<compile_context>
chip_gen: v5e
topology: v5e:2x2
jax: 0.10.0
libtpu: 0.0.40
codegen_flags: <defaults>
</compile_context>

<pallas_src>
import functools

import jax
import jax.numpy as jnp
from jax.experimental import pallas as pl
from jax.experimental.pallas import tpu as pltpu

# (in, out) feature sizes of the 10 rep_learner Linear layers + regressor.
LAYER_DIMS = (
    (38, 152), (152, 304), (304, 304), (304, 304), (304, 608),
    (608, 608), (608, 304), (304, 304), (304, 152), (152, 76),
    (76, 1),  # regressor
)
REP_DIMS = LAYER_DIMS[:-1]
NUM_REP = len(REP_DIMS)          # 10
NUM_LAYERS = len(LAYER_DIMS)     # 11
IN_DIM = LAYER_DIMS[0][0]        # 38


def _round_up(n, m):
    return ((n + m - 1) // m) * m


# Lane-padded (multiple-of-128) output widths of the rep layers.
PAD_OUT = tuple(_round_up(o, 128) for _, o in REP_DIMS)   # 256,384,...,640,...,128
PAD_IN = (IN_DIM,) + PAD_OUT[:-1]
PACK_W = max(PAD_OUT)            # 640, lane-aligned slab width
ROW_REG_W = NUM_REP              # slab row holding the regressor weight row
ROW_REG_B = NUM_REP + 1          # slab row holding the regressor bias
PACK_ROWS = NUM_REP + 2          # 12

MAX_TM = 1024  # v6e/v7x sweet spot; on v5e pass tm=512 explicitly if desired.


def _choose_tile(batch, max_tm=MAX_TM):
    """Pick (padded_batch, tm): tm multiple of 128 (or the whole tiny batch),
    capped at max_tm, and >=2 grid steps when the batch allows it (v7x)."""
    padded = _round_up(batch, 8)            # sublane-align
    if padded <= 256:
        return padded, padded               # single step covering everything
    tm = min(max_tm, max(128, ((padded // 2) // 128) * 128))
    padded = pl.cdiv(padded, tm) * tm
    return padded, tm


def _mlp_kernel(x_ref, *refs, compute_dtype):
    """refs = (w0..w9 [lane-padded], bias_pack_ref, out_ref)."""
    out_ref = refs[-1]
    pack_ref = refs[-2]
    w_refs = refs[:-2]

    # In-kernel narrow cast of the input tile (no wrapper-side prepass over x).
    h = x_ref[...].astype(compute_dtype)                        # (tm, 38)
    for li in range(NUM_REP):
        w = w_refs[li][...]                                     # (in_pad, out_pad)
        b = pack_ref[li:li + 1, :PAD_OUT[li]]                   # (1, out_pad) f32
        acc = jnp.dot(h, w, preferred_element_type=jnp.float32) + b
        # ReLU after the narrow cast: max(round(x), 0) == round(max(x, 0)),
        # and bf16 ReLU halves VALU/vreg traffic on v6e/v7x.
        h = jnp.maximum(acc.astype(compute_dtype), 0)
        # TODO(synk): nn.Dropout(p=DO) skipped (eval-mode identity); a training
        # variant would use pltpu.prng_seed + pltpu.prng_random_bits here.

    # Regressor (76 -> 1) as VPU multiply + XLU lane reduction: an N=1 MXU pass
    # would burn a full set of MXU pushes for ~0.003% of the useful FLOPs.
    w_reg = pack_ref[ROW_REG_W:ROW_REG_W + 1, :PAD_OUT[-1]]     # (1, 128) f32
    b_reg = pack_ref[ROW_REG_B:ROW_REG_B + 1, 0:1]              # (1, 1)  f32
    y = jnp.sum(h.astype(jnp.float32) * w_reg, axis=-1, keepdims=True) + b_reg
    # NOTE: the 1-lane output store is a handful of masked vsts per step;
    # lane-padding the output would trade that for 128x more HBM writeback.
    out_ref[...] = y.astype(out_ref.dtype)


def mlp_reg4_forward(x, params, *, tm=None, compute_dtype=jnp.bfloat16):
    """x: (batch, 38) f32.  params: 11 (W (in, out), b (out,)) pairs."""
    batch, in_dim = x.shape
    assert in_dim == IN_DIM, (in_dim, IN_DIM)

    if tm is None:
        padded, tm = _choose_tile(batch)
    else:
        padded = pl.cdiv(batch, tm) * tm
    if padded != batch:
        x = jnp.pad(x, ((0, padded - batch), (0, 0)))
    grid = (padded // tm,)

    # One-time wrapper-level weight prep: cast + zero-pad each rep-layer weight
    # to lane-aligned (in_pad, out_pad).  Zero cols + zero bias => padded
    # activation lanes are exactly 0 after ReLU.
    weights = []
    for li, (w, _) in enumerate(params[:-1]):
        wpad = jnp.zeros((PAD_IN[li], PAD_OUT[li]), compute_dtype)
        wpad = wpad.at[: w.shape[0], : w.shape[1]].set(w.astype(compute_dtype))
        weights.append(wpad)

    # One packed f32 slab: rows 0..9 rep-layer biases, row 10 regressor weight
    # row, row 11 regressor bias (1 DMA / 1 padded allocation instead of 12).
    bias_pack = jnp.zeros((PACK_ROWS, PACK_W), jnp.float32)
    for li, (_, b) in enumerate(params[:-1]):
        bias_pack = bias_pack.at[li, : b.shape[0]].set(
            b.reshape(-1).astype(jnp.float32))
    w_reg, b_reg = params[-1]
    bias_pack = bias_pack.at[ROW_REG_W, : w_reg.shape[0]].set(
        w_reg.reshape(-1).astype(jnp.float32))
    bias_pack = bias_pack.at[ROW_REG_B, 0].set(
        b_reg.reshape(()).astype(jnp.float32))

    x_spec = pl.BlockSpec((tm, in_dim), lambda i: (i, 0))
    # Constant index_maps -> params DMA'd once, VMEM-resident across the grid.
    w_specs = [pl.BlockSpec(w.shape, lambda i: (0, 0)) for w in weights]
    pack_spec = pl.BlockSpec(bias_pack.shape, lambda i: (0, 0))
    out_spec = pl.BlockSpec((tm, 1), lambda i: (i, 0))

    param_bytes = sum(w.size * w.dtype.itemsize for w in weights) + bias_pack.nbytes
    flops = 2 * padded * sum(fi * fo for fi, fo in LAYER_DIMS)
    cost = pl.CostEstimate(
        flops=flops,
        transcendentals=0,
        bytes_accessed=padded * in_dim * 4 + param_bytes + padded * 4,
    )

    out = pl.pallas_call(
        functools.partial(_mlp_kernel, compute_dtype=compute_dtype),
        out_shape=jax.ShapeDtypeStruct((padded, 1), jnp.float32),
        grid=grid,
        in_specs=[x_spec, *w_specs, pack_spec],
        out_specs=out_spec,
        compiler_params=pltpu.CompilerParams(
            dimension_semantics=("parallel",)),  # v7x: shard batch over 2 TCs
        cost_estimate=cost,
    )(x, *weights, bias_pack)
    return out[:batch]


def init_params(key):
    """PyTorch-style init: U(-1/sqrt(fan_in), 1/sqrt(fan_in)) for W and b."""
    params = []
    for fan_in, fan_out in LAYER_DIMS:
        key, kw, kb = jax.random.split(key, 3)
        bound = 1.0 / (fan_in ** 0.5)
        w = jax.random.uniform(kw, (fan_in, fan_out), jnp.float32, -bound, bound)
        b = jax.random.uniform(kb, (fan_out,), jnp.float32, -bound, bound)
        params.append((w, b))
    return params


def reference_forward(x, params, compute_dtype=jnp.float32):
    """Pure-JAX reference mirroring the kernel's dtype path."""
    h = x.astype(compute_dtype)
    for w, b in params[:-1]:
        acc = jnp.dot(h, w.astype(compute_dtype),
                      preferred_element_type=jnp.float32) + b.astype(jnp.float32)
        h = jnp.maximum(acc.astype(compute_dtype), 0)
    w, b = params[-1]
    return (jnp.dot(h.astype(jnp.float32), w.astype(jnp.float32))
            + b.astype(jnp.float32))


if __name__ == "__main__":
    key = jax.random.PRNGKey(0)
    key, kx = jax.random.split(key)
    batch = 300  # not a tile multiple: exercises batch padding and a grid > 1
    x = jax.random.normal(kx, (batch, IN_DIM), jnp.float32)
    params = init_params(key)

    # 1) f32 path: must match the plain f32 reference tightly.
    out_f32 = jax.block_until_ready(
        mlp_reg4_forward(x, params, compute_dtype=jnp.float32))
    ref_f32 = reference_forward(x, params, compute_dtype=jnp.float32)
    assert out_f32.shape == (batch, 1), out_f32.shape
    assert jnp.allclose(out_f32, ref_f32, atol=1e-4, rtol=1e-4), (
        float(jnp.max(jnp.abs(out_f32 - ref_f32))))

    # 2) Default bf16-in / f32-accumulate path against a bf16-quantized
    #    reference (generous tolerance: 10-layer bf16 chain).
    out_bf16 = jax.block_until_ready(mlp_reg4_forward(x, params))
    ref_bf16 = reference_forward(x, params, compute_dtype=jnp.bfloat16)
    assert out_bf16.shape == (batch, 1), out_bf16.shape
    assert jnp.allclose(out_bf16, ref_bf16, atol=2e-2, rtol=2e-2), (
        float(jnp.max(jnp.abs(out_bf16 - ref_bf16))))

    print("KERNEL_OK")
</pallas_src>

<mosaic_0001>
module attributes {stable_mosaic.version = 11 : i64} {
  func.func @_mlp_kernel(%arg0: i32, %arg1: memref<128x38xf32, #tpu.memory_space<vmem>>, %arg2: memref<38x256xf32, #tpu.memory_space<vmem>>, %arg3: memref<256x384xf32, #tpu.memory_space<vmem>>, %arg4: memref<384x384xf32, #tpu.memory_space<vmem>>, %arg5: memref<384x384xf32, #tpu.memory_space<vmem>>, %arg6: memref<384x640xf32, #tpu.memory_space<vmem>>, %arg7: memref<640x640xf32, #tpu.memory_space<vmem>>, %arg8: memref<640x384xf32, #tpu.memory_space<vmem>>, %arg9: memref<384x384xf32, #tpu.memory_space<vmem>>, %arg10: memref<384x256xf32, #tpu.memory_space<vmem>>, %arg11: memref<256x128xf32, #tpu.memory_space<vmem>>, %arg12: memref<12x640xf32, #tpu.memory_space<vmem>>, %arg13: memref<128x1xf32, #tpu.memory_space<vmem>>) attributes {dimension_semantics = [#tpu.dimension_semantics<parallel>], iteration_bounds = array<i64: 3>, scalar_prefetch = 0 : i64, scratch_operands = 0 : i64, tpu.core_type = #tpu.core_type<tc>, window_params = [{transform_indices = @transform_0, window_bounds = array<i64: 128, 38>}, {pipeline_mode = #tpu.pipeline_mode<synchronous>, transform_indices = @transform_1, window_bounds = array<i64: 38, 256>}, {pipeline_mode = #tpu.pipeline_mode<synchronous>, transform_indices = @transform_2, window_bounds = array<i64: 256, 384>}, {pipeline_mode = #tpu.pipeline_mode<synchronous>, transform_indices = @transform_3, window_bounds = array<i64: 384, 384>}, {pipeline_mode = #tpu.pipeline_mode<synchronous>, transform_indices = @transform_4, window_bounds = array<i64: 384, 384>}, {pipeline_mode = #tpu.pipeline_mode<synchronous>, transform_indices = @transform_5, window_bounds = array<i64: 384, 640>}, {pipeline_mode = #tpu.pipeline_mode<synchronous>, transform_indices = @transform_6, window_bounds = array<i64: 640, 640>}, {pipeline_mode = #tpu.pipeline_mode<synchronous>, transform_indices = @transform_7, window_bounds = array<i64: 640, 384>}, {pipeline_mode = #tpu.pipeline_mode<synchronous>, transform_indices = @transform_8, window_bounds = array<i64: 384, 384>}, {pipeline_mode = #tpu.pipeline_mode<synchronous>, transform_indices = @transform_9, window_bounds = array<i64: 384, 256>}, {pipeline_mode = #tpu.pipeline_mode<synchronous>, transform_indices = @transform_10, window_bounds = array<i64: 256, 128>}, {pipeline_mode = #tpu.pipeline_mode<synchronous>, transform_indices = @transform_11, window_bounds = array<i64: 12, 640>}, {transform_indices = @transform_12, window_bounds = array<i64: 128, 1>}]} {
    %c0 = arith.constant 0 : index
    %c0_0 = arith.constant 0 : index
    %0 = vector.load %arg1[%c0, %c0_0] : memref<128x38xf32, #tpu.memory_space<vmem>>, vector<128x38xf32>
    %c0_1 = arith.constant 0 : index
    %c0_2 = arith.constant 0 : index
    %1 = vector.load %arg2[%c0_1, %c0_2] : memref<38x256xf32, #tpu.memory_space<vmem>>, vector<38x256xf32>
    %c0_3 = arith.constant 0 : index
    %c0_4 = arith.constant 0 : index
    %2 = vector.load %arg12[%c0_3, %c0_4] : memref<12x640xf32, #tpu.memory_space<vmem>>, vector<1x256xf32>
    %cst = arith.constant dense<0.000000e+00> : vector<128x256xf32>
    %3 = tpu.matmul %0, %1, %cst {dimension_numbers = #tpu.dot_dimension_numbers<[1], [0], [0], [1], [0, 0, 1, 1], [], []>} : vector<128x38xf32>, vector<38x256xf32>, vector<128x256xf32> -> vector<128x256xf32>
    %4 = vector.broadcast %2 : vector<1x256xf32> to vector<128x256xf32>
    %5 = arith.addf %3, %4 : vector<128x256xf32>
    %cst_5 = arith.constant 0.000000e+00 : f32
    %6 = vector.broadcast %cst_5 : f32 to vector<128x256xf32>
    %7 = arith.maximumf %5, %6 : vector<128x256xf32>
    %c0_6 = arith.constant 0 : index
    %c0_7 = arith.constant 0 : index
    %8 = vector.load %arg3[%c0_6, %c0_7] : memref<256x384xf32, #tpu.memory_space<vmem>>, vector<256x384xf32>
    %c1 = arith.constant 1 : index
    %c0_8 = arith.constant 0 : index
    %9 = vector.load %arg12[%c1, %c0_8] : memref<12x640xf32, #tpu.memory_space<vmem>>, vector<1x384xf32>
    %cst_9 = arith.constant dense<0.000000e+00> : vector<128x384xf32>
    %10 = tpu.matmul %7, %8, %cst_9 {dimension_numbers = #tpu.dot_dimension_numbers<[1], [0], [0], [1], [0, 0, 1, 1], [], []>} : vector<128x256xf32>, vector<256x384xf32>, vector<128x384xf32> -> vector<128x384xf32>
    %11 = vector.broadcast %9 : vector<1x384xf32> to vector<128x384xf32>
    %12 = arith.addf %10, %11 : vector<128x384xf32>
    %cst_10 = arith.constant 0.000000e+00 : f32
    %13 = vector.broadcast %cst_10 : f32 to vector<128x384xf32>
    %14 = arith.maximumf %12, %13 : vector<128x384xf32>
    %c0_11 = arith.constant 0 : index
    %c0_12 = arith.constant 0 : index
    %15 = vector.load %arg4[%c0_11, %c0_12] : memref<384x384xf32, #tpu.memory_space<vmem>>, vector<384x384xf32>
    %c2 = arith.constant 2 : index
    %c0_13 = arith.constant 0 : index
    %16 = vector.load %arg12[%c2, %c0_13] : memref<12x640xf32, #tpu.memory_space<vmem>>, vector<1x384xf32>
    %cst_14 = arith.constant dense<0.000000e+00> : vector<128x384xf32>
    %17 = tpu.matmul %14, %15, %cst_14 {dimension_numbers = #tpu.dot_dimension_numbers<[1], [0], [0], [1], [0, 0, 1, 1], [], []>} : vector<128x384xf32>, vector<384x384xf32>, vector<128x384xf32> -> vector<128x384xf32>
    %18 = vector.broadcast %16 : vector<1x384xf32> to vector<128x384xf32>
    %19 = arith.addf %17, %18 : vector<128x384xf32>
    %cst_15 = arith.constant 0.000000e+00 : f32
    %20 = vector.broadcast %cst_15 : f32 to vector<128x384xf32>
    %21 = arith.maximumf %19, %20 : vector<128x384xf32>
    %c0_16 = arith.constant 0 : index
    %c0_17 = arith.constant 0 : index
    %22 = vector.load %arg5[%c0_16, %c0_17] : memref<384x384xf32, #tpu.memory_space<vmem>>, vector<384x384xf32>
    %c3 = arith.constant 3 : index
    %c0_18 = arith.constant 0 : index
    %23 = vector.load %arg12[%c3, %c0_18] : memref<12x640xf32, #tpu.memory_space<vmem>>, vector<1x384xf32>
    %cst_19 = arith.constant dense<0.000000e+00> : vector<128x384xf32>
    %24 = tpu.matmul %21, %22, %cst_19 {dimension_numbers = #tpu.dot_dimension_numbers<[1], [0], [0], [1], [0, 0, 1, 1], [], []>} : vector<128x384xf32>, vector<384x384xf32>, vector<128x384xf32> -> vector<128x384xf32>
    %25 = vector.broadcast %23 : vector<1x384xf32> to vector<128x384xf32>
    %26 = arith.addf %24, %25 : vector<128x384xf32>
    %cst_20 = arith.constant 0.000000e+00 : f32
    %27 = vector.broadcast %cst_20 : f32 to vector<128x384xf32>
    %28 = arith.maximumf %26, %27 : vector<128x384xf32>
    %c0_21 = arith.constant 0 : index
    %c0_22 = arith.constant 0 : index
    %29 = vector.load %arg6[%c0_21, %c0_22] : memref<384x640xf32, #tpu.memory_space<vmem>>, vector<384x640xf32>
    %c4 = arith.constant 4 : index
    %c0_23 = arith.constant 0 : index
    %30 = vector.load %arg12[%c4, %c0_23] : memref<12x640xf32, #tpu.memory_space<vmem>>, vector<1x640xf32>
    %cst_24 = arith.constant dense<0.000000e+00> : vector<128x640xf32>
    %31 = tpu.matmul %28, %29, %cst_24 {dimension_numbers = #tpu.dot_dimension_numbers<[1], [0], [0], [1], [0, 0, 1, 1], [], []>} : vector<128x384xf32>, vector<384x640xf32>, vector<128x640xf32> -> vector<128x640xf32>
    %32 = vector.broadcast %30 : vector<1x640xf32> to vector<128x640xf32>
    %33 = arith.addf %31, %32 : vector<128x640xf32>
    %cst_25 = arith.constant 0.000000e+00 : f32
    %34 = vector.broadcast %cst_25 : f32 to vector<128x640xf32>
    %35 = arith.maximumf %33, %34 : vector<128x640xf32>
    %c0_26 = arith.constant 0 : index
    %c0_27 = arith.constant 0 : index
    %36 = vector.load %arg7[%c0_26, %c0_27] : memref<640x640xf32, #tpu.memory_space<vmem>>, vector<640x640xf32>
    %c5 = arith.constant 5 : index
    %c0_28 = arith.constant 0 : index
    %37 = vector.load %arg12[%c5, %c0_28] : memref<12x640xf32, #tpu.memory_space<vmem>>, vector<1x640xf32>
    %cst_29 = arith.constant dense<0.000000e+00> : vector<128x640xf32>
    %38 = tpu.matmul %35, %36, %cst_29 {dimension_numbers = #tpu.dot_dimension_numbers<[1], [0], [0], [1], [0, 0, 1, 1], [], []>} : vector<128x640xf32>, vector<640x640xf32>, vector<128x640xf32> -> vector<128x640xf32>
    %39 = vector.broadcast %37 : vector<1x640xf32> to vector<128x640xf32>
    %40 = arith.addf %38, %39 : vector<128x640xf32>
    %cst_30 = arith.constant 0.000000e+00 : f32
    %41 = vector.broadcast %cst_30 : f32 to vector<128x640xf32>
    %42 = arith.maximumf %40, %41 : vector<128x640xf32>
    %c0_31 = arith.constant 0 : index
    %c0_32 = arith.constant 0 : index
    %43 = vector.load %arg8[%c0_31, %c0_32] : memref<640x384xf32, #tpu.memory_space<vmem>>, vector<640x384xf32>
    %c6 = arith.constant 6 : index
    %c0_33 = arith.constant 0 : index
    %44 = vector.load %arg12[%c6, %c0_33] : memref<12x640xf32, #tpu.memory_space<vmem>>, vector<1x384xf32>
    %cst_34 = arith.constant dense<0.000000e+00> : vector<128x384xf32>
    %45 = tpu.matmul %42, %43, %cst_34 {dimension_numbers = #tpu.dot_dimension_numbers<[1], [0], [0], [1], [0, 0, 1, 1], [], []>} : vector<128x640xf32>, vector<640x384xf32>, vector<128x384xf32> -> vector<128x384xf32>
    %46 = vector.broadcast %44 : vector<1x384xf32> to vector<128x384xf32>
    %47 = arith.addf %45, %46 : vector<128x384xf32>
    %cst_35 = arith.constant 0.000000e+00 : f32
    %48 = vector.broadcast %cst_35 : f32 to vector<128x384xf32>
    %49 = arith.maximumf %47, %48 : vector<128x384xf32>
    %c0_36 = arith.constant 0 : index
    %c0_37 = arith.constant 0 : index
    %50 = vector.load %arg9[%c0_36, %c0_37] : memref<384x384xf32, #tpu.memory_space<vmem>>, vector<384x384xf32>
    %c7 = arith.constant 7 : index
    %c0_38 = arith.constant 0 : index
    %51 = vector.load %arg12[%c7, %c0_38] : memref<12x640xf32, #tpu.memory_space<vmem>>, vector<1x384xf32>
    %cst_39 = arith.constant dense<0.000000e+00> : vector<128x384xf32>
    %52 = tpu.matmul %49, %50, %cst_39 {dimension_numbers = #tpu.dot_dimension_numbers<[1], [0], [0], [1], [0, 0, 1, 1], [], []>} : vector<128x384xf32>, vector<384x384xf32>, vector<128x384xf32> -> vector<128x384xf32>
    %53 = vector.broadcast %51 : vector<1x384xf32> to vector<128x384xf32>
    %54 = arith.addf %52, %53 : vector<128x384xf32>
    %cst_40 = arith.constant 0.000000e+00 : f32
    %55 = vector.broadcast %cst_40 : f32 to vector<128x384xf32>
    %56 = arith.maximumf %54, %55 : vector<128x384xf32>
    %c0_41 = arith.constant 0 : index
    %c0_42 = arith.constant 0 : index
    %57 = vector.load %arg10[%c0_41, %c0_42] : memref<384x256xf32, #tpu.memory_space<vmem>>, vector<384x256xf32>
    %c8 = arith.constant 8 : index
    %c0_43 = arith.constant 0 : index
    %58 = vector.load %arg12[%c8, %c0_43] : memref<12x640xf32, #tpu.memory_space<vmem>>, vector<1x256xf32>
    %cst_44 = arith.constant dense<0.000000e+00> : vector<128x256xf32>
    %59 = tpu.matmul %56, %57, %cst_44 {dimension_numbers = #tpu.dot_dimension_numbers<[1], [0], [0], [1], [0, 0, 1, 1], [], []>} : vector<128x384xf32>, vector<384x256xf32>, vector<128x256xf32> -> vector<128x256xf32>
    %60 = vector.broadcast %58 : vector<1x256xf32> to vector<128x256xf32>
    %61 = arith.addf %59, %60 : vector<128x256xf32>
    %cst_45 = arith.constant 0.000000e+00 : f32
    %62 = vector.broadcast %cst_45 : f32 to vector<128x256xf32>
    %63 = arith.maximumf %61, %62 : vector<128x256xf32>
    %c0_46 = arith.constant 0 : index
    %c0_47 = arith.constant 0 : index
    %64 = vector.load %arg11[%c0_46, %c0_47] : memref<256x128xf32, #tpu.memory_space<vmem>>, vector<256x128xf32>
    %c9 = arith.constant 9 : index
    %c0_48 = arith.constant 0 : index
    %65 = vector.load %arg12[%c9, %c0_48] : memref<12x640xf32, #tpu.memory_space<vmem>>, vector<1x128xf32>
    %cst_49 = arith.constant dense<0.000000e+00> : vector<128x128xf32>
    %66 = tpu.matmul %63, %64, %cst_49 {dimension_numbers = #tpu.dot_dimension_numbers<[1], [0], [0], [1], [0, 0, 1, 1], [], []>} : vector<128x256xf32>, vector<256x128xf32>, vector<128x128xf32> -> vector<128x128xf32>
    %67 = vector.broadcast %65 : vector<1x128xf32> to vector<128x128xf32>
    %68 = arith.addf %66, %67 : vector<128x128xf32>
    %cst_50 = arith.constant 0.000000e+00 : f32
    %69 = vector.broadcast %cst_50 : f32 to vector<128x128xf32>
    %70 = arith.maximumf %68, %69 : vector<128x128xf32>
    %c10 = arith.constant 10 : index
    %c0_51 = arith.constant 0 : index
    %71 = vector.load %arg12[%c10, %c0_51] : memref<12x640xf32, #tpu.memory_space<vmem>>, vector<1x128xf32>
    %c11 = arith.constant 11 : index
    %c0_52 = arith.constant 0 : index
    %72 = vector.load %arg12[%c11, %c0_52] : memref<12x640xf32, #tpu.memory_space<vmem>>, vector<1x1xf32>
    %73 = vector.broadcast %71 : vector<1x128xf32> to vector<128x128xf32>
    %74 = arith.mulf %70, %73 : vector<128x128xf32>
    %cst_53 = arith.constant dense<0.000000e+00> : vector<128xf32>
    %75 = vector.multi_reduction <add>, %74, %cst_53 [1] : vector<128x128xf32> to vector<128xf32>
    %76 = vector.shape_cast %75 : vector<128xf32> to vector<128x1xf32>
    %77 = vector.broadcast %72 : vector<1x1xf32> to vector<128x1xf32>
    %78 = arith.addf %76, %77 : vector<128x1xf32>
    %c0_54 = arith.constant 0 : index
    %c0_55 = arith.constant 0 : index
    %79 = vector.load %arg13[%c0_54, %c0_55] : memref<128x1xf32, #tpu.memory_space<vmem>>, vector<128x1xf32>
    tpu.vector_store %arg13[%c0_54, %c0_55], %78 {strides = array<i32>} : memref<128x1xf32, #tpu.memory_space<vmem>>, vector<128x1xf32>,
    return
  }
  func.func @transform_0(%arg0: i32) -> (i32, i32) {
    %c0_i32 = arith.constant 0 : i32
    %c0_i32_0 = arith.constant 0 : i32
    return %arg0, %c0_i32 : i32, i32
  }
  func.func @transform_1(%arg0: i32) -> (i32, i32) {
    %c0_i32 = arith.constant 0 : i32
    %c0_i32_0 = arith.constant 0 : i32
    %c0_i32_1 = arith.constant 0 : i32
    return %c0_i32, %c0_i32_0 : i32, i32
  }
  func.func @transform_2(%arg0: i32) -> (i32, i32) {
    %c0_i32 = arith.constant 0 : i32
    %c0_i32_0 = arith.constant 0 : i32
    %c0_i32_1 = arith.constant 0 : i32
    return %c0_i32, %c0_i32_0 : i32, i32
  }
  func.func @transform_3(%arg0: i32) -> (i32, i32) {
    %c0_i32 = arith.constant 0 : i32
    %c0_i32_0 = arith.constant 0 : i32
    %c0_i32_1 = arith.constant 0 : i32
    return %c0_i32, %c0_i32_0 : i32, i32
  }
  func.func @transform_4(%arg0: i32) -> (i32, i32) {
    %c0_i32 = arith.constant 0 : i32
    %c0_i32_0 = arith.constant 0 : i32
    %c0_i32_1 = arith.constant 0 : i32
    return %c0_i32, %c0_i32_0 : i32, i32
  }
  func.func @transform_5(%arg0: i32) -> (i32, i32) {
    %c0_i32 = arith.constant 0 : i32
    %c0_i32_0 = arith.constant 0 : i32
    %c0_i32_1 = arith.constant 0 : i32
    return %c0_i32, %c0_i32_0 : i32, i32
  }
  func.func @transform_6(%arg0: i32) -> (i32, i32) {
    %c0_i32 = arith.constant 0 : i32
    %c0_i32_0 = arith.constant 0 : i32
    %c0_i32_1 = arith.constant 0 : i32
    return %c0_i32, %c0_i32_0 : i32, i32
  }
  func.func @transform_7(%arg0: i32) -> (i32, i32) {
    %c0_i32 = arith.constant 0 : i32
    %c0_i32_0 = arith.constant 0 : i32
    %c0_i32_1 = arith.constant 0 : i32
    return %c0_i32, %c0_i32_0 : i32, i32
  }
  func.func @transform_8(%arg0: i32) -> (i32, i32) {
    %c0_i32 = arith.constant 0 : i32
    %c0_i32_0 = arith.constant 0 : i32
    %c0_i32_1 = arith.constant 0 : i32
    return %c0_i32, %c0_i32_0 : i32, i32
  }
  func.func @transform_9(%arg0: i32) -> (i32, i32) {
    %c0_i32 = arith.constant 0 : i32
    %c0_i32_0 = arith.constant 0 : i32
    %c0_i32_1 = arith.constant 0 : i32
    return %c0_i32, %c0_i32_0 : i32, i32
  }
  func.func @transform_10(%arg0: i32) -> (i32, i32) {
    %c0_i32 = arith.constant 0 : i32
    %c0_i32_0 = arith.constant 0 : i32
    %c0_i32_1 = arith.constant 0 : i32
    return %c0_i32, %c0_i32_0 : i32, i32
  }
  func.func @transform_11(%arg0: i32) -> (i32, i32) {
    %c0_i32 = arith.constant 0 : i32
    %c0_i32_0 = arith.constant 0 : i32
    %c0_i32_1 = arith.constant 0 : i32
    return %c0_i32, %c0_i32_0 : i32, i32
  }
  func.func @transform_12(%arg0: i32) -> (i32, i32) {
    %c0_i32 = arith.constant 0 : i32
    %c0_i32_0 = arith.constant 0 : i32
    return %arg0, %c0_i32 : i32, i32
  }
}

</mosaic_0001>

<llo_original>
// kernel: tpu_custom_call.1
$region0: #{tpu_custom_call.1}
  #allocation0 [shape = 'u32[]', space=smem, size = 0x4, offset = 0x4, fixed_abs, tag = 'smem constant byte address 0x4 - core index']
  #allocation1 [shape = 'u32[72,128]{1,0:T(1,128)}', space=vmem, size = 0x9000, scoped, tag = 'internal scratch']
  %s0 = inlined_call_operand.vmem [shape: f32[384,38], index: 0, kind: input, shape index: {}]
  %s1 = inlined_call_operand.hbm [shape: f32[38,256], index: 1, kind: input, shape index: {}]
  %s2 = inlined_call_operand.hbm [shape: f32[256,384], index: 2, kind: input, shape index: {}]
  %s3 = inlined_call_operand.hbm [shape: f32[384,384], index: 3, kind: input, shape index: {}]
  %s4 = inlined_call_operand.hbm [shape: f32[384,384], index: 4, kind: input, shape index: {}]
  %s5 = inlined_call_operand.hbm [shape: f32[384,640], index: 5, kind: input, shape index: {}]
  %s6 = inlined_call_operand.hbm [shape: f32[640,640], index: 6, kind: input, shape index: {}]
  %s7 = inlined_call_operand.hbm [shape: f32[640,384], index: 7, kind: input, shape index: {}]
  %s8 = inlined_call_operand.hbm [shape: f32[384,384], index: 8, kind: input, shape index: {}]
  %s9 = inlined_call_operand.hbm [shape: f32[384,256], index: 9, kind: input, shape index: {}]
  %s10 = inlined_call_operand.hbm [shape: f32[256,128], index: 10, kind: input, shape index: {}]
  %s11 = inlined_call_operand.hbm [shape: f32[12,640], index: 11, kind: input, shape index: {}]
  %s12 = inlined_call_operand.vmem [shape: f32[384,1], index: 12, kind: output, shape index: {}]
  %s13 = sld [smem:[#allocation0]]
  $region125: #{tpu_custom_call.1} parent=0
    _
  %s15 = ssub.s32 1, %s13
  %s16 = scalar_select 0, %s15, %s13
  $region1: #{tpu_custom_call.1} parent=0
    #allocation2 [shape = 'u8[40960]{0}', space=vmem, size = 0xa000, scoped, tag = 'input window, operand 1, single buffered']
    #allocation3 [shape = 's32[2]{0}', space=sflag, size = 0x8, scoped, tag = 'scoped memory for tpu_custom_call.1']
    #allocation4 [shape = 'u8[393216]{0}', space=vmem, size = 0x60000, scoped, tag = 'input window, operand 2, single buffered']
    #allocation5 [shape = 's32[1]{0}', space=sflag, size = 0x4, scoped, tag = 'scoped memory for tpu_custom_call.1']
    #allocation6 [shape = 'u8[589824]{0}', space=vmem, size = 0x90000, scoped, tag = 'input window, operand 3, single buffered']
    #allocation7 [shape = 'u8[589824]{0}', space=vmem, size = 0x90000, scoped, tag = 'input window, operand 4, single buffered']
    #allocation8 [shape = 's32[1]{0}', space=sflag, size = 0x4, scoped, tag = 'scoped memory for tpu_custom_call.1']
    #allocation9 [shape = 'u8[983040]{0}', space=vmem, size = 0xf0000, scoped, tag = 'input window, operand 5, single buffered']
    #allocation10 [shape = 'u8[1638400]{0}', space=vmem, size = 0x190000, scoped, tag = 'input window, operand 6, single buffered']
    #allocation11 [shape = 's32[1]{0}', space=sflag, size = 0x4, scoped, tag = 'scoped memory for tpu_custom_call.1']
    #allocation12 [shape = 'u8[983040]{0}', space=vmem, size = 0xf0000, scoped, tag = 'input window, operand 7, single buffered']
    #allocation13 [shape = 'u8[589824]{0}', space=vmem, size = 0x90000, scoped, tag = 'input window, operand 8, single buffered']
    #allocation14 [shape = 's32[1]{0}', space=sflag, size = 0x4, scoped, tag = 'scoped memory for tpu_custom_call.1']
    #allocation15 [shape = 'u8[393216]{0}', space=vmem, size = 0x60000, scoped, tag = 'input window, operand 9, single buffered']
    #allocation16 [shape = 'u8[131072]{0}', space=vmem, size = 0x20000, scoped, tag = 'input window, operand 10, single buffered']
    #allocation17 [shape = 's32[1]{0}', space=sflag, size = 0x4, scoped, tag = 'scoped memory for tpu_custom_call.1']
    #allocation18 [shape = 'u8[40960]{0}', space=vmem, size = 0xa000, scoped, tag = 'input window, operand 11, single buffered']
    %17 = vsyncpa [#allocation3], 0
    %18 = vsyncpa [#allocation5], 0
    %19 = vsyncpa [#allocation8], 0
    %20 = vsyncpa [#allocation11], 0
    %21 = vsyncpa [#allocation14], 0
    %22 = vsyncpa [#allocation17], 0
    loop: start=0, step=1, limit=5
    $region2: #{tpu_custom_call.1} parent=1 // loop_pre_header
      _
    $region3: #{tpu_custom_call.1} parent=1 // loop_header
      %s24 = sphi 0, %s28
      %p25 = scmp.ge.s32.totalorder %s24, 5
      %s34 = sphi 0, %s36
      %s37 = sphi 0, %s34
      %s38 = sphi 0, %s37
      %s54 = sphi 0, %s38
      %s58 = sphi 0, %s58
      %s60 = sphi 0, %s58
      %s61 = sphi 0, %s60
      %s75 = sphi 0, %s61
      %s79 = sphi 0, %s79
      %s81 = sphi 0, %s79
      %s82 = sphi 0, %s81
      %s96 = sphi 0, %s82
      %s100 = sphi 0, %s100
      %s102 = sphi 0, %s100
      %s103 = sphi 0, %s102
      %s117 = sphi 0, %s103
      %s121 = sphi 0, %s121
      %s123 = sphi 0, %s121
      %s124 = sphi 0, %s123
      %s138 = sphi 0, %s124
      %s142 = sphi 0, %s142
      %s144 = sphi 0, %s142
      %s145 = sphi 0, %s144
      %s159 = sphi 0, %s145
      %s163 = sphi 0, %s163
      %s165 = sphi 0, %s163
      %s166 = sphi 0, %s165
      %s180 = sphi 0, %s166
      %s184 = sphi 0, %s184
      %s186 = sphi 0, %s184
      %s187 = sphi 0, %s186
      %s201 = sphi 0, %s187
      %s205 = sphi 0, %s205
      %s207 = sphi 0, %s205
      %s208 = sphi 0, %s207
      %s222 = sphi 0, %s208
      %s226 = sphi 0, %s226
      %s228 = sphi 0, %s226
      %s229 = sphi 0, %s228
      %s243 = sphi 0, %s229
      %s247 = sphi 0, %s247
      %s249 = sphi 0, %s247
      %s250 = sphi 0, %s249
      %s264 = sphi 0, %s250
      %s268 = sphi 0, %s268
      %s270 = sphi 0, %s268
      %s271 = sphi 0, %s270
      %s285 = sphi 0, %s271
      %s291 = sphi 0, %s293
      %s294 = sphi 0, %s291
      %s295 = sphi 0, %s294
      %s311 = sphi 0, %s295
    $region4: #{tpu_custom_call.1} parent=1 // loop_header_branch
      %27 = sbr.rel (%p25) target = $region8
    $region5: #{tpu_custom_call.1} parent=1 // loop_body
      %s29 = ssub.s32 %s24, 1
      %s30 = ssub.s32 %s24, 2
      %s31 = sadd.s32 %s24, 1
      %s32 = ssub.s32 %s24, %s31
      %p33 = scmp.eq.s32.totalorder %s32, 0
      %s35 = sadd.s32 %s34, 1
      %s36 = scalar_select %p33, %s34, %s35
      %p39 = pneg %p33
      %p40 = scmp.eq.s32.totalorder %s24, 2
      %p41 = por %p39, %p40
      %p42 = scmp.ne.s32.totalorder %s34, %s37
      %p43 = scmp.eq.s32.totalorder %s24, 0
      %p44 = por %p42, %p43
      %p45 = scmp.ne.s32.totalorder %s34, %s37
      %p46 = scmp.eq.s32.totalorder %s29, 2
      %p47 = por %p45, %p46
      %p48 = scmp.ne.s32.totalorder %s37, %s38
      %p49 = scmp.eq.s32.totalorder %s29, 0
      %p50 = por %p48, %p49
      %p51 = scmp.ne.s32.totalorder %s37, %s38
      %p52 = scmp.eq.s32.totalorder %s30, 2
      %p53 = por %p51, %p52
      %p55 = scmp.ne.s32.totalorder %s38, %s54
      %p56 = scmp.eq.s32.totalorder %s30, 0
      %p57 = por %p55, %p56
      %s59 = sadd.s32 %s58, 1
      %p62 = scmp.eq.s32.totalorder %s24, 2
      %p63 = scmp.ne.s32.totalorder %s58, %s60
      %p64 = scmp.eq.s32.totalorder %s24, 0
      %p65 = por %p63, %p64
      %p66 = scmp.ne.s32.totalorder %s58, %s60
      %p67 = scmp.eq.s32.totalorder %s29, 2
      %p68 = por %p66, %p67
      %p69 = scmp.ne.s32.totalorder %s60, %s61
      %p70 = scmp.eq.s32.totalorder %s29, 0
      %p71 = por %p69, %p70
      %p72 = scmp.ne.s32.totalorder %s60, %s61
      %p73 = scmp.eq.s32.totalorder %s30, 2
      %p74 = por %p72, %p73
      %p76 = scmp.ne.s32.totalorder %s61, %s75
      %p77 = scmp.eq.s32.totalorder %s30, 0
      %p78 = por %p76, %p77
      %s80 = sadd.s32 %s79, 1
      %p83 = scmp.eq.s32.totalorder %s24, 2
      %p84 = scmp.ne.s32.totalorder %s79, %s81
      %p85 = scmp.eq.s32.totalorder %s24, 0
      %p86 = por %p84, %p85
      %p87 = scmp.ne.s32.totalorder %s79, %s81
      %p88 = scmp.eq.s32.totalorder %s29, 2
      %p89 = por %p87, %p88
      %p90 = scmp.ne.s32.totalorder %s81, %s82
      %p91 = scmp.eq.s32.totalorder %s29, 0
      %p92 = por %p90, %p91
      %p93 = scmp.ne.s32.totalorder %s81, %s82
      %p94 = scmp.eq.s32.totalorder %s30, 2
      %p95 = por %p93, %p94
      %p97 = scmp.ne.s32.totalorder %s82, %s96
      %p98 = scmp.eq.s32.totalorder %s30, 0
      %p99 = por %p97, %p98
      %s101 = sadd.s32 %s100, 1
      %p104 = scmp.eq.s32.totalorder %s24, 2
      %p105 = scmp.ne.s32.totalorder %s100, %s102
      %p106 = scmp.eq.s32.totalorder %s24, 0
      %p107 = por %p105, %p106
      %p108 = scmp.ne.s32.totalorder %s100, %s102
      %p109 = scmp.eq.s32.totalorder %s29, 2
      %p110 = por %p108, %p109
      %p111 = scmp.ne.s32.totalorder %s102, %s103
      %p112 = scmp.eq.s32.totalorder %s29, 0
      %p113 = por %p111, %p112
      %p114 = scmp.ne.s32.totalorder %s102, %s103
      %p115 = scmp.eq.s32.totalorder %s30, 2
      %p116 = por %p114, %p115
      %p118 = scmp.ne.s32.totalorder %s103, %s117
      %p119 = scmp.eq.s32.totalorder %s30, 0
      %p120 = por %p118, %p119
      %s122 = sadd.s32 %s121, 1
      %p125 = scmp.eq.s32.totalorder %s24, 2
      %p126 = scmp.ne.s32.totalorder %s121, %s123
      %p127 = scmp.eq.s32.totalorder %s24, 0
      %p128 = por %p126, %p127
      %p129 = scmp.ne.s32.totalorder %s121, %s123
      %p130 = scmp.eq.s32.totalorder %s29, 2
      %p131 = por %p129, %p130
      %p132 = scmp.ne.s32.totalorder %s123, %s124
      %p133 = scmp.eq.s32.totalorder %s29, 0
      %p134 = por %p132, %p133
      %p135 = scmp.ne.s32.totalorder %s123, %s124
      %p136 = scmp.eq.s32.totalorder %s30, 2
      %p137 = por %p135, %p136
      %p139 = scmp.ne.s32.totalorder %s124, %s138
      %p140 = scmp.eq.s32.totalorder %s30, 0
      %p141 = por %p139, %p140
      %s143 = sadd.s32 %s142, 1
      %p146 = scmp.eq.s32.totalorder %s24, 2
      %p147 = scmp.ne.s32.totalorder %s142, %s144
      %p148 = scmp.eq.s32.totalorder %s24, 0
      %p149 = por %p147, %p148
      %p150 = scmp.ne.s32.totalorder %s142, %s144
      %p151 = scmp.eq.s32.totalorder %s29, 2
      %p152 = por %p150, %p151
      %p153 = scmp.ne.s32.totalorder %s144, %s145
      %p154 = scmp.eq.s32.totalorder %s29, 0
      %p155 = por %p153, %p154
      %p156 = scmp.ne.s32.totalorder %s144, %s145
      %p157 = scmp.eq.s32.totalorder %s30, 2
      %p158 = por %p156, %p157
      %p160 = scmp.ne.s32.totalorder %s145, %s159
      %p161 = scmp.eq.s32.totalorder %s30, 0
      %p162 = por %p160, %p161
      %s164 = sadd.s32 %s163, 1
      %p167 = scmp.eq.s32.totalorder %s24, 2
      %p168 = scmp.ne.s32.totalorder %s163, %s165
      %p169 = scmp.eq.s32.totalorder %s24, 0
      %p170 = por %p168, %p169
      %p171 = scmp.ne.s32.totalorder %s163, %s165
      %p172 = scmp.eq.s32.totalorder %s29, 2
      %p173 = por %p171, %p172
      %p174 = scmp.ne.s32.totalorder %s165, %s166
      %p175 = scmp.eq.s32.totalorder %s29, 0
      %p176 = por %p174, %p175
      %p177 = scmp.ne.s32.totalorder %s165, %s166
      %p178 = scmp.eq.s32.totalorder %s30, 2
      %p179 = por %p177, %p178
      %p181 = scmp.ne.s32.totalorder %s166, %s180
      %p182 = scmp.eq.s32.totalorder %s30, 0
      %p183 = por %p181, %p182
      %s185 = sadd.s32 %s184, 1
      %p188 = scmp.eq.s32.totalorder %s24, 2
      %p189 = scmp.ne.s32.totalorder %s184, %s186
      %p190 = scmp.eq.s32.totalorder %s24, 0
      %p191 = por %p189, %p190
      %p192 = scmp.ne.s32.totalorder %s184, %s186
      %p193 = scmp.eq.s32.totalorder %s29, 2
      %p194 = por %p192, %p193
      %p195 = scmp.ne.s32.totalorder %s186, %s187
      %p196 = scmp.eq.s32.totalorder %s29, 0
      %p197 = por %p195, %p196
      %p198 = scmp.ne.s32.totalorder %s186, %s187
      %p199 = scmp.eq.s32.totalorder %s30, 2
      %p200 = por %p198, %p199
      %p202 = scmp.ne.s32.totalorder %s187, %s201
      %p203 = scmp.eq.s32.totalorder %s30, 0
      %p204 = por %p202, %p203
      %s206 = sadd.s32 %s205, 1
      %p209 = scmp.eq.s32.totalorder %s24, 2
      %p210 = scmp.ne.s32.totalorder %s205, %s207
      %p211 = scmp.eq.s32.totalorder %s24, 0
      %p212 = por %p210, %p211
      %p213 = scmp.ne.s32.totalorder %s205, %s207
      %p214 = scmp.eq.s32.totalorder %s29, 2
      %p215 = por %p213, %p214
      %p216 = scmp.ne.s32.totalorder %s207, %s208
      %p217 = scmp.eq.s32.totalorder %s29, 0
      %p218 = por %p216, %p217
      %p219 = scmp.ne.s32.totalorder %s207, %s208
      %p220 = scmp.eq.s32.totalorder %s30, 2
      %p221 = por %p219, %p220
      %p223 = scmp.ne.s32.totalorder %s208, %s222
      %p224 = scmp.eq.s32.totalorder %s30, 0
      %p225 = por %p223, %p224
      %s227 = sadd.s32 %s226, 1
      %p230 = scmp.eq.s32.totalorder %s24, 2
      %p231 = scmp.ne.s32.totalorder %s226, %s228
      %p232 = scmp.eq.s32.totalorder %s24, 0
      %p233 = por %p231, %p232
      %p234 = scmp.ne.s32.totalorder %s226, %s228
      %p235 = scmp.eq.s32.totalorder %s29, 2
      %p236 = por %p234, %p235
      %p237 = scmp.ne.s32.totalorder %s228, %s229
      %p238 = scmp.eq.s32.totalorder %s29, 0
      %p239 = por %p237, %p238
      %p240 = scmp.ne.s32.totalorder %s228, %s229
      %p241 = scmp.eq.s32.totalorder %s30, 2
      %p242 = por %p240, %p241
      %p244 = scmp.ne.s32.totalorder %s229, %s243
      %p245 = scmp.eq.s32.totalorder %s30, 0
      %p246 = por %p244, %p245
      %s248 = sadd.s32 %s247, 1
      %p251 = scmp.eq.s32.totalorder %s24, 2
      %p252 = scmp.ne.s32.totalorder %s247, %s249
      %p253 = scmp.eq.s32.totalorder %s24, 0
      %p254 = por %p252, %p253
      %p255 = scmp.ne.s32.totalorder %s247, %s249
      %p256 = scmp.eq.s32.totalorder %s29, 2
      %p257 = por %p255, %p256
      %p258 = scmp.ne.s32.totalorder %s249, %s250
      %p259 = scmp.eq.s32.totalorder %s29, 0
      %p260 = por %p258, %p259
      %p261 = scmp.ne.s32.totalorder %s249, %s250
      %p262 = scmp.eq.s32.totalorder %s30, 2
      %p263 = por %p261, %p262
      %p265 = scmp.ne.s32.totalorder %s250, %s264
      %p266 = scmp.eq.s32.totalorder %s30, 0
      %p267 = por %p265, %p266
      %s269 = sadd.s32 %s268, 1
      %p272 = scmp.eq.s32.totalorder %s24, 2
      %p273 = scmp.ne.s32.totalorder %s268, %s270
      %p274 = scmp.eq.s32.totalorder %s24, 0
      %p275 = por %p273, %p274
      %p276 = scmp.ne.s32.totalorder %s268, %s270
      %p277 = scmp.eq.s32.totalorder %s29, 2
      %p278 = por %p276, %p277
      %p279 = scmp.ne.s32.totalorder %s270, %s271
      %p280 = scmp.eq.s32.totalorder %s29, 0
      %p281 = por %p279, %p280
      %p282 = scmp.ne.s32.totalorder %s270, %s271
      %p283 = scmp.eq.s32.totalorder %s30, 2
      %p284 = por %p282, %p283
      %p286 = scmp.ne.s32.totalorder %s271, %s285
      %p287 = scmp.eq.s32.totalorder %s30, 0
      %p288 = por %p286, %p287
      %s289 = ssub.s32 %s24, %s31
      %p290 = scmp.eq.s32.totalorder %s289, 0
      %s292 = sadd.s32 %s291, 1
      %s293 = scalar_select %p290, %s291, %s292
      %p296 = pneg %p290
      %p297 = scmp.eq.s32.totalorder %s24, 2
      %p298 = por %p296, %p297
      %p299 = scmp.ne.s32.totalorder %s291, %s294
      %p300 = scmp.eq.s32.totalorder %s24, 0
      %p301 = por %p299, %p300
      %p302 = scmp.ne.s32.totalorder %s291, %s294
      %p303 = scmp.eq.s32.totalorder %s29, 2
      %p304 = por %p302, %p303
      %p305 = scmp.ne.s32.totalorder %s294, %s295
      %p306 = scmp.eq.s32.totalorder %s29, 0
      %p307 = por %p305, %p306
      %p308 = scmp.ne.s32.totalorder %s294, %s295
      %p309 = scmp.eq.s32.totalorder %s30, 2
      %p310 = por %p308, %p309
      %p312 = scmp.ne.s32.totalorder %s295, %s311
      %p313 = scmp.eq.s32.totalorder %s30, 0
      %p314 = por %p312, %p313
      %p315 = scmp.le.s32.totalorder 1, %s24
      %p316 = scmp.lt.s32.totalorder %s24, 4
      %p317 = pnand %p315, %p316
      %p318 = pneg %p317
      // Predicated region
      $region9: #{tpu_custom_call.1} parent=5 // pred_check
        _
      $region10: #{tpu_custom_call.1} parent=5 // pred_check_branch
        %320 = sbr.rel (%p317) target = $region12
      $region11: #{tpu_custom_call.1} parent=5 // pred_region
        %s321 = ssub.s32 %s24, 1
        // Predicated region
        $region13: #{tpu_custom_call.1} parent=11 // pred_check
          %p322 = pneg %p71
        $region14: #{tpu_custom_call.1} parent=11 // pred_check_branch
          %324 = sbr.rel (%p322) target = $region16
        $region15: #{tpu_custom_call.1} parent=11 // pred_region
          %326 = vsyncadd [#allocation3], 0
          %s327 = sshll.u32 %s1, 4
          %s328 = int_to_ptr.hbm [resolvable:$true] %s327
          %s329 = sshll.u32 [#allocation2], 4
          %s330 = int_to_ptr.vmem [resolvable:$true] %s329
          %335 = dma.hbm_to_vmem [thread:$0]  %s328, 1280, %s330, [#allocation3], 256, 256, 16
        $region16: #{tpu_custom_call.1} parent=11 // pred_fallthru
          _
        // Predicated region
        $region17: #{tpu_custom_call.1} parent=11 // pred_check
          %p336 = pneg %p92
        $region18: #{tpu_custom_call.1} parent=11 // pred_check_branch
          %338 = sbr.rel (%p336) target = $region20
        $region19: #{tpu_custom_call.1} parent=11 // pred_region
          %340 = vsyncadd [#allocation5], 0
          %s341 = sshll.u32 %s2, 4
          %s342 = int_to_ptr.hbm [resolvable:$true] %s341
          %s343 = sshll.u32 [#allocation4], 4
          %s344 = int_to_ptr.vmem [resolvable:$true] %s343
          %349 = dma.hbm_to_vmem [thread:$0]  %s342, 12288, %s344, [#allocation5], 384, 384, 24
        $region20: #{tpu_custom_call.1} parent=11 // pred_fallthru
          _
        // Predicated region
        $region21: #{tpu_custom_call.1} parent=11 // pred_check
          %p350 = pneg %p113
        $region22: #{tpu_custom_call.1} parent=11 // pred_check_branch
          %352 = sbr.rel (%p350) target = $region24
        $region23: #{tpu_custom_call.1} parent=11 // pred_region
          %354 = vsyncadd [#allocation5], 0
          %s355 = sshll.u32 %s3, 4
          %s356 = int_to_ptr.hbm [resolvable:$true] %s355
          %s357 = sshll.u32 [#allocation6], 4
          %s358 = int_to_ptr.vmem [resolvable:$true] %s357
          %363 = dma.hbm_to_vmem [thread:$0]  %s356, 18432, %s358, [#allocation5], 384, 384, 24
        $region24: #{tpu_custom_call.1} parent=11 // pred_fallthru
          _
        // Predicated region
        $region25: #{tpu_custom_call.1} parent=11 // pred_check
          %p364 = pneg %p134
        $region26: #{tpu_custom_call.1} parent=11 // pred_check_branch
          %366 = sbr.rel (%p364) target = $region28
        $region27: #{tpu_custom_call.1} parent=11 // pred_region
          %368 = vsyncadd [#allocation8], 0
          %s369 = sshll.u32 %s4, 4
          %s370 = int_to_ptr.hbm [resolvable:$true] %s369
          %s371 = sshll.u32 [#allocation7], 4
          %s372 = int_to_ptr.vmem [resolvable:$true] %s371
          %377 = dma.hbm_to_vmem [thread:$0]  %s370, 18432, %s372, [#allocation8], 384, 384, 24
        $region28: #{tpu_custom_call.1} parent=11 // pred_fallthru
          _
        // Predicated region
        $region29: #{tpu_custom_call.1} parent=11 // pred_check
          %p378 = pneg %p155
        $region30: #{tpu_custom_call.1} parent=11 // pred_check_branch
          %380 = sbr.rel (%p378) target = $region32
        $region31: #{tpu_custom_call.1} parent=11 // pred_region
          %382 = vsyncadd [#allocation8], 0
          %s383 = sshll.u32 %s5, 4
          %s384 = int_to_ptr.hbm [resolvable:$true] %s383
          %s385 = sshll.u32 [#allocation9], 4
          %s386 = int_to_ptr.vmem [resolvable:$true] %s385
          %391 = dma.hbm_to_vmem [thread:$0]  %s384, 30720, %s386, [#allocation8], 640, 640, 40
        $region32: #{tpu_custom_call.1} parent=11 // pred_fallthru
          _
        // Predicated region
        $region33: #{tpu_custom_call.1} parent=11 // pred_check
          %p392 = pneg %p176
        $region34: #{tpu_custom_call.1} parent=11 // pred_check_branch
          %394 = sbr.rel (%p392) target = $region36
        $region35: #{tpu_custom_call.1} parent=11 // pred_region
          %396 = vsyncadd [#allocation11], 0
          %s397 = sshll.u32 %s6, 4
          %s398 = int_to_ptr.hbm [resolvable:$true] %s397
          %s399 = sshll.u32 [#allocation10], 4
          %s400 = int_to_ptr.vmem [resolvable:$true] %s399
          %405 = dma.hbm_to_vmem [thread:$0]  %s398, 51200, %s400, [#allocation11], 640, 640, 40
        $region36: #{tpu_custom_call.1} parent=11 // pred_fallthru
          _
        // Predicated region
        $region37: #{tpu_custom_call.1} parent=11 // pred_check
          %p406 = pneg %p197
        $region38: #{tpu_custom_call.1} parent=11 // pred_check_branch
          %408 = sbr.rel (%p406) target = $region40
        $region39: #{tpu_custom_call.1} parent=11 // pred_region
          %410 = vsyncadd [#allocation11], 0
          %s411 = sshll.u32 %s7, 4
          %s412 = int_to_ptr.hbm [resolvable:$true] %s411
          %s413 = sshll.u32 [#allocation12], 4
          %s414 = int_to_ptr.vmem [resolvable:$true] %s413
          %419 = dma.hbm_to_vmem [thread:$0]  %s412, 30720, %s414, [#allocation11], 384, 384, 24
        $region40: #{tpu_custom_call.1} parent=11 // pred_fallthru
          _
        // Predicated region
        $region41: #{tpu_custom_call.1} parent=11 // pred_check
          %p420 = pneg %p218
        $region42: #{tpu_custom_call.1} parent=11 // pred_check_branch
          %422 = sbr.rel (%p420) target = $region44
        $region43: #{tpu_custom_call.1} parent=11 // pred_region
          %424 = vsyncadd [#allocation14], 0
          %s425 = sshll.u32 %s8, 4
          %s426 = int_to_ptr.hbm [resolvable:$true] %s425
          %s427 = sshll.u32 [#allocation13], 4
          %s428 = int_to_ptr.vmem [resolvable:$true] %s427
          %433 = dma.hbm_to_vmem [thread:$0]  %s426, 18432, %s428, [#allocation14], 384, 384, 24
        $region44: #{tpu_custom_call.1} parent=11 // pred_fallthru
          _
        // Predicated region
        $region45: #{tpu_custom_call.1} parent=11 // pred_check
          %p434 = pneg %p239
        $region46: #{tpu_custom_call.1} parent=11 // pred_check_branch
          %436 = sbr.rel (%p434) target = $region48
        $region47: #{tpu_custom_call.1} parent=11 // pred_region
          %438 = vsyncadd [#allocation14], 0
          %s439 = sshll.u32 %s9, 4
          %s440 = int_to_ptr.hbm [resolvable:$true] %s439
          %s441 = sshll.u32 [#allocation15], 4
          %s442 = int_to_ptr.vmem [resolvable:$true] %s441
          %447 = dma.hbm_to_vmem [thread:$0]  %s440, 12288, %s442, [#allocation14], 256, 256, 16
        $region48: #{tpu_custom_call.1} parent=11 // pred_fallthru
          _
        // Predicated region
        $region49: #{tpu_custom_call.1} parent=11 // pred_check
          %p448 = pneg %p260
        $region50: #{tpu_custom_call.1} parent=11 // pred_check_branch
          %450 = sbr.rel (%p448) target = $region52
        $region51: #{tpu_custom_call.1} parent=11 // pred_region
          %452 = vsyncadd [#allocation17], 0
          %s453 = sshll.u32 %s10, 4
          %s454 = int_to_ptr.hbm [resolvable:$true] %s453
          %s455 = sshll.u32 [#allocation16], 4
          %s456 = int_to_ptr.vmem [resolvable:$true] %s455
          %461 = dma.hbm_to_vmem [thread:$0]  %s454, 4096, %s456, [#allocation17], 128, 128, 8
        $region52: #{tpu_custom_call.1} parent=11 // pred_fallthru
          _
        // Predicated region
        $region53: #{tpu_custom_call.1} parent=11 // pred_check
          %p462 = pneg %p281
        $region54: #{tpu_custom_call.1} parent=11 // pred_check_branch
          %464 = sbr.rel (%p462) target = $region56
        $region55: #{tpu_custom_call.1} parent=11 // pred_region
          %466 = vsyncadd [#allocation17], 0
          %s467 = sshll.u32 %s11, 4
          %s468 = int_to_ptr.hbm [resolvable:$true] %s467
          %s469 = sshll.u32 [#allocation18], 4
          %s470 = int_to_ptr.vmem [resolvable:$true] %s469
          %475 = dma.hbm_to_vmem [thread:$0]  %s468, 1280, %s470, [#allocation17], 640, 640, 40
        $region56: #{tpu_custom_call.1} parent=11 // pred_fallthru
          _
      $region12: #{tpu_custom_call.1} parent=5 // pred_fallthru
        _
      %p476 = scmp.lt.s32.totalorder %s24, 3
      // Predicated region
      $region57: #{tpu_custom_call.1} parent=5 // pred_check
        %p477 = pneg %p476
      $region58: #{tpu_custom_call.1} parent=5 // pred_check_branch
        %479 = sbr.rel (%p477) target = $region60
      $region59: #{tpu_custom_call.1} parent=5 // pred_region
        // Predicated region
        $region61: #{tpu_custom_call.1} parent=59 // pred_check
          %p480 = pneg %p44
        $region62: #{tpu_custom_call.1} parent=59 // pred_check_branch
          %482 = sbr.rel (%p480) target = $region64
        $region63: #{tpu_custom_call.1} parent=59 // pred_region
          %s483 = smul.u32 16, %s24
          %p484 = scmp.lt.s32.totalorder %s483, 47
          %s485 = scalar_select %p484, %s483, 47
          %s486 = smul.addr %s485, 8
          %s487 = scalar_lea.vmem %s0, %s486
          %s488 = smul.u32 16, %s24
        $region64: #{tpu_custom_call.1} parent=59 // pred_fallthru
          _
      $region60: #{tpu_custom_call.1} parent=5 // pred_fallthru
        _
      %p489 = scmp.le.s32.totalorder 1, %s24
      %p490 = scmp.lt.s32.totalorder %s24, 4
      %p491 = pnand %p489, %p490
      %p492 = pneg %p491
      // Predicated region
      $region65: #{tpu_custom_call.1} parent=5 // pred_check
        _
      $region66: #{tpu_custom_call.1} parent=5 // pred_check_branch
        %494 = sbr.rel (%p491) target = $region68
      $region67: #{tpu_custom_call.1} parent=5 // pred_region
        %s495 = ssub.s32 %s24, 1
        // Predicated region
        $region69: #{tpu_custom_call.1} parent=67 // pred_check
          %p496 = pneg %p71
        $region70: #{tpu_custom_call.1} parent=67 // pred_check_branch
          %498 = sbr.rel (%p496) target = $region72
        $region71: #{tpu_custom_call.1} parent=67 // pred_region
          %500 = dma.done [#allocation3], 1280
        $region72: #{tpu_custom_call.1} parent=67 // pred_fallthru
          _
        // Predicated region
        $region73: #{tpu_custom_call.1} parent=67 // pred_check
          %p501 = pneg %p92
        $region74: #{tpu_custom_call.1} parent=67 // pred_check_branch
          %503 = sbr.rel (%p501) target = $region76
        $region75: #{tpu_custom_call.1} parent=67 // pred_region
          %505 = dma.done [#allocation5], 12288
        $region76: #{tpu_custom_call.1} parent=67 // pred_fallthru
          _
        // Predicated region
        $region77: #{tpu_custom_call.1} parent=67 // pred_check
          %p506 = pneg %p113
        $region78: #{tpu_custom_call.1} parent=67 // pred_check_branch
          %508 = sbr.rel (%p506) target = $region80
        $region79: #{tpu_custom_call.1} parent=67 // pred_region
          %510 = dma.done [#allocation5], 18432
        $region80: #{tpu_custom_call.1} parent=67 // pred_fallthru
          _
        // Predicated region
        $region81: #{tpu_custom_call.1} parent=67 // pred_check
          %p511 = pneg %p134
        $region82: #{tpu_custom_call.1} parent=67 // pred_check_branch
          %513 = sbr.rel (%p511) target = $region84
        $region83: #{tpu_custom_call.1} parent=67 // pred_region
          %515 = dma.done [#allocation8], 18432
        $region84: #{tpu_custom_call.1} parent=67 // pred_fallthru
          _
        // Predicated region
        $region85: #{tpu_custom_call.1} parent=67 // pred_check
          %p516 = pneg %p155
        $region86: #{tpu_custom_call.1} parent=67 // pred_check_branch
          %518 = sbr.rel (%p516) target = $region88
        $region87: #{tpu_custom_call.1} parent=67 // pred_region
          %520 = dma.done [#allocation8], 30720
        $region88: #{tpu_custom_call.1} parent=67 // pred_fallthru
          _
        // Predicated region
        $region89: #{tpu_custom_call.1} parent=67 // pred_check
          %p521 = pneg %p176
        $region90: #{tpu_custom_call.1} parent=67 // pred_check_branch
          %523 = sbr.rel (%p521) target = $region92
        $region91: #{tpu_custom_call.1} parent=67 // pred_region
          %525 = dma.done [#allocation11], 51200
        $region92: #{tpu_custom_call.1} parent=67 // pred_fallthru
          _
        // Predicated region
        $region93: #{tpu_custom_call.1} parent=67 // pred_check
          %p526 = pneg %p197
        $region94: #{tpu_custom_call.1} parent=67 // pred_check_branch
          %528 = sbr.rel (%p526) target = $region96
        $region95: #{tpu_custom_call.1} parent=67 // pred_region
          %530 = dma.done [#allocation11], 30720
        $region96: #{tpu_custom_call.1} parent=67 // pred_fallthru
          _
        // Predicated region
        $region97: #{tpu_custom_call.1} parent=67 // pred_check
          %p531 = pneg %p218
        $region98: #{tpu_custom_call.1} parent=67 // pred_check_branch
          %533 = sbr.rel (%p531) target = $region100
        $region99: #{tpu_custom_call.1} parent=67 // pred_region
          %535 = dma.done [#allocation14], 18432
        $region100: #{tpu_custom_call.1} parent=67 // pred_fallthru
          _
        // Predicated region
        $region101: #{tpu_custom_call.1} parent=67 // pred_check
          %p536 = pneg %p239
        $region102: #{tpu_custom_call.1} parent=67 // pred_check_branch
          %538 = sbr.rel (%p536) target = $region104
        $region103: #{tpu_custom_call.1} parent=67 // pred_region
          %540 = dma.done [#allocation14], 12288
        $region104: #{tpu_custom_call.1} parent=67 // pred_fallthru
          _
        // Predicated region
        $region105: #{tpu_custom_call.1} parent=67 // pred_check
          %p541 = pneg %p260
        $region106: #{tpu_custom_call.1} parent=67 // pred_check_branch
          %543 = sbr.rel (%p541) target = $region108
        $region107: #{tpu_custom_call.1} parent=67 // pred_region
          %545 = dma.done [#allocation17], 4096
        $region108: #{tpu_custom_call.1} parent=67 // pred_fallthru
          _
        // Predicated region
        $region109: #{tpu_custom_call.1} parent=67 // pred_check
          %p546 = pneg %p281
        $region110: #{tpu_custom_call.1} parent=67 // pred_check_branch
          %548 = sbr.rel (%p546) target = $region112
        $region111: #{tpu_custom_call.1} parent=67 // pred_region
          %550 = dma.done [#allocation17], 1280
        $region112: #{tpu_custom_call.1} parent=67 // pred_fallthru
          _
        %s551 = smul.u32 16, %s29
        %p552 = scmp.lt.s32.totalorder %s551, 47
        %s553 = scalar_select %p552, %s551, 47
        %s554 = smul.addr %s553, 8
        %s555 = scalar_lea.vmem %s0, %s554
        %p556 = pneg %p50
        %p557 = pneg %p47
        %p558 = pneg %p71
        %p559 = pneg %p68
        %p560 = pneg %p92
        %p561 = pneg %p89
        %p562 = pneg %p113
        %p563 = pneg %p110
        %p564 = pneg %p134
        %p565 = pneg %p131
        %p566 = pneg %p155
        %p567 = pneg %p152
        %p568 = pneg %p176
        %p569 = pneg %p173
        %p570 = pneg %p197
        %p571 = pneg %p194
        %p572 = pneg %p218
        %p573 = pneg %p215
        %p574 = pneg %p239
        %p575 = pneg %p236
        %p576 = pneg %p260
        %p577 = pneg %p257
        %p578 = pneg %p281
        %p579 = pneg %p278
        %p580 = pneg %p307
        %p581 = pneg %p304
        %s582 = smul.u32 16, %s29
        %p583 = scmp.lt.s32.totalorder %s582, 47
        %s584 = scalar_select %p583, %s582, 47
        %s585 = smul.addr %s584, 8
        %s586 = scalar_lea.vmem %s12, %s585
        %s587 = smul.u32 16, %s29
        %p588 = scmp.lt.s32.totalorder %s587, 47
        %s589 = scalar_select %p588, %s587, 47
        %s590 = smul.addr %s589, 8
        %s591 = scalar_lea.vmem %s0, %s590
        %s592 = smul.u32 16, %s29
        %s593 = smul.u32 16, %s29
        %p594 = scmp.lt.s32.totalorder %s593, 47
        %s595 = scalar_select %p594, %s593, 47
        %s596 = smul.addr %s595, 8
        %s597 = scalar_lea.vmem %s12, %s596
        %s598 = smul.u32 16, %s29
        %v599 = vld [vmem:[%s591] sm:$0xff]
        %v600 = vld [vmem:[%s591 + $0x8] sm:$0xff]
        %v601 = vld [vmem:[%s591 + $0x10] sm:$0xff]
        %v602 = vld [vmem:[%s591 + $0x18] sm:$0xff]
        %v603 = vld [vmem:[%s591 + $0x20] sm:$0xff]
        %v604 = vld [vmem:[%s591 + $0x28] sm:$0xff]
        %v605 = vld [vmem:[%s591 + $0x30] sm:$0xff]
        %v606 = vld [vmem:[%s591 + $0x38] sm:$0xff]
        %v607 = vld [vmem:[%s591 + $0x40] sm:$0xff]
        %v608 = vld [vmem:[%s591 + $0x48] sm:$0xff]
        %v609 = vld [vmem:[%s591 + $0x50] sm:$0xff]
        %v610 = vld [vmem:[%s591 + $0x58] sm:$0xff]
        %v611 = vld [vmem:[%s591 + $0x60] sm:$0xff]
        %v612 = vld [vmem:[%s591 + $0x68] sm:$0xff]
        %v613 = vld [vmem:[%s591 + $0x70] sm:$0xff]
        %v614 = vld [vmem:[%s591 + $0x78] sm:$0xff]
        %v615 = vld [vmem:[#allocation2] sm:$0xff]
        %v616 = vld [vmem:[#allocation2 + $0x8] sm:$0xff]
        %v617 = vld [vmem:[#allocation2 + $0x10] sm:$0xff]
        %v618 = vld [vmem:[#allocation2 + $0x18] sm:$0xff]
        %v619 = vld [vmem:[#allocation2 + $0x20] sm:$0xff]
        %v620 = vld [vmem:[#allocation2 + $0x28] sm:$0xff]
        %v621 = vld [vmem:[#allocation2 + $0x30] sm:$0xff]
        %v622 = vld [vmem:[#allocation2 + $0x38] sm:$0xff]
        %v623 = vld [vmem:[#allocation2 + $0x40] sm:$0x3f]
        %v624 = vld [vmem:[#allocation2 + $0x48] sm:$0x3f]
        %v625 = vld [vmem:[#allocation18] ss:$8 sm:$0x3]
        %v627 = vperm.slane %v625, 0
        %v628 = vperm.slane %v625, 1
        %vm631 = vcmask 310272
        %v633 = vsel %vm631, %v599, 0
        %v636 = vsel %vm631, %v600, 0
        %v639 = vsel %vm631, %v601, 0
        %v642 = vsel %vm631, %v602, 0
        %v645 = vsel %vm631, %v603, 0
        %v648 = vsel %vm631, %v604, 0
        %v651 = vsel %vm631, %v605, 0
        %v654 = vsel %vm631, %v606, 0
        %v657 = vsel %vm631, %v607, 0
        %v660 = vsel %vm631, %v608, 0
        %v663 = vsel %vm631, %v609, 0
        %v666 = vsel %vm631, %v610, 0
        %v669 = vsel %vm631, %v611, 0
        %v672 = vsel %vm631, %v612, 0
        %v675 = vsel %vm631, %v613, 0
        %v678 = vsel %vm631, %v614, 0
        %vm680 = vcmask 1045504
        %v682 = vsel %vm680, %v623, 0
        %v685 = vsel %vm680, %v624, 0
        %687 = vmatpush.msra.mxu0 0.0
        %688 = vmatpush.msra.mxu0 0.0
        %689 = vmatpush.msra.mxu0 0.0
        %690 = vmatpush.msra.mxu0 0.0
        %691 = vmatpush.msra.mxu0 0.0
        %692 = vmatpush.msra.mxu0 0.0
        %693 = vmatpush.msra.mxu0 0.0
        %694 = vmatpush.msra.mxu0 0.0
        %695 = vmatpush.msra.mxu0 0.0
        %696 = vmatpush.msra.mxu0 0.0
        %697 = vmatpush.msra.mxu0 0.0
        %698 = vmatpush.msra.mxu0 %v682
        %699 = vmatpush.msra.mxu0 %v621
        %700 = vmatpush.msra.mxu0 %v619
        %701 = vmatpush.msra.mxu0 %v617
        %702 = vmatpush.msra.mxu0 %v615
        %703 = vmatmul.f32.gmra.mxu0 %v633
        %v704 = vpop.f32.mrf.mxu0
        %v705 = vadd.f32 %v627, %v704
        %706 = vmatmul.f32.gmra.mxu0 %v636
        %v707 = vpop.f32.mrf.mxu0
        %v708 = vadd.f32 %v627, %v707
        %709 = vmatmul.f32.gmra.mxu0 %v639
        %v710 = vpop.f32.mrf.mxu0
        %v711 = vadd.f32 %v627, %v710
        %712 = vmatmul.f32.gmra.mxu0 %v642
        %v713 = vpop.f32.mrf.mxu0
        %v714 = vadd.f32 %v627, %v713
        %715 = vmatmul.f32.gmra.mxu0 %v645
        %v716 = vpop.f32.mrf.mxu0
        %v717 = vadd.f32 %v627, %v716
        %718 = vmatmul.f32.gmra.mxu0 %v648
        %v719 = vpop.f32.mrf.mxu0
        %v720 = vadd.f32 %v627, %v719
        %721 = vmatmul.f32.gmra.mxu0 %v651
        %v722 = vpop.f32.mrf.mxu0
        %v723 = vadd.f32 %v627, %v722
        %724 = vmatmul.f32.gmra.mxu0 %v654
        %v725 = vpop.f32.mrf.mxu0
        %v726 = vadd.f32 %v627, %v725
        %727 = vmatmul.f32.gmra.mxu0 %v657
        %v728 = vpop.f32.mrf.mxu0
        %v729 = vadd.f32 %v627, %v728
        %730 = vmatmul.f32.gmra.mxu0 %v660
        %v731 = vpop.f32.mrf.mxu0
        %v732 = vadd.f32 %v627, %v731
        %733 = vmatmul.f32.gmra.mxu0 %v663
        %v734 = vpop.f32.mrf.mxu0
        %v735 = vadd.f32 %v627, %v734
        %736 = vmatmul.f32.gmra.mxu0 %v666
        %v737 = vpop.f32.mrf.mxu0
        %v738 = vadd.f32 %v627, %v737
        %739 = vmatmul.f32.gmra.mxu0 %v669
        %v740 = vpop.f32.mrf.mxu0
        %v741 = vadd.f32 %v627, %v740
        %742 = vmatmul.f32.gmra.mxu0 %v672
        %v743 = vpop.f32.mrf.mxu0
        %v744 = vadd.f32 %v627, %v743
        %745 = vmatmul.f32.gmra.mxu0 %v675
        %v746 = vpop.f32.mrf.mxu0
        %v747 = vadd.f32 %v627, %v746
        %748 = vmatmul.f32.gmra.mxu0 %v678
        %v749 = vpop.f32.mrf.mxu0
        %v750 = vadd.f32 %v627, %v749
        %751 = vdwg.mxu0
        %752 = vmatpush.msra.mxu0 0.0
        %753 = vmatpush.msra.mxu0 0.0
        %754 = vmatpush.msra.mxu0 0.0
        %755 = vmatpush.msra.mxu0 0.0
        %756 = vmatpush.msra.mxu0 0.0
        %757 = vmatpush.msra.mxu0 0.0
        %758 = vmatpush.msra.mxu0 0.0
        %759 = vmatpush.msra.mxu0 0.0
        %760 = vmatpush.msra.mxu0 0.0
        %761 = vmatpush.msra.mxu0 0.0
        %762 = vmatpush.msra.mxu0 0.0
        %763 = vmatpush.msra.mxu0 %v685
        %764 = vmatpush.msra.mxu0 %v622
        %765 = vmatpush.msra.mxu0 %v620
        %766 = vmatpush.msra.mxu0 %v618
        %767 = vmatpush.msra.mxu0 %v616
        %768 = vmatmul.f32.gmra.mxu0 %v633
        %v769 = vpop.f32.mrf.mxu0
        %v770 = vadd.f32 %v628, %v769
        %771 = vmatmul.f32.gmra.mxu0 %v636
        %v772 = vpop.f32.mrf.mxu0
        %v773 = vadd.f32 %v628, %v772
        %774 = vmatmul.f32.gmra.mxu0 %v639
        %v775 = vpop.f32.mrf.mxu0
        %v776 = vadd.f32 %v628, %v775
        %777 = vmatmul.f32.gmra.mxu0 %v642
        %v778 = vpop.f32.mrf.mxu0
        %v779 = vadd.f32 %v628, %v778
        %780 = vmatmul.f32.gmra.mxu0 %v645
        %v781 = vpop.f32.mrf.mxu0
        %v782 = vadd.f32 %v628, %v781
        %783 = vmatmul.f32.gmra.mxu0 %v648
        %v784 = vpop.f32.mrf.mxu0
        %v785 = vadd.f32 %v628, %v784
        %786 = vmatmul.f32.gmra.mxu0 %v651
        %v787 = vpop.f32.mrf.mxu0
        %v788 = vadd.f32 %v628, %v787
        %789 = vmatmul.f32.gmra.mxu0 %v654
        %v790 = vpop.f32.mrf.mxu0
        %v791 = vadd.f32 %v628, %v790
        %792 = vmatmul.f32.gmra.mxu0 %v657
        %v793 = vpop.f32.mrf.mxu0
        %v794 = vadd.f32 %v628, %v793
        %795 = vmatmul.f32.gmra.mxu0 %v660
        %v796 = vpop.f32.mrf.mxu0
        %v797 = vadd.f32 %v628, %v796
        %798 = vmatmul.f32.gmra.mxu0 %v663
        %v799 = vpop.f32.mrf.mxu0
        %v800 = vadd.f32 %v628, %v799
        %801 = vmatmul.f32.gmra.mxu0 %v666
        %v802 = vpop.f32.mrf.mxu0
        %v803 = vadd.f32 %v628, %v802
        %804 = vmatmul.f32.gmra.mxu0 %v669
        %v805 = vpop.f32.mrf.mxu0
        %v806 = vadd.f32 %v628, %v805
        %807 = vmatmul.f32.gmra.mxu0 %v672
        %v808 = vpop.f32.mrf.mxu0
        %v809 = vadd.f32 %v628, %v808
        %810 = vmatmul.f32.gmra.mxu0 %v675
        %v811 = vpop.f32.mrf.mxu0
        %v812 = vadd.f32 %v628, %v811
        %813 = vmatmul.f32.gmra.mxu0 %v678
        %v814 = vpop.f32.mrf.mxu0
        %v815 = vadd.f32 %v628, %v814
        %816 = vdwg.mxu0
        %v817 = vmax.f32 %v705, 0.0
        %v818 = vmax.f32 %v770, 0.0
        %v819 = vmax.f32 %v708, 0.0
        %v820 = vmax.f32 %v773, 0.0
        %v821 = vmax.f32 %v711, 0.0
        %v822 = vmax.f32 %v776, 0.0
        %v823 = vmax.f32 %v714, 0.0
        %v824 = vmax.f32 %v779, 0.0
        %v825 = vmax.f32 %v717, 0.0
        %v826 = vmax.f32 %v782, 0.0
        %v827 = vmax.f32 %v720, 0.0
        %v828 = vmax.f32 %v785, 0.0
        %v829 = vmax.f32 %v723, 0.0
        %v830 = vmax.f32 %v788, 0.0
        %v831 = vmax.f32 %v726, 0.0
        %v832 = vmax.f32 %v791, 0.0
        %v833 = vmax.f32 %v729, 0.0
        %v834 = vmax.f32 %v794, 0.0
        %v835 = vmax.f32 %v732, 0.0
        %v836 = vmax.f32 %v797, 0.0
        %v837 = vmax.f32 %v735, 0.0
        %v838 = vmax.f32 %v800, 0.0
        %v839 = vmax.f32 %v738, 0.0
        %v840 = vmax.f32 %v803, 0.0
        %v841 = vmax.f32 %v741, 0.0
        %v842 = vmax.f32 %v806, 0.0
        %v843 = vmax.f32 %v744, 0.0
        %v844 = vmax.f32 %v809, 0.0
        %v845 = vmax.f32 %v747, 0.0
        %v846 = vmax.f32 %v812, 0.0
        %v847 = vmax.f32 %v750, 0.0
        %v848 = vmax.f32 %v815, 0.0
        %v849 = vld [vmem:[#allocation4] sm:$0xff]
        %v850 = vld [vmem:[#allocation4 + $0x8] sm:$0xff]
        %v851 = vld [vmem:[#allocation4 + $0x10] sm:$0xff]
        %v852 = vld [vmem:[#allocation4 + $0x18] sm:$0xff]
        %v853 = vld [vmem:[#allocation4 + $0x20] sm:$0xff]
        %v854 = vld [vmem:[#allocation4 + $0x28] sm:$0xff]
        %v855 = vld [vmem:[#allocation4 + $0x30] sm:$0xff]
        %v856 = vld [vmem:[#allocation4 + $0x38] sm:$0xff]
        %v857 = vld [vmem:[#allocation4 + $0x40] sm:$0xff]
        %v858 = vld [vmem:[#allocation4 + $0x48] sm:$0xff]
        %v859 = vld [vmem:[#allocation4 + $0x50] sm:$0xff]
        %v860 = vld [vmem:[#allocation4 + $0x58] sm:$0xff]
        %v861 = vld [vmem:[#allocation4 + $0x60] sm:$0xff]
        %v862 = vld [vmem:[#allocation4 + $0x68] sm:$0xff]
        %v863 = vld [vmem:[#allocation4 + $0x70] sm:$0xff]
        %v864 = vld [vmem:[#allocation4 + $0x78] sm:$0xff]
        %v865 = vld [vmem:[#allocation4 + $0x80] sm:$0xff]
        %v866 = vld [vmem:[#allocation4 + $0x88] sm:$0xff]
        %v867 = vld [vmem:[#allocation4 + $0x90] sm:$0xff]
        %v868 = vld [vmem:[#allocation4 + $0x98] sm:$0xff]
        %v869 = vld [vmem:[#allocation4 + $0xa0] sm:$0xff]
        %v870 = vld [vmem:[#allocation4 + $0xa8] sm:$0xff]
        %v871 = vld [vmem:[#allocation4 + $0xb0] sm:$0xff]
        %v872 = vld [vmem:[#allocation4 + $0xb8] sm:$0xff]
        %v873 = vld [vmem:[#allocation4 + $0xc0] sm:$0xff]
        %v874 = vld [vmem:[#allocation4 + $0xc8] sm:$0xff]
        %v875 = vld [vmem:[#allocation4 + $0xd0] sm:$0xff]
        %v876 = vld [vmem:[#allocation4 + $0xd8] sm:$0xff]
        %v877 = vld [vmem:[#allocation4 + $0xe0] sm:$0xff]
        %v878 = vld [vmem:[#allocation4 + $0xe8] sm:$0xff]
        %v879 = vld [vmem:[#allocation4 + $0xf0] sm:$0xff]
        %v880 = vld [vmem:[#allocation4 + $0xf8] sm:$0xff]
        %v881 = vld [vmem:[#allocation4 + $0x100] sm:$0xff]
        %v882 = vld [vmem:[#allocation4 + $0x108] sm:$0xff]
        %v883 = vld [vmem:[#allocation4 + $0x110] sm:$0xff]
        %v884 = vld [vmem:[#allocation4 + $0x118] sm:$0xff]
        %v885 = vld [vmem:[#allocation4 + $0x120] sm:$0xff]
        %v886 = vld [vmem:[#allocation4 + $0x128] sm:$0xff]
        %v887 = vld [vmem:[#allocation4 + $0x130] sm:$0xff]
        %v888 = vld [vmem:[#allocation4 + $0x138] sm:$0xff]
        %v889 = vld [vmem:[#allocation4 + $0x140] sm:$0xff]
        %v890 = vld [vmem:[#allocation4 + $0x148] sm:$0xff]
        %v891 = vld [vmem:[#allocation4 + $0x150] sm:$0xff]
        %v892 = vld [vmem:[#allocation4 + $0x158] sm:$0xff]
        %v893 = vld [vmem:[#allocation4 + $0x160] sm:$0xff]
        %v894 = vld [vmem:[#allocation4 + $0x168] sm:$0xff]
        %v895 = vld [vmem:[#allocation4 + $0x170] sm:$0xff]
        %v896 = vld [vmem:[#allocation4 + $0x178] sm:$0xff]
        %v897 = vld [vmem:[#allocation4 + $0x180] sm:$0xff]
        %v898 = vld [vmem:[#allocation4 + $0x188] sm:$0xff]
        %v899 = vld [vmem:[#allocation4 + $0x190] sm:$0xff]
        %v900 = vld [vmem:[#allocation4 + $0x198] sm:$0xff]
        %v901 = vld [vmem:[#allocation4 + $0x1a0] sm:$0xff]
        %v902 = vld [vmem:[#allocation4 + $0x1a8] sm:$0xff]
        %v903 = vld [vmem:[#allocation4 + $0x1b0] sm:$0xff]
        %v904 = vld [vmem:[#allocation4 + $0x1b8] sm:$0xff]
        %v905 = vld [vmem:[#allocation4 + $0x1c0] sm:$0xff]
        %v906 = vld [vmem:[#allocation4 + $0x1c8] sm:$0xff]
        %v907 = vld [vmem:[#allocation4 + $0x1d0] sm:$0xff]
        %v908 = vld [vmem:[#allocation4 + $0x1d8] sm:$0xff]
        %v909 = vld [vmem:[#allocation4 + $0x1e0] sm:$0xff]
        %v910 = vld [vmem:[#allocation4 + $0x1e8] sm:$0xff]
        %v911 = vld [vmem:[#allocation4 + $0x1f0] sm:$0xff]
        %v912 = vld [vmem:[#allocation4 + $0x1f8] sm:$0xff]
        %v913 = vld [vmem:[#allocation4 + $0x200] sm:$0xff]
        %v914 = vld [vmem:[#allocation4 + $0x208] sm:$0xff]
        %v915 = vld [vmem:[#allocation4 + $0x210] sm:$0xff]
        %v916 = vld [vmem:[#allocation4 + $0x218] sm:$0xff]
        %v917 = vld [vmem:[#allocation4 + $0x220] sm:$0xff]
        %v918 = vld [vmem:[#allocation4 + $0x228] sm:$0xff]
        %v919 = vld [vmem:[#allocation4 + $0x230] sm:$0xff]
        %v920 = vld [vmem:[#allocation4 + $0x238] sm:$0xff]
        %v921 = vld [vmem:[#allocation4 + $0x240] sm:$0xff]
        %v922 = vld [vmem:[#allocation4 + $0x248] sm:$0xff]
        %v923 = vld [vmem:[#allocation4 + $0x250] sm:$0xff]
        %v924 = vld [vmem:[#allocation4 + $0x258] sm:$0xff]
        %v925 = vld [vmem:[#allocation4 + $0x260] sm:$0xff]
        %v926 = vld [vmem:[#allocation4 + $0x268] sm:$0xff]
        %v927 = vld [vmem:[#allocation4 + $0x270] sm:$0xff]
        %v928 = vld [vmem:[#allocation4 + $0x278] sm:$0xff]
        %v929 = vld [vmem:[#allocation4 + $0x280] sm:$0xff]
        %v930 = vld [vmem:[#allocation4 + $0x288] sm:$0xff]
        %v931 = vld [vmem:[#allocation4 + $0x290] sm:$0xff]
        %v932 = vld [vmem:[#allocation4 + $0x298] sm:$0xff]
        %v933 = vld [vmem:[#allocation4 + $0x2a0] sm:$0xff]
        %v934 = vld [vmem:[#allocation4 + $0x2a8] sm:$0xff]
        %v935 = vld [vmem:[#allocation4 + $0x2b0] sm:$0xff]
        %v936 = vld [vmem:[#allocation4 + $0x2b8] sm:$0xff]
        %v937 = vld [vmem:[#allocation4 + $0x2c0] sm:$0xff]
        %v938 = vld [vmem:[#allocation4 + $0x2c8] sm:$0xff]
        %v939 = vld [vmem:[#allocation4 + $0x2d0] sm:$0xff]
        %v940 = vld [vmem:[#allocation4 + $0x2d8] sm:$0xff]
        %v941 = vld [vmem:[#allocation4 + $0x2e0] sm:$0xff]
        %v942 = vld [vmem:[#allocation4 + $0x2e8] sm:$0xff]
        %v943 = vld [vmem:[#allocation4 + $0x2f0] sm:$0xff]
        %v944 = vld [vmem:[#allocation4 + $0x2f8] sm:$0xff]
        %s945 = scalar_lea.vmem [#allocation18], 1
        %v946 = vld [vmem:[%s945] ss:$8 sm:$0x7]
        %v948 = vperm.slane %v946, 0
        %v949 = vperm.slane %v946, 1
        %v950 = vperm.slane %v946, 2
        %954 = vmatpush.msra.mxu0 %v894
        %955 = vmatpush.msra.mxu0 %v891
        %956 = vmatpush.msra.mxu0 %v888
        %957 = vmatpush.msra.mxu0 %v885
        %958 = vmatpush.msra.mxu0 %v882
        %959 = vmatpush.msra.mxu0 %v879
        %960 = vmatpush.msra.mxu0 %v876
        %961 = vmatpush.msra.mxu0 %v873
        %962 = vmatpush.msra.mxu0 %v870
        %963 = vmatpush.msra.mxu0 %v867
        %964 = vmatpush.msra.mxu0 %v864
        %965 = vmatpush.msra.mxu0 %v861
        %966 = vmatpush.msra.mxu0 %v858
        %967 = vmatpush.msra.mxu0 %v855
        %968 = vmatpush.msra.mxu0 %v852
        %969 = vmatpush.msra.mxu0 %v849
        %970 = vmatmul.f32.gmra.mxu0 %v817
        %v971 = vpop.f32.mrf.mxu0
        %v972 = vadd.f32 %v948, %v971
        %973 = vmatmul.f32.gmra.mxu0 %v819
        %v974 = vpop.f32.mrf.mxu0
        %v975 = vadd.f32 %v948, %v974
        %976 = vmatmul.f32.gmra.mxu0 %v821
        %v977 = vpop.f32.mrf.mxu0
        %v978 = vadd.f32 %v948, %v977
        %979 = vmatmul.f32.gmra.mxu0 %v823
        %v980 = vpop.f32.mrf.mxu0
        %v981 = vadd.f32 %v948, %v980
        %982 = vmatmul.f32.gmra.mxu0 %v825
        %v983 = vpop.f32.mrf.mxu0
        %v984 = vadd.f32 %v948, %v983
        %985 = vmatmul.f32.gmra.mxu0 %v827
        %v986 = vpop.f32.mrf.mxu0
        %v987 = vadd.f32 %v948, %v986
        %988 = vmatmul.f32.gmra.mxu0 %v829
        %v989 = vpop.f32.mrf.mxu0
        %v990 = vadd.f32 %v948, %v989
        %991 = vmatmul.f32.gmra.mxu0 %v831
        %v992 = vpop.f32.mrf.mxu0
        %v993 = vadd.f32 %v948, %v992
        %994 = vmatmul.f32.gmra.mxu0 %v833
        %v995 = vpop.f32.mrf.mxu0
        %v996 = vadd.f32 %v948, %v995
        %997 = vmatmul.f32.gmra.mxu0 %v835
        %v998 = vpop.f32.mrf.mxu0
        %v999 = vadd.f32 %v948, %v998
        %1000 = vmatmul.f32.gmra.mxu0 %v837
        %v1001 = vpop.f32.mrf.mxu0
        %v1002 = vadd.f32 %v948, %v1001
        %1003 = vmatmul.f32.gmra.mxu0 %v839
        %v1004 = vpop.f32.mrf.mxu0
        %v1005 = vadd.f32 %v948, %v1004
        %1006 = vmatmul.f32.gmra.mxu0 %v841
        %v1007 = vpop.f32.mrf.mxu0
        %v1008 = vadd.f32 %v948, %v1007
        %1009 = vmatmul.f32.gmra.mxu0 %v843
        %v1010 = vpop.f32.mrf.mxu0
        %v1011 = vadd.f32 %v948, %v1010
        %1012 = vmatmul.f32.gmra.mxu0 %v845
        %v1013 = vpop.f32.mrf.mxu0
        %v1014 = vadd.f32 %v948, %v1013
        %1015 = vmatmul.f32.gmra.mxu0 %v847
        %v1016 = vpop.f32.mrf.mxu0
        %v1017 = vadd.f32 %v948, %v1016
        %1018 = vdwg.mxu0
        %1019 = vmatpush.msra.mxu0 %v942
        %1020 = vmatpush.msra.mxu0 %v939
        %1021 = vmatpush.msra.mxu0 %v936
        %1022 = vmatpush.msra.mxu0 %v933
        %1023 = vmatpush.msra.mxu0 %v930
        %1024 = vmatpush.msra.mxu0 %v927
        %1025 = vmatpush.msra.mxu0 %v924
        %1026 = vmatpush.msra.mxu0 %v921
        %1027 = vmatpush.msra.mxu0 %v918
        %1028 = vmatpush.msra.mxu0 %v915
        %1029 = vmatpush.msra.mxu0 %v912
        %1030 = vmatpush.msra.mxu0 %v909
        %1031 = vmatpush.msra.mxu0 %v906
        %1032 = vmatpush.msra.mxu0 %v903
        %1033 = vmatpush.msra.mxu0 %v900
        %1034 = vmatpush.msra.mxu0 %v897
        %1035 = vmatmul.f32.gmra.mxu0 %v818
        %v1036 = vpop.f32.mrf.mxu0
        %v1037 = vadd.f32 %v972, %v1036
        %1038 = vmatmul.f32.gmra.mxu0 %v820
        %v1039 = vpop.f32.mrf.mxu0
        %v1040 = vadd.f32 %v975, %v1039
        %1041 = vmatmul.f32.gmra.mxu0 %v822
        %v1042 = vpop.f32.mrf.mxu0
        %v1043 = vadd.f32 %v978, %v1042
        %1044 = vmatmul.f32.gmra.mxu0 %v824
        %v1045 = vpop.f32.mrf.mxu0
        %v1046 = vadd.f32 %v981, %v1045
        %1047 = vmatmul.f32.gmra.mxu0 %v826
        %v1048 = vpop.f32.mrf.mxu0
        %v1049 = vadd.f32 %v984, %v1048
        %1050 = vmatmul.f32.gmra.mxu0 %v828
        %v1051 = vpop.f32.mrf.mxu0
        %v1052 = vadd.f32 %v987, %v1051
        %1053 = vmatmul.f32.gmra.mxu0 %v830
        %v1054 = vpop.f32.mrf.mxu0
        %v1055 = vadd.f32 %v990, %v1054
        %1056 = vmatmul.f32.gmra.mxu0 %v832
        %v1057 = vpop.f32.mrf.mxu0
        %v1058 = vadd.f32 %v993, %v1057
        %1059 = vmatmul.f32.gmra.mxu0 %v834
        %v1060 = vpop.f32.mrf.mxu0
        %v1061 = vadd.f32 %v996, %v1060
        %1062 = vmatmul.f32.gmra.mxu0 %v836
        %v1063 = vpop.f32.mrf.mxu0
        %v1064 = vadd.f32 %v999, %v1063
        %1065 = vmatmul.f32.gmra.mxu0 %v838
        %v1066 = vpop.f32.mrf.mxu0
        %v1067 = vadd.f32 %v1002, %v1066
        %1068 = vmatmul.f32.gmra.mxu0 %v840
        %v1069 = vpop.f32.mrf.mxu0
        %v1070 = vadd.f32 %v1005, %v1069
        %1071 = vmatmul.f32.gmra.mxu0 %v842
        %v1072 = vpop.f32.mrf.mxu0
        %v1073 = vadd.f32 %v1008, %v1072
        %1074 = vmatmul.f32.gmra.mxu0 %v844
        %v1075 = vpop.f32.mrf.mxu0
        %v1076 = vadd.f32 %v1011, %v1075
        %1077 = vmatmul.f32.gmra.mxu0 %v846
        %v1078 = vpop.f32.mrf.mxu0
        %v1079 = vadd.f32 %v1014, %v1078
        %1080 = vmatmul.f32.gmra.mxu0 %v848
        %v1081 = vpop.f32.mrf.mxu0
        %v1082 = vadd.f32 %v1017, %v1081
        %1083 = vdwg.mxu0
        %1084 = vmatpush.msra.mxu0 %v895
        %1085 = vmatpush.msra.mxu0 %v892
        %1086 = vmatpush.msra.mxu0 %v889
        %1087 = vmatpush.msra.mxu0 %v886
        %1088 = vmatpush.msra.mxu0 %v883
        %1089 = vmatpush.msra.mxu0 %v880
        %1090 = vmatpush.msra.mxu0 %v877
        %1091 = vmatpush.msra.mxu0 %v874
        %1092 = vmatpush.msra.mxu0 %v871
        %1093 = vmatpush.msra.mxu0 %v868
        %1094 = vmatpush.msra.mxu0 %v865
        %1095 = vmatpush.msra.mxu0 %v862
        %1096 = vmatpush.msra.mxu0 %v859
        %1097 = vmatpush.msra.mxu0 %v856
        %1098 = vmatpush.msra.mxu0 %v853
        %1099 = vmatpush.msra.mxu0 %v850
        %1100 = vmatmul.f32.gmra.mxu0 %v817
        %v1101 = vpop.f32.mrf.mxu0
        %v1102 = vadd.f32 %v949, %v1101
        %1103 = vmatmul.f32.gmra.mxu0 %v819
        %v1104 = vpop.f32.mrf.mxu0
        %v1105 = vadd.f32 %v949, %v1104
        %1106 = vmatmul.f32.gmra.mxu0 %v821
        %v1107 = vpop.f32.mrf.mxu0
        %v1108 = vadd.f32 %v949, %v1107
        %1109 = vmatmul.f32.gmra.mxu0 %v823
        %v1110 = vpop.f32.mrf.mxu0
        %v1111 = vadd.f32 %v949, %v1110
        %1112 = vmatmul.f32.gmra.mxu0 %v825
        %v1113 = vpop.f32.mrf.mxu0
        %v1114 = vadd.f32 %v949, %v1113
        %1115 = vmatmul.f32.gmra.mxu0 %v827
        %v1116 = vpop.f32.mrf.mxu0
        %v1117 = vadd.f32 %v949, %v1116
        %1118 = vmatmul.f32.gmra.mxu0 %v829
        %v1119 = vpop.f32.mrf.mxu0
        %v1120 = vadd.f32 %v949, %v1119
        %1121 = vmatmul.f32.gmra.mxu0 %v831
        %v1122 = vpop.f32.mrf.mxu0
        %v1123 = vadd.f32 %v949, %v1122
        %1124 = vmatmul.f32.gmra.mxu0 %v833
        %v1125 = vpop.f32.mrf.mxu0
        %v1126 = vadd.f32 %v949, %v1125
        %1127 = vmatmul.f32.gmra.mxu0 %v835
        %v1128 = vpop.f32.mrf.mxu0
        %v1129 = vadd.f32 %v949, %v1128
        %1130 = vmatmul.f32.gmra.mxu0 %v837
        %v1131 = vpop.f32.mrf.mxu0
        %v1132 = vadd.f32 %v949, %v1131
        %1133 = vmatmul.f32.gmra.mxu0 %v839
        %v1134 = vpop.f32.mrf.mxu0
        %v1135 = vadd.f32 %v949, %v1134
        %1136 = vmatmul.f32.gmra.mxu0 %v841
        %v1137 = vpop.f32.mrf.mxu0
        %v1138 = vadd.f32 %v949, %v1137
        %1139 = vmatmul.f32.gmra.mxu0 %v843
        %v1140 = vpop.f32.mrf.mxu0
        %v1141 = vadd.f32 %v949, %v1140
        %1142 = vmatmul.f32.gmra.mxu0 %v845
        %v1143 = vpop.f32.mrf.mxu0
        %v1144 = vadd.f32 %v949, %v1143
        %1145 = vmatmul.f32.gmra.mxu0 %v847
        %v1146 = vpop.f32.mrf.mxu0
        %v1147 = vadd.f32 %v949, %v1146
        %1148 = vdwg.mxu0
        %1149 = vmatpush.msra.mxu0 %v943
        %1150 = vmatpush.msra.mxu0 %v940
        %1151 = vmatpush.msra.mxu0 %v937
        %1152 = vmatpush.msra.mxu0 %v934
        %1153 = vmatpush.msra.mxu0 %v931
        %1154 = vmatpush.msra.mxu0 %v928
        %1155 = vmatpush.msra.mxu0 %v925
        %1156 = vmatpush.msra.mxu0 %v922
        %1157 = vmatpush.msra.mxu0 %v919
        %1158 = vmatpush.msra.mxu0 %v916
        %1159 = vmatpush.msra.mxu0 %v913
        %1160 = vmatpush.msra.mxu0 %v910
        %1161 = vmatpush.msra.mxu0 %v907
        %1162 = vmatpush.msra.mxu0 %v904
        %1163 = vmatpush.msra.mxu0 %v901
        %1164 = vmatpush.msra.mxu0 %v898
        %1165 = vmatmul.f32.gmra.mxu0 %v818
        %v1166 = vpop.f32.mrf.mxu0
        %v1167 = vadd.f32 %v1102, %v1166
        %1168 = vmatmul.f32.gmra.mxu0 %v820
        %v1169 = vpop.f32.mrf.mxu0
        %v1170 = vadd.f32 %v1105, %v1169
        %1171 = vmatmul.f32.gmra.mxu0 %v822
        %v1172 = vpop.f32.mrf.mxu0
        %v1173 = vadd.f32 %v1108, %v1172
        %1174 = vmatmul.f32.gmra.mxu0 %v824
        %v1175 = vpop.f32.mrf.mxu0
        %v1176 = vadd.f32 %v1111, %v1175
        %1177 = vmatmul.f32.gmra.mxu0 %v826
        %v1178 = vpop.f32.mrf.mxu0
        %v1179 = vadd.f32 %v1114, %v1178
        %1180 = vmatmul.f32.gmra.mxu0 %v828
        %v1181 = vpop.f32.mrf.mxu0
        %v1182 = vadd.f32 %v1117, %v1181
        %1183 = vmatmul.f32.gmra.mxu0 %v830
        %v1184 = vpop.f32.mrf.mxu0
        %v1185 = vadd.f32 %v1120, %v1184
        %1186 = vmatmul.f32.gmra.mxu0 %v832
        %v1187 = vpop.f32.mrf.mxu0
        %v1188 = vadd.f32 %v1123, %v1187
        %1189 = vmatmul.f32.gmra.mxu0 %v834
        %v1190 = vpop.f32.mrf.mxu0
        %v1191 = vadd.f32 %v1126, %v1190
        %1192 = vmatmul.f32.gmra.mxu0 %v836
        %v1193 = vpop.f32.mrf.mxu0
        %v1194 = vadd.f32 %v1129, %v1193
        %1195 = vmatmul.f32.gmra.mxu0 %v838
        %v1196 = vpop.f32.mrf.mxu0
        %v1197 = vadd.f32 %v1132, %v1196
        %1198 = vmatmul.f32.gmra.mxu0 %v840
        %v1199 = vpop.f32.mrf.mxu0
        %v1200 = vadd.f32 %v1135, %v1199
        %1201 = vmatmul.f32.gmra.mxu0 %v842
        %v1202 = vpop.f32.mrf.mxu0
        %v1203 = vadd.f32 %v1138, %v1202
        %1204 = vmatmul.f32.gmra.mxu0 %v844
        %v1205 = vpop.f32.mrf.mxu0
        %v1206 = vadd.f32 %v1141, %v1205
        %1207 = vmatmul.f32.gmra.mxu0 %v846
        %v1208 = vpop.f32.mrf.mxu0
        %v1209 = vadd.f32 %v1144, %v1208
        %1210 = vmatmul.f32.gmra.mxu0 %v848
        %v1211 = vpop.f32.mrf.mxu0
        %v1212 = vadd.f32 %v1147, %v1211
        %1213 = vdwg.mxu0
        %1214 = vmatpush.msra.mxu0 %v896
        %1215 = vmatpush.msra.mxu0 %v893
        %1216 = vmatpush.msra.mxu0 %v890
        %1217 = vmatpush.msra.mxu0 %v887
        %1218 = vmatpush.msra.mxu0 %v884
        %1219 = vmatpush.msra.mxu0 %v881
        %1220 = vmatpush.msra.mxu0 %v878
        %1221 = vmatpush.msra.mxu0 %v875
        %1222 = vmatpush.msra.mxu0 %v872
        %1223 = vmatpush.msra.mxu0 %v869
        %1224 = vmatpush.msra.mxu0 %v866
        %1225 = vmatpush.msra.mxu0 %v863
        %1226 = vmatpush.msra.mxu0 %v860
        %1227 = vmatpush.msra.mxu0 %v857
        %1228 = vmatpush.msra.mxu0 %v854
        %1229 = vmatpush.msra.mxu0 %v851
        %1230 = vmatmul.f32.gmra.mxu0 %v817
        %v1231 = vpop.f32.mrf.mxu0
        %v1232 = vadd.f32 %v950, %v1231
        %1233 = vmatmul.f32.gmra.mxu0 %v819
        %v1234 = vpop.f32.mrf.mxu0
        %v1235 = vadd.f32 %v950, %v1234
        %1236 = vmatmul.f32.gmra.mxu0 %v821
        %v1237 = vpop.f32.mrf.mxu0
        %v1238 = vadd.f32 %v950, %v1237
        %1239 = vmatmul.f32.gmra.mxu0 %v823
        %v1240 = vpop.f32.mrf.mxu0
        %v1241 = vadd.f32 %v950, %v1240
        %1242 = vmatmul.f32.gmra.mxu0 %v825
        %v1243 = vpop.f32.mrf.mxu0
        %v1244 = vadd.f32 %v950, %v1243
        %1245 = vmatmul.f32.gmra.mxu0 %v827
        %v1246 = vpop.f32.mrf.mxu0
        %v1247 = vadd.f32 %v950, %v1246
        %1248 = vmatmul.f32.gmra.mxu0 %v829
        %v1249 = vpop.f32.mrf.mxu0
        %v1250 = vadd.f32 %v950, %v1249
        %1251 = vmatmul.f32.gmra.mxu0 %v831
        %v1252 = vpop.f32.mrf.mxu0
        %v1253 = vadd.f32 %v950, %v1252
        %1254 = vmatmul.f32.gmra.mxu0 %v833
        %v1255 = vpop.f32.mrf.mxu0
        %v1256 = vadd.f32 %v950, %v1255
        %1257 = vmatmul.f32.gmra.mxu0 %v835
        %v1258 = vpop.f32.mrf.mxu0
        %v1259 = vadd.f32 %v950, %v1258
        %1260 = vmatmul.f32.gmra.mxu0 %v837
        %v1261 = vpop.f32.mrf.mxu0
        %v1262 = vadd.f32 %v950, %v1261
        %1263 = vmatmul.f32.gmra.mxu0 %v839
        %v1264 = vpop.f32.mrf.mxu0
        %v1265 = vadd.f32 %v950, %v1264
        %1266 = vmatmul.f32.gmra.mxu0 %v841
        %v1267 = vpop.f32.mrf.mxu0
        %v1268 = vadd.f32 %v950, %v1267
        %1269 = vmatmul.f32.gmra.mxu0 %v843
        %v1270 = vpop.f32.mrf.mxu0
        %v1271 = vadd.f32 %v950, %v1270
        %1272 = vmatmul.f32.gmra.mxu0 %v845
        %v1273 = vpop.f32.mrf.mxu0
        %v1274 = vadd.f32 %v950, %v1273
        %1275 = vmatmul.f32.gmra.mxu0 %v847
        %v1276 = vpop.f32.mrf.mxu0
        %v1277 = vadd.f32 %v950, %v1276
        %1278 = vdwg.mxu0
        %1279 = vmatpush.msra.mxu0 %v944
        %1280 = vmatpush.msra.mxu0 %v941
        %1281 = vmatpush.msra.mxu0 %v938
        %1282 = vmatpush.msra.mxu0 %v935
        %1283 = vmatpush.msra.mxu0 %v932
        %1284 = vmatpush.msra.mxu0 %v929
        %1285 = vmatpush.msra.mxu0 %v926
        %1286 = vmatpush.msra.mxu0 %v923
        %1287 = vmatpush.msra.mxu0 %v920
        %1288 = vmatpush.msra.mxu0 %v917
        %1289 = vmatpush.msra.mxu0 %v914
        %1290 = vmatpush.msra.mxu0 %v911
        %1291 = vmatpush.msra.mxu0 %v908
        %1292 = vmatpush.msra.mxu0 %v905
        %1293 = vmatpush.msra.mxu0 %v902
        %1294 = vmatpush.msra.mxu0 %v899
        %1295 = vmatmul.f32.gmra.mxu0 %v818
        %v1296 = vpop.f32.mrf.mxu0
        %v1297 = vadd.f32 %v1232, %v1296
        %1298 = vmatmul.f32.gmra.mxu0 %v820
        %v1299 = vpop.f32.mrf.mxu0
        %v1300 = vadd.f32 %v1235, %v1299
        %1301 = vmatmul.f32.gmra.mxu0 %v822
        %v1302 = vpop.f32.mrf.mxu0
        %v1303 = vadd.f32 %v1238, %v1302
        %1304 = vmatmul.f32.gmra.mxu0 %v824
        %v1305 = vpop.f32.mrf.mxu0
        %v1306 = vadd.f32 %v1241, %v1305
        %1307 = vmatmul.f32.gmra.mxu0 %v826
        %v1308 = vpop.f32.mrf.mxu0
        %v1309 = vadd.f32 %v1244, %v1308
        %1310 = vmatmul.f32.gmra.mxu0 %v828
        %v1311 = vpop.f32.mrf.mxu0
        %v1312 = vadd.f32 %v1247, %v1311
        %1313 = vmatmul.f32.gmra.mxu0 %v830
        %v1314 = vpop.f32.mrf.mxu0
        %v1315 = vadd.f32 %v1250, %v1314
        %1316 = vmatmul.f32.gmra.mxu0 %v832
        %v1317 = vpop.f32.mrf.mxu0
        %v1318 = vadd.f32 %v1253, %v1317
        %1319 = vmatmul.f32.gmra.mxu0 %v834
        %v1320 = vpop.f32.mrf.mxu0
        %v1321 = vadd.f32 %v1256, %v1320
        %1322 = vmatmul.f32.gmra.mxu0 %v836
        %v1323 = vpop.f32.mrf.mxu0
        %v1324 = vadd.f32 %v1259, %v1323
        %1325 = vmatmul.f32.gmra.mxu0 %v838
        %v1326 = vpop.f32.mrf.mxu0
        %v1327 = vadd.f32 %v1262, %v1326
        %1328 = vmatmul.f32.gmra.mxu0 %v840
        %v1329 = vpop.f32.mrf.mxu0
        %v1330 = vadd.f32 %v1265, %v1329
        %1331 = vmatmul.f32.gmra.mxu0 %v842
        %v1332 = vpop.f32.mrf.mxu0
        %v1333 = vadd.f32 %v1268, %v1332
        %1334 = vmatmul.f32.gmra.mxu0 %v844
        %v1335 = vpop.f32.mrf.mxu0
        %v1336 = vadd.f32 %v1271, %v1335
        %1337 = vmatmul.f32.gmra.mxu0 %v846
        %v1338 = vpop.f32.mrf.mxu0
        %v1339 = vadd.f32 %v1274, %v1338
        %1340 = vmatmul.f32.gmra.mxu0 %v848
        %v1341 = vpop.f32.mrf.mxu0
        %v1342 = vadd.f32 %v1277, %v1341
        %1343 = vdwg.mxu0
        %v1344 = vmax.f32 %v1037, 0.0
        %v1345 = vmax.f32 %v1167, 0.0
        %v1346 = vmax.f32 %v1297, 0.0
        %v1347 = vmax.f32 %v1040, 0.0
        %v1348 = vmax.f32 %v1170, 0.0
        %v1349 = vmax.f32 %v1300, 0.0
        %v1350 = vmax.f32 %v1043, 0.0
        %v1351 = vmax.f32 %v1173, 0.0
        %v1352 = vmax.f32 %v1303, 0.0
        %v1353 = vmax.f32 %v1046, 0.0
        %v1354 = vmax.f32 %v1176, 0.0
        %v1355 = vmax.f32 %v1306, 0.0
        %v1356 = vmax.f32 %v1049, 0.0
        %v1357 = vmax.f32 %v1179, 0.0
        %v1358 = vmax.f32 %v1309, 0.0
        %v1359 = vmax.f32 %v1052, 0.0
        %v1360 = vmax.f32 %v1182, 0.0
        %v1361 = vmax.f32 %v1312, 0.0
        %v1362 = vmax.f32 %v1055, 0.0
        %v1363 = vmax.f32 %v1185, 0.0
        %v1364 = vmax.f32 %v1315, 0.0
        %v1365 = vmax.f32 %v1058, 0.0
        %v1366 = vmax.f32 %v1188, 0.0
        %v1367 = vmax.f32 %v1318, 0.0
        %v1368 = vmax.f32 %v1061, 0.0
        %v1369 = vmax.f32 %v1191, 0.0
        %v1370 = vmax.f32 %v1321, 0.0
        %v1371 = vmax.f32 %v1064, 0.0
        %v1372 = vmax.f32 %v1194, 0.0
        %v1373 = vmax.f32 %v1324, 0.0
        %v1374 = vmax.f32 %v1067, 0.0
        %v1375 = vmax.f32 %v1197, 0.0
        %v1376 = vmax.f32 %v1327, 0.0
        %v1377 = vmax.f32 %v1070, 0.0
        %v1378 = vmax.f32 %v1200, 0.0
        %v1379 = vmax.f32 %v1330, 0.0
        %v1380 = vmax.f32 %v1073, 0.0
        %v1381 = vmax.f32 %v1203, 0.0
        %v1382 = vmax.f32 %v1333, 0.0
        %v1383 = vmax.f32 %v1076, 0.0
        %v1384 = vmax.f32 %v1206, 0.0
        %v1385 = vmax.f32 %v1336, 0.0
        %v1386 = vmax.f32 %v1079, 0.0
        %v1387 = vmax.f32 %v1209, 0.0
        %v1388 = vmax.f32 %v1339, 0.0
        %v1389 = vmax.f32 %v1082, 0.0
        %v1390 = vmax.f32 %v1212, 0.0
        %v1391 = vmax.f32 %v1342, 0.0
        %v1392 = vld [vmem:[#allocation6] sm:$0xff]
        %v1393 = vld [vmem:[#allocation6 + $0x8] sm:$0xff]
        %v1394 = vld [vmem:[#allocation6 + $0x10] sm:$0xff]
        %v1395 = vld [vmem:[#allocation6 + $0x18] sm:$0xff]
        %v1396 = vld [vmem:[#allocation6 + $0x20] sm:$0xff]
        %v1397 = vld [vmem:[#allocation6 + $0x28] sm:$0xff]
        %v1398 = vld [vmem:[#allocation6 + $0x30] sm:$0xff]
        %v1399 = vld [vmem:[#allocation6 + $0x38] sm:$0xff]
        %v1400 = vld [vmem:[#allocation6 + $0x40] sm:$0xff]
        %v1401 = vld [vmem:[#allocation6 + $0x48] sm:$0xff]
        %v1402 = vld [vmem:[#allocation6 + $0x50] sm:$0xff]
        %v1403 = vld [vmem:[#allocation6 + $0x58] sm:$0xff]
        %v1404 = vld [vmem:[#allocation6 + $0x60] sm:$0xff]
        %v1405 = vld [vmem:[#allocation6 + $0x68] sm:$0xff]
        %v1406 = vld [vmem:[#allocation6 + $0x70] sm:$0xff]
        %v1407 = vld [vmem:[#allocation6 + $0x78] sm:$0xff]
        %v1408 = vld [vmem:[#allocation6 + $0x80] sm:$0xff]
        %v1409 = vld [vmem:[#allocation6 + $0x88] sm:$0xff]
        %v1410 = vld [vmem:[#allocation6 + $0x90] sm:$0xff]
        %v1411 = vld [vmem:[#allocation6 + $0x98] sm:$0xff]
        %v1412 = vld [vmem:[#allocation6 + $0xa0] sm:$0xff]
        %v1413 = vld [vmem:[#allocation6 + $0xa8] sm:$0xff]
        %v1414 = vld [vmem:[#allocation6 + $0xb0] sm:$0xff]
        %v1415 = vld [vmem:[#allocation6 + $0xb8] sm:$0xff]
        %v1416 = vld [vmem:[#allocation6 + $0xc0] sm:$0xff]
        %v1417 = vld [vmem:[#allocation6 + $0xc8] sm:$0xff]
        %v1418 = vld [vmem:[#allocation6 + $0xd0] sm:$0xff]
        %v1419 = vld [vmem:[#allocation6 + $0xd8] sm:$0xff]
        %v1420 = vld [vmem:[#allocation6 + $0xe0] sm:$0xff]
        %v1421 = vld [vmem:[#allocation6 + $0xe8] sm:$0xff]
        %v1422 = vld [vmem:[#allocation6 + $0xf0] sm:$0xff]
        %v1423 = vld [vmem:[#allocation6 + $0xf8] sm:$0xff]
        %v1424 = vld [vmem:[#allocation6 + $0x100] sm:$0xff]
        %v1425 = vld [vmem:[#allocation6 + $0x108] sm:$0xff]
        %v1426 = vld [vmem:[#allocation6 + $0x110] sm:$0xff]
        %v1427 = vld [vmem:[#allocation6 + $0x118] sm:$0xff]
        %v1428 = vld [vmem:[#allocation6 + $0x120] sm:$0xff]
        %v1429 = vld [vmem:[#allocation6 + $0x128] sm:$0xff]
        %v1430 = vld [vmem:[#allocation6 + $0x130] sm:$0xff]
        %v1431 = vld [vmem:[#allocation6 + $0x138] sm:$0xff]
        %v1432 = vld [vmem:[#allocation6 + $0x140] sm:$0xff]
        %v1433 = vld [vmem:[#allocation6 + $0x148] sm:$0xff]
        %v1434 = vld [vmem:[#allocation6 + $0x150] sm:$0xff]
        %v1435 = vld [vmem:[#allocation6 + $0x158] sm:$0xff]
        %v1436 = vld [vmem:[#allocation6 + $0x160] sm:$0xff]
        %v1437 = vld [vmem:[#allocation6 + $0x168] sm:$0xff]
        %v1438 = vld [vmem:[#allocation6 + $0x170] sm:$0xff]
        %v1439 = vld [vmem:[#allocation6 + $0x178] sm:$0xff]
        %v1440 = vld [vmem:[#allocation6 + $0x180] sm:$0xff]
        %v1441 = vld [vmem:[#allocation6 + $0x188] sm:$0xff]
        %v1442 = vld [vmem:[#allocation6 + $0x190] sm:$0xff]
        %v1443 = vld [vmem:[#allocation6 + $0x198] sm:$0xff]
        %v1444 = vld [vmem:[#allocation6 + $0x1a0] sm:$0xff]
        %v1445 = vld [vmem:[#allocation6 + $0x1a8] sm:$0xff]
        %v1446 = vld [vmem:[#allocation6 + $0x1b0] sm:$0xff]
        %v1447 = vld [vmem:[#allocation6 + $0x1b8] sm:$0xff]
        %v1448 = vld [vmem:[#allocation6 + $0x1c0] sm:$0xff]
        %v1449 = vld [vmem:[#allocation6 + $0x1c8] sm:$0xff]
        %v1450 = vld [vmem:[#allocation6 + $0x1d0] sm:$0xff]
        %v1451 = vld [vmem:[#allocation6 + $0x1d8] sm:$0xff]
        %v1452 = vld [vmem:[#allocation6 + $0x1e0] sm:$0xff]
        %v1453 = vld [vmem:[#allocation6 + $0x1e8] sm:$0xff]
        %v1454 = vld [vmem:[#allocation6 + $0x1f0] sm:$0xff]
        %v1455 = vld [vmem:[#allocation6 + $0x1f8] sm:$0xff]
        %v1456 = vld [vmem:[#allocation6 + $0x200] sm:$0xff]
        %v1457 = vld [vmem:[#allocation6 + $0x208] sm:$0xff]
        %v1458 = vld [vmem:[#allocation6 + $0x210] sm:$0xff]
        %v1459 = vld [vmem:[#allocation6 + $0x218] sm:$0xff]
        %v1460 = vld [vmem:[#allocation6 + $0x220] sm:$0xff]
        %v1461 = vld [vmem:[#allocation6 + $0x228] sm:$0xff]
        %v1462 = vld [vmem:[#allocation6 + $0x230] sm:$0xff]
        %v1463 = vld [vmem:[#allocation6 + $0x238] sm:$0xff]
        %v1464 = vld [vmem:[#allocation6 + $0x240] sm:$0xff]
        %v1465 = vld [vmem:[#allocation6 + $0x248] sm:$0xff]
        %v1466 = vld [vmem:[#allocation6 + $0x250] sm:$0xff]
        %v1467 = vld [vmem:[#allocation6 + $0x258] sm:$0xff]
        %v1468 = vld [vmem:[#allocation6 + $0x260] sm:$0xff]
        %v1469 = vld [vmem:[#allocation6 + $0x268] sm:$0xff]
        %v1470 = vld [vmem:[#allocation6 + $0x270] sm:$0xff]
        %v1471 = vld [vmem:[#allocation6 + $0x278] sm:$0xff]
        %v1472 = vld [vmem:[#allocation6 + $0x280] sm:$0xff]
        %v1473 = vld [vmem:[#allocation6 + $0x288] sm:$0xff]
        %v1474 = vld [vmem:[#allocation6 + $0x290] sm:$0xff]
        %v1475 = vld [vmem:[#allocation6 + $0x298] sm:$0xff]
        %v1476 = vld [vmem:[#allocation6 + $0x2a0] sm:$0xff]
        %v1477 = vld [vmem:[#allocation6 + $0x2a8] sm:$0xff]
        %v1478 = vld [vmem:[#allocation6 + $0x2b0] sm:$0xff]
        %v1479 = vld [vmem:[#allocation6 + $0x2b8] sm:$0xff]
        %v1480 = vld [vmem:[#allocation6 + $0x2c0] sm:$0xff]
        %v1481 = vld [vmem:[#allocation6 + $0x2c8] sm:$0xff]
        %v1482 = vld [vmem:[#allocation6 + $0x2d0] sm:$0xff]
        %v1483 = vld [vmem:[#allocation6 + $0x2d8] sm:$0xff]
        %v1484 = vld [vmem:[#allocation6 + $0x2e0] sm:$0xff]
        %v1485 = vld [vmem:[#allocation6 + $0x2e8] sm:$0xff]
        %v1486 = vld [vmem:[#allocation6 + $0x2f0] sm:$0xff]
        %v1487 = vld [vmem:[#allocation6 + $0x2f8] sm:$0xff]
        %v1488 = vld [vmem:[#allocation6 + $0x300] sm:$0xff]
        %v1489 = vld [vmem:[#allocation6 + $0x308] sm:$0xff]
        %v1490 = vld [vmem:[#allocation6 + $0x310] sm:$0xff]
        %v1491 = vld [vmem:[#allocation6 + $0x318] sm:$0xff]
        %v1492 = vld [vmem:[#allocation6 + $0x320] sm:$0xff]
        %v1493 = vld [vmem:[#allocation6 + $0x328] sm:$0xff]
        %v1494 = vld [vmem:[#allocation6 + $0x330] sm:$0xff]
        %v1495 = vld [vmem:[#allocation6 + $0x338] sm:$0xff]
        %v1496 = vld [vmem:[#allocation6 + $0x340] sm:$0xff]
        %v1497 = vld [vmem:[#allocation6 + $0x348] sm:$0xff]
        %v1498 = vld [vmem:[#allocation6 + $0x350] sm:$0xff]
        %v1499 = vld [vmem:[#allocation6 + $0x358] sm:$0xff]
        %v1500 = vld [vmem:[#allocation6 + $0x360] sm:$0xff]
        %v1501 = vld [vmem:[#allocation6 + $0x368] sm:$0xff]
        %v1502 = vld [vmem:[#allocation6 + $0x370] sm:$0xff]
        %v1503 = vld [vmem:[#allocation6 + $0x378] sm:$0xff]
        %v1504 = vld [vmem:[#allocation6 + $0x380] sm:$0xff]
        %v1505 = vld [vmem:[#allocation6 + $0x388] sm:$0xff]
        %v1506 = vld [vmem:[#allocation6 + $0x390] sm:$0xff]
        %v1507 = vld [vmem:[#allocation6 + $0x398] sm:$0xff]
        %v1508 = vld [vmem:[#allocation6 + $0x3a0] sm:$0xff]
        %v1509 = vld [vmem:[#allocation6 + $0x3a8] sm:$0xff]
        %v1510 = vld [vmem:[#allocation6 + $0x3b0] sm:$0xff]
        %v1511 = vld [vmem:[#allocation6 + $0x3b8] sm:$0xff]
        %v1512 = vld [vmem:[#allocation6 + $0x3c0] sm:$0xff]
        %v1513 = vld [vmem:[#allocation6 + $0x3c8] sm:$0xff]
        %v1514 = vld [vmem:[#allocation6 + $0x3d0] sm:$0xff]
        %v1515 = vld [vmem:[#allocation6 + $0x3d8] sm:$0xff]
        %v1516 = vld [vmem:[#allocation6 + $0x3e0] sm:$0xff]
        %v1517 = vld [vmem:[#allocation6 + $0x3e8] sm:$0xff]
        %v1518 = vld [vmem:[#allocation6 + $0x3f0] sm:$0xff]
        %v1519 = vld [vmem:[#allocation6 + $0x3f8] sm:$0xff]
        %v1520 = vld [vmem:[#allocation6 + $0x400] sm:$0xff]
        %v1521 = vld [vmem:[#allocation6 + $0x408] sm:$0xff]
        %v1522 = vld [vmem:[#allocation6 + $0x410] sm:$0xff]
        %v1523 = vld [vmem:[#allocation6 + $0x418] sm:$0xff]
        %v1524 = vld [vmem:[#allocation6 + $0x420] sm:$0xff]
        %v1525 = vld [vmem:[#allocation6 + $0x428] sm:$0xff]
        %v1526 = vld [vmem:[#allocation6 + $0x430] sm:$0xff]
        %v1527 = vld [vmem:[#allocation6 + $0x438] sm:$0xff]
        %v1528 = vld [vmem:[#allocation6 + $0x440] sm:$0xff]
        %v1529 = vld [vmem:[#allocation6 + $0x448] sm:$0xff]
        %v1530 = vld [vmem:[#allocation6 + $0x450] sm:$0xff]
        %v1531 = vld [vmem:[#allocation6 + $0x458] sm:$0xff]
        %v1532 = vld [vmem:[#allocation6 + $0x460] sm:$0xff]
        %v1533 = vld [vmem:[#allocation6 + $0x468] sm:$0xff]
        %v1534 = vld [vmem:[#allocation6 + $0x470] sm:$0xff]
        %v1535 = vld [vmem:[#allocation6 + $0x478] sm:$0xff]
        %s1536 = scalar_lea.vmem [#allocation18], 2
        %v1537 = vld [vmem:[%s1536] ss:$8 sm:$0x7]
        %v1539 = vperm.slane %v1537, 0
        %v1540 = vperm.slane %v1537, 1
        %v1541 = vperm.slane %v1537, 2
        %1545 = vmatpush.msra.mxu0 %v1437
        %1546 = vmatpush.msra.mxu0 %v1434
        %1547 = vmatpush.msra.mxu0 %v1431
        %1548 = vmatpush.msra.mxu0 %v1428
        %1549 = vmatpush.msra.mxu0 %v1425
        %1550 = vmatpush.msra.mxu0 %v1422
        %1551 = vmatpush.msra.mxu0 %v1419
        %1552 = vmatpush.msra.mxu0 %v1416
        %1553 = vmatpush.msra.mxu0 %v1413
        %1554 = vmatpush.msra.mxu0 %v1410
        %1555 = vmatpush.msra.mxu0 %v1407
        %1556 = vmatpush.msra.mxu0 %v1404
        %1557 = vmatpush.msra.mxu0 %v1401
        %1558 = vmatpush.msra.mxu0 %v1398
        %1559 = vmatpush.msra.mxu0 %v1395
        %1560 = vmatpush.msra.mxu0 %v1392
        %1561 = vmatmul.f32.gmra.mxu0 %v1344
        %v1562 = vpop.f32.mrf.mxu0
        %v1563 = vadd.f32 %v1539, %v1562
        %1564 = vmatmul.f32.gmra.mxu0 %v1347
        %v1565 = vpop.f32.mrf.mxu0
        %v1566 = vadd.f32 %v1539, %v1565
        %1567 = vmatmul.f32.gmra.mxu0 %v1350
        %v1568 = vpop.f32.mrf.mxu0
        %v1569 = vadd.f32 %v1539, %v1568
        %1570 = vmatmul.f32.gmra.mxu0 %v1353
        %v1571 = vpop.f32.mrf.mxu0
        %v1572 = vadd.f32 %v1539, %v1571
        %1573 = vmatmul.f32.gmra.mxu0 %v1356
        %v1574 = vpop.f32.mrf.mxu0
        %v1575 = vadd.f32 %v1539, %v1574
        %1576 = vmatmul.f32.gmra.mxu0 %v1359
        %v1577 = vpop.f32.mrf.mxu0
        %v1578 = vadd.f32 %v1539, %v1577
        %1579 = vmatmul.f32.gmra.mxu0 %v1362
        %v1580 = vpop.f32.mrf.mxu0
        %v1581 = vadd.f32 %v1539, %v1580
        %1582 = vmatmul.f32.gmra.mxu0 %v1365
        %v1583 = vpop.f32.mrf.mxu0
        %v1584 = vadd.f32 %v1539, %v1583
        %1585 = vmatmul.f32.gmra.mxu0 %v1368
        %v1586 = vpop.f32.mrf.mxu0
        %v1587 = vadd.f32 %v1539, %v1586
        %1588 = vmatmul.f32.gmra.mxu0 %v1371
        %v1589 = vpop.f32.mrf.mxu0
        %v1590 = vadd.f32 %v1539, %v1589
        %1591 = vmatmul.f32.gmra.mxu0 %v1374
        %v1592 = vpop.f32.mrf.mxu0
        %v1593 = vadd.f32 %v1539, %v1592
        %1594 = vmatmul.f32.gmra.mxu0 %v1377
        %v1595 = vpop.f32.mrf.mxu0
        %v1596 = vadd.f32 %v1539, %v1595
        %1597 = vmatmul.f32.gmra.mxu0 %v1380
        %v1598 = vpop.f32.mrf.mxu0
        %v1599 = vadd.f32 %v1539, %v1598
        %1600 = vmatmul.f32.gmra.mxu0 %v1383
        %v1601 = vpop.f32.mrf.mxu0
        %v1602 = vadd.f32 %v1539, %v1601
        %1603 = vmatmul.f32.gmra.mxu0 %v1386
        %v1604 = vpop.f32.mrf.mxu0
        %v1605 = vadd.f32 %v1539, %v1604
        %1606 = vmatmul.f32.gmra.mxu0 %v1389
        %v1607 = vpop.f32.mrf.mxu0
        %v1608 = vadd.f32 %v1539, %v1607
        %1609 = vdwg.mxu0
        %1610 = vmatpush.msra.mxu0 %v1485
        %1611 = vmatpush.msra.mxu0 %v1482
        %1612 = vmatpush.msra.mxu0 %v1479
        %1613 = vmatpush.msra.mxu0 %v1476
        %1614 = vmatpush.msra.mxu0 %v1473
        %1615 = vmatpush.msra.mxu0 %v1470
        %1616 = vmatpush.msra.mxu0 %v1467
        %1617 = vmatpush.msra.mxu0 %v1464
        %1618 = vmatpush.msra.mxu0 %v1461
        %1619 = vmatpush.msra.mxu0 %v1458
        %1620 = vmatpush.msra.mxu0 %v1455
        %1621 = vmatpush.msra.mxu0 %v1452
        %1622 = vmatpush.msra.mxu0 %v1449
        %1623 = vmatpush.msra.mxu0 %v1446
        %1624 = vmatpush.msra.mxu0 %v1443
        %1625 = vmatpush.msra.mxu0 %v1440
        %1626 = vmatmul.f32.gmra.mxu0 %v1345
        %v1627 = vpop.f32.mrf.mxu0
        %v1628 = vadd.f32 %v1563, %v1627
        %1629 = vmatmul.f32.gmra.mxu0 %v1348
        %v1630 = vpop.f32.mrf.mxu0
        %v1631 = vadd.f32 %v1566, %v1630
        %1632 = vmatmul.f32.gmra.mxu0 %v1351
        %v1633 = vpop.f32.mrf.mxu0
        %v1634 = vadd.f32 %v1569, %v1633
        %1635 = vmatmul.f32.gmra.mxu0 %v1354
        %v1636 = vpop.f32.mrf.mxu0
        %v1637 = vadd.f32 %v1572, %v1636
        %1638 = vmatmul.f32.gmra.mxu0 %v1357
        %v1639 = vpop.f32.mrf.mxu0
        %v1640 = vadd.f32 %v1575, %v1639
        %1641 = vmatmul.f32.gmra.mxu0 %v1360
        %v1642 = vpop.f32.mrf.mxu0
        %v1643 = vadd.f32 %v1578, %v1642
        %1644 = vmatmul.f32.gmra.mxu0 %v1363
        %v1645 = vpop.f32.mrf.mxu0
        %v1646 = vadd.f32 %v1581, %v1645
        %1647 = vmatmul.f32.gmra.mxu0 %v1366
        %v1648 = vpop.f32.mrf.mxu0
        %v1649 = vadd.f32 %v1584, %v1648
        %1650 = vmatmul.f32.gmra.mxu0 %v1369
        %v1651 = vpop.f32.mrf.mxu0
        %v1652 = vadd.f32 %v1587, %v1651
        %1653 = vmatmul.f32.gmra.mxu0 %v1372
        %v1654 = vpop.f32.mrf.mxu0
        %v1655 = vadd.f32 %v1590, %v1654
        %1656 = vmatmul.f32.gmra.mxu0 %v1375
        %v1657 = vpop.f32.mrf.mxu0
        %v1658 = vadd.f32 %v1593, %v1657
        %1659 = vmatmul.f32.gmra.mxu0 %v1378
        %v1660 = vpop.f32.mrf.mxu0
        %v1661 = vadd.f32 %v1596, %v1660
        %1662 = vmatmul.f32.gmra.mxu0 %v1381
        %v1663 = vpop.f32.mrf.mxu0
        %v1664 = vadd.f32 %v1599, %v1663
        %1665 = vmatmul.f32.gmra.mxu0 %v1384
        %v1666 = vpop.f32.mrf.mxu0
        %v1667 = vadd.f32 %v1602, %v1666
        %1668 = vmatmul.f32.gmra.mxu0 %v1387
        %v1669 = vpop.f32.mrf.mxu0
        %v1670 = vadd.f32 %v1605, %v1669
        %1671 = vmatmul.f32.gmra.mxu0 %v1390
        %v1672 = vpop.f32.mrf.mxu0
        %v1673 = vadd.f32 %v1608, %v1672
        %1674 = vdwg.mxu0
        %1675 = vmatpush.msra.mxu0 %v1533
        %1676 = vmatpush.msra.mxu0 %v1530
        %1677 = vmatpush.msra.mxu0 %v1527
        %1678 = vmatpush.msra.mxu0 %v1524
        %1679 = vmatpush.msra.mxu0 %v1521
        %1680 = vmatpush.msra.mxu0 %v1518
        %1681 = vmatpush.msra.mxu0 %v1515
        %1682 = vmatpush.msra.mxu0 %v1512
        %1683 = vmatpush.msra.mxu0 %v1509
        %1684 = vmatpush.msra.mxu0 %v1506
        %1685 = vmatpush.msra.mxu0 %v1503
        %1686 = vmatpush.msra.mxu0 %v1500
        %1687 = vmatpush.msra.mxu0 %v1497
        %1688 = vmatpush.msra.mxu0 %v1494
        %1689 = vmatpush.msra.mxu0 %v1491
        %1690 = vmatpush.msra.mxu0 %v1488
        %1691 = vmatmul.f32.gmra.mxu0 %v1346
        %v1692 = vpop.f32.mrf.mxu0
        %v1693 = vadd.f32 %v1628, %v1692
        %1694 = vmatmul.f32.gmra.mxu0 %v1349
        %v1695 = vpop.f32.mrf.mxu0
        %v1696 = vadd.f32 %v1631, %v1695
        %1697 = vmatmul.f32.gmra.mxu0 %v1352
        %v1698 = vpop.f32.mrf.mxu0
        %v1699 = vadd.f32 %v1634, %v1698
        %1700 = vmatmul.f32.gmra.mxu0 %v1355
        %v1701 = vpop.f32.mrf.mxu0
        %v1702 = vadd.f32 %v1637, %v1701
        %1703 = vmatmul.f32.gmra.mxu0 %v1358
        %v1704 = vpop.f32.mrf.mxu0
        %v1705 = vadd.f32 %v1640, %v1704
        %1706 = vmatmul.f32.gmra.mxu0 %v1361
        %v1707 = vpop.f32.mrf.mxu0
        %v1708 = vadd.f32 %v1643, %v1707
        %1709 = vmatmul.f32.gmra.mxu0 %v1364
        %v1710 = vpop.f32.mrf.mxu0
        %v1711 = vadd.f32 %v1646, %v1710
        %1712 = vmatmul.f32.gmra.mxu0 %v1367
        %v1713 = vpop.f32.mrf.mxu0
        %v1714 = vadd.f32 %v1649, %v1713
        %1715 = vmatmul.f32.gmra.mxu0 %v1370
        %v1716 = vpop.f32.mrf.mxu0
        %v1717 = vadd.f32 %v1652, %v1716
        %1718 = vmatmul.f32.gmra.mxu0 %v1373
        %v1719 = vpop.f32.mrf.mxu0
        %v1720 = vadd.f32 %v1655, %v1719
        %1721 = vmatmul.f32.gmra.mxu0 %v1376
        %v1722 = vpop.f32.mrf.mxu0
        %v1723 = vadd.f32 %v1658, %v1722
        %1724 = vmatmul.f32.gmra.mxu0 %v1379
        %v1725 = vpop.f32.mrf.mxu0
        %v1726 = vadd.f32 %v1661, %v1725
        %1727 = vmatmul.f32.gmra.mxu0 %v1382
        %v1728 = vpop.f32.mrf.mxu0
        %v1729 = vadd.f32 %v1664, %v1728
        %1730 = vmatmul.f32.gmra.mxu0 %v1385
        %v1731 = vpop.f32.mrf.mxu0
        %v1732 = vadd.f32 %v1667, %v1731
        %1733 = vmatmul.f32.gmra.mxu0 %v1388
        %v1734 = vpop.f32.mrf.mxu0
        %v1735 = vadd.f32 %v1670, %v1734
        %1736 = vmatmul.f32.gmra.mxu0 %v1391
        %v1737 = vpop.f32.mrf.mxu0
        %v1738 = vadd.f32 %v1673, %v1737
        %1739 = vdwg.mxu0
        %1740 = vmatpush.msra.mxu0 %v1438
        %1741 = vmatpush.msra.mxu0 %v1435
        %1742 = vmatpush.msra.mxu0 %v1432
        %1743 = vmatpush.msra.mxu0 %v1429
        %1744 = vmatpush.msra.mxu0 %v1426
        %1745 = vmatpush.msra.mxu0 %v1423
        %1746 = vmatpush.msra.mxu0 %v1420
        %1747 = vmatpush.msra.mxu0 %v1417
        %1748 = vmatpush.msra.mxu0 %v1414
        %1749 = vmatpush.msra.mxu0 %v1411
        %1750 = vmatpush.msra.mxu0 %v1408
        %1751 = vmatpush.msra.mxu0 %v1405
        %1752 = vmatpush.msra.mxu0 %v1402
        %1753 = vmatpush.msra.mxu0 %v1399
        %1754 = vmatpush.msra.mxu0 %v1396
        %1755 = vmatpush.msra.mxu0 %v1393
        %1756 = vmatmul.f32.gmra.mxu0 %v1344
        %v1757 = vpop.f32.mrf.mxu0
        %v1758 = vadd.f32 %v1540, %v1757
        %1759 = vmatmul.f32.gmra.mxu0 %v1347
        %v1760 = vpop.f32.mrf.mxu0
        %v1761 = vadd.f32 %v1540, %v1760
        %1762 = vmatmul.f32.gmra.mxu0 %v1350
        %v1763 = vpop.f32.mrf.mxu0
        %v1764 = vadd.f32 %v1540, %v1763
        %1765 = vmatmul.f32.gmra.mxu0 %v1353
        %v1766 = vpop.f32.mrf.mxu0
        %v1767 = vadd.f32 %v1540, %v1766
        %1768 = vmatmul.f32.gmra.mxu0 %v1356
        %v1769 = vpop.f32.mrf.mxu0
        %v1770 = vadd.f32 %v1540, %v1769
        %1771 = vmatmul.f32.gmra.mxu0 %v1359
        %v1772 = vpop.f32.mrf.mxu0
        %v1773 = vadd.f32 %v1540, %v1772
        %1774 = vmatmul.f32.gmra.mxu0 %v1362
        %v1775 = vpop.f32.mrf.mxu0
        %v1776 = vadd.f32 %v1540, %v1775
        %1777 = vmatmul.f32.gmra.mxu0 %v1365
        %v1778 = vpop.f32.mrf.mxu0
        %v1779 = vadd.f32 %v1540, %v1778
        %1780 = vmatmul.f32.gmra.mxu0 %v1368
        %v1781 = vpop.f32.mrf.mxu0
        %v1782 = vadd.f32 %v1540, %v1781
        %1783 = vmatmul.f32.gmra.mxu0 %v1371
        %v1784 = vpop.f32.mrf.mxu0
        %v1785 = vadd.f32 %v1540, %v1784
        %1786 = vmatmul.f32.gmra.mxu0 %v1374
        %v1787 = vpop.f32.mrf.mxu0
        %v1788 = vadd.f32 %v1540, %v1787
        %1789 = vmatmul.f32.gmra.mxu0 %v1377
        %v1790 = vpop.f32.mrf.mxu0
        %v1791 = vadd.f32 %v1540, %v1790
        %1792 = vmatmul.f32.gmra.mxu0 %v1380
        %v1793 = vpop.f32.mrf.mxu0
        %v1794 = vadd.f32 %v1540, %v1793
        %1795 = vmatmul.f32.gmra.mxu0 %v1383
        %v1796 = vpop.f32.mrf.mxu0
        %v1797 = vadd.f32 %v1540, %v1796
        %1798 = vmatmul.f32.gmra.mxu0 %v1386
        %v1799 = vpop.f32.mrf.mxu0
        %v1800 = vadd.f32 %v1540, %v1799
        %1801 = vmatmul.f32.gmra.mxu0 %v1389
        %v1802 = vpop.f32.mrf.mxu0
        %v1803 = vadd.f32 %v1540, %v1802
        %1804 = vdwg.mxu0
        %1805 = vmatpush.msra.mxu0 %v1486
        %1806 = vmatpush.msra.mxu0 %v1483
        %1807 = vmatpush.msra.mxu0 %v1480
        %1808 = vmatpush.msra.mxu0 %v1477
        %1809 = vmatpush.msra.mxu0 %v1474
        %1810 = vmatpush.msra.mxu0 %v1471
        %1811 = vmatpush.msra.mxu0 %v1468
        %1812 = vmatpush.msra.mxu0 %v1465
        %1813 = vmatpush.msra.mxu0 %v1462
        %1814 = vmatpush.msra.mxu0 %v1459
        %1815 = vmatpush.msra.mxu0 %v1456
        %1816 = vmatpush.msra.mxu0 %v1453
        %1817 = vmatpush.msra.mxu0 %v1450
        %1818 = vmatpush.msra.mxu0 %v1447
        %1819 = vmatpush.msra.mxu0 %v1444
        %1820 = vmatpush.msra.mxu0 %v1441
        %1821 = vmatmul.f32.gmra.mxu0 %v1345
        %v1822 = vpop.f32.mrf.mxu0
        %v1823 = vadd.f32 %v1758, %v1822
        %1824 = vmatmul.f32.gmra.mxu0 %v1348
        %v1825 = vpop.f32.mrf.mxu0
        %v1826 = vadd.f32 %v1761, %v1825
        %1827 = vmatmul.f32.gmra.mxu0 %v1351
        %v1828 = vpop.f32.mrf.mxu0
        %v1829 = vadd.f32 %v1764, %v1828
        %1830 = vmatmul.f32.gmra.mxu0 %v1354
        %v1831 = vpop.f32.mrf.mxu0
        %v1832 = vadd.f32 %v1767, %v1831
        %1833 = vmatmul.f32.gmra.mxu0 %v1357
        %v1834 = vpop.f32.mrf.mxu0
        %v1835 = vadd.f32 %v1770, %v1834
        %1836 = vmatmul.f32.gmra.mxu0 %v1360
        %v1837 = vpop.f32.mrf.mxu0
        %v1838 = vadd.f32 %v1773, %v1837
        %1839 = vmatmul.f32.gmra.mxu0 %v1363
        %v1840 = vpop.f32.mrf.mxu0
        %v1841 = vadd.f32 %v1776, %v1840
        %1842 = vmatmul.f32.gmra.mxu0 %v1366
        %v1843 = vpop.f32.mrf.mxu0
        %v1844 = vadd.f32 %v1779, %v1843
        %1845 = vmatmul.f32.gmra.mxu0 %v1369
        %v1846 = vpop.f32.mrf.mxu0
        %v1847 = vadd.f32 %v1782, %v1846
        %1848 = vmatmul.f32.gmra.mxu0 %v1372
        %v1849 = vpop.f32.mrf.mxu0
        %v1850 = vadd.f32 %v1785, %v1849
        %1851 = vmatmul.f32.gmra.mxu0 %v1375
        %v1852 = vpop.f32.mrf.mxu0
        %v1853 = vadd.f32 %v1788, %v1852
        %1854 = vmatmul.f32.gmra.mxu0 %v1378
        %v1855 = vpop.f32.mrf.mxu0
        %v1856 = vadd.f32 %v1791, %v1855
        %1857 = vmatmul.f32.gmra.mxu0 %v1381
        %v1858 = vpop.f32.mrf.mxu0
        %v1859 = vadd.f32 %v1794, %v1858
        %1860 = vmatmul.f32.gmra.mxu0 %v1384
        %v1861 = vpop.f32.mrf.mxu0
        %v1862 = vadd.f32 %v1797, %v1861
        %1863 = vmatmul.f32.gmra.mxu0 %v1387
        %v1864 = vpop.f32.mrf.mxu0
        %v1865 = vadd.f32 %v1800, %v1864
        %1866 = vmatmul.f32.gmra.mxu0 %v1390
        %v1867 = vpop.f32.mrf.mxu0
        %v1868 = vadd.f32 %v1803, %v1867
        %1869 = vdwg.mxu0
        %1870 = vmatpush.msra.mxu0 %v1534
        %1871 = vmatpush.msra.mxu0 %v1531
        %1872 = vmatpush.msra.mxu0 %v1528
        %1873 = vmatpush.msra.mxu0 %v1525
        %1874 = vmatpush.msra.mxu0 %v1522
        %1875 = vmatpush.msra.mxu0 %v1519
        %1876 = vmatpush.msra.mxu0 %v1516
        %1877 = vmatpush.msra.mxu0 %v1513
        %1878 = vmatpush.msra.mxu0 %v1510
        %1879 = vmatpush.msra.mxu0 %v1507
        %1880 = vmatpush.msra.mxu0 %v1504
        %1881 = vmatpush.msra.mxu0 %v1501
        %1882 = vmatpush.msra.mxu0 %v1498
        %1883 = vmatpush.msra.mxu0 %v1495
        %1884 = vmatpush.msra.mxu0 %v1492
        %1885 = vmatpush.msra.mxu0 %v1489
        %1886 = vmatmul.f32.gmra.mxu0 %v1346
        %v1887 = vpop.f32.mrf.mxu0
        %v1888 = vadd.f32 %v1823, %v1887
        %1889 = vmatmul.f32.gmra.mxu0 %v1349
        %v1890 = vpop.f32.mrf.mxu0
        %v1891 = vadd.f32 %v1826, %v1890
        %1892 = vmatmul.f32.gmra.mxu0 %v1352
        %v1893 = vpop.f32.mrf.mxu0
        %v1894 = vadd.f32 %v1829, %v1893
        %1895 = vmatmul.f32.gmra.mxu0 %v1355
        %v1896 = vpop.f32.mrf.mxu0
        %v1897 = vadd.f32 %v1832, %v1896
        %1898 = vmatmul.f32.gmra.mxu0 %v1358
        %v1899 = vpop.f32.mrf.mxu0
        %v1900 = vadd.f32 %v1835, %v1899
        %1901 = vmatmul.f32.gmra.mxu0 %v1361
        %v1902 = vpop.f32.mrf.mxu0
        %v1903 = vadd.f32 %v1838, %v1902
        %1904 = vmatmul.f32.gmra.mxu0 %v1364
        %v1905 = vpop.f32.mrf.mxu0
        %v1906 = vadd.f32 %v1841, %v1905
        %1907 = vmatmul.f32.gmra.mxu0 %v1367
        %v1908 = vpop.f32.mrf.mxu0
        %v1909 = vadd.f32 %v1844, %v1908
        %1910 = vmatmul.f32.gmra.mxu0 %v1370
        %v1911 = vpop.f32.mrf.mxu0
        %v1912 = vadd.f32 %v1847, %v1911
        %1913 = vmatmul.f32.gmra.mxu0 %v1373
        %v1914 = vpop.f32.mrf.mxu0
        %v1915 = vadd.f32 %v1850, %v1914
        %1916 = vmatmul.f32.gmra.mxu0 %v1376
        %v1917 = vpop.f32.mrf.mxu0
        %v1918 = vadd.f32 %v1853, %v1917
        %1919 = vmatmul.f32.gmra.mxu0 %v1379
        %v1920 = vpop.f32.mrf.mxu0
        %v1921 = vadd.f32 %v1856, %v1920
        %1922 = vmatmul.f32.gmra.mxu0 %v1382
        %v1923 = vpop.f32.mrf.mxu0
        %v1924 = vadd.f32 %v1859, %v1923
        %1925 = vmatmul.f32.gmra.mxu0 %v1385
        %v1926 = vpop.f32.mrf.mxu0
        %v1927 = vadd.f32 %v1862, %v1926
        %1928 = vmatmul.f32.gmra.mxu0 %v1388
        %v1929 = vpop.f32.mrf.mxu0
        %v1930 = vadd.f32 %v1865, %v1929
        %1931 = vmatmul.f32.gmra.mxu0 %v1391
        %v1932 = vpop.f32.mrf.mxu0
        %v1933 = vadd.f32 %v1868, %v1932
        %1934 = vdwg.mxu0
        %1935 = vmatpush.msra.mxu0 %v1439
        %1936 = vmatpush.msra.mxu0 %v1436
        %1937 = vmatpush.msra.mxu0 %v1433
        %1938 = vmatpush.msra.mxu0 %v1430
        %1939 = vmatpush.msra.mxu0 %v1427
        %1940 = vmatpush.msra.mxu0 %v1424
        %1941 = vmatpush.msra.mxu0 %v1421
        %1942 = vmatpush.msra.mxu0 %v1418
        %1943 = vmatpush.msra.mxu0 %v1415
        %1944 = vmatpush.msra.mxu0 %v1412
        %1945 = vmatpush.msra.mxu0 %v1409
        %1946 = vmatpush.msra.mxu0 %v1406
        %1947 = vmatpush.msra.mxu0 %v1403
        %1948 = vmatpush.msra.mxu0 %v1400
        %1949 = vmatpush.msra.mxu0 %v1397
        %1950 = vmatpush.msra.mxu0 %v1394
        %1951 = vmatmul.f32.gmra.mxu0 %v1344
        %v1952 = vpop.f32.mrf.mxu0
        %v1953 = vadd.f32 %v1541, %v1952
        %1954 = vmatmul.f32.gmra.mxu0 %v1347
        %v1955 = vpop.f32.mrf.mxu0
        %v1956 = vadd.f32 %v1541, %v1955
        %1957 = vmatmul.f32.gmra.mxu0 %v1350
        %v1958 = vpop.f32.mrf.mxu0
        %v1959 = vadd.f32 %v1541, %v1958
        %1960 = vmatmul.f32.gmra.mxu0 %v1353
        %v1961 = vpop.f32.mrf.mxu0
        %v1962 = vadd.f32 %v1541, %v1961
        %1963 = vmatmul.f32.gmra.mxu0 %v1356
        %v1964 = vpop.f32.mrf.mxu0
        %v1965 = vadd.f32 %v1541, %v1964
        %1966 = vmatmul.f32.gmra.mxu0 %v1359
        %v1967 = vpop.f32.mrf.mxu0
        %v1968 = vadd.f32 %v1541, %v1967
        %1969 = vmatmul.f32.gmra.mxu0 %v1362
        %v1970 = vpop.f32.mrf.mxu0
        %v1971 = vadd.f32 %v1541, %v1970
        %1972 = vmatmul.f32.gmra.mxu0 %v1365
        %v1973 = vpop.f32.mrf.mxu0
        %v1974 = vadd.f32 %v1541, %v1973
        %1975 = vmatmul.f32.gmra.mxu0 %v1368
        %v1976 = vpop.f32.mrf.mxu0
        %v1977 = vadd.f32 %v1541, %v1976
        %1978 = vmatmul.f32.gmra.mxu0 %v1371
        %v1979 = vpop.f32.mrf.mxu0
        %v1980 = vadd.f32 %v1541, %v1979
        %1981 = vmatmul.f32.gmra.mxu0 %v1374
        %v1982 = vpop.f32.mrf.mxu0
        %v1983 = vadd.f32 %v1541, %v1982
        %1984 = vmatmul.f32.gmra.mxu0 %v1377
        %v1985 = vpop.f32.mrf.mxu0
        %v1986 = vadd.f32 %v1541, %v1985
        %1987 = vmatmul.f32.gmra.mxu0 %v1380
        %v1988 = vpop.f32.mrf.mxu0
        %v1989 = vadd.f32 %v1541, %v1988
        %1990 = vmatmul.f32.gmra.mxu0 %v1383
        %v1991 = vpop.f32.mrf.mxu0
        %v1992 = vadd.f32 %v1541, %v1991
        %1993 = vmatmul.f32.gmra.mxu0 %v1386
        %v1994 = vpop.f32.mrf.mxu0
        %v1995 = vadd.f32 %v1541, %v1994
        %1996 = vmatmul.f32.gmra.mxu0 %v1389
        %v1997 = vpop.f32.mrf.mxu0
        %v1998 = vadd.f32 %v1541, %v1997
        %1999 = vdwg.mxu0
        %2000 = vmatpush.msra.mxu0 %v1487
        %2001 = vmatpush.msra.mxu0 %v1484
        %2002 = vmatpush.msra.mxu0 %v1481
        %2003 = vmatpush.msra.mxu0 %v1478
        %2004 = vmatpush.msra.mxu0 %v1475
        %2005 = vmatpush.msra.mxu0 %v1472
        %2006 = vmatpush.msra.mxu0 %v1469
        %2007 = vmatpush.msra.mxu0 %v1466
        %2008 = vmatpush.msra.mxu0 %v1463
        %2009 = vmatpush.msra.mxu0 %v1460
        %2010 = vmatpush.msra.mxu0 %v1457
        %2011 = vmatpush.msra.mxu0 %v1454
        %2012 = vmatpush.msra.mxu0 %v1451
        %2013 = vmatpush.msra.mxu0 %v1448
        %2014 = vmatpush.msra.mxu0 %v1445
        %2015 = vmatpush.msra.mxu0 %v1442
        %2016 = vmatmul.f32.gmra.mxu0 %v1345
        %v2017 = vpop.f32.mrf.mxu0
        %v2018 = vadd.f32 %v1953, %v2017
        %2019 = vmatmul.f32.gmra.mxu0 %v1348
        %v2020 = vpop.f32.mrf.mxu0
        %v2021 = vadd.f32 %v1956, %v2020
        %2022 = vmatmul.f32.gmra.mxu0 %v1351
        %v2023 = vpop.f32.mrf.mxu0
        %v2024 = vadd.f32 %v1959, %v2023
        %2025 = vmatmul.f32.gmra.mxu0 %v1354
        %v2026 = vpop.f32.mrf.mxu0
        %v2027 = vadd.f32 %v1962, %v2026
        %2028 = vmatmul.f32.gmra.mxu0 %v1357
        %v2029 = vpop.f32.mrf.mxu0
        %v2030 = vadd.f32 %v1965, %v2029
        %2031 = vmatmul.f32.gmra.mxu0 %v1360
        %v2032 = vpop.f32.mrf.mxu0
        %v2033 = vadd.f32 %v1968, %v2032
        %2034 = vmatmul.f32.gmra.mxu0 %v1363
        %v2035 = vpop.f32.mrf.mxu0
        %v2036 = vadd.f32 %v1971, %v2035
        %2037 = vmatmul.f32.gmra.mxu0 %v1366
        %v2038 = vpop.f32.mrf.mxu0
        %v2039 = vadd.f32 %v1974, %v2038
        %2040 = vmatmul.f32.gmra.mxu0 %v1369
        %v2041 = vpop.f32.mrf.mxu0
        %v2042 = vadd.f32 %v1977, %v2041
        %2043 = vmatmul.f32.gmra.mxu0 %v1372
        %v2044 = vpop.f32.mrf.mxu0
        %v2045 = vadd.f32 %v1980, %v2044
        %2046 = vmatmul.f32.gmra.mxu0 %v1375
        %v2047 = vpop.f32.mrf.mxu0
        %v2048 = vadd.f32 %v1983, %v2047
        %2049 = vmatmul.f32.gmra.mxu0 %v1378
        %v2050 = vpop.f32.mrf.mxu0
        %v2051 = vadd.f32 %v1986, %v2050
        %2052 = vmatmul.f32.gmra.mxu0 %v1381
        %v2053 = vpop.f32.mrf.mxu0
        %v2054 = vadd.f32 %v1989, %v2053
        %2055 = vmatmul.f32.gmra.mxu0 %v1384
        %v2056 = vpop.f32.mrf.mxu0
        %v2057 = vadd.f32 %v1992, %v2056
        %2058 = vmatmul.f32.gmra.mxu0 %v1387
        %v2059 = vpop.f32.mrf.mxu0
        %v2060 = vadd.f32 %v1995, %v2059
        %2061 = vmatmul.f32.gmra.mxu0 %v1390
        %v2062 = vpop.f32.mrf.mxu0
        %v2063 = vadd.f32 %v1998, %v2062
        %2064 = vdwg.mxu0
        %2065 = vmatpush.msra.mxu0 %v1535
        %2066 = vmatpush.msra.mxu0 %v1532
        %2067 = vmatpush.msra.mxu0 %v1529
        %2068 = vmatpush.msra.mxu0 %v1526
        %2069 = vmatpush.msra.mxu0 %v1523
        %2070 = vmatpush.msra.mxu0 %v1520
        %2071 = vmatpush.msra.mxu0 %v1517
        %2072 = vmatpush.msra.mxu0 %v1514
        %2073 = vmatpush.msra.mxu0 %v1511
        %2074 = vmatpush.msra.mxu0 %v1508
        %2075 = vmatpush.msra.mxu0 %v1505
        %2076 = vmatpush.msra.mxu0 %v1502
        %2077 = vmatpush.msra.mxu0 %v1499
        %2078 = vmatpush.msra.mxu0 %v1496
        %2079 = vmatpush.msra.mxu0 %v1493
        %2080 = vmatpush.msra.mxu0 %v1490
        %2081 = vmatmul.f32.gmra.mxu0 %v1346
        %v2082 = vpop.f32.mrf.mxu0
        %v2083 = vadd.f32 %v2018, %v2082
        %2084 = vmatmul.f32.gmra.mxu0 %v1349
        %v2085 = vpop.f32.mrf.mxu0
        %v2086 = vadd.f32 %v2021, %v2085
        %2087 = vmatmul.f32.gmra.mxu0 %v1352
        %v2088 = vpop.f32.mrf.mxu0
        %v2089 = vadd.f32 %v2024, %v2088
        %2090 = vmatmul.f32.gmra.mxu0 %v1355
        %v2091 = vpop.f32.mrf.mxu0
        %v2092 = vadd.f32 %v2027, %v2091
        %2093 = vmatmul.f32.gmra.mxu0 %v1358
        %v2094 = vpop.f32.mrf.mxu0
        %v2095 = vadd.f32 %v2030, %v2094
        %2096 = vmatmul.f32.gmra.mxu0 %v1361
        %v2097 = vpop.f32.mrf.mxu0
        %v2098 = vadd.f32 %v2033, %v2097
        %2099 = vmatmul.f32.gmra.mxu0 %v1364
        %v2100 = vpop.f32.mrf.mxu0
        %v2101 = vadd.f32 %v2036, %v2100
        %2102 = vmatmul.f32.gmra.mxu0 %v1367
        %v2103 = vpop.f32.mrf.mxu0
        %v2104 = vadd.f32 %v2039, %v2103
        %2105 = vmatmul.f32.gmra.mxu0 %v1370
        %v2106 = vpop.f32.mrf.mxu0
        %v2107 = vadd.f32 %v2042, %v2106
        %2108 = vmatmul.f32.gmra.mxu0 %v1373
        %v2109 = vpop.f32.mrf.mxu0
        %v2110 = vadd.f32 %v2045, %v2109
        %2111 = vmatmul.f32.gmra.mxu0 %v1376
        %v2112 = vpop.f32.mrf.mxu0
        %v2113 = vadd.f32 %v2048, %v2112
        %2114 = vmatmul.f32.gmra.mxu0 %v1379
        %v2115 = vpop.f32.mrf.mxu0
        %v2116 = vadd.f32 %v2051, %v2115
        %2117 = vmatmul.f32.gmra.mxu0 %v1382
        %v2118 = vpop.f32.mrf.mxu0
        %v2119 = vadd.f32 %v2054, %v2118
        %2120 = vmatmul.f32.gmra.mxu0 %v1385
        %v2121 = vpop.f32.mrf.mxu0
        %v2122 = vadd.f32 %v2057, %v2121
        %2123 = vmatmul.f32.gmra.mxu0 %v1388
        %v2124 = vpop.f32.mrf.mxu0
        %v2125 = vadd.f32 %v2060, %v2124
        %2126 = vmatmul.f32.gmra.mxu0 %v1391
        %v2127 = vpop.f32.mrf.mxu0
        %v2128 = vadd.f32 %v2063, %v2127
        %2129 = vdwg.mxu0
        %v2130 = vmax.f32 %v1693, 0.0
        %v2131 = vmax.f32 %v1888, 0.0
        %v2132 = vmax.f32 %v2083, 0.0
        %v2133 = vmax.f32 %v1696, 0.0
        %v2134 = vmax.f32 %v1891, 0.0
        %v2135 = vmax.f32 %v2086, 0.0
        %v2136 = vmax.f32 %v1699, 0.0
        %v2137 = vmax.f32 %v1894, 0.0
        %v2138 = vmax.f32 %v2089, 0.0
        %v2139 = vmax.f32 %v1702, 0.0
        %v2140 = vmax.f32 %v1897, 0.0
        %v2141 = vmax.f32 %v2092, 0.0
        %v2142 = vmax.f32 %v1705, 0.0
        %v2143 = vmax.f32 %v1900, 0.0
        %v2144 = vmax.f32 %v2095, 0.0
        %v2145 = vmax.f32 %v1708, 0.0
        %v2146 = vmax.f32 %v1903, 0.0
        %v2147 = vmax.f32 %v2098, 0.0
        %v2148 = vmax.f32 %v1711, 0.0
        %v2149 = vmax.f32 %v1906, 0.0
        %v2150 = vmax.f32 %v2101, 0.0
        %v2151 = vmax.f32 %v1714, 0.0
        %v2152 = vmax.f32 %v1909, 0.0
        %v2153 = vmax.f32 %v2104, 0.0
        %v2154 = vmax.f32 %v1717, 0.0
        %v2155 = vmax.f32 %v1912, 0.0
        %v2156 = vmax.f32 %v2107, 0.0
        %v2157 = vmax.f32 %v1720, 0.0
        %v2158 = vmax.f32 %v1915, 0.0
        %v2159 = vmax.f32 %v2110, 0.0
        %v2160 = vmax.f32 %v1723, 0.0
        %v2161 = vmax.f32 %v1918, 0.0
        %v2162 = vmax.f32 %v2113, 0.0
        %v2163 = vmax.f32 %v1726, 0.0
        %v2164 = vmax.f32 %v1921, 0.0
        %v2165 = vmax.f32 %v2116, 0.0
        %v2166 = vmax.f32 %v1729, 0.0
        %v2167 = vmax.f32 %v1924, 0.0
        %v2168 = vmax.f32 %v2119, 0.0
        %v2169 = vmax.f32 %v1732, 0.0
        %v2170 = vmax.f32 %v1927, 0.0
        %v2171 = vmax.f32 %v2122, 0.0
        %v2172 = vmax.f32 %v1735, 0.0
        %v2173 = vmax.f32 %v1930, 0.0
        %v2174 = vmax.f32 %v2125, 0.0
        %v2175 = vmax.f32 %v1738, 0.0
        %v2176 = vmax.f32 %v1933, 0.0
        %v2177 = vmax.f32 %v2128, 0.0
        %v2178 = vld [vmem:[#allocation7] sm:$0xff]
        %v2179 = vld [vmem:[#allocation7 + $0x8] sm:$0xff]
        %v2180 = vld [vmem:[#allocation7 + $0x10] sm:$0xff]
        %v2181 = vld [vmem:[#allocation7 + $0x18] sm:$0xff]
        %v2182 = vld [vmem:[#allocation7 + $0x20] sm:$0xff]
        %v2183 = vld [vmem:[#allocation7 + $0x28] sm:$0xff]
        %v2184 = vld [vmem:[#allocation7 + $0x30] sm:$0xff]
        %v2185 = vld [vmem:[#allocation7 + $0x38] sm:$0xff]
        %v2186 = vld [vmem:[#allocation7 + $0x40] sm:$0xff]
        %v2187 = vld [vmem:[#allocation7 + $0x48] sm:$0xff]
        %v2188 = vld [vmem:[#allocation7 + $0x50] sm:$0xff]
        %v2189 = vld [vmem:[#allocation7 + $0x58] sm:$0xff]
        %v2190 = vld [vmem:[#allocation7 + $0x60] sm:$0xff]
        %v2191 = vld [vmem:[#allocation7 + $0x68] sm:$0xff]
        %v2192 = vld [vmem:[#allocation7 + $0x70] sm:$0xff]
        %v2193 = vld [vmem:[#allocation7 + $0x78] sm:$0xff]
        %v2194 = vld [vmem:[#allocation7 + $0x80] sm:$0xff]
        %v2195 = vld [vmem:[#allocation7 + $0x88] sm:$0xff]
        %v2196 = vld [vmem:[#allocation7 + $0x90] sm:$0xff]
        %v2197 = vld [vmem:[#allocation7 + $0x98] sm:$0xff]
        %v2198 = vld [vmem:[#allocation7 + $0xa0] sm:$0xff]
        %v2199 = vld [vmem:[#allocation7 + $0xa8] sm:$0xff]
        %v2200 = vld [vmem:[#allocation7 + $0xb0] sm:$0xff]
        %v2201 = vld [vmem:[#allocation7 + $0xb8] sm:$0xff]
        %v2202 = vld [vmem:[#allocation7 + $0xc0] sm:$0xff]
        %v2203 = vld [vmem:[#allocation7 + $0xc8] sm:$0xff]
        %v2204 = vld [vmem:[#allocation7 + $0xd0] sm:$0xff]
        %v2205 = vld [vmem:[#allocation7 + $0xd8] sm:$0xff]
        %v2206 = vld [vmem:[#allocation7 + $0xe0] sm:$0xff]
        %v2207 = vld [vmem:[#allocation7 + $0xe8] sm:$0xff]
        %v2208 = vld [vmem:[#allocation7 + $0xf0] sm:$0xff]
        %v2209 = vld [vmem:[#allocation7 + $0xf8] sm:$0xff]
        %v2210 = vld [vmem:[#allocation7 + $0x100] sm:$0xff]
        %v2211 = vld [vmem:[#allocation7 + $0x108] sm:$0xff]
        %v2212 = vld [vmem:[#allocation7 + $0x110] sm:$0xff]
        %v2213 = vld [vmem:[#allocation7 + $0x118] sm:$0xff]
        %v2214 = vld [vmem:[#allocation7 + $0x120] sm:$0xff]
        %v2215 = vld [vmem:[#allocation7 + $0x128] sm:$0xff]
        %v2216 = vld [vmem:[#allocation7 + $0x130] sm:$0xff]
        %v2217 = vld [vmem:[#allocation7 + $0x138] sm:$0xff]
        %v2218 = vld [vmem:[#allocation7 + $0x140] sm:$0xff]
        %v2219 = vld [vmem:[#allocation7 + $0x148] sm:$0xff]
        %v2220 = vld [vmem:[#allocation7 + $0x150] sm:$0xff]
        %v2221 = vld [vmem:[#allocation7 + $0x158] sm:$0xff]
        %v2222 = vld [vmem:[#allocation7 + $0x160] sm:$0xff]
        %v2223 = vld [vmem:[#allocation7 + $0x168] sm:$0xff]
        %v2224 = vld [vmem:[#allocation7 + $0x170] sm:$0xff]
        %v2225 = vld [vmem:[#allocation7 + $0x178] sm:$0xff]
        %v2226 = vld [vmem:[#allocation7 + $0x180] sm:$0xff]
        %v2227 = vld [vmem:[#allocation7 + $0x188] sm:$0xff]
        %v2228 = vld [vmem:[#allocation7 + $0x190] sm:$0xff]
        %v2229 = vld [vmem:[#allocation7 + $0x198] sm:$0xff]
        %v2230 = vld [vmem:[#allocation7 + $0x1a0] sm:$0xff]
        %v2231 = vld [vmem:[#allocation7 + $0x1a8] sm:$0xff]
        %v2232 = vld [vmem:[#allocation7 + $0x1b0] sm:$0xff]
        %v2233 = vld [vmem:[#allocation7 + $0x1b8] sm:$0xff]
        %v2234 = vld [vmem:[#allocation7 + $0x1c0] sm:$0xff]
        %v2235 = vld [vmem:[#allocation7 + $0x1c8] sm:$0xff]
        %v2236 = vld [vmem:[#allocation7 + $0x1d0] sm:$0xff]
        %v2237 = vld [vmem:[#allocation7 + $0x1d8] sm:$0xff]
        %v2238 = vld [vmem:[#allocation7 + $0x1e0] sm:$0xff]
        %v2239 = vld [vmem:[#allocation7 + $0x1e8] sm:$0xff]
        %v2240 = vld [vmem:[#allocation7 + $0x1f0] sm:$0xff]
        %v2241 = vld [vmem:[#allocation7 + $0x1f8] sm:$0xff]
        %v2242 = vld [vmem:[#allocation7 + $0x200] sm:$0xff]
        %v2243 = vld [vmem:[#allocation7 + $0x208] sm:$0xff]
        %v2244 = vld [vmem:[#allocation7 + $0x210] sm:$0xff]
        %v2245 = vld [vmem:[#allocation7 + $0x218] sm:$0xff]
        %v2246 = vld [vmem:[#allocation7 + $0x220] sm:$0xff]
        %v2247 = vld [vmem:[#allocation7 + $0x228] sm:$0xff]
        %v2248 = vld [vmem:[#allocation7 + $0x230] sm:$0xff]
        %v2249 = vld [vmem:[#allocation7 + $0x238] sm:$0xff]
        %v2250 = vld [vmem:[#allocation7 + $0x240] sm:$0xff]
        %v2251 = vld [vmem:[#allocation7 + $0x248] sm:$0xff]
        %v2252 = vld [vmem:[#allocation7 + $0x250] sm:$0xff]
        %v2253 = vld [vmem:[#allocation7 + $0x258] sm:$0xff]
        %v2254 = vld [vmem:[#allocation7 + $0x260] sm:$0xff]
        %v2255 = vld [vmem:[#allocation7 + $0x268] sm:$0xff]
        %v2256 = vld [vmem:[#allocation7 + $0x270] sm:$0xff]
        %v2257 = vld [vmem:[#allocation7 + $0x278] sm:$0xff]
        %v2258 = vld [vmem:[#allocation7 + $0x280] sm:$0xff]
        %v2259 = vld [vmem:[#allocation7 + $0x288] sm:$0xff]
        %v2260 = vld [vmem:[#allocation7 + $0x290] sm:$0xff]
        %v2261 = vld [vmem:[#allocation7 + $0x298] sm:$0xff]
        %v2262 = vld [vmem:[#allocation7 + $0x2a0] sm:$0xff]
        %v2263 = vld [vmem:[#allocation7 + $0x2a8] sm:$0xff]
        %v2264 = vld [vmem:[#allocation7 + $0x2b0] sm:$0xff]
        %v2265 = vld [vmem:[#allocation7 + $0x2b8] sm:$0xff]
        %v2266 = vld [vmem:[#allocation7 + $0x2c0] sm:$0xff]
        %v2267 = vld [vmem:[#allocation7 + $0x2c8] sm:$0xff]
        %v2268 = vld [vmem:[#allocation7 + $0x2d0] sm:$0xff]
        %v2269 = vld [vmem:[#allocation7 + $0x2d8] sm:$0xff]
        %v2270 = vld [vmem:[#allocation7 + $0x2e0] sm:$0xff]
        %v2271 = vld [vmem:[#allocation7 + $0x2e8] sm:$0xff]
        %v2272 = vld [vmem:[#allocation7 + $0x2f0] sm:$0xff]
        %v2273 = vld [vmem:[#allocation7 + $0x2f8] sm:$0xff]
        %v2274 = vld [vmem:[#allocation7 + $0x300] sm:$0xff]
        %v2275 = vld [vmem:[#allocation7 + $0x308] sm:$0xff]
        %v2276 = vld [vmem:[#allocation7 + $0x310] sm:$0xff]
        %v2277 = vld [vmem:[#allocation7 + $0x318] sm:$0xff]
        %v2278 = vld [vmem:[#allocation7 + $0x320] sm:$0xff]
        %v2279 = vld [vmem:[#allocation7 + $0x328] sm:$0xff]
        %v2280 = vld [vmem:[#allocation7 + $0x330] sm:$0xff]
        %v2281 = vld [vmem:[#allocation7 + $0x338] sm:$0xff]
        %v2282 = vld [vmem:[#allocation7 + $0x340] sm:$0xff]
        %v2283 = vld [vmem:[#allocation7 + $0x348] sm:$0xff]
        %v2284 = vld [vmem:[#allocation7 + $0x350] sm:$0xff]
        %v2285 = vld [vmem:[#allocation7 + $0x358] sm:$0xff]
        %v2286 = vld [vmem:[#allocation7 + $0x360] sm:$0xff]
        %v2287 = vld [vmem:[#allocation7 + $0x368] sm:$0xff]
        %v2288 = vld [vmem:[#allocation7 + $0x370] sm:$0xff]
        %v2289 = vld [vmem:[#allocation7 + $0x378] sm:$0xff]
        %v2290 = vld [vmem:[#allocation7 + $0x380] sm:$0xff]
        %v2291 = vld [vmem:[#allocation7 + $0x388] sm:$0xff]
        %v2292 = vld [vmem:[#allocation7 + $0x390] sm:$0xff]
        %v2293 = vld [vmem:[#allocation7 + $0x398] sm:$0xff]
        %v2294 = vld [vmem:[#allocation7 + $0x3a0] sm:$0xff]
        %v2295 = vld [vmem:[#allocation7 + $0x3a8] sm:$0xff]
        %v2296 = vld [vmem:[#allocation7 + $0x3b0] sm:$0xff]
        %v2297 = vld [vmem:[#allocation7 + $0x3b8] sm:$0xff]
        %v2298 = vld [vmem:[#allocation7 + $0x3c0] sm:$0xff]
        %v2299 = vld [vmem:[#allocation7 + $0x3c8] sm:$0xff]
        %v2300 = vld [vmem:[#allocation7 + $0x3d0] sm:$0xff]
        %v2301 = vld [vmem:[#allocation7 + $0x3d8] sm:$0xff]
        %v2302 = vld [vmem:[#allocation7 + $0x3e0] sm:$0xff]
        %v2303 = vld [vmem:[#allocation7 + $0x3e8] sm:$0xff]
        %v2304 = vld [vmem:[#allocation7 + $0x3f0] sm:$0xff]
        %v2305 = vld [vmem:[#allocation7 + $0x3f8] sm:$0xff]
        %v2306 = vld [vmem:[#allocation7 + $0x400] sm:$0xff]
        %v2307 = vld [vmem:[#allocation7 + $0x408] sm:$0xff]
        %v2308 = vld [vmem:[#allocation7 + $0x410] sm:$0xff]
        %v2309 = vld [vmem:[#allocation7 + $0x418] sm:$0xff]
        %v2310 = vld [vmem:[#allocation7 + $0x420] sm:$0xff]
        %v2311 = vld [vmem:[#allocation7 + $0x428] sm:$0xff]
        %v2312 = vld [vmem:[#allocation7 + $0x430] sm:$0xff]
        %v2313 = vld [vmem:[#allocation7 + $0x438] sm:$0xff]
        %v2314 = vld [vmem:[#allocation7 + $0x440] sm:$0xff]
        %v2315 = vld [vmem:[#allocation7 + $0x448] sm:$0xff]
        %v2316 = vld [vmem:[#allocation7 + $0x450] sm:$0xff]
        %v2317 = vld [vmem:[#allocation7 + $0x458] sm:$0xff]
        %v2318 = vld [vmem:[#allocation7 + $0x460] sm:$0xff]
        %v2319 = vld [vmem:[#allocation7 + $0x468] sm:$0xff]
        %v2320 = vld [vmem:[#allocation7 + $0x470] sm:$0xff]
        %v2321 = vld [vmem:[#allocation7 + $0x478] sm:$0xff]
        %s2322 = scalar_lea.vmem [#allocation18], 3
        %v2323 = vld [vmem:[%s2322] ss:$8 sm:$0x7]
        %v2325 = vperm.slane %v2323, 0
        %v2326 = vperm.slane %v2323, 1
        %v2327 = vperm.slane %v2323, 2
        %2331 = vmatpush.msra.mxu0 %v2223
        %2332 = vmatpush.msra.mxu0 %v2220
        %2333 = vmatpush.msra.mxu0 %v2217
        %2334 = vmatpush.msra.mxu0 %v2214
        %2335 = vmatpush.msra.mxu0 %v2211
        %2336 = vmatpush.msra.mxu0 %v2208
        %2337 = vmatpush.msra.mxu0 %v2205
        %2338 = vmatpush.msra.mxu0 %v2202
        %2339 = vmatpush.msra.mxu0 %v2199
        %2340 = vmatpush.msra.mxu0 %v2196
        %2341 = vmatpush.msra.mxu0 %v2193
        %2342 = vmatpush.msra.mxu0 %v2190
        %2343 = vmatpush.msra.mxu0 %v2187
        %2344 = vmatpush.msra.mxu0 %v2184
        %2345 = vmatpush.msra.mxu0 %v2181
        %2346 = vmatpush.msra.mxu0 %v2178
        %2347 = vmatmul.f32.gmra.mxu0 %v2130
        %v2348 = vpop.f32.mrf.mxu0
        %v2349 = vadd.f32 %v2325, %v2348
        %2350 = vmatmul.f32.gmra.mxu0 %v2133
        %v2351 = vpop.f32.mrf.mxu0
        %v2352 = vadd.f32 %v2325, %v2351
        %2353 = vmatmul.f32.gmra.mxu0 %v2136
        %v2354 = vpop.f32.mrf.mxu0
        %v2355 = vadd.f32 %v2325, %v2354
        %2356 = vmatmul.f32.gmra.mxu0 %v2139
        %v2357 = vpop.f32.mrf.mxu0
        %v2358 = vadd.f32 %v2325, %v2357
        %2359 = vmatmul.f32.gmra.mxu0 %v2142
        %v2360 = vpop.f32.mrf.mxu0
        %v2361 = vadd.f32 %v2325, %v2360
        %2362 = vmatmul.f32.gmra.mxu0 %v2145
        %v2363 = vpop.f32.mrf.mxu0
        %v2364 = vadd.f32 %v2325, %v2363
        %2365 = vmatmul.f32.gmra.mxu0 %v2148
        %v2366 = vpop.f32.mrf.mxu0
        %v2367 = vadd.f32 %v2325, %v2366
        %2368 = vmatmul.f32.gmra.mxu0 %v2151
        %v2369 = vpop.f32.mrf.mxu0
        %v2370 = vadd.f32 %v2325, %v2369
        %2371 = vmatmul.f32.gmra.mxu0 %v2154
        %v2372 = vpop.f32.mrf.mxu0
        %v2373 = vadd.f32 %v2325, %v2372
        %2374 = vmatmul.f32.gmra.mxu0 %v2157
        %v2375 = vpop.f32.mrf.mxu0
        %v2376 = vadd.f32 %v2325, %v2375
        %2377 = vmatmul.f32.gmra.mxu0 %v2160
        %v2378 = vpop.f32.mrf.mxu0
        %v2379 = vadd.f32 %v2325, %v2378
        %2380 = vmatmul.f32.gmra.mxu0 %v2163
        %v2381 = vpop.f32.mrf.mxu0
        %v2382 = vadd.f32 %v2325, %v2381
        %2383 = vmatmul.f32.gmra.mxu0 %v2166
        %v2384 = vpop.f32.mrf.mxu0
        %v2385 = vadd.f32 %v2325, %v2384
        %2386 = vmatmul.f32.gmra.mxu0 %v2169
        %v2387 = vpop.f32.mrf.mxu0
        %v2388 = vadd.f32 %v2325, %v2387
        %2389 = vmatmul.f32.gmra.mxu0 %v2172
        %v2390 = vpop.f32.mrf.mxu0
        %v2391 = vadd.f32 %v2325, %v2390
        %2392 = vmatmul.f32.gmra.mxu0 %v2175
        %v2393 = vpop.f32.mrf.mxu0
        %v2394 = vadd.f32 %v2325, %v2393
        %2395 = vdwg.mxu0
        %2396 = vmatpush.msra.mxu0 %v2271
        %2397 = vmatpush.msra.mxu0 %v2268
        %2398 = vmatpush.msra.mxu0 %v2265
        %2399 = vmatpush.msra.mxu0 %v2262
        %2400 = vmatpush.msra.mxu0 %v2259
        %2401 = vmatpush.msra.mxu0 %v2256
        %2402 = vmatpush.msra.mxu0 %v2253
        %2403 = vmatpush.msra.mxu0 %v2250
        %2404 = vmatpush.msra.mxu0 %v2247
        %2405 = vmatpush.msra.mxu0 %v2244
        %2406 = vmatpush.msra.mxu0 %v2241
        %2407 = vmatpush.msra.mxu0 %v2238
        %2408 = vmatpush.msra.mxu0 %v2235
        %2409 = vmatpush.msra.mxu0 %v2232
        %2410 = vmatpush.msra.mxu0 %v2229
        %2411 = vmatpush.msra.mxu0 %v2226
        %2412 = vmatmul.f32.gmra.mxu0 %v2131
        %v2413 = vpop.f32.mrf.mxu0
        %v2414 = vadd.f32 %v2349, %v2413
        %2415 = vmatmul.f32.gmra.mxu0 %v2134
        %v2416 = vpop.f32.mrf.mxu0
        %v2417 = vadd.f32 %v2352, %v2416
        %2418 = vmatmul.f32.gmra.mxu0 %v2137
        %v2419 = vpop.f32.mrf.mxu0
        %v2420 = vadd.f32 %v2355, %v2419
        %2421 = vmatmul.f32.gmra.mxu0 %v2140
        %v2422 = vpop.f32.mrf.mxu0
        %v2423 = vadd.f32 %v2358, %v2422
        %2424 = vmatmul.f32.gmra.mxu0 %v2143
        %v2425 = vpop.f32.mrf.mxu0
        %v2426 = vadd.f32 %v2361, %v2425
        %2427 = vmatmul.f32.gmra.mxu0 %v2146
        %v2428 = vpop.f32.mrf.mxu0
        %v2429 = vadd.f32 %v2364, %v2428
        %2430 = vmatmul.f32.gmra.mxu0 %v2149
        %v2431 = vpop.f32.mrf.mxu0
        %v2432 = vadd.f32 %v2367, %v2431
        %2433 = vmatmul.f32.gmra.mxu0 %v2152
        %v2434 = vpop.f32.mrf.mxu0
        %v2435 = vadd.f32 %v2370, %v2434
        %2436 = vmatmul.f32.gmra.mxu0 %v2155
        %v2437 = vpop.f32.mrf.mxu0
        %v2438 = vadd.f32 %v2373, %v2437
        %2439 = vmatmul.f32.gmra.mxu0 %v2158
        %v2440 = vpop.f32.mrf.mxu0
        %v2441 = vadd.f32 %v2376, %v2440
        %2442 = vmatmul.f32.gmra.mxu0 %v2161
        %v2443 = vpop.f32.mrf.mxu0
        %v2444 = vadd.f32 %v2379, %v2443
        %2445 = vmatmul.f32.gmra.mxu0 %v2164
        %v2446 = vpop.f32.mrf.mxu0
        %v2447 = vadd.f32 %v2382, %v2446
        %2448 = vmatmul.f32.gmra.mxu0 %v2167
        %v2449 = vpop.f32.mrf.mxu0
        %v2450 = vadd.f32 %v2385, %v2449
        %2451 = vmatmul.f32.gmra.mxu0 %v2170
        %v2452 = vpop.f32.mrf.mxu0
        %v2453 = vadd.f32 %v2388, %v2452
        %2454 = vmatmul.f32.gmra.mxu0 %v2173
        %v2455 = vpop.f32.mrf.mxu0
        %v2456 = vadd.f32 %v2391, %v2455
        %2457 = vmatmul.f32.gmra.mxu0 %v2176
        %v2458 = vpop.f32.mrf.mxu0
        %v2459 = vadd.f32 %v2394, %v2458
        %2460 = vdwg.mxu0
        %2461 = vmatpush.msra.mxu0 %v2319
        %2462 = vmatpush.msra.mxu0 %v2316
        %2463 = vmatpush.msra.mxu0 %v2313
        %2464 = vmatpush.msra.mxu0 %v2310
        %2465 = vmatpush.msra.mxu0 %v2307
        %2466 = vmatpush.msra.mxu0 %v2304
        %2467 = vmatpush.msra.mxu0 %v2301
        %2468 = vmatpush.msra.mxu0 %v2298
        %2469 = vmatpush.msra.mxu0 %v2295
        %2470 = vmatpush.msra.mxu0 %v2292
        %2471 = vmatpush.msra.mxu0 %v2289
        %2472 = vmatpush.msra.mxu0 %v2286
        %2473 = vmatpush.msra.mxu0 %v2283
        %2474 = vmatpush.msra.mxu0 %v2280
        %2475 = vmatpush.msra.mxu0 %v2277
        %2476 = vmatpush.msra.mxu0 %v2274
        %2477 = vmatmul.f32.gmra.mxu0 %v2132
        %v2478 = vpop.f32.mrf.mxu0
        %v2479 = vadd.f32 %v2414, %v2478
        %2480 = vmatmul.f32.gmra.mxu0 %v2135
        %v2481 = vpop.f32.mrf.mxu0
        %v2482 = vadd.f32 %v2417, %v2481
        %2483 = vmatmul.f32.gmra.mxu0 %v2138
        %v2484 = vpop.f32.mrf.mxu0
        %v2485 = vadd.f32 %v2420, %v2484
        %2486 = vmatmul.f32.gmra.mxu0 %v2141
        %v2487 = vpop.f32.mrf.mxu0
        %v2488 = vadd.f32 %v2423, %v2487
        %2489 = vmatmul.f32.gmra.mxu0 %v2144
        %v2490 = vpop.f32.mrf.mxu0
        %v2491 = vadd.f32 %v2426, %v2490
        %2492 = vmatmul.f32.gmra.mxu0 %v2147
        %v2493 = vpop.f32.mrf.mxu0
        %v2494 = vadd.f32 %v2429, %v2493
        %2495 = vmatmul.f32.gmra.mxu0 %v2150
        %v2496 = vpop.f32.mrf.mxu0
        %v2497 = vadd.f32 %v2432, %v2496
        %2498 = vmatmul.f32.gmra.mxu0 %v2153
        %v2499 = vpop.f32.mrf.mxu0
        %v2500 = vadd.f32 %v2435, %v2499
        %2501 = vmatmul.f32.gmra.mxu0 %v2156
        %v2502 = vpop.f32.mrf.mxu0
        %v2503 = vadd.f32 %v2438, %v2502
        %2504 = vmatmul.f32.gmra.mxu0 %v2159
        %v2505 = vpop.f32.mrf.mxu0
        %v2506 = vadd.f32 %v2441, %v2505
        %2507 = vmatmul.f32.gmra.mxu0 %v2162
        %v2508 = vpop.f32.mrf.mxu0
        %v2509 = vadd.f32 %v2444, %v2508
        %2510 = vmatmul.f32.gmra.mxu0 %v2165
        %v2511 = vpop.f32.mrf.mxu0
        %v2512 = vadd.f32 %v2447, %v2511
        %2513 = vmatmul.f32.gmra.mxu0 %v2168
        %v2514 = vpop.f32.mrf.mxu0
        %v2515 = vadd.f32 %v2450, %v2514
        %2516 = vmatmul.f32.gmra.mxu0 %v2171
        %v2517 = vpop.f32.mrf.mxu0
        %v2518 = vadd.f32 %v2453, %v2517
        %2519 = vmatmul.f32.gmra.mxu0 %v2174
        %v2520 = vpop.f32.mrf.mxu0
        %v2521 = vadd.f32 %v2456, %v2520
        %2522 = vmatmul.f32.gmra.mxu0 %v2177
        %v2523 = vpop.f32.mrf.mxu0
        %v2524 = vadd.f32 %v2459, %v2523
        %2525 = vdwg.mxu0
        %2526 = vmatpush.msra.mxu0 %v2224
        %2527 = vmatpush.msra.mxu0 %v2221
        %2528 = vmatpush.msra.mxu0 %v2218
        %2529 = vmatpush.msra.mxu0 %v2215
        %2530 = vmatpush.msra.mxu0 %v2212
        %2531 = vmatpush.msra.mxu0 %v2209
        %2532 = vmatpush.msra.mxu0 %v2206
        %2533 = vmatpush.msra.mxu0 %v2203
        %2534 = vmatpush.msra.mxu0 %v2200
        %2535 = vmatpush.msra.mxu0 %v2197
        %2536 = vmatpush.msra.mxu0 %v2194
        %2537 = vmatpush.msra.mxu0 %v2191
        %2538 = vmatpush.msra.mxu0 %v2188
        %2539 = vmatpush.msra.mxu0 %v2185
        %2540 = vmatpush.msra.mxu0 %v2182
        %2541 = vmatpush.msra.mxu0 %v2179
        %2542 = vmatmul.f32.gmra.mxu0 %v2130
        %v2543 = vpop.f32.mrf.mxu0
        %v2544 = vadd.f32 %v2326, %v2543
        %2545 = vmatmul.f32.gmra.mxu0 %v2133
        %v2546 = vpop.f32.mrf.mxu0
        %v2547 = vadd.f32 %v2326, %v2546
        %2548 = vmatmul.f32.gmra.mxu0 %v2136
        %v2549 = vpop.f32.mrf.mxu0
        %v2550 = vadd.f32 %v2326, %v2549
        %2551 = vmatmul.f32.gmra.mxu0 %v2139
        %v2552 = vpop.f32.mrf.mxu0
        %v2553 = vadd.f32 %v2326, %v2552
        %2554 = vmatmul.f32.gmra.mxu0 %v2142
        %v2555 = vpop.f32.mrf.mxu0
        %v2556 = vadd.f32 %v2326, %v2555
        %2557 = vmatmul.f32.gmra.mxu0 %v2145
        %v2558 = vpop.f32.mrf.mxu0
        %v2559 = vadd.f32 %v2326, %v2558
        %2560 = vmatmul.f32.gmra.mxu0 %v2148
        %v2561 = vpop.f32.mrf.mxu0
        %v2562 = vadd.f32 %v2326, %v2561
        %2563 = vmatmul.f32.gmra.mxu0 %v2151
        %v2564 = vpop.f32.mrf.mxu0
        %v2565 = vadd.f32 %v2326, %v2564
        %2566 = vmatmul.f32.gmra.mxu0 %v2154
        %v2567 = vpop.f32.mrf.mxu0
        %v2568 = vadd.f32 %v2326, %v2567
        %2569 = vmatmul.f32.gmra.mxu0 %v2157
        %v2570 = vpop.f32.mrf.mxu0
        %v2571 = vadd.f32 %v2326, %v2570
        %2572 = vmatmul.f32.gmra.mxu0 %v2160
        %v2573 = vpop.f32.mrf.mxu0
        %v2574 = vadd.f32 %v2326, %v2573
        %2575 = vmatmul.f32.gmra.mxu0 %v2163
        %v2576 = vpop.f32.mrf.mxu0
        %v2577 = vadd.f32 %v2326, %v2576
        %2578 = vmatmul.f32.gmra.mxu0 %v2166
        %v2579 = vpop.f32.mrf.mxu0
        %v2580 = vadd.f32 %v2326, %v2579
        %2581 = vmatmul.f32.gmra.mxu0 %v2169
        %v2582 = vpop.f32.mrf.mxu0
        %v2583 = vadd.f32 %v2326, %v2582
        %2584 = vmatmul.f32.gmra.mxu0 %v2172
        %v2585 = vpop.f32.mrf.mxu0
        %v2586 = vadd.f32 %v2326, %v2585
        %2587 = vmatmul.f32.gmra.mxu0 %v2175
        %v2588 = vpop.f32.mrf.mxu0
        %v2589 = vadd.f32 %v2326, %v2588
        %2590 = vdwg.mxu0
        %2591 = vmatpush.msra.mxu0 %v2272
        %2592 = vmatpush.msra.mxu0 %v2269
        %2593 = vmatpush.msra.mxu0 %v2266
        %2594 = vmatpush.msra.mxu0 %v2263
        %2595 = vmatpush.msra.mxu0 %v2260
        %2596 = vmatpush.msra.mxu0 %v2257
        %2597 = vmatpush.msra.mxu0 %v2254
        %2598 = vmatpush.msra.mxu0 %v2251
        %2599 = vmatpush.msra.mxu0 %v2248
        %2600 = vmatpush.msra.mxu0 %v2245
        %2601 = vmatpush.msra.mxu0 %v2242
        %2602 = vmatpush.msra.mxu0 %v2239
        %2603 = vmatpush.msra.mxu0 %v2236
        %2604 = vmatpush.msra.mxu0 %v2233
        %2605 = vmatpush.msra.mxu0 %v2230
        %2606 = vmatpush.msra.mxu0 %v2227
        %2607 = vmatmul.f32.gmra.mxu0 %v2131
        %v2608 = vpop.f32.mrf.mxu0
        %v2609 = vadd.f32 %v2544, %v2608
        %2610 = vmatmul.f32.gmra.mxu0 %v2134
        %v2611 = vpop.f32.mrf.mxu0
        %v2612 = vadd.f32 %v2547, %v2611
        %2613 = vmatmul.f32.gmra.mxu0 %v2137
        %v2614 = vpop.f32.mrf.mxu0
        %v2615 = vadd.f32 %v2550, %v2614
        %2616 = vmatmul.f32.gmra.mxu0 %v2140
        %v2617 = vpop.f32.mrf.mxu0
        %v2618 = vadd.f32 %v2553, %v2617
        %2619 = vmatmul.f32.gmra.mxu0 %v2143
        %v2620 = vpop.f32.mrf.mxu0
        %v2621 = vadd.f32 %v2556, %v2620
        %2622 = vmatmul.f32.gmra.mxu0 %v2146
        %v2623 = vpop.f32.mrf.mxu0
        %v2624 = vadd.f32 %v2559, %v2623
        %2625 = vmatmul.f32.gmra.mxu0 %v2149
        %v2626 = vpop.f32.mrf.mxu0
        %v2627 = vadd.f32 %v2562, %v2626
        %2628 = vmatmul.f32.gmra.mxu0 %v2152
        %v2629 = vpop.f32.mrf.mxu0
        %v2630 = vadd.f32 %v2565, %v2629
        %2631 = vmatmul.f32.gmra.mxu0 %v2155
        %v2632 = vpop.f32.mrf.mxu0
        %v2633 = vadd.f32 %v2568, %v2632
        %2634 = vmatmul.f32.gmra.mxu0 %v2158
        %v2635 = vpop.f32.mrf.mxu0
        %v2636 = vadd.f32 %v2571, %v2635
        %2637 = vmatmul.f32.gmra.mxu0 %v2161
        %v2638 = vpop.f32.mrf.mxu0
        %v2639 = vadd.f32 %v2574, %v2638
        %2640 = vmatmul.f32.gmra.mxu0 %v2164
        %v2641 = vpop.f32.mrf.mxu0
        %v2642 = vadd.f32 %v2577, %v2641
        %2643 = vmatmul.f32.gmra.mxu0 %v2167
        %v2644 = vpop.f32.mrf.mxu0
        %v2645 = vadd.f32 %v2580, %v2644
        %2646 = vmatmul.f32.gmra.mxu0 %v2170
        %v2647 = vpop.f32.mrf.mxu0
        %v2648 = vadd.f32 %v2583, %v2647
        %2649 = vmatmul.f32.gmra.mxu0 %v2173
        %v2650 = vpop.f32.mrf.mxu0
        %v2651 = vadd.f32 %v2586, %v2650
        %2652 = vmatmul.f32.gmra.mxu0 %v2176
        %v2653 = vpop.f32.mrf.mxu0
        %v2654 = vadd.f32 %v2589, %v2653
        %2655 = vdwg.mxu0
        %2656 = vmatpush.msra.mxu0 %v2320
        %2657 = vmatpush.msra.mxu0 %v2317
        %2658 = vmatpush.msra.mxu0 %v2314
        %2659 = vmatpush.msra.mxu0 %v2311
        %2660 = vmatpush.msra.mxu0 %v2308
        %2661 = vmatpush.msra.mxu0 %v2305
        %2662 = vmatpush.msra.mxu0 %v2302
        %2663 = vmatpush.msra.mxu0 %v2299
        %2664 = vmatpush.msra.mxu0 %v2296
        %2665 = vmatpush.msra.mxu0 %v2293
        %2666 = vmatpush.msra.mxu0 %v2290
        %2667 = vmatpush.msra.mxu0 %v2287
        %2668 = vmatpush.msra.mxu0 %v2284
        %2669 = vmatpush.msra.mxu0 %v2281
        %2670 = vmatpush.msra.mxu0 %v2278
        %2671 = vmatpush.msra.mxu0 %v2275
        %2672 = vmatmul.f32.gmra.mxu0 %v2132
        %v2673 = vpop.f32.mrf.mxu0
        %v2674 = vadd.f32 %v2609, %v2673
        %2675 = vmatmul.f32.gmra.mxu0 %v2135
        %v2676 = vpop.f32.mrf.mxu0
        %v2677 = vadd.f32 %v2612, %v2676
        %2678 = vmatmul.f32.gmra.mxu0 %v2138
        %v2679 = vpop.f32.mrf.mxu0
        %v2680 = vadd.f32 %v2615, %v2679
        %2681 = vmatmul.f32.gmra.mxu0 %v2141
        %v2682 = vpop.f32.mrf.mxu0
        %v2683 = vadd.f32 %v2618, %v2682
        %2684 = vmatmul.f32.gmra.mxu0 %v2144
        %v2685 = vpop.f32.mrf.mxu0
        %v2686 = vadd.f32 %v2621, %v2685
        %2687 = vmatmul.f32.gmra.mxu0 %v2147
        %v2688 = vpop.f32.mrf.mxu0
        %v2689 = vadd.f32 %v2624, %v2688
        %2690 = vmatmul.f32.gmra.mxu0 %v2150
        %v2691 = vpop.f32.mrf.mxu0
        %v2692 = vadd.f32 %v2627, %v2691
        %2693 = vmatmul.f32.gmra.mxu0 %v2153
        %v2694 = vpop.f32.mrf.mxu0
        %v2695 = vadd.f32 %v2630, %v2694
        %2696 = vmatmul.f32.gmra.mxu0 %v2156
        %v2697 = vpop.f32.mrf.mxu0
        %v2698 = vadd.f32 %v2633, %v2697
        %2699 = vmatmul.f32.gmra.mxu0 %v2159
        %v2700 = vpop.f32.mrf.mxu0
        %v2701 = vadd.f32 %v2636, %v2700
        %2702 = vmatmul.f32.gmra.mxu0 %v2162
        %v2703 = vpop.f32.mrf.mxu0
        %v2704 = vadd.f32 %v2639, %v2703
        %2705 = vmatmul.f32.gmra.mxu0 %v2165
        %v2706 = vpop.f32.mrf.mxu0
        %v2707 = vadd.f32 %v2642, %v2706
        %2708 = vmatmul.f32.gmra.mxu0 %v2168
        %v2709 = vpop.f32.mrf.mxu0
        %v2710 = vadd.f32 %v2645, %v2709
        %2711 = vmatmul.f32.gmra.mxu0 %v2171
        %v2712 = vpop.f32.mrf.mxu0
        %v2713 = vadd.f32 %v2648, %v2712
        %2714 = vmatmul.f32.gmra.mxu0 %v2174
        %v2715 = vpop.f32.mrf.mxu0
        %v2716 = vadd.f32 %v2651, %v2715
        %2717 = vmatmul.f32.gmra.mxu0 %v2177
        %v2718 = vpop.f32.mrf.mxu0
        %v2719 = vadd.f32 %v2654, %v2718
        %2720 = vdwg.mxu0
        %2721 = vmatpush.msra.mxu0 %v2225
        %2722 = vmatpush.msra.mxu0 %v2222
        %2723 = vmatpush.msra.mxu0 %v2219
        %2724 = vmatpush.msra.mxu0 %v2216
        %2725 = vmatpush.msra.mxu0 %v2213
        %2726 = vmatpush.msra.mxu0 %v2210
        %2727 = vmatpush.msra.mxu0 %v2207
        %2728 = vmatpush.msra.mxu0 %v2204
        %2729 = vmatpush.msra.mxu0 %v2201
        %2730 = vmatpush.msra.mxu0 %v2198
        %2731 = vmatpush.msra.mxu0 %v2195
        %2732 = vmatpush.msra.mxu0 %v2192
        %2733 = vmatpush.msra.mxu0 %v2189
        %2734 = vmatpush.msra.mxu0 %v2186
        %2735 = vmatpush.msra.mxu0 %v2183
        %2736 = vmatpush.msra.mxu0 %v2180
        %2737 = vmatmul.f32.gmra.mxu0 %v2130
        %v2738 = vpop.f32.mrf.mxu0
        %v2739 = vadd.f32 %v2327, %v2738
        %2740 = vmatmul.f32.gmra.mxu0 %v2133
        %v2741 = vpop.f32.mrf.mxu0
        %v2742 = vadd.f32 %v2327, %v2741
        %2743 = vmatmul.f32.gmra.mxu0 %v2136
        %v2744 = vpop.f32.mrf.mxu0
        %v2745 = vadd.f32 %v2327, %v2744
        %2746 = vmatmul.f32.gmra.mxu0 %v2139
        %v2747 = vpop.f32.mrf.mxu0
        %v2748 = vadd.f32 %v2327, %v2747
        %2749 = vmatmul.f32.gmra.mxu0 %v2142
        %v2750 = vpop.f32.mrf.mxu0
        %v2751 = vadd.f32 %v2327, %v2750
        %2752 = vmatmul.f32.gmra.mxu0 %v2145
        %v2753 = vpop.f32.mrf.mxu0
        %v2754 = vadd.f32 %v2327, %v2753
        %2755 = vmatmul.f32.gmra.mxu0 %v2148
        %v2756 = vpop.f32.mrf.mxu0
        %v2757 = vadd.f32 %v2327, %v2756
        %2758 = vmatmul.f32.gmra.mxu0 %v2151
        %v2759 = vpop.f32.mrf.mxu0
        %v2760 = vadd.f32 %v2327, %v2759
        %2761 = vmatmul.f32.gmra.mxu0 %v2154
        %v2762 = vpop.f32.mrf.mxu0
        %v2763 = vadd.f32 %v2327, %v2762
        %2764 = vmatmul.f32.gmra.mxu0 %v2157
        %v2765 = vpop.f32.mrf.mxu0
        %v2766 = vadd.f32 %v2327, %v2765
        %2767 = vmatmul.f32.gmra.mxu0 %v2160
        %v2768 = vpop.f32.mrf.mxu0
        %v2769 = vadd.f32 %v2327, %v2768
        %2770 = vmatmul.f32.gmra.mxu0 %v2163
        %v2771 = vpop.f32.mrf.mxu0
        %v2772 = vadd.f32 %v2327, %v2771
        %2773 = vmatmul.f32.gmra.mxu0 %v2166
        %v2774 = vpop.f32.mrf.mxu0
        %v2775 = vadd.f32 %v2327, %v2774
        %2776 = vmatmul.f32.gmra.mxu0 %v2169
        %v2777 = vpop.f32.mrf.mxu0
        %v2778 = vadd.f32 %v2327, %v2777
        %2779 = vmatmul.f32.gmra.mxu0 %v2172
        %v2780 = vpop.f32.mrf.mxu0
        %v2781 = vadd.f32 %v2327, %v2780
        %2782 = vmatmul.f32.gmra.mxu0 %v2175
        %v2783 = vpop.f32.mrf.mxu0
        %v2784 = vadd.f32 %v2327, %v2783
        %2785 = vdwg.mxu0
        %2786 = vmatpush.msra.mxu0 %v2273
        %2787 = vmatpush.msra.mxu0 %v2270
        %2788 = vmatpush.msra.mxu0 %v2267
        %2789 = vmatpush.msra.mxu0 %v2264
        %2790 = vmatpush.msra.mxu0 %v2261
        %2791 = vmatpush.msra.mxu0 %v2258
        %2792 = vmatpush.msra.mxu0 %v2255
        %2793 = vmatpush.msra.mxu0 %v2252
        %2794 = vmatpush.msra.mxu0 %v2249
        %2795 = vmatpush.msra.mxu0 %v2246
        %2796 = vmatpush.msra.mxu0 %v2243
        %2797 = vmatpush.msra.mxu0 %v2240
        %2798 = vmatpush.msra.mxu0 %v2237
        %2799 = vmatpush.msra.mxu0 %v2234
        %2800 = vmatpush.msra.mxu0 %v2231
        %2801 = vmatpush.msra.mxu0 %v2228
        %2802 = vmatmul.f32.gmra.mxu0 %v2131
        %v2803 = vpop.f32.mrf.mxu0
        %v2804 = vadd.f32 %v2739, %v2803
        %2805 = vmatmul.f32.gmra.mxu0 %v2134
        %v2806 = vpop.f32.mrf.mxu0
        %v2807 = vadd.f32 %v2742, %v2806
        %2808 = vmatmul.f32.gmra.mxu0 %v2137
        %v2809 = vpop.f32.mrf.mxu0
        %v2810 = vadd.f32 %v2745, %v2809
        %2811 = vmatmul.f32.gmra.mxu0 %v2140
        %v2812 = vpop.f32.mrf.mxu0
        %v2813 = vadd.f32 %v2748, %v2812
        %2814 = vmatmul.f32.gmra.mxu0 %v2143
        %v2815 = vpop.f32.mrf.mxu0
        %v2816 = vadd.f32 %v2751, %v2815
        %2817 = vmatmul.f32.gmra.mxu0 %v2146
        %v2818 = vpop.f32.mrf.mxu0
        %v2819 = vadd.f32 %v2754, %v2818
        %2820 = vmatmul.f32.gmra.mxu0 %v2149
        %v2821 = vpop.f32.mrf.mxu0
        %v2822 = vadd.f32 %v2757, %v2821
        %2823 = vmatmul.f32.gmra.mxu0 %v2152
        %v2824 = vpop.f32.mrf.mxu0
        %v2825 = vadd.f32 %v2760, %v2824
        %2826 = vmatmul.f32.gmra.mxu0 %v2155
        %v2827 = vpop.f32.mrf.mxu0
        %v2828 = vadd.f32 %v2763, %v2827
        %2829 = vmatmul.f32.gmra.mxu0 %v2158
        %v2830 = vpop.f32.mrf.mxu0
        %v2831 = vadd.f32 %v2766, %v2830
        %2832 = vmatmul.f32.gmra.mxu0 %v2161
        %v2833 = vpop.f32.mrf.mxu0
        %v2834 = vadd.f32 %v2769, %v2833
        %2835 = vmatmul.f32.gmra.mxu0 %v2164
        %v2836 = vpop.f32.mrf.mxu0
        %v2837 = vadd.f32 %v2772, %v2836
        %2838 = vmatmul.f32.gmra.mxu0 %v2167
        %v2839 = vpop.f32.mrf.mxu0
        %v2840 = vadd.f32 %v2775, %v2839
        %2841 = vmatmul.f32.gmra.mxu0 %v2170
        %v2842 = vpop.f32.mrf.mxu0
        %v2843 = vadd.f32 %v2778, %v2842
        %2844 = vmatmul.f32.gmra.mxu0 %v2173
        %v2845 = vpop.f32.mrf.mxu0
        %v2846 = vadd.f32 %v2781, %v2845
        %2847 = vmatmul.f32.gmra.mxu0 %v2176
        %v2848 = vpop.f32.mrf.mxu0
        %v2849 = vadd.f32 %v2784, %v2848
        %2850 = vdwg.mxu0
        %2851 = vmatpush.msra.mxu0 %v2321
        %2852 = vmatpush.msra.mxu0 %v2318
        %2853 = vmatpush.msra.mxu0 %v2315
        %2854 = vmatpush.msra.mxu0 %v2312
        %2855 = vmatpush.msra.mxu0 %v2309
        %2856 = vmatpush.msra.mxu0 %v2306
        %2857 = vmatpush.msra.mxu0 %v2303
        %2858 = vmatpush.msra.mxu0 %v2300
        %2859 = vmatpush.msra.mxu0 %v2297
        %2860 = vmatpush.msra.mxu0 %v2294
        %2861 = vmatpush.msra.mxu0 %v2291
        %2862 = vmatpush.msra.mxu0 %v2288
        %2863 = vmatpush.msra.mxu0 %v2285
        %2864 = vmatpush.msra.mxu0 %v2282
        %2865 = vmatpush.msra.mxu0 %v2279
        %2866 = vmatpush.msra.mxu0 %v2276
        %2867 = vmatmul.f32.gmra.mxu0 %v2132
        %v2868 = vpop.f32.mrf.mxu0
        %v2869 = vadd.f32 %v2804, %v2868
        %2870 = vmatmul.f32.gmra.mxu0 %v2135
        %v2871 = vpop.f32.mrf.mxu0
        %v2872 = vadd.f32 %v2807, %v2871
        %2873 = vmatmul.f32.gmra.mxu0 %v2138
        %v2874 = vpop.f32.mrf.mxu0
        %v2875 = vadd.f32 %v2810, %v2874
        %2876 = vmatmul.f32.gmra.mxu0 %v2141
        %v2877 = vpop.f32.mrf.mxu0
        %v2878 = vadd.f32 %v2813, %v2877
        %2879 = vmatmul.f32.gmra.mxu0 %v2144
        %v2880 = vpop.f32.mrf.mxu0
        %v2881 = vadd.f32 %v2816, %v2880
        %2882 = vmatmul.f32.gmra.mxu0 %v2147
        %v2883 = vpop.f32.mrf.mxu0
        %v2884 = vadd.f32 %v2819, %v2883
        %2885 = vmatmul.f32.gmra.mxu0 %v2150
        %v2886 = vpop.f32.mrf.mxu0
        %v2887 = vadd.f32 %v2822, %v2886
        %2888 = vmatmul.f32.gmra.mxu0 %v2153
        %v2889 = vpop.f32.mrf.mxu0
        %v2890 = vadd.f32 %v2825, %v2889
        %2891 = vmatmul.f32.gmra.mxu0 %v2156
        %v2892 = vpop.f32.mrf.mxu0
        %v2893 = vadd.f32 %v2828, %v2892
        %2894 = vmatmul.f32.gmra.mxu0 %v2159
        %v2895 = vpop.f32.mrf.mxu0
        %v2896 = vadd.f32 %v2831, %v2895
        %2897 = vmatmul.f32.gmra.mxu0 %v2162
        %v2898 = vpop.f32.mrf.mxu0
        %v2899 = vadd.f32 %v2834, %v2898
        %2900 = vmatmul.f32.gmra.mxu0 %v2165
        %v2901 = vpop.f32.mrf.mxu0
        %v2902 = vadd.f32 %v2837, %v2901
        %2903 = vmatmul.f32.gmra.mxu0 %v2168
        %v2904 = vpop.f32.mrf.mxu0
        %v2905 = vadd.f32 %v2840, %v2904
        %2906 = vmatmul.f32.gmra.mxu0 %v2171
        %v2907 = vpop.f32.mrf.mxu0
        %v2908 = vadd.f32 %v2843, %v2907
        %2909 = vmatmul.f32.gmra.mxu0 %v2174
        %v2910 = vpop.f32.mrf.mxu0
        %v2911 = vadd.f32 %v2846, %v2910
        %2912 = vmatmul.f32.gmra.mxu0 %v2177
        %v2913 = vpop.f32.mrf.mxu0
        %v2914 = vadd.f32 %v2849, %v2913
        %2915 = vdwg.mxu0
        %v2916 = vmax.f32 %v2479, 0.0
        %v2917 = vmax.f32 %v2674, 0.0
        %v2918 = vmax.f32 %v2869, 0.0
        %v2919 = vmax.f32 %v2482, 0.0
        %v2920 = vmax.f32 %v2677, 0.0
        %v2921 = vmax.f32 %v2872, 0.0
        %v2922 = vmax.f32 %v2485, 0.0
        %v2923 = vmax.f32 %v2680, 0.0
        %v2924 = vmax.f32 %v2875, 0.0
        %v2925 = vmax.f32 %v2488, 0.0
        %v2926 = vmax.f32 %v2683, 0.0
        %v2927 = vmax.f32 %v2878, 0.0
        %v2928 = vmax.f32 %v2491, 0.0
        %v2929 = vmax.f32 %v2686, 0.0
        %v2930 = vmax.f32 %v2881, 0.0
        %v2931 = vmax.f32 %v2494, 0.0
        %v2932 = vmax.f32 %v2689, 0.0
        %v2933 = vmax.f32 %v2884, 0.0
        %v2934 = vmax.f32 %v2497, 0.0
        %v2935 = vmax.f32 %v2692, 0.0
        %v2936 = vmax.f32 %v2887, 0.0
        %v2937 = vmax.f32 %v2500, 0.0
        %v2938 = vmax.f32 %v2695, 0.0
        %v2939 = vmax.f32 %v2890, 0.0
        %v2940 = vmax.f32 %v2503, 0.0
        %v2941 = vmax.f32 %v2698, 0.0
        %v2942 = vmax.f32 %v2893, 0.0
        %v2943 = vmax.f32 %v2506, 0.0
        %v2944 = vmax.f32 %v2701, 0.0
        %v2945 = vmax.f32 %v2896, 0.0
        %v2946 = vmax.f32 %v2509, 0.0
        %v2947 = vmax.f32 %v2704, 0.0
        %v2948 = vmax.f32 %v2899, 0.0
        %v2949 = vmax.f32 %v2512, 0.0
        %v2950 = vmax.f32 %v2707, 0.0
        %v2951 = vmax.f32 %v2902, 0.0
        %v2952 = vmax.f32 %v2515, 0.0
        %v2953 = vmax.f32 %v2710, 0.0
        %v2954 = vmax.f32 %v2905, 0.0
        %v2955 = vmax.f32 %v2518, 0.0
        %v2956 = vmax.f32 %v2713, 0.0
        %v2957 = vmax.f32 %v2908, 0.0
        %v2958 = vmax.f32 %v2521, 0.0
        %v2959 = vmax.f32 %v2716, 0.0
        %v2960 = vmax.f32 %v2911, 0.0
        %v2961 = vmax.f32 %v2524, 0.0
        %v2962 = vmax.f32 %v2719, 0.0
        %v2963 = vmax.f32 %v2914, 0.0
        %v2964 = vld [vmem:[#allocation9] sm:$0xff]
        %v2965 = vld [vmem:[#allocation9 + $0x8] sm:$0xff]
        %v2966 = vld [vmem:[#allocation9 + $0x10] sm:$0xff]
        %v2967 = vld [vmem:[#allocation9 + $0x18] sm:$0xff]
        %v2968 = vld [vmem:[#allocation9 + $0x20] sm:$0xff]
        %v2969 = vld [vmem:[#allocation9 + $0x28] sm:$0xff]
        %v2970 = vld [vmem:[#allocation9 + $0x30] sm:$0xff]
        %v2971 = vld [vmem:[#allocation9 + $0x38] sm:$0xff]
        %v2972 = vld [vmem:[#allocation9 + $0x40] sm:$0xff]
        %v2973 = vld [vmem:[#allocation9 + $0x48] sm:$0xff]
        %v2974 = vld [vmem:[#allocation9 + $0x50] sm:$0xff]
        %v2975 = vld [vmem:[#allocation9 + $0x58] sm:$0xff]
        %v2976 = vld [vmem:[#allocation9 + $0x60] sm:$0xff]
        %v2977 = vld [vmem:[#allocation9 + $0x68] sm:$0xff]
        %v2978 = vld [vmem:[#allocation9 + $0x70] sm:$0xff]
        %v2979 = vld [vmem:[#allocation9 + $0x78] sm:$0xff]
        %v2980 = vld [vmem:[#allocation9 + $0x80] sm:$0xff]
        %v2981 = vld [vmem:[#allocation9 + $0x88] sm:$0xff]
        %v2982 = vld [vmem:[#allocation9 + $0x90] sm:$0xff]
        %v2983 = vld [vmem:[#allocation9 + $0x98] sm:$0xff]
        %v2984 = vld [vmem:[#allocation9 + $0xa0] sm:$0xff]
        %v2985 = vld [vmem:[#allocation9 + $0xa8] sm:$0xff]
        %v2986 = vld [vmem:[#allocation9 + $0xb0] sm:$0xff]
        %v2987 = vld [vmem:[#allocation9 + $0xb8] sm:$0xff]
        %v2988 = vld [vmem:[#allocation9 + $0xc0] sm:$0xff]
        %v2989 = vld [vmem:[#allocation9 + $0xc8] sm:$0xff]
        %v2990 = vld [vmem:[#allocation9 + $0xd0] sm:$0xff]
        %v2991 = vld [vmem:[#allocation9 + $0xd8] sm:$0xff]
        %v2992 = vld [vmem:[#allocation9 + $0xe0] sm:$0xff]
        %v2993 = vld [vmem:[#allocation9 + $0xe8] sm:$0xff]
        %v2994 = vld [vmem:[#allocation9 + $0xf0] sm:$0xff]
        %v2995 = vld [vmem:[#allocation9 + $0xf8] sm:$0xff]
        %v2996 = vld [vmem:[#allocation9 + $0x100] sm:$0xff]
        %v2997 = vld [vmem:[#allocation9 + $0x108] sm:$0xff]
        %v2998 = vld [vmem:[#allocation9 + $0x110] sm:$0xff]
        %v2999 = vld [vmem:[#allocation9 + $0x118] sm:$0xff]
        %v3000 = vld [vmem:[#allocation9 + $0x120] sm:$0xff]
        %v3001 = vld [vmem:[#allocation9 + $0x128] sm:$0xff]
        %v3002 = vld [vmem:[#allocation9 + $0x130] sm:$0xff]
        %v3003 = vld [vmem:[#allocation9 + $0x138] sm:$0xff]
        %v3004 = vld [vmem:[#allocation9 + $0x140] sm:$0xff]
        %v3005 = vld [vmem:[#allocation9 + $0x148] sm:$0xff]
        %v3006 = vld [vmem:[#allocation9 + $0x150] sm:$0xff]
        %v3007 = vld [vmem:[#allocation9 + $0x158] sm:$0xff]
        %v3008 = vld [vmem:[#allocation9 + $0x160] sm:$0xff]
        %v3009 = vld [vmem:[#allocation9 + $0x168] sm:$0xff]
        %v3010 = vld [vmem:[#allocation9 + $0x170] sm:$0xff]
        %v3011 = vld [vmem:[#allocation9 + $0x178] sm:$0xff]
        %v3012 = vld [vmem:[#allocation9 + $0x180] sm:$0xff]
        %v3013 = vld [vmem:[#allocation9 + $0x188] sm:$0xff]
        %v3014 = vld [vmem:[#allocation9 + $0x190] sm:$0xff]
        %v3015 = vld [vmem:[#allocation9 + $0x198] sm:$0xff]
        %v3016 = vld [vmem:[#allocation9 + $0x1a0] sm:$0xff]
        %v3017 = vld [vmem:[#allocation9 + $0x1a8] sm:$0xff]
        %v3018 = vld [vmem:[#allocation9 + $0x1b0] sm:$0xff]
        %v3019 = vld [vmem:[#allocation9 + $0x1b8] sm:$0xff]
        %v3020 = vld [vmem:[#allocation9 + $0x1c0] sm:$0xff]
        %v3021 = vld [vmem:[#allocation9 + $0x1c8] sm:$0xff]
        %v3022 = vld [vmem:[#allocation9 + $0x1d0] sm:$0xff]
        %v3023 = vld [vmem:[#allocation9 + $0x1d8] sm:$0xff]
        %v3024 = vld [vmem:[#allocation9 + $0x1e0] sm:$0xff]
        %v3025 = vld [vmem:[#allocation9 + $0x1e8] sm:$0xff]
        %v3026 = vld [vmem:[#allocation9 + $0x1f0] sm:$0xff]
        %v3027 = vld [vmem:[#allocation9 + $0x1f8] sm:$0xff]
        %v3028 = vld [vmem:[#allocation9 + $0x200] sm:$0xff]
        %v3029 = vld [vmem:[#allocation9 + $0x208] sm:$0xff]
        %v3030 = vld [vmem:[#allocation9 + $0x210] sm:$0xff]
        %v3031 = vld [vmem:[#allocation9 + $0x218] sm:$0xff]
        %v3032 = vld [vmem:[#allocation9 + $0x220] sm:$0xff]
        %v3033 = vld [vmem:[#allocation9 + $0x228] sm:$0xff]
        %v3034 = vld [vmem:[#allocation9 + $0x230] sm:$0xff]
        %v3035 = vld [vmem:[#allocation9 + $0x238] sm:$0xff]
        %v3036 = vld [vmem:[#allocation9 + $0x240] sm:$0xff]
        %v3037 = vld [vmem:[#allocation9 + $0x248] sm:$0xff]
        %v3038 = vld [vmem:[#allocation9 + $0x250] sm:$0xff]
        %v3039 = vld [vmem:[#allocation9 + $0x258] sm:$0xff]
        %v3040 = vld [vmem:[#allocation9 + $0x260] sm:$0xff]
        %v3041 = vld [vmem:[#allocation9 + $0x268] sm:$0xff]
        %v3042 = vld [vmem:[#allocation9 + $0x270] sm:$0xff]
        %v3043 = vld [vmem:[#allocation9 + $0x278] sm:$0xff]
        %v3044 = vld [vmem:[#allocation9 + $0x280] sm:$0xff]
        %v3045 = vld [vmem:[#allocation9 + $0x288] sm:$0xff]
        %v3046 = vld [vmem:[#allocation9 + $0x290] sm:$0xff]
        %v3047 = vld [vmem:[#allocation9 + $0x298] sm:$0xff]
        %v3048 = vld [vmem:[#allocation9 + $0x2a0] sm:$0xff]
        %v3049 = vld [vmem:[#allocation9 + $0x2a8] sm:$0xff]
        %v3050 = vld [vmem:[#allocation9 + $0x2b0] sm:$0xff]
        %v3051 = vld [vmem:[#allocation9 + $0x2b8] sm:$0xff]
        %v3052 = vld [vmem:[#allocation9 + $0x2c0] sm:$0xff]
        %v3053 = vld [vmem:[#allocation9 + $0x2c8] sm:$0xff]
        %v3054 = vld [vmem:[#allocation9 + $0x2d0] sm:$0xff]
        %v3055 = vld [vmem:[#allocation9 + $0x2d8] sm:$0xff]
        %v3056 = vld [vmem:[#allocation9 + $0x2e0] sm:$0xff]
        %v3057 = vld [vmem:[#allocation9 + $0x2e8] sm:$0xff]
        %v3058 = vld [vmem:[#allocation9 + $0x2f0] sm:$0xff]
        %v3059 = vld [vmem:[#allocation9 + $0x2f8] sm:$0xff]
        %v3060 = vld [vmem:[#allocation9 + $0x300] sm:$0xff]
        %v3061 = vld [vmem:[#allocation9 + $0x308] sm:$0xff]
        %v3062 = vld [vmem:[#allocation9 + $0x310] sm:$0xff]
        %v3063 = vld [vmem:[#allocation9 + $0x318] sm:$0xff]
        %v3064 = vld [vmem:[#allocation9 + $0x320] sm:$0xff]
        %v3065 = vld [vmem:[#allocation9 + $0x328] sm:$0xff]
        %v3066 = vld [vmem:[#allocation9 + $0x330] sm:$0xff]
        %v3067 = vld [vmem:[#allocation9 + $0x338] sm:$0xff]
        %v3068 = vld [vmem:[#allocation9 + $0x340] sm:$0xff]
        %v3069 = vld [vmem:[#allocation9 + $0x348] sm:$0xff]
        %v3070 = vld [vmem:[#allocation9 + $0x350] sm:$0xff]
        %v3071 = vld [vmem:[#allocation9 + $0x358] sm:$0xff]
        %v3072 = vld [vmem:[#allocation9 + $0x360] sm:$0xff]
        %v3073 = vld [vmem:[#allocation9 + $0x368] sm:$0xff]
        %v3074 = vld [vmem:[#allocation9 + $0x370] sm:$0xff]
        %v3075 = vld [vmem:[#allocation9 + $0x378] sm:$0xff]
        %v3076 = vld [vmem:[#allocation9 + $0x380] sm:$0xff]
        %v3077 = vld [vmem:[#allocation9 + $0x388] sm:$0xff]
        %v3078 = vld [vmem:[#allocation9 + $0x390] sm:$0xff]
        %v3079 = vld [vmem:[#allocation9 + $0x398] sm:$0xff]
        %v3080 = vld [vmem:[#allocation9 + $0x3a0] sm:$0xff]
        %v3081 = vld [vmem:[#allocation9 + $0x3a8] sm:$0xff]
        %v3082 = vld [vmem:[#allocation9 + $0x3b0] sm:$0xff]
        %v3083 = vld [vmem:[#allocation9 + $0x3b8] sm:$0xff]
        %v3084 = vld [vmem:[#allocation9 + $0x3c0] sm:$0xff]
        %v3085 = vld [vmem:[#allocation9 + $0x3c8] sm:$0xff]
        %v3086 = vld [vmem:[#allocation9 + $0x3d0] sm:$0xff]
        %v3087 = vld [vmem:[#allocation9 + $0x3d8] sm:$0xff]
        %v3088 = vld [vmem:[#allocation9 + $0x3e0] sm:$0xff]
        %v3089 = vld [vmem:[#allocation9 + $0x3e8] sm:$0xff]
        %v3090 = vld [vmem:[#allocation9 + $0x3f0] sm:$0xff]
        %v3091 = vld [vmem:[#allocation9 + $0x3f8] sm:$0xff]
        %v3092 = vld [vmem:[#allocation9 + $0x400] sm:$0xff]
        %v3093 = vld [vmem:[#allocation9 + $0x408] sm:$0xff]
        %v3094 = vld [vmem:[#allocation9 + $0x410] sm:$0xff]
        %v3095 = vld [vmem:[#allocation9 + $0x418] sm:$0xff]
        %v3096 = vld [vmem:[#allocation9 + $0x420] sm:$0xff]
        %v3097 = vld [vmem:[#allocation9 + $0x428] sm:$0xff]
        %v3098 = vld [vmem:[#allocation9 + $0x430] sm:$0xff]
        %v3099 = vld [vmem:[#allocation9 + $0x438] sm:$0xff]
        %v3100 = vld [vmem:[#allocation9 + $0x440] sm:$0xff]
        %v3101 = vld [vmem:[#allocation9 + $0x448] sm:$0xff]
        %v3102 = vld [vmem:[#allocation9 + $0x450] sm:$0xff]
        %v3103 = vld [vmem:[#allocation9 + $0x458] sm:$0xff]
        %v3104 = vld [vmem:[#allocation9 + $0x460] sm:$0xff]
        %v3105 = vld [vmem:[#allocation9 + $0x468] sm:$0xff]
        %v3106 = vld [vmem:[#allocation9 + $0x470] sm:$0xff]
        %v3107 = vld [vmem:[#allocation9 + $0x478] sm:$0xff]
        %v3108 = vld [vmem:[#allocation9 + $0x480] sm:$0xff]
        %v3109 = vld [vmem:[#allocation9 + $0x488] sm:$0xff]
        %v3110 = vld [vmem:[#allocation9 + $0x490] sm:$0xff]
        %v3111 = vld [vmem:[#allocation9 + $0x498] sm:$0xff]
        %v3112 = vld [vmem:[#allocation9 + $0x4a0] sm:$0xff]
        %v3113 = vld [vmem:[#allocation9 + $0x4a8] sm:$0xff]
        %v3114 = vld [vmem:[#allocation9 + $0x4b0] sm:$0xff]
        %v3115 = vld [vmem:[#allocation9 + $0x4b8] sm:$0xff]
        %v3116 = vld [vmem:[#allocation9 + $0x4c0] sm:$0xff]
        %v3117 = vld [vmem:[#allocation9 + $0x4c8] sm:$0xff]
        %v3118 = vld [vmem:[#allocation9 + $0x4d0] sm:$0xff]
        %v3119 = vld [vmem:[#allocation9 + $0x4d8] sm:$0xff]
        %v3120 = vld [vmem:[#allocation9 + $0x4e0] sm:$0xff]
        %v3121 = vld [vmem:[#allocation9 + $0x4e8] sm:$0xff]
        %v3122 = vld [vmem:[#allocation9 + $0x4f0] sm:$0xff]
        %v3123 = vld [vmem:[#allocation9 + $0x4f8] sm:$0xff]
        %v3124 = vld [vmem:[#allocation9 + $0x500] sm:$0xff]
        %v3125 = vld [vmem:[#allocation9 + $0x508] sm:$0xff]
        %v3126 = vld [vmem:[#allocation9 + $0x510] sm:$0xff]
        %v3127 = vld [vmem:[#allocation9 + $0x518] sm:$0xff]
        %v3128 = vld [vmem:[#allocation9 + $0x520] sm:$0xff]
        %v3129 = vld [vmem:[#allocation9 + $0x528] sm:$0xff]
        %v3130 = vld [vmem:[#allocation9 + $0x530] sm:$0xff]
        %v3131 = vld [vmem:[#allocation9 + $0x538] sm:$0xff]
        %v3132 = vld [vmem:[#allocation9 + $0x540] sm:$0xff]
        %v3133 = vld [vmem:[#allocation9 + $0x548] sm:$0xff]
        %v3134 = vld [vmem:[#allocation9 + $0x550] sm:$0xff]
        %v3135 = vld [vmem:[#allocation9 + $0x558] sm:$0xff]
        %v3136 = vld [vmem:[#allocation9 + $0x560] sm:$0xff]
        %v3137 = vld [vmem:[#allocation9 + $0x568] sm:$0xff]
        %v3138 = vld [vmem:[#allocation9 + $0x570] sm:$0xff]
        %v3139 = vld [vmem:[#allocation9 + $0x578] sm:$0xff]
        %v3140 = vld [vmem:[#allocation9 + $0x580] sm:$0xff]
        %v3141 = vld [vmem:[#allocation9 + $0x588] sm:$0xff]
        %v3142 = vld [vmem:[#allocation9 + $0x590] sm:$0xff]
        %v3143 = vld [vmem:[#allocation9 + $0x598] sm:$0xff]
        %v3144 = vld [vmem:[#allocation9 + $0x5a0] sm:$0xff]
        %v3145 = vld [vmem:[#allocation9 + $0x5a8] sm:$0xff]
        %v3146 = vld [vmem:[#allocation9 + $0x5b0] sm:$0xff]
        %v3147 = vld [vmem:[#allocation9 + $0x5b8] sm:$0xff]
        %v3148 = vld [vmem:[#allocation9 + $0x5c0] sm:$0xff]
        %v3149 = vld [vmem:[#allocation9 + $0x5c8] sm:$0xff]
        %v3150 = vld [vmem:[#allocation9 + $0x5d0] sm:$0xff]
        %v3151 = vld [vmem:[#allocation9 + $0x5d8] sm:$0xff]
        %v3152 = vld [vmem:[#allocation9 + $0x5e0] sm:$0xff]
        %v3153 = vld [vmem:[#allocation9 + $0x5e8] sm:$0xff]
        %v3154 = vld [vmem:[#allocation9 + $0x5f0] sm:$0xff]
        %v3155 = vld [vmem:[#allocation9 + $0x5f8] sm:$0xff]
        %v3156 = vld [vmem:[#allocation9 + $0x600] sm:$0xff]
        %v3157 = vld [vmem:[#allocation9 + $0x608] sm:$0xff]
        %v3158 = vld [vmem:[#allocation9 + $0x610] sm:$0xff]
        %v3159 = vld [vmem:[#allocation9 + $0x618] sm:$0xff]
        %v3160 = vld [vmem:[#allocation9 + $0x620] sm:$0xff]
        %v3161 = vld [vmem:[#allocation9 + $0x628] sm:$0xff]
        %v3162 = vld [vmem:[#allocation9 + $0x630] sm:$0xff]
        %v3163 = vld [vmem:[#allocation9 + $0x638] sm:$0xff]
        %v3164 = vld [vmem:[#allocation9 + $0x640] sm:$0xff]
        %v3165 = vld [vmem:[#allocation9 + $0x648] sm:$0xff]
        %v3166 = vld [vmem:[#allocation9 + $0x650] sm:$0xff]
        %v3167 = vld [vmem:[#allocation9 + $0x658] sm:$0xff]
        %v3168 = vld [vmem:[#allocation9 + $0x660] sm:$0xff]
        %v3169 = vld [vmem:[#allocation9 + $0x668] sm:$0xff]
        %v3170 = vld [vmem:[#allocation9 + $0x670] sm:$0xff]
        %v3171 = vld [vmem:[#allocation9 + $0x678] sm:$0xff]
        %v3172 = vld [vmem:[#allocation9 + $0x680] sm:$0xff]
        %v3173 = vld [vmem:[#allocation9 + $0x688] sm:$0xff]
        %v3174 = vld [vmem:[#allocation9 + $0x690] sm:$0xff]
        %v3175 = vld [vmem:[#allocation9 + $0x698] sm:$0xff]
        %v3176 = vld [vmem:[#allocation9 + $0x6a0] sm:$0xff]
        %v3177 = vld [vmem:[#allocation9 + $0x6a8] sm:$0xff]
        %v3178 = vld [vmem:[#allocation9 + $0x6b0] sm:$0xff]
        %v3179 = vld [vmem:[#allocation9 + $0x6b8] sm:$0xff]
        %v3180 = vld [vmem:[#allocation9 + $0x6c0] sm:$0xff]
        %v3181 = vld [vmem:[#allocation9 + $0x6c8] sm:$0xff]
        %v3182 = vld [vmem:[#allocation9 + $0x6d0] sm:$0xff]
        %v3183 = vld [vmem:[#allocation9 + $0x6d8] sm:$0xff]
        %v3184 = vld [vmem:[#allocation9 + $0x6e0] sm:$0xff]
        %v3185 = vld [vmem:[#allocation9 + $0x6e8] sm:$0xff]
        %v3186 = vld [vmem:[#allocation9 + $0x6f0] sm:$0xff]
        %v3187 = vld [vmem:[#allocation9 + $0x6f8] sm:$0xff]
        %v3188 = vld [vmem:[#allocation9 + $0x700] sm:$0xff]
        %v3189 = vld [vmem:[#allocation9 + $0x708] sm:$0xff]
        %v3190 = vld [vmem:[#allocation9 + $0x710] sm:$0xff]
        %v3191 = vld [vmem:[#allocation9 + $0x718] sm:$0xff]
        %v3192 = vld [vmem:[#allocation9 + $0x720] sm:$0xff]
        %v3193 = vld [vmem:[#allocation9 + $0x728] sm:$0xff]
        %v3194 = vld [vmem:[#allocation9 + $0x730] sm:$0xff]
        %v3195 = vld [vmem:[#allocation9 + $0x738] sm:$0xff]
        %v3196 = vld [vmem:[#allocation9 + $0x740] sm:$0xff]
        %v3197 = vld [vmem:[#allocation9 + $0x748] sm:$0xff]
        %v3198 = vld [vmem:[#allocation9 + $0x750] sm:$0xff]
        %v3199 = vld [vmem:[#allocation9 + $0x758] sm:$0xff]
        %v3200 = vld [vmem:[#allocation9 + $0x760] sm:$0xff]
        %v3201 = vld [vmem:[#allocation9 + $0x768] sm:$0xff]
        %v3202 = vld [vmem:[#allocation9 + $0x770] sm:$0xff]
        %v3203 = vld [vmem:[#allocation9 + $0x778] sm:$0xff]
        %s3204 = scalar_lea.vmem [#allocation18], 4
        %v3205 = vld [vmem:[%s3204] ss:$8 sm:$0xf]
        %v3206 = vld [vmem:[%s3204] ss:$8 sm:$0x10]
        %v3207 = vor.u32 %v3205, %v3206
        %v3209 = vperm.slane %v3207, 0
        %v3210 = vperm.slane %v3207, 1
        %v3211 = vperm.slane %v3207, 2
        %v3212 = vperm.slane %v3207, 3
        %v3213 = vperm.slane %v3207, 4
        %3219 = vmatpush.msra.mxu0 %v3039
        %3220 = vmatpush.msra.mxu0 %v3034
        %3221 = vmatpush.msra.mxu0 %v3029
        %3222 = vmatpush.msra.mxu0 %v3024
        %3223 = vmatpush.msra.mxu0 %v3019
        %3224 = vmatpush.msra.mxu0 %v3014
        %3225 = vmatpush.msra.mxu0 %v3009
        %3226 = vmatpush.msra.mxu0 %v3004
        %3227 = vmatpush.msra.mxu0 %v2999
        %3228 = vmatpush.msra.mxu0 %v2994
        %3229 = vmatpush.msra.mxu0 %v2989
        %3230 = vmatpush.msra.mxu0 %v2984
        %3231 = vmatpush.msra.mxu0 %v2979
        %3232 = vmatpush.msra.mxu0 %v2974
        %3233 = vmatpush.msra.mxu0 %v2969
        %3234 = vmatpush.msra.mxu0 %v2964
        %3235 = vmatmul.f32.gmra.mxu0 %v2916
        %v3236 = vpop.f32.mrf.mxu0
        %v3237 = vadd.f32 %v3209, %v3236
        %3238 = vmatmul.f32.gmra.mxu0 %v2919
        %v3239 = vpop.f32.mrf.mxu0
        %v3240 = vadd.f32 %v3209, %v3239
        %3241 = vmatmul.f32.gmra.mxu0 %v2922
        %v3242 = vpop.f32.mrf.mxu0
        %v3243 = vadd.f32 %v3209, %v3242
        %3244 = vmatmul.f32.gmra.mxu0 %v2925
        %v3245 = vpop.f32.mrf.mxu0
        %v3246 = vadd.f32 %v3209, %v3245
        %3247 = vmatmul.f32.gmra.mxu0 %v2928
        %v3248 = vpop.f32.mrf.mxu0
        %v3249 = vadd.f32 %v3209, %v3248
        %3250 = vmatmul.f32.gmra.mxu0 %v2931
        %v3251 = vpop.f32.mrf.mxu0
        %v3252 = vadd.f32 %v3209, %v3251
        %3253 = vmatmul.f32.gmra.mxu0 %v2934
        %v3254 = vpop.f32.mrf.mxu0
        %v3255 = vadd.f32 %v3209, %v3254
        %3256 = vmatmul.f32.gmra.mxu0 %v2937
        %v3257 = vpop.f32.mrf.mxu0
        %v3258 = vadd.f32 %v3209, %v3257
        %3259 = vmatmul.f32.gmra.mxu0 %v2940
        %v3260 = vpop.f32.mrf.mxu0
        %v3261 = vadd.f32 %v3209, %v3260
        %3262 = vmatmul.f32.gmra.mxu0 %v2943
        %v3263 = vpop.f32.mrf.mxu0
        %v3264 = vadd.f32 %v3209, %v3263
        %3265 = vmatmul.f32.gmra.mxu0 %v2946
        %v3266 = vpop.f32.mrf.mxu0
        %v3267 = vadd.f32 %v3209, %v3266
        %3268 = vmatmul.f32.gmra.mxu0 %v2949
        %v3269 = vpop.f32.mrf.mxu0
        %v3270 = vadd.f32 %v3209, %v3269
        %3271 = vmatmul.f32.gmra.mxu0 %v2952
        %v3272 = vpop.f32.mrf.mxu0
        %v3273 = vadd.f32 %v3209, %v3272
        %3274 = vmatmul.f32.gmra.mxu0 %v2955
        %v3275 = vpop.f32.mrf.mxu0
        %v3276 = vadd.f32 %v3209, %v3275
        %3277 = vmatmul.f32.gmra.mxu0 %v2958
        %v3278 = vpop.f32.mrf.mxu0
        %v3279 = vadd.f32 %v3209, %v3278
        %3280 = vmatmul.f32.gmra.mxu0 %v2961
        %v3281 = vpop.f32.mrf.mxu0
        %v3282 = vadd.f32 %v3209, %v3281
        %3283 = vdwg.mxu0
        %3284 = vmatpush.msra.mxu0 %v3119
        %3285 = vmatpush.msra.mxu0 %v3114
        %3286 = vmatpush.msra.mxu0 %v3109
        %3287 = vmatpush.msra.mxu0 %v3104
        %3288 = vmatpush.msra.mxu0 %v3099
        %3289 = vmatpush.msra.mxu0 %v3094
        %3290 = vmatpush.msra.mxu0 %v3089
        %3291 = vmatpush.msra.mxu0 %v3084
        %3292 = vmatpush.msra.mxu0 %v3079
        %3293 = vmatpush.msra.mxu0 %v3074
        %3294 = vmatpush.msra.mxu0 %v3069
        %3295 = vmatpush.msra.mxu0 %v3064
        %3296 = vmatpush.msra.mxu0 %v3059
        %3297 = vmatpush.msra.mxu0 %v3054
        %3298 = vmatpush.msra.mxu0 %v3049
        %3299 = vmatpush.msra.mxu0 %v3044
        %3300 = vmatmul.f32.gmra.mxu0 %v2917
        %v3301 = vpop.f32.mrf.mxu0
        %v3302 = vadd.f32 %v3237, %v3301
        %3303 = vmatmul.f32.gmra.mxu0 %v2920
        %v3304 = vpop.f32.mrf.mxu0
        %v3305 = vadd.f32 %v3240, %v3304
        %3306 = vmatmul.f32.gmra.mxu0 %v2923
        %v3307 = vpop.f32.mrf.mxu0
        %v3308 = vadd.f32 %v3243, %v3307
        %3309 = vmatmul.f32.gmra.mxu0 %v2926
        %v3310 = vpop.f32.mrf.mxu0
        %v3311 = vadd.f32 %v3246, %v3310
        %3312 = vmatmul.f32.gmra.mxu0 %v2929
        %v3313 = vpop.f32.mrf.mxu0
        %v3314 = vadd.f32 %v3249, %v3313
        %3315 = vmatmul.f32.gmra.mxu0 %v2932
        %v3316 = vpop.f32.mrf.mxu0
        %v3317 = vadd.f32 %v3252, %v3316
        %3318 = vmatmul.f32.gmra.mxu0 %v2935
        %v3319 = vpop.f32.mrf.mxu0
        %v3320 = vadd.f32 %v3255, %v3319
        %3321 = vmatmul.f32.gmra.mxu0 %v2938
        %v3322 = vpop.f32.mrf.mxu0
        %v3323 = vadd.f32 %v3258, %v3322
        %3324 = vmatmul.f32.gmra.mxu0 %v2941
        %v3325 = vpop.f32.mrf.mxu0
        %v3326 = vadd.f32 %v3261, %v3325
        %3327 = vmatmul.f32.gmra.mxu0 %v2944
        %v3328 = vpop.f32.mrf.mxu0
        %v3329 = vadd.f32 %v3264, %v3328
        %3330 = vmatmul.f32.gmra.mxu0 %v2947
        %v3331 = vpop.f32.mrf.mxu0
        %v3332 = vadd.f32 %v3267, %v3331
        %3333 = vmatmul.f32.gmra.mxu0 %v2950
        %v3334 = vpop.f32.mrf.mxu0
        %v3335 = vadd.f32 %v3270, %v3334
        %3336 = vmatmul.f32.gmra.mxu0 %v2953
        %v3337 = vpop.f32.mrf.mxu0
        %v3338 = vadd.f32 %v3273, %v3337
        %3339 = vmatmul.f32.gmra.mxu0 %v2956
        %v3340 = vpop.f32.mrf.mxu0
        %v3341 = vadd.f32 %v3276, %v3340
        %3342 = vmatmul.f32.gmra.mxu0 %v2959
        %v3343 = vpop.f32.mrf.mxu0
        %v3344 = vadd.f32 %v3279, %v3343
        %3345 = vmatmul.f32.gmra.mxu0 %v2962
        %v3346 = vpop.f32.mrf.mxu0
        %v3347 = vadd.f32 %v3282, %v3346
        %3348 = vdwg.mxu0
        %3349 = vmatpush.msra.mxu0 %v3199
        %3350 = vmatpush.msra.mxu0 %v3194
        %3351 = vmatpush.msra.mxu0 %v3189
        %3352 = vmatpush.msra.mxu0 %v3184
        %3353 = vmatpush.msra.mxu0 %v3179
        %3354 = vmatpush.msra.mxu0 %v3174
        %3355 = vmatpush.msra.mxu0 %v3169
        %3356 = vmatpush.msra.mxu0 %v3164
        %3357 = vmatpush.msra.mxu0 %v3159
        %3358 = vmatpush.msra.mxu0 %v3154
        %3359 = vmatpush.msra.mxu0 %v3149
        %3360 = vmatpush.msra.mxu0 %v3144
        %3361 = vmatpush.msra.mxu0 %v3139
        %3362 = vmatpush.msra.mxu0 %v3134
        %3363 = vmatpush.msra.mxu0 %v3129
        %3364 = vmatpush.msra.mxu0 %v3124
        %3365 = vmatmul.f32.gmra.mxu0 %v2918
        %v3366 = vpop.f32.mrf.mxu0
        %v3367 = vadd.f32 %v3302, %v3366
        %3368 = vmatmul.f32.gmra.mxu0 %v2921
        %v3369 = vpop.f32.mrf.mxu0
        %v3370 = vadd.f32 %v3305, %v3369
        %3371 = vmatmul.f32.gmra.mxu0 %v2924
        %v3372 = vpop.f32.mrf.mxu0
        %v3373 = vadd.f32 %v3308, %v3372
        %3374 = vmatmul.f32.gmra.mxu0 %v2927
        %v3375 = vpop.f32.mrf.mxu0
        %v3376 = vadd.f32 %v3311, %v3375
        %3377 = vmatmul.f32.gmra.mxu0 %v2930
        %v3378 = vpop.f32.mrf.mxu0
        %v3379 = vadd.f32 %v3314, %v3378
        %3380 = vmatmul.f32.gmra.mxu0 %v2933
        %v3381 = vpop.f32.mrf.mxu0
        %v3382 = vadd.f32 %v3317, %v3381
        %3383 = vmatmul.f32.gmra.mxu0 %v2936
        %v3384 = vpop.f32.mrf.mxu0
        %v3385 = vadd.f32 %v3320, %v3384
        %3386 = vmatmul.f32.gmra.mxu0 %v2939
        %v3387 = vpop.f32.mrf.mxu0
        %v3388 = vadd.f32 %v3323, %v3387
        %3389 = vmatmul.f32.gmra.mxu0 %v2942
        %v3390 = vpop.f32.mrf.mxu0
        %v3391 = vadd.f32 %v3326, %v3390
        %3392 = vmatmul.f32.gmra.mxu0 %v2945
        %v3393 = vpop.f32.mrf.mxu0
        %v3394 = vadd.f32 %v3329, %v3393
        %3395 = vmatmul.f32.gmra.mxu0 %v2948
        %v3396 = vpop.f32.mrf.mxu0
        %v3397 = vadd.f32 %v3332, %v3396
        %3398 = vmatmul.f32.gmra.mxu0 %v2951
        %v3399 = vpop.f32.mrf.mxu0
        %v3400 = vadd.f32 %v3335, %v3399
        %3401 = vmatmul.f32.gmra.mxu0 %v2954
        %v3402 = vpop.f32.mrf.mxu0
        %v3403 = vadd.f32 %v3338, %v3402
        %3404 = vmatmul.f32.gmra.mxu0 %v2957
        %v3405 = vpop.f32.mrf.mxu0
        %v3406 = vadd.f32 %v3341, %v3405
        %3407 = vmatmul.f32.gmra.mxu0 %v2960
        %v3408 = vpop.f32.mrf.mxu0
        %v3409 = vadd.f32 %v3344, %v3408
        %3410 = vmatmul.f32.gmra.mxu0 %v2963
        %v3411 = vpop.f32.mrf.mxu0
        %v3412 = vadd.f32 %v3347, %v3411
        %3413 = vdwg.mxu0
        %3414 = vmatpush.msra.mxu0 %v3040
        %3415 = vmatpush.msra.mxu0 %v3035
        %3416 = vmatpush.msra.mxu0 %v3030
        %3417 = vmatpush.msra.mxu0 %v3025
        %3418 = vmatpush.msra.mxu0 %v3020
        %3419 = vmatpush.msra.mxu0 %v3015
        %3420 = vmatpush.msra.mxu0 %v3010
        %3421 = vmatpush.msra.mxu0 %v3005
        %3422 = vmatpush.msra.mxu0 %v3000
        %3423 = vmatpush.msra.mxu0 %v2995
        %3424 = vmatpush.msra.mxu0 %v2990
        %3425 = vmatpush.msra.mxu0 %v2985
        %3426 = vmatpush.msra.mxu0 %v2980
        %3427 = vmatpush.msra.mxu0 %v2975
        %3428 = vmatpush.msra.mxu0 %v2970
        %3429 = vmatpush.msra.mxu0 %v2965
        %3430 = vmatmul.f32.gmra.mxu0 %v2916
        %v3431 = vpop.f32.mrf.mxu0
        %v3432 = vadd.f32 %v3210, %v3431
        %3433 = vmatmul.f32.gmra.mxu0 %v2919
        %v3434 = vpop.f32.mrf.mxu0
        %v3435 = vadd.f32 %v3210, %v3434
        %3436 = vmatmul.f32.gmra.mxu0 %v2922
        %v3437 = vpop.f32.mrf.mxu0
        %v3438 = vadd.f32 %v3210, %v3437
        %3439 = vmatmul.f32.gmra.mxu0 %v2925
        %v3440 = vpop.f32.mrf.mxu0
        %v3441 = vadd.f32 %v3210, %v3440
        %3442 = vmatmul.f32.gmra.mxu0 %v2928
        %v3443 = vpop.f32.mrf.mxu0
        %v3444 = vadd.f32 %v3210, %v3443
        %3445 = vmatmul.f32.gmra.mxu0 %v2931
        %v3446 = vpop.f32.mrf.mxu0
        %v3447 = vadd.f32 %v3210, %v3446
        %3448 = vmatmul.f32.gmra.mxu0 %v2934
        %v3449 = vpop.f32.mrf.mxu0
        %v3450 = vadd.f32 %v3210, %v3449
        %3451 = vmatmul.f32.gmra.mxu0 %v2937
        %v3452 = vpop.f32.mrf.mxu0
        %v3453 = vadd.f32 %v3210, %v3452
        %3454 = vmatmul.f32.gmra.mxu0 %v2940
        %v3455 = vpop.f32.mrf.mxu0
        %v3456 = vadd.f32 %v3210, %v3455
        %3457 = vmatmul.f32.gmra.mxu0 %v2943
        %v3458 = vpop.f32.mrf.mxu0
        %v3459 = vadd.f32 %v3210, %v3458
        %3460 = vmatmul.f32.gmra.mxu0 %v2946
        %v3461 = vpop.f32.mrf.mxu0
        %v3462 = vadd.f32 %v3210, %v3461
        %3463 = vmatmul.f32.gmra.mxu0 %v2949
        %v3464 = vpop.f32.mrf.mxu0
        %v3465 = vadd.f32 %v3210, %v3464
        %3466 = vmatmul.f32.gmra.mxu0 %v2952
        %v3467 = vpop.f32.mrf.mxu0
        %v3468 = vadd.f32 %v3210, %v3467
        %3469 = vmatmul.f32.gmra.mxu0 %v2955
        %v3470 = vpop.f32.mrf.mxu0
        %v3471 = vadd.f32 %v3210, %v3470
        %3472 = vmatmul.f32.gmra.mxu0 %v2958
        %v3473 = vpop.f32.mrf.mxu0
        %v3474 = vadd.f32 %v3210, %v3473
        %3475 = vmatmul.f32.gmra.mxu0 %v2961
        %v3476 = vpop.f32.mrf.mxu0
        %v3477 = vadd.f32 %v3210, %v3476
        %3478 = vdwg.mxu0
        %3479 = vmatpush.msra.mxu0 %v3120
        %3480 = vmatpush.msra.mxu0 %v3115
        %3481 = vmatpush.msra.mxu0 %v3110
        %3482 = vmatpush.msra.mxu0 %v3105
        %3483 = vmatpush.msra.mxu0 %v3100
        %3484 = vmatpush.msra.mxu0 %v3095
        %3485 = vmatpush.msra.mxu0 %v3090
        %3486 = vmatpush.msra.mxu0 %v3085
        %3487 = vmatpush.msra.mxu0 %v3080
        %3488 = vmatpush.msra.mxu0 %v3075
        %3489 = vmatpush.msra.mxu0 %v3070
        %3490 = vmatpush.msra.mxu0 %v3065
        %3491 = vmatpush.msra.mxu0 %v3060
        %3492 = vmatpush.msra.mxu0 %v3055
        %3493 = vmatpush.msra.mxu0 %v3050
        %3494 = vmatpush.msra.mxu0 %v3045
        %3495 = vmatmul.f32.gmra.mxu0 %v2917
        %v3496 = vpop.f32.mrf.mxu0
        %v3497 = vadd.f32 %v3432, %v3496
        %3498 = vmatmul.f32.gmra.mxu0 %v2920
        %v3499 = vpop.f32.mrf.mxu0
        %v3500 = vadd.f32 %v3435, %v3499
        %3501 = vmatmul.f32.gmra.mxu0 %v2923
        %v3502 = vpop.f32.mrf.mxu0
        %v3503 = vadd.f32 %v3438, %v3502
        %3504 = vmatmul.f32.gmra.mxu0 %v2926
        %v3505 = vpop.f32.mrf.mxu0
        %v3506 = vadd.f32 %v3441, %v3505
        %3507 = vmatmul.f32.gmra.mxu0 %v2929
        %v3508 = vpop.f32.mrf.mxu0
        %v3509 = vadd.f32 %v3444, %v3508
        %3510 = vmatmul.f32.gmra.mxu0 %v2932
        %v3511 = vpop.f32.mrf.mxu0
        %v3512 = vadd.f32 %v3447, %v3511
        %3513 = vmatmul.f32.gmra.mxu0 %v2935
        %v3514 = vpop.f32.mrf.mxu0
        %v3515 = vadd.f32 %v3450, %v3514
        %3516 = vmatmul.f32.gmra.mxu0 %v2938
        %v3517 = vpop.f32.mrf.mxu0
        %v3518 = vadd.f32 %v3453, %v3517
        %3519 = vmatmul.f32.gmra.mxu0 %v2941
        %v3520 = vpop.f32.mrf.mxu0
        %v3521 = vadd.f32 %v3456, %v3520
        %3522 = vmatmul.f32.gmra.mxu0 %v2944
        %v3523 = vpop.f32.mrf.mxu0
        %v3524 = vadd.f32 %v3459, %v3523
        %3525 = vmatmul.f32.gmra.mxu0 %v2947
        %v3526 = vpop.f32.mrf.mxu0
        %v3527 = vadd.f32 %v3462, %v3526
        %3528 = vmatmul.f32.gmra.mxu0 %v2950
        %v3529 = vpop.f32.mrf.mxu0
        %v3530 = vadd.f32 %v3465, %v3529
        %3531 = vmatmul.f32.gmra.mxu0 %v2953
        %v3532 = vpop.f32.mrf.mxu0
        %v3533 = vadd.f32 %v3468, %v3532
        %3534 = vmatmul.f32.gmra.mxu0 %v2956
        %v3535 = vpop.f32.mrf.mxu0
        %v3536 = vadd.f32 %v3471, %v3535
        %3537 = vmatmul.f32.gmra.mxu0 %v2959
        %v3538 = vpop.f32.mrf.mxu0
        %v3539 = vadd.f32 %v3474, %v3538
        %3540 = vmatmul.f32.gmra.mxu0 %v2962
        %v3541 = vpop.f32.mrf.mxu0
        %v3542 = vadd.f32 %v3477, %v3541
        %3543 = vdwg.mxu0
        %3544 = vmatpush.msra.mxu0 %v3200
        %3545 = vmatpush.msra.mxu0 %v3195
        %3546 = vmatpush.msra.mxu0 %v3190
        %3547 = vmatpush.msra.mxu0 %v3185
        %3548 = vmatpush.msra.mxu0 %v3180
        %3549 = vmatpush.msra.mxu0 %v3175
        %3550 = vmatpush.msra.mxu0 %v3170
        %3551 = vmatpush.msra.mxu0 %v3165
        %3552 = vmatpush.msra.mxu0 %v3160
        %3553 = vmatpush.msra.mxu0 %v3155
        %3554 = vmatpush.msra.mxu0 %v3150
        %3555 = vmatpush.msra.mxu0 %v3145
        %3556 = vmatpush.msra.mxu0 %v3140
        %3557 = vmatpush.msra.mxu0 %v3135
        %3558 = vmatpush.msra.mxu0 %v3130
        %3559 = vmatpush.msra.mxu0 %v3125
        %3560 = vmatmul.f32.gmra.mxu0 %v2918
        %v3561 = vpop.f32.mrf.mxu0
        %v3562 = vadd.f32 %v3497, %v3561
        %3563 = vmatmul.f32.gmra.mxu0 %v2921
        %v3564 = vpop.f32.mrf.mxu0
        %v3565 = vadd.f32 %v3500, %v3564
        %3566 = vmatmul.f32.gmra.mxu0 %v2924
        %v3567 = vpop.f32.mrf.mxu0
        %v3568 = vadd.f32 %v3503, %v3567
        %3569 = vmatmul.f32.gmra.mxu0 %v2927
        %v3570 = vpop.f32.mrf.mxu0
        %v3571 = vadd.f32 %v3506, %v3570
        %3572 = vmatmul.f32.gmra.mxu0 %v2930
        %v3573 = vpop.f32.mrf.mxu0
        %v3574 = vadd.f32 %v3509, %v3573
        %3575 = vmatmul.f32.gmra.mxu0 %v2933
        %v3576 = vpop.f32.mrf.mxu0
        %v3577 = vadd.f32 %v3512, %v3576
        %3578 = vmatmul.f32.gmra.mxu0 %v2936
        %v3579 = vpop.f32.mrf.mxu0
        %v3580 = vadd.f32 %v3515, %v3579
        %3581 = vmatmul.f32.gmra.mxu0 %v2939
        %v3582 = vpop.f32.mrf.mxu0
        %v3583 = vadd.f32 %v3518, %v3582
        %3584 = vmatmul.f32.gmra.mxu0 %v2942
        %v3585 = vpop.f32.mrf.mxu0
        %v3586 = vadd.f32 %v3521, %v3585
        %3587 = vmatmul.f32.gmra.mxu0 %v2945
        %v3588 = vpop.f32.mrf.mxu0
        %v3589 = vadd.f32 %v3524, %v3588
        %3590 = vmatmul.f32.gmra.mxu0 %v2948
        %v3591 = vpop.f32.mrf.mxu0
        %v3592 = vadd.f32 %v3527, %v3591
        %3593 = vmatmul.f32.gmra.mxu0 %v2951
        %v3594 = vpop.f32.mrf.mxu0
        %v3595 = vadd.f32 %v3530, %v3594
        %3596 = vmatmul.f32.gmra.mxu0 %v2954
        %v3597 = vpop.f32.mrf.mxu0
        %v3598 = vadd.f32 %v3533, %v3597
        %3599 = vmatmul.f32.gmra.mxu0 %v2957
        %v3600 = vpop.f32.mrf.mxu0
        %v3601 = vadd.f32 %v3536, %v3600
        %3602 = vmatmul.f32.gmra.mxu0 %v2960
        %v3603 = vpop.f32.mrf.mxu0
        %v3604 = vadd.f32 %v3539, %v3603
        %3605 = vmatmul.f32.gmra.mxu0 %v2963
        %v3606 = vpop.f32.mrf.mxu0
        %v3607 = vadd.f32 %v3542, %v3606
        %3608 = vdwg.mxu0
        %3609 = vmatpush.msra.mxu0 %v3041
        %3610 = vmatpush.msra.mxu0 %v3036
        %3611 = vmatpush.msra.mxu0 %v3031
        %3612 = vmatpush.msra.mxu0 %v3026
        %3613 = vmatpush.msra.mxu0 %v3021
        %3614 = vmatpush.msra.mxu0 %v3016
        %3615 = vmatpush.msra.mxu0 %v3011
        %3616 = vmatpush.msra.mxu0 %v3006
        %3617 = vmatpush.msra.mxu0 %v3001
        %3618 = vmatpush.msra.mxu0 %v2996
        %3619 = vmatpush.msra.mxu0 %v2991
        %3620 = vmatpush.msra.mxu0 %v2986
        %3621 = vmatpush.msra.mxu0 %v2981
        %3622 = vmatpush.msra.mxu0 %v2976
        %3623 = vmatpush.msra.mxu0 %v2971
        %3624 = vmatpush.msra.mxu0 %v2966
        %3625 = vmatmul.f32.gmra.mxu0 %v2916
        %v3626 = vpop.f32.mrf.mxu0
        %v3627 = vadd.f32 %v3211, %v3626
        %3628 = vmatmul.f32.gmra.mxu0 %v2919
        %v3629 = vpop.f32.mrf.mxu0
        %v3630 = vadd.f32 %v3211, %v3629
        %3631 = vmatmul.f32.gmra.mxu0 %v2922
        %v3632 = vpop.f32.mrf.mxu0
        %v3633 = vadd.f32 %v3211, %v3632
        %3634 = vmatmul.f32.gmra.mxu0 %v2925
        %v3635 = vpop.f32.mrf.mxu0
        %v3636 = vadd.f32 %v3211, %v3635
        %3637 = vmatmul.f32.gmra.mxu0 %v2928
        %v3638 = vpop.f32.mrf.mxu0
        %v3639 = vadd.f32 %v3211, %v3638
        %3640 = vmatmul.f32.gmra.mxu0 %v2931
        %v3641 = vpop.f32.mrf.mxu0
        %v3642 = vadd.f32 %v3211, %v3641
        %3643 = vmatmul.f32.gmra.mxu0 %v2934
        %v3644 = vpop.f32.mrf.mxu0
        %v3645 = vadd.f32 %v3211, %v3644
        %3646 = vmatmul.f32.gmra.mxu0 %v2937
        %v3647 = vpop.f32.mrf.mxu0
        %v3648 = vadd.f32 %v3211, %v3647
        %3649 = vmatmul.f32.gmra.mxu0 %v2940
        %v3650 = vpop.f32.mrf.mxu0
        %v3651 = vadd.f32 %v3211, %v3650
        %3652 = vmatmul.f32.gmra.mxu0 %v2943
        %v3653 = vpop.f32.mrf.mxu0
        %v3654 = vadd.f32 %v3211, %v3653
        %3655 = vmatmul.f32.gmra.mxu0 %v2946
        %v3656 = vpop.f32.mrf.mxu0
        %v3657 = vadd.f32 %v3211, %v3656
        %3658 = vmatmul.f32.gmra.mxu0 %v2949
        %v3659 = vpop.f32.mrf.mxu0
        %v3660 = vadd.f32 %v3211, %v3659
        %3661 = vmatmul.f32.gmra.mxu0 %v2952
        %v3662 = vpop.f32.mrf.mxu0
        %v3663 = vadd.f32 %v3211, %v3662
        %3664 = vmatmul.f32.gmra.mxu0 %v2955
        %v3665 = vpop.f32.mrf.mxu0
        %v3666 = vadd.f32 %v3211, %v3665
        %3667 = vmatmul.f32.gmra.mxu0 %v2958
        %v3668 = vpop.f32.mrf.mxu0
        %v3669 = vadd.f32 %v3211, %v3668
        %3670 = vmatmul.f32.gmra.mxu0 %v2961
        %v3671 = vpop.f32.mrf.mxu0
        %v3672 = vadd.f32 %v3211, %v3671
        %3673 = vdwg.mxu0
        %3674 = vmatpush.msra.mxu0 %v3121
        %3675 = vmatpush.msra.mxu0 %v3116
        %3676 = vmatpush.msra.mxu0 %v3111
        %3677 = vmatpush.msra.mxu0 %v3106
        %3678 = vmatpush.msra.mxu0 %v3101
        %3679 = vmatpush.msra.mxu0 %v3096
        %3680 = vmatpush.msra.mxu0 %v3091
        %3681 = vmatpush.msra.mxu0 %v3086
        %3682 = vmatpush.msra.mxu0 %v3081
        %3683 = vmatpush.msra.mxu0 %v3076
        %3684 = vmatpush.msra.mxu0 %v3071
        %3685 = vmatpush.msra.mxu0 %v3066
        %3686 = vmatpush.msra.mxu0 %v3061
        %3687 = vmatpush.msra.mxu0 %v3056
        %3688 = vmatpush.msra.mxu0 %v3051
        %3689 = vmatpush.msra.mxu0 %v3046
        %3690 = vmatmul.f32.gmra.mxu0 %v2917
        %v3691 = vpop.f32.mrf.mxu0
        %v3692 = vadd.f32 %v3627, %v3691
        %3693 = vmatmul.f32.gmra.mxu0 %v2920
        %v3694 = vpop.f32.mrf.mxu0
        %v3695 = vadd.f32 %v3630, %v3694
        %3696 = vmatmul.f32.gmra.mxu0 %v2923
        %v3697 = vpop.f32.mrf.mxu0
        %v3698 = vadd.f32 %v3633, %v3697
        %3699 = vmatmul.f32.gmra.mxu0 %v2926
        %v3700 = vpop.f32.mrf.mxu0
        %v3701 = vadd.f32 %v3636, %v3700
        %3702 = vmatmul.f32.gmra.mxu0 %v2929
        %v3703 = vpop.f32.mrf.mxu0
        %v3704 = vadd.f32 %v3639, %v3703
        %3705 = vmatmul.f32.gmra.mxu0 %v2932
        %v3706 = vpop.f32.mrf.mxu0
        %v3707 = vadd.f32 %v3642, %v3706
        %3708 = vmatmul.f32.gmra.mxu0 %v2935
        %v3709 = vpop.f32.mrf.mxu0
        %v3710 = vadd.f32 %v3645, %v3709
        %3711 = vmatmul.f32.gmra.mxu0 %v2938
        %v3712 = vpop.f32.mrf.mxu0
        %v3713 = vadd.f32 %v3648, %v3712
        %3714 = vmatmul.f32.gmra.mxu0 %v2941
        %v3715 = vpop.f32.mrf.mxu0
        %v3716 = vadd.f32 %v3651, %v3715
        %3717 = vmatmul.f32.gmra.mxu0 %v2944
        %v3718 = vpop.f32.mrf.mxu0
        %v3719 = vadd.f32 %v3654, %v3718
        %3720 = vmatmul.f32.gmra.mxu0 %v2947
        %v3721 = vpop.f32.mrf.mxu0
        %v3722 = vadd.f32 %v3657, %v3721
        %3723 = vmatmul.f32.gmra.mxu0 %v2950
        %v3724 = vpop.f32.mrf.mxu0
        %v3725 = vadd.f32 %v3660, %v3724
        %3726 = vmatmul.f32.gmra.mxu0 %v2953
        %v3727 = vpop.f32.mrf.mxu0
        %v3728 = vadd.f32 %v3663, %v3727
        %3729 = vmatmul.f32.gmra.mxu0 %v2956
        %v3730 = vpop.f32.mrf.mxu0
        %v3731 = vadd.f32 %v3666, %v3730
        %3732 = vmatmul.f32.gmra.mxu0 %v2959
        %v3733 = vpop.f32.mrf.mxu0
        %v3734 = vadd.f32 %v3669, %v3733
        %3735 = vmatmul.f32.gmra.mxu0 %v2962
        %v3736 = vpop.f32.mrf.mxu0
        %v3737 = vadd.f32 %v3672, %v3736
        %3738 = vdwg.mxu0
        %3739 = vmatpush.msra.mxu0 %v3201
        %3740 = vmatpush.msra.mxu0 %v3196
        %3741 = vmatpush.msra.mxu0 %v3191
        %3742 = vmatpush.msra.mxu0 %v3186
        %3743 = vmatpush.msra.mxu0 %v3181
        %3744 = vmatpush.msra.mxu0 %v3176
        %3745 = vmatpush.msra.mxu0 %v3171
        %3746 = vmatpush.msra.mxu0 %v3166
        %3747 = vmatpush.msra.mxu0 %v3161
        %3748 = vmatpush.msra.mxu0 %v3156
        %3749 = vmatpush.msra.mxu0 %v3151
        %3750 = vmatpush.msra.mxu0 %v3146
        %3751 = vmatpush.msra.mxu0 %v3141
        %3752 = vmatpush.msra.mxu0 %v3136
        %3753 = vmatpush.msra.mxu0 %v3131
        %3754 = vmatpush.msra.mxu0 %v3126
        %3755 = vmatmul.f32.gmra.mxu0 %v2918
        %v3756 = vpop.f32.mrf.mxu0
        %v3757 = vadd.f32 %v3692, %v3756
        %3758 = vmatmul.f32.gmra.mxu0 %v2921
        %v3759 = vpop.f32.mrf.mxu0
        %v3760 = vadd.f32 %v3695, %v3759
        %3761 = vmatmul.f32.gmra.mxu0 %v2924
        %v3762 = vpop.f32.mrf.mxu0
        %v3763 = vadd.f32 %v3698, %v3762
        %3764 = vmatmul.f32.gmra.mxu0 %v2927
        %v3765 = vpop.f32.mrf.mxu0
        %v3766 = vadd.f32 %v3701, %v3765
        %3767 = vmatmul.f32.gmra.mxu0 %v2930
        %v3768 = vpop.f32.mrf.mxu0
        %v3769 = vadd.f32 %v3704, %v3768
        %3770 = vmatmul.f32.gmra.mxu0 %v2933
        %v3771 = vpop.f32.mrf.mxu0
        %v3772 = vadd.f32 %v3707, %v3771
        %3773 = vmatmul.f32.gmra.mxu0 %v2936
        %v3774 = vpop.f32.mrf.mxu0
        %v3775 = vadd.f32 %v3710, %v3774
        %3776 = vmatmul.f32.gmra.mxu0 %v2939
        %v3777 = vpop.f32.mrf.mxu0
        %v3778 = vadd.f32 %v3713, %v3777
        %3779 = vmatmul.f32.gmra.mxu0 %v2942
        %v3780 = vpop.f32.mrf.mxu0
        %v3781 = vadd.f32 %v3716, %v3780
        %3782 = vmatmul.f32.gmra.mxu0 %v2945
        %v3783 = vpop.f32.mrf.mxu0
        %v3784 = vadd.f32 %v3719, %v3783
        %3785 = vmatmul.f32.gmra.mxu0 %v2948
        %v3786 = vpop.f32.mrf.mxu0
        %v3787 = vadd.f32 %v3722, %v3786
        %3788 = vmatmul.f32.gmra.mxu0 %v2951
        %v3789 = vpop.f32.mrf.mxu0
        %v3790 = vadd.f32 %v3725, %v3789
        %3791 = vmatmul.f32.gmra.mxu0 %v2954
        %v3792 = vpop.f32.mrf.mxu0
        %v3793 = vadd.f32 %v3728, %v3792
        %3794 = vmatmul.f32.gmra.mxu0 %v2957
        %v3795 = vpop.f32.mrf.mxu0
        %v3796 = vadd.f32 %v3731, %v3795
        %3797 = vmatmul.f32.gmra.mxu0 %v2960
        %v3798 = vpop.f32.mrf.mxu0
        %v3799 = vadd.f32 %v3734, %v3798
        %3800 = vmatmul.f32.gmra.mxu0 %v2963
        %v3801 = vpop.f32.mrf.mxu0
        %v3802 = vadd.f32 %v3737, %v3801
        %3803 = vdwg.mxu0
        %3804 = vmatpush.msra.mxu0 %v3042
        %3805 = vmatpush.msra.mxu0 %v3037
        %3806 = vmatpush.msra.mxu0 %v3032
        %3807 = vmatpush.msra.mxu0 %v3027
        %3808 = vmatpush.msra.mxu0 %v3022
        %3809 = vmatpush.msra.mxu0 %v3017
        %3810 = vmatpush.msra.mxu0 %v3012
        %3811 = vmatpush.msra.mxu0 %v3007
        %3812 = vmatpush.msra.mxu0 %v3002
        %3813 = vmatpush.msra.mxu0 %v2997
        %3814 = vmatpush.msra.mxu0 %v2992
        %3815 = vmatpush.msra.mxu0 %v2987
        %3816 = vmatpush.msra.mxu0 %v2982
        %3817 = vmatpush.msra.mxu0 %v2977
        %3818 = vmatpush.msra.mxu0 %v2972
        %3819 = vmatpush.msra.mxu0 %v2967
        %3820 = vmatmul.f32.gmra.mxu0 %v2916
        %v3821 = vpop.f32.mrf.mxu0
        %v3822 = vadd.f32 %v3212, %v3821
        %3823 = vmatmul.f32.gmra.mxu0 %v2919
        %v3824 = vpop.f32.mrf.mxu0
        %v3825 = vadd.f32 %v3212, %v3824
        %3826 = vmatmul.f32.gmra.mxu0 %v2922
        %v3827 = vpop.f32.mrf.mxu0
        %v3828 = vadd.f32 %v3212, %v3827
        %3829 = vmatmul.f32.gmra.mxu0 %v2925
        %v3830 = vpop.f32.mrf.mxu0
        %v3831 = vadd.f32 %v3212, %v3830
        %3832 = vmatmul.f32.gmra.mxu0 %v2928
        %v3833 = vpop.f32.mrf.mxu0
        %v3834 = vadd.f32 %v3212, %v3833
        %3835 = vmatmul.f32.gmra.mxu0 %v2931
        %v3836 = vpop.f32.mrf.mxu0
        %v3837 = vadd.f32 %v3212, %v3836
        %3838 = vmatmul.f32.gmra.mxu0 %v2934
        %v3839 = vpop.f32.mrf.mxu0
        %v3840 = vadd.f32 %v3212, %v3839
        %3841 = vmatmul.f32.gmra.mxu0 %v2937
        %v3842 = vpop.f32.mrf.mxu0
        %v3843 = vadd.f32 %v3212, %v3842
        %3844 = vmatmul.f32.gmra.mxu0 %v2940
        %v3845 = vpop.f32.mrf.mxu0
        %v3846 = vadd.f32 %v3212, %v3845
        %3847 = vmatmul.f32.gmra.mxu0 %v2943
        %v3848 = vpop.f32.mrf.mxu0
        %v3849 = vadd.f32 %v3212, %v3848
        %3850 = vmatmul.f32.gmra.mxu0 %v2946
        %v3851 = vpop.f32.mrf.mxu0
        %v3852 = vadd.f32 %v3212, %v3851
        %3853 = vmatmul.f32.gmra.mxu0 %v2949
        %v3854 = vpop.f32.mrf.mxu0
        %v3855 = vadd.f32 %v3212, %v3854
        %3856 = vmatmul.f32.gmra.mxu0 %v2952
        %v3857 = vpop.f32.mrf.mxu0
        %v3858 = vadd.f32 %v3212, %v3857
        %3859 = vmatmul.f32.gmra.mxu0 %v2955
        %v3860 = vpop.f32.mrf.mxu0
        %v3861 = vadd.f32 %v3212, %v3860
        %3862 = vmatmul.f32.gmra.mxu0 %v2958
        %v3863 = vpop.f32.mrf.mxu0
        %v3864 = vadd.f32 %v3212, %v3863
        %3865 = vmatmul.f32.gmra.mxu0 %v2961
        %v3866 = vpop.f32.mrf.mxu0
        %v3867 = vadd.f32 %v3212, %v3866
        %3868 = vdwg.mxu0
        %3869 = vmatpush.msra.mxu0 %v3122
        %3870 = vmatpush.msra.mxu0 %v3117
        %3871 = vmatpush.msra.mxu0 %v3112
        %3872 = vmatpush.msra.mxu0 %v3107
        %3873 = vmatpush.msra.mxu0 %v3102
        %3874 = vmatpush.msra.mxu0 %v3097
        %3875 = vmatpush.msra.mxu0 %v3092
        %3876 = vmatpush.msra.mxu0 %v3087
        %3877 = vmatpush.msra.mxu0 %v3082
        %3878 = vmatpush.msra.mxu0 %v3077
        %3879 = vmatpush.msra.mxu0 %v3072
        %3880 = vmatpush.msra.mxu0 %v3067
        %3881 = vmatpush.msra.mxu0 %v3062
        %3882 = vmatpush.msra.mxu0 %v3057
        %3883 = vmatpush.msra.mxu0 %v3052
        %3884 = vmatpush.msra.mxu0 %v3047
        %3885 = vmatmul.f32.gmra.mxu0 %v2917
        %v3886 = vpop.f32.mrf.mxu0
        %v3887 = vadd.f32 %v3822, %v3886
        %3888 = vmatmul.f32.gmra.mxu0 %v2920
        %v3889 = vpop.f32.mrf.mxu0
        %v3890 = vadd.f32 %v3825, %v3889
        %3891 = vmatmul.f32.gmra.mxu0 %v2923
        %v3892 = vpop.f32.mrf.mxu0
        %v3893 = vadd.f32 %v3828, %v3892
        %3894 = vmatmul.f32.gmra.mxu0 %v2926
        %v3895 = vpop.f32.mrf.mxu0
        %v3896 = vadd.f32 %v3831, %v3895
        %3897 = vmatmul.f32.gmra.mxu0 %v2929
        %v3898 = vpop.f32.mrf.mxu0
        %v3899 = vadd.f32 %v3834, %v3898
        %3900 = vmatmul.f32.gmra.mxu0 %v2932
        %v3901 = vpop.f32.mrf.mxu0
        %v3902 = vadd.f32 %v3837, %v3901
        %3903 = vmatmul.f32.gmra.mxu0 %v2935
        %v3904 = vpop.f32.mrf.mxu0
        %v3905 = vadd.f32 %v3840, %v3904
        %3906 = vmatmul.f32.gmra.mxu0 %v2938
        %v3907 = vpop.f32.mrf.mxu0
        %v3908 = vadd.f32 %v3843, %v3907
        %3909 = vmatmul.f32.gmra.mxu0 %v2941
        %v3910 = vpop.f32.mrf.mxu0
        %v3911 = vadd.f32 %v3846, %v3910
        %3912 = vmatmul.f32.gmra.mxu0 %v2944
        %v3913 = vpop.f32.mrf.mxu0
        %v3914 = vadd.f32 %v3849, %v3913
        %3915 = vmatmul.f32.gmra.mxu0 %v2947
        %v3916 = vpop.f32.mrf.mxu0
        %v3917 = vadd.f32 %v3852, %v3916
        %3918 = vmatmul.f32.gmra.mxu0 %v2950
        %v3919 = vpop.f32.mrf.mxu0
        %v3920 = vadd.f32 %v3855, %v3919
        %3921 = vmatmul.f32.gmra.mxu0 %v2953
        %v3922 = vpop.f32.mrf.mxu0
        %v3923 = vadd.f32 %v3858, %v3922
        %3924 = vmatmul.f32.gmra.mxu0 %v2956
        %v3925 = vpop.f32.mrf.mxu0
        %v3926 = vadd.f32 %v3861, %v3925
        %3927 = vmatmul.f32.gmra.mxu0 %v2959
        %v3928 = vpop.f32.mrf.mxu0
        %v3929 = vadd.f32 %v3864, %v3928
        %3930 = vmatmul.f32.gmra.mxu0 %v2962
        %v3931 = vpop.f32.mrf.mxu0
        %v3932 = vadd.f32 %v3867, %v3931
        %3933 = vdwg.mxu0
        %3934 = vmatpush.msra.mxu0 %v3202
        %3935 = vmatpush.msra.mxu0 %v3197
        %3936 = vmatpush.msra.mxu0 %v3192
        %3937 = vmatpush.msra.mxu0 %v3187
        %3938 = vmatpush.msra.mxu0 %v3182
        %3939 = vmatpush.msra.mxu0 %v3177
        %3940 = vmatpush.msra.mxu0 %v3172
        %3941 = vmatpush.msra.mxu0 %v3167
        %3942 = vmatpush.msra.mxu0 %v3162
        %3943 = vmatpush.msra.mxu0 %v3157
        %3944 = vmatpush.msra.mxu0 %v3152
        %3945 = vmatpush.msra.mxu0 %v3147
        %3946 = vmatpush.msra.mxu0 %v3142
        %3947 = vmatpush.msra.mxu0 %v3137
        %3948 = vmatpush.msra.mxu0 %v3132
        %3949 = vmatpush.msra.mxu0 %v3127
        %3950 = vmatmul.f32.gmra.mxu0 %v2918
        %v3951 = vpop.f32.mrf.mxu0
        %v3952 = vadd.f32 %v3887, %v3951
        %3953 = vmatmul.f32.gmra.mxu0 %v2921
        %v3954 = vpop.f32.mrf.mxu0
        %v3955 = vadd.f32 %v3890, %v3954
        %3956 = vmatmul.f32.gmra.mxu0 %v2924
        %v3957 = vpop.f32.mrf.mxu0
        %v3958 = vadd.f32 %v3893, %v3957
        %3959 = vmatmul.f32.gmra.mxu0 %v2927
        %v3960 = vpop.f32.mrf.mxu0
        %v3961 = vadd.f32 %v3896, %v3960
        %3962 = vmatmul.f32.gmra.mxu0 %v2930
        %v3963 = vpop.f32.mrf.mxu0
        %v3964 = vadd.f32 %v3899, %v3963
        %3965 = vmatmul.f32.gmra.mxu0 %v2933
        %v3966 = vpop.f32.mrf.mxu0
        %v3967 = vadd.f32 %v3902, %v3966
        %3968 = vmatmul.f32.gmra.mxu0 %v2936
        %v3969 = vpop.f32.mrf.mxu0
        %v3970 = vadd.f32 %v3905, %v3969
        %3971 = vmatmul.f32.gmra.mxu0 %v2939
        %v3972 = vpop.f32.mrf.mxu0
        %v3973 = vadd.f32 %v3908, %v3972
        %3974 = vmatmul.f32.gmra.mxu0 %v2942
        %v3975 = vpop.f32.mrf.mxu0
        %v3976 = vadd.f32 %v3911, %v3975
        %3977 = vmatmul.f32.gmra.mxu0 %v2945
        %v3978 = vpop.f32.mrf.mxu0
        %v3979 = vadd.f32 %v3914, %v3978
        %3980 = vmatmul.f32.gmra.mxu0 %v2948
        %v3981 = vpop.f32.mrf.mxu0
        %v3982 = vadd.f32 %v3917, %v3981
        %3983 = vmatmul.f32.gmra.mxu0 %v2951
        %v3984 = vpop.f32.mrf.mxu0
        %v3985 = vadd.f32 %v3920, %v3984
        %3986 = vmatmul.f32.gmra.mxu0 %v2954
        %v3987 = vpop.f32.mrf.mxu0
        %v3988 = vadd.f32 %v3923, %v3987
        %3989 = vmatmul.f32.gmra.mxu0 %v2957
        %v3990 = vpop.f32.mrf.mxu0
        %v3991 = vadd.f32 %v3926, %v3990
        %3992 = vmatmul.f32.gmra.mxu0 %v2960
        %v3993 = vpop.f32.mrf.mxu0
        %v3994 = vadd.f32 %v3929, %v3993
        %3995 = vmatmul.f32.gmra.mxu0 %v2963
        %v3996 = vpop.f32.mrf.mxu0
        %v3997 = vadd.f32 %v3932, %v3996
        %3998 = vdwg.mxu0
        %3999 = vmatpush.msra.mxu0 %v3043
        %4000 = vmatpush.msra.mxu0 %v3038
        %4001 = vmatpush.msra.mxu0 %v3033
        %4002 = vmatpush.msra.mxu0 %v3028
        %4003 = vmatpush.msra.mxu0 %v3023
        %4004 = vmatpush.msra.mxu0 %v3018
        %4005 = vmatpush.msra.mxu0 %v3013
        %4006 = vmatpush.msra.mxu0 %v3008
        %4007 = vmatpush.msra.mxu0 %v3003
        %4008 = vmatpush.msra.mxu0 %v2998
        %4009 = vmatpush.msra.mxu0 %v2993
        %4010 = vmatpush.msra.mxu0 %v2988
        %4011 = vmatpush.msra.mxu0 %v2983
        %4012 = vmatpush.msra.mxu0 %v2978
        %4013 = vmatpush.msra.mxu0 %v2973
        %4014 = vmatpush.msra.mxu0 %v2968
        %4015 = vmatmul.f32.gmra.mxu0 %v2916
        %v4016 = vpop.f32.mrf.mxu0
        %v4017 = vadd.f32 %v3213, %v4016
        %4018 = vmatmul.f32.gmra.mxu0 %v2919
        %v4019 = vpop.f32.mrf.mxu0
        %v4020 = vadd.f32 %v3213, %v4019
        %4021 = vmatmul.f32.gmra.mxu0 %v2922
        %v4022 = vpop.f32.mrf.mxu0
        %v4023 = vadd.f32 %v3213, %v4022
        %4024 = vmatmul.f32.gmra.mxu0 %v2925
        %v4025 = vpop.f32.mrf.mxu0
        %v4026 = vadd.f32 %v3213, %v4025
        %4027 = vmatmul.f32.gmra.mxu0 %v2928
        %v4028 = vpop.f32.mrf.mxu0
        %v4029 = vadd.f32 %v3213, %v4028
        %4030 = vmatmul.f32.gmra.mxu0 %v2931
        %v4031 = vpop.f32.mrf.mxu0
        %v4032 = vadd.f32 %v3213, %v4031
        %4033 = vmatmul.f32.gmra.mxu0 %v2934
        %v4034 = vpop.f32.mrf.mxu0
        %v4035 = vadd.f32 %v3213, %v4034
        %4036 = vmatmul.f32.gmra.mxu0 %v2937
        %v4037 = vpop.f32.mrf.mxu0
        %v4038 = vadd.f32 %v3213, %v4037
        %4039 = vmatmul.f32.gmra.mxu0 %v2940
        %v4040 = vpop.f32.mrf.mxu0
        %v4041 = vadd.f32 %v3213, %v4040
        %4042 = vmatmul.f32.gmra.mxu0 %v2943
        %v4043 = vpop.f32.mrf.mxu0
        %v4044 = vadd.f32 %v3213, %v4043
        %4045 = vmatmul.f32.gmra.mxu0 %v2946
        %v4046 = vpop.f32.mrf.mxu0
        %v4047 = vadd.f32 %v3213, %v4046
        %4048 = vmatmul.f32.gmra.mxu0 %v2949
        %v4049 = vpop.f32.mrf.mxu0
        %v4050 = vadd.f32 %v3213, %v4049
        %4051 = vmatmul.f32.gmra.mxu0 %v2952
        %v4052 = vpop.f32.mrf.mxu0
        %v4053 = vadd.f32 %v3213, %v4052
        %4054 = vmatmul.f32.gmra.mxu0 %v2955
        %v4055 = vpop.f32.mrf.mxu0
        %v4056 = vadd.f32 %v3213, %v4055
        %4057 = vmatmul.f32.gmra.mxu0 %v2958
        %v4058 = vpop.f32.mrf.mxu0
        %v4059 = vadd.f32 %v3213, %v4058
        %4060 = vmatmul.f32.gmra.mxu0 %v2961
        %v4061 = vpop.f32.mrf.mxu0
        %v4062 = vadd.f32 %v3213, %v4061
        %4063 = vdwg.mxu0
        %4064 = vmatpush.msra.mxu0 %v3123
        %4065 = vmatpush.msra.mxu0 %v3118
        %4066 = vmatpush.msra.mxu0 %v3113
        %4067 = vmatpush.msra.mxu0 %v3108
        %4068 = vmatpush.msra.mxu0 %v3103
        %4069 = vmatpush.msra.mxu0 %v3098
        %4070 = vmatpush.msra.mxu0 %v3093
        %4071 = vmatpush.msra.mxu0 %v3088
        %4072 = vmatpush.msra.mxu0 %v3083
        %4073 = vmatpush.msra.mxu0 %v3078
        %4074 = vmatpush.msra.mxu0 %v3073
        %4075 = vmatpush.msra.mxu0 %v3068
        %4076 = vmatpush.msra.mxu0 %v3063
        %4077 = vmatpush.msra.mxu0 %v3058
        %4078 = vmatpush.msra.mxu0 %v3053
        %4079 = vmatpush.msra.mxu0 %v3048
        %4080 = vmatmul.f32.gmra.mxu0 %v2917
        %v4081 = vpop.f32.mrf.mxu0
        %v4082 = vadd.f32 %v4017, %v4081
        %4083 = vmatmul.f32.gmra.mxu0 %v2920
        %v4084 = vpop.f32.mrf.mxu0
        %v4085 = vadd.f32 %v4020, %v4084
        %4086 = vmatmul.f32.gmra.mxu0 %v2923
        %v4087 = vpop.f32.mrf.mxu0
        %v4088 = vadd.f32 %v4023, %v4087
        %4089 = vmatmul.f32.gmra.mxu0 %v2926
        %v4090 = vpop.f32.mrf.mxu0
        %v4091 = vadd.f32 %v4026, %v4090
        %4092 = vmatmul.f32.gmra.mxu0 %v2929
        %v4093 = vpop.f32.mrf.mxu0
        %v4094 = vadd.f32 %v4029, %v4093
        %4095 = vmatmul.f32.gmra.mxu0 %v2932
        %v4096 = vpop.f32.mrf.mxu0
        %v4097 = vadd.f32 %v4032, %v4096
        %4098 = vmatmul.f32.gmra.mxu0 %v2935
        %v4099 = vpop.f32.mrf.mxu0
        %v4100 = vadd.f32 %v4035, %v4099
        %4101 = vmatmul.f32.gmra.mxu0 %v2938
        %v4102 = vpop.f32.mrf.mxu0
        %v4103 = vadd.f32 %v4038, %v4102
        %4104 = vmatmul.f32.gmra.mxu0 %v2941
        %v4105 = vpop.f32.mrf.mxu0
        %v4106 = vadd.f32 %v4041, %v4105
        %4107 = vmatmul.f32.gmra.mxu0 %v2944
        %v4108 = vpop.f32.mrf.mxu0
        %v4109 = vadd.f32 %v4044, %v4108
        %4110 = vmatmul.f32.gmra.mxu0 %v2947
        %v4111 = vpop.f32.mrf.mxu0
        %v4112 = vadd.f32 %v4047, %v4111
        %4113 = vmatmul.f32.gmra.mxu0 %v2950
        %v4114 = vpop.f32.mrf.mxu0
        %v4115 = vadd.f32 %v4050, %v4114
        %4116 = vmatmul.f32.gmra.mxu0 %v2953
        %v4117 = vpop.f32.mrf.mxu0
        %v4118 = vadd.f32 %v4053, %v4117
        %4119 = vmatmul.f32.gmra.mxu0 %v2956
        %v4120 = vpop.f32.mrf.mxu0
        %v4121 = vadd.f32 %v4056, %v4120
        %4122 = vmatmul.f32.gmra.mxu0 %v2959
        %v4123 = vpop.f32.mrf.mxu0
        %v4124 = vadd.f32 %v4059, %v4123
        %4125 = vmatmul.f32.gmra.mxu0 %v2962
        %v4126 = vpop.f32.mrf.mxu0
        %v4127 = vadd.f32 %v4062, %v4126
        %4128 = vdwg.mxu0
        %4129 = vmatpush.msra.mxu0 %v3203
        %4130 = vmatpush.msra.mxu0 %v3198
        %4131 = vmatpush.msra.mxu0 %v3193
        %4132 = vmatpush.msra.mxu0 %v3188
        %4133 = vmatpush.msra.mxu0 %v3183
        %4134 = vmatpush.msra.mxu0 %v3178
        %4135 = vmatpush.msra.mxu0 %v3173
        %4136 = vmatpush.msra.mxu0 %v3168
        %4137 = vmatpush.msra.mxu0 %v3163
        %4138 = vmatpush.msra.mxu0 %v3158
        %4139 = vmatpush.msra.mxu0 %v3153
        %4140 = vmatpush.msra.mxu0 %v3148
        %4141 = vmatpush.msra.mxu0 %v3143
        %4142 = vmatpush.msra.mxu0 %v3138
        %4143 = vmatpush.msra.mxu0 %v3133
        %4144 = vmatpush.msra.mxu0 %v3128
        %4145 = vmatmul.f32.gmra.mxu0 %v2918
        %v4146 = vpop.f32.mrf.mxu0
        %v4147 = vadd.f32 %v4082, %v4146
        %4148 = vmatmul.f32.gmra.mxu0 %v2921
        %v4149 = vpop.f32.mrf.mxu0
        %v4150 = vadd.f32 %v4085, %v4149
        %4151 = vmatmul.f32.gmra.mxu0 %v2924
        %v4152 = vpop.f32.mrf.mxu0
        %v4153 = vadd.f32 %v4088, %v4152
        %4154 = vmatmul.f32.gmra.mxu0 %v2927
        %v4155 = vpop.f32.mrf.mxu0
        %v4156 = vadd.f32 %v4091, %v4155
        %4157 = vmatmul.f32.gmra.mxu0 %v2930
        %v4158 = vpop.f32.mrf.mxu0
        %v4159 = vadd.f32 %v4094, %v4158
        %4160 = vmatmul.f32.gmra.mxu0 %v2933
        %v4161 = vpop.f32.mrf.mxu0
        %v4162 = vadd.f32 %v4097, %v4161
        %4163 = vmatmul.f32.gmra.mxu0 %v2936
        %v4164 = vpop.f32.mrf.mxu0
        %v4165 = vadd.f32 %v4100, %v4164
        %4166 = vmatmul.f32.gmra.mxu0 %v2939
        %v4167 = vpop.f32.mrf.mxu0
        %v4168 = vadd.f32 %v4103, %v4167
        %4169 = vmatmul.f32.gmra.mxu0 %v2942
        %v4170 = vpop.f32.mrf.mxu0
        %v4171 = vadd.f32 %v4106, %v4170
        %4172 = vmatmul.f32.gmra.mxu0 %v2945
        %v4173 = vpop.f32.mrf.mxu0
        %v4174 = vadd.f32 %v4109, %v4173
        %4175 = vmatmul.f32.gmra.mxu0 %v2948
        %v4176 = vpop.f32.mrf.mxu0
        %v4177 = vadd.f32 %v4112, %v4176
        %4178 = vmatmul.f32.gmra.mxu0 %v2951
        %v4179 = vpop.f32.mrf.mxu0
        %v4180 = vadd.f32 %v4115, %v4179
        %4181 = vmatmul.f32.gmra.mxu0 %v2954
        %v4182 = vpop.f32.mrf.mxu0
        %v4183 = vadd.f32 %v4118, %v4182
        %4184 = vmatmul.f32.gmra.mxu0 %v2957
        %v4185 = vpop.f32.mrf.mxu0
        %v4186 = vadd.f32 %v4121, %v4185
        %4187 = vmatmul.f32.gmra.mxu0 %v2960
        %v4188 = vpop.f32.mrf.mxu0
        %v4189 = vadd.f32 %v4124, %v4188
        %4190 = vmatmul.f32.gmra.mxu0 %v2963
        %v4191 = vpop.f32.mrf.mxu0
        %v4192 = vadd.f32 %v4127, %v4191
        %4193 = vdwg.mxu0
        %v4194 = vmax.f32 %v3367, 0.0
        %v4195 = vmax.f32 %v3562, 0.0
        %v4196 = vmax.f32 %v3757, 0.0
        %v4197 = vmax.f32 %v3952, 0.0
        %v4198 = vmax.f32 %v4147, 0.0
        %v4199 = vmax.f32 %v3370, 0.0
        %v4200 = vmax.f32 %v3565, 0.0
        %v4201 = vmax.f32 %v3760, 0.0
        %v4202 = vmax.f32 %v3955, 0.0
        %v4203 = vmax.f32 %v4150, 0.0
        %v4204 = vmax.f32 %v3373, 0.0
        %v4205 = vmax.f32 %v3568, 0.0
        %v4206 = vmax.f32 %v3763, 0.0
        %v4207 = vmax.f32 %v3958, 0.0
        %v4208 = vmax.f32 %v4153, 0.0
        %v4209 = vmax.f32 %v3376, 0.0
        %v4210 = vmax.f32 %v3571, 0.0
        %v4211 = vmax.f32 %v3766, 0.0
        %v4212 = vmax.f32 %v3961, 0.0
        %v4213 = vmax.f32 %v4156, 0.0
        %v4214 = vmax.f32 %v3379, 0.0
        %v4215 = vmax.f32 %v3574, 0.0
        %v4216 = vmax.f32 %v3769, 0.0
        %v4217 = vmax.f32 %v3964, 0.0
        %v4218 = vmax.f32 %v4159, 0.0
        %v4219 = vmax.f32 %v3382, 0.0
        %v4220 = vmax.f32 %v3577, 0.0
        %v4221 = vmax.f32 %v3772, 0.0
        %v4222 = vmax.f32 %v3967, 0.0
        %v4223 = vmax.f32 %v4162, 0.0
        %v4224 = vmax.f32 %v3385, 0.0
        %v4225 = vmax.f32 %v3580, 0.0
        %v4226 = vmax.f32 %v3775, 0.0
        %v4227 = vmax.f32 %v3970, 0.0
        %v4228 = vmax.f32 %v4165, 0.0
        %v4229 = vmax.f32 %v3388, 0.0
        %v4230 = vmax.f32 %v3583, 0.0
        %v4231 = vmax.f32 %v3778, 0.0
        %v4232 = vmax.f32 %v3973, 0.0
        %v4233 = vmax.f32 %v4168, 0.0
        %v4234 = vmax.f32 %v3391, 0.0
        %v4235 = vmax.f32 %v3586, 0.0
        %v4236 = vmax.f32 %v3781, 0.0
        %v4237 = vmax.f32 %v3976, 0.0
        %v4238 = vmax.f32 %v4171, 0.0
        %v4239 = vmax.f32 %v3394, 0.0
        %v4240 = vmax.f32 %v3589, 0.0
        %v4241 = vmax.f32 %v3784, 0.0
        %v4242 = vmax.f32 %v3979, 0.0
        %v4243 = vmax.f32 %v4174, 0.0
        %v4244 = vmax.f32 %v3397, 0.0
        %v4245 = vmax.f32 %v3592, 0.0
        %v4246 = vmax.f32 %v3787, 0.0
        %v4247 = vmax.f32 %v3982, 0.0
        %v4248 = vmax.f32 %v4177, 0.0
        %v4249 = vmax.f32 %v3400, 0.0
        %v4250 = vmax.f32 %v3595, 0.0
        %v4251 = vmax.f32 %v3790, 0.0
        %v4252 = vmax.f32 %v3985, 0.0
        %v4253 = vmax.f32 %v4180, 0.0
        %v4254 = vmax.f32 %v3403, 0.0
        %v4255 = vmax.f32 %v3598, 0.0
        %v4256 = vmax.f32 %v3793, 0.0
        %v4257 = vmax.f32 %v3988, 0.0
        %v4258 = vmax.f32 %v4183, 0.0
        %v4259 = vmax.f32 %v3406, 0.0
        %v4260 = vmax.f32 %v3601, 0.0
        %v4261 = vmax.f32 %v3796, 0.0
        %v4262 = vmax.f32 %v3991, 0.0
        %v4263 = vmax.f32 %v4186, 0.0
        %v4264 = vmax.f32 %v3409, 0.0
        %v4265 = vmax.f32 %v3604, 0.0
        %v4266 = vmax.f32 %v3799, 0.0
        %v4267 = vmax.f32 %v3994, 0.0
        %v4268 = vmax.f32 %v4189, 0.0
        %v4269 = vmax.f32 %v3412, 0.0
        %v4270 = vmax.f32 %v3607, 0.0
        %v4271 = vmax.f32 %v3802, 0.0
        %v4272 = vmax.f32 %v3997, 0.0
        %v4273 = vmax.f32 %v4192, 0.0
        %v4274 = vld [vmem:[#allocation10] sm:$0xff]
        %v4275 = vld [vmem:[#allocation10 + $0x8] sm:$0xff]
        %v4276 = vld [vmem:[#allocation10 + $0x10] sm:$0xff]
        %v4277 = vld [vmem:[#allocation10 + $0x18] sm:$0xff]
        %v4278 = vld [vmem:[#allocation10 + $0x20] sm:$0xff]
        %v4279 = vld [vmem:[#allocation10 + $0x28] sm:$0xff]
        %v4280 = vld [vmem:[#allocation10 + $0x30] sm:$0xff]
        %v4281 = vld [vmem:[#allocation10 + $0x38] sm:$0xff]
        %v4282 = vld [vmem:[#allocation10 + $0x40] sm:$0xff]
        %v4283 = vld [vmem:[#allocation10 + $0x48] sm:$0xff]
        %v4284 = vld [vmem:[#allocation10 + $0x50] sm:$0xff]
        %v4285 = vld [vmem:[#allocation10 + $0x58] sm:$0xff]
        %v4286 = vld [vmem:[#allocation10 + $0x60] sm:$0xff]
        %v4287 = vld [vmem:[#allocation10 + $0x68] sm:$0xff]
        %v4288 = vld [vmem:[#allocation10 + $0x70] sm:$0xff]
        %v4289 = vld [vmem:[#allocation10 + $0x78] sm:$0xff]
        %v4290 = vld [vmem:[#allocation10 + $0x80] sm:$0xff]
        %v4291 = vld [vmem:[#allocation10 + $0x88] sm:$0xff]
        %v4292 = vld [vmem:[#allocation10 + $0x90] sm:$0xff]
        %v4293 = vld [vmem:[#allocation10 + $0x98] sm:$0xff]
        %v4294 = vld [vmem:[#allocation10 + $0xa0] sm:$0xff]
        %v4295 = vld [vmem:[#allocation10 + $0xa8] sm:$0xff]
        %v4296 = vld [vmem:[#allocation10 + $0xb0] sm:$0xff]
        %v4297 = vld [vmem:[#allocation10 + $0xb8] sm:$0xff]
        %v4298 = vld [vmem:[#allocation10 + $0xc0] sm:$0xff]
        %v4299 = vld [vmem:[#allocation10 + $0xc8] sm:$0xff]
        %v4300 = vld [vmem:[#allocation10 + $0xd0] sm:$0xff]
        %v4301 = vld [vmem:[#allocation10 + $0xd8] sm:$0xff]
        %v4302 = vld [vmem:[#allocation10 + $0xe0] sm:$0xff]
        %v4303 = vld [vmem:[#allocation10 + $0xe8] sm:$0xff]
        %v4304 = vld [vmem:[#allocation10 + $0xf0] sm:$0xff]
        %v4305 = vld [vmem:[#allocation10 + $0xf8] sm:$0xff]
        %v4306 = vld [vmem:[#allocation10 + $0x100] sm:$0xff]
        %v4307 = vld [vmem:[#allocation10 + $0x108] sm:$0xff]
        %v4308 = vld [vmem:[#allocation10 + $0x110] sm:$0xff]
        %v4309 = vld [vmem:[#allocation10 + $0x118] sm:$0xff]
        %v4310 = vld [vmem:[#allocation10 + $0x120] sm:$0xff]
        %v4311 = vld [vmem:[#allocation10 + $0x128] sm:$0xff]
        %v4312 = vld [vmem:[#allocation10 + $0x130] sm:$0xff]
        %v4313 = vld [vmem:[#allocation10 + $0x138] sm:$0xff]
        %v4314 = vld [vmem:[#allocation10 + $0x140] sm:$0xff]
        %v4315 = vld [vmem:[#allocation10 + $0x148] sm:$0xff]
        %v4316 = vld [vmem:[#allocation10 + $0x150] sm:$0xff]
        %v4317 = vld [vmem:[#allocation10 + $0x158] sm:$0xff]
        %v4318 = vld [vmem:[#allocation10 + $0x160] sm:$0xff]
        %v4319 = vld [vmem:[#allocation10 + $0x168] sm:$0xff]
        %v4320 = vld [vmem:[#allocation10 + $0x170] sm:$0xff]
        %v4321 = vld [vmem:[#allocation10 + $0x178] sm:$0xff]
        %v4322 = vld [vmem:[#allocation10 + $0x180] sm:$0xff]
        %v4323 = vld [vmem:[#allocation10 + $0x188] sm:$0xff]
        %v4324 = vld [vmem:[#allocation10 + $0x190] sm:$0xff]
        %v4325 = vld [vmem:[#allocation10 + $0x198] sm:$0xff]
        %v4326 = vld [vmem:[#allocation10 + $0x1a0] sm:$0xff]
        %v4327 = vld [vmem:[#allocation10 + $0x1a8] sm:$0xff]
        %v4328 = vld [vmem:[#allocation10 + $0x1b0] sm:$0xff]
        %v4329 = vld [vmem:[#allocation10 + $0x1b8] sm:$0xff]
        %v4330 = vld [vmem:[#allocation10 + $0x1c0] sm:$0xff]
        %v4331 = vld [vmem:[#allocation10 + $0x1c8] sm:$0xff]
        %v4332 = vld [vmem:[#allocation10 + $0x1d0] sm:$0xff]
        %v4333 = vld [vmem:[#allocation10 + $0x1d8] sm:$0xff]
        %v4334 = vld [vmem:[#allocation10 + $0x1e0] sm:$0xff]
        %v4335 = vld [vmem:[#allocation10 + $0x1e8] sm:$0xff]
        %v4336 = vld [vmem:[#allocation10 + $0x1f0] sm:$0xff]
        %v4337 = vld [vmem:[#allocation10 + $0x1f8] sm:$0xff]
        %v4338 = vld [vmem:[#allocation10 + $0x200] sm:$0xff]
        %v4339 = vld [vmem:[#allocation10 + $0x208] sm:$0xff]
        %v4340 = vld [vmem:[#allocation10 + $0x210] sm:$0xff]
        %v4341 = vld [vmem:[#allocation10 + $0x218] sm:$0xff]
        %v4342 = vld [vmem:[#allocation10 + $0x220] sm:$0xff]
        %v4343 = vld [vmem:[#allocation10 + $0x228] sm:$0xff]
        %v4344 = vld [vmem:[#allocation10 + $0x230] sm:$0xff]
        %v4345 = vld [vmem:[#allocation10 + $0x238] sm:$0xff]
        %v4346 = vld [vmem:[#allocation10 + $0x240] sm:$0xff]
        %v4347 = vld [vmem:[#allocation10 + $0x248] sm:$0xff]
        %v4348 = vld [vmem:[#allocation10 + $0x250] sm:$0xff]
        %v4349 = vld [vmem:[#allocation10 + $0x258] sm:$0xff]
        %v4350 = vld [vmem:[#allocation10 + $0x260] sm:$0xff]
        %v4351 = vld [vmem:[#allocation10 + $0x268] sm:$0xff]
        %v4352 = vld [vmem:[#allocation10 + $0x270] sm:$0xff]
        %v4353 = vld [vmem:[#allocation10 + $0x278] sm:$0xff]
        %v4354 = vld [vmem:[#allocation10 + $0x280] sm:$0xff]
        %v4355 = vld [vmem:[#allocation10 + $0x288] sm:$0xff]
        %v4356 = vld [vmem:[#allocation10 + $0x290] sm:$0xff]
        %v4357 = vld [vmem:[#allocation10 + $0x298] sm:$0xff]
        %v4358 = vld [vmem:[#allocation10 + $0x2a0] sm:$0xff]
        %v4359 = vld [vmem:[#allocation10 + $0x2a8] sm:$0xff]
        %v4360 = vld [vmem:[#allocation10 + $0x2b0] sm:$0xff]
        %v4361 = vld [vmem:[#allocation10 + $0x2b8] sm:$0xff]
        %v4362 = vld [vmem:[#allocation10 + $0x2c0] sm:$0xff]
        %v4363 = vld [vmem:[#allocation10 + $0x2c8] sm:$0xff]
        %v4364 = vld [vmem:[#allocation10 + $0x2d0] sm:$0xff]
        %v4365 = vld [vmem:[#allocation10 + $0x2d8] sm:$0xff]
        %v4366 = vld [vmem:[#allocation10 + $0x2e0] sm:$0xff]
        %v4367 = vld [vmem:[#allocation10 + $0x2e8] sm:$0xff]
        %v4368 = vld [vmem:[#allocation10 + $0x2f0] sm:$0xff]
        %v4369 = vld [vmem:[#allocation10 + $0x2f8] sm:$0xff]
        %v4370 = vld [vmem:[#allocation10 + $0x300] sm:$0xff]
        %v4371 = vld [vmem:[#allocation10 + $0x308] sm:$0xff]
        %v4372 = vld [vmem:[#allocation10 + $0x310] sm:$0xff]
        %v4373 = vld [vmem:[#allocation10 + $0x318] sm:$0xff]
        %v4374 = vld [vmem:[#allocation10 + $0x320] sm:$0xff]
        %v4375 = vld [vmem:[#allocation10 + $0x328] sm:$0xff]
        %v4376 = vld [vmem:[#allocation10 + $0x330] sm:$0xff]
        %v4377 = vld [vmem:[#allocation10 + $0x338] sm:$0xff]
        %v4378 = vld [vmem:[#allocation10 + $0x340] sm:$0xff]
        %v4379 = vld [vmem:[#allocation10 + $0x348] sm:$0xff]
        %v4380 = vld [vmem:[#allocation10 + $0x350] sm:$0xff]
        %v4381 = vld [vmem:[#allocation10 + $0x358] sm:$0xff]
        %v4382 = vld [vmem:[#allocation10 + $0x360] sm:$0xff]
        %v4383 = vld [vmem:[#allocation10 + $0x368] sm:$0xff]
        %v4384 = vld [vmem:[#allocation10 + $0x370] sm:$0xff]
        %v4385 = vld [vmem:[#allocation10 + $0x378] sm:$0xff]
        %v4386 = vld [vmem:[#allocation10 + $0x380] sm:$0xff]
        %v4387 = vld [vmem:[#allocation10 + $0x388] sm:$0xff]
        %v4388 = vld [vmem:[#allocation10 + $0x390] sm:$0xff]
        %v4389 = vld [vmem:[#allocation10 + $0x398] sm:$0xff]
        %v4390 = vld [vmem:[#allocation10 + $0x3a0] sm:$0xff]
        %v4391 = vld [vmem:[#allocation10 + $0x3a8] sm:$0xff]
        %v4392 = vld [vmem:[#allocation10 + $0x3b0] sm:$0xff]
        %v4393 = vld [vmem:[#allocation10 + $0x3b8] sm:$0xff]
        %v4394 = vld [vmem:[#allocation10 + $0x3c0] sm:$0xff]
        %v4395 = vld [vmem:[#allocation10 + $0x3c8] sm:$0xff]
        %v4396 = vld [vmem:[#allocation10 + $0x3d0] sm:$0xff]
        %v4397 = vld [vmem:[#allocation10 + $0x3d8] sm:$0xff]
        %v4398 = vld [vmem:[#allocation10 + $0x3e0] sm:$0xff]
        %v4399 = vld [vmem:[#allocation10 + $0x3e8] sm:$0xff]
        %v4400 = vld [vmem:[#allocation10 + $0x3f0] sm:$0xff]
        %v4401 = vld [vmem:[#allocation10 + $0x3f8] sm:$0xff]
        %v4402 = vld [vmem:[#allocation10 + $0x400] sm:$0xff]
        %v4403 = vld [vmem:[#allocation10 + $0x408] sm:$0xff]
        %v4404 = vld [vmem:[#allocation10 + $0x410] sm:$0xff]
        %v4405 = vld [vmem:[#allocation10 + $0x418] sm:$0xff]
        %v4406 = vld [vmem:[#allocation10 + $0x420] sm:$0xff]
        %v4407 = vld [vmem:[#allocation10 + $0x428] sm:$0xff]
        %v4408 = vld [vmem:[#allocation10 + $0x430] sm:$0xff]
        %v4409 = vld [vmem:[#allocation10 + $0x438] sm:$0xff]
        %v4410 = vld [vmem:[#allocation10 + $0x440] sm:$0xff]
        %v4411 = vld [vmem:[#allocation10 + $0x448] sm:$0xff]
        %v4412 = vld [vmem:[#allocation10 + $0x450] sm:$0xff]
        %v4413 = vld [vmem:[#allocation10 + $0x458] sm:$0xff]
        %v4414 = vld [vmem:[#allocation10 + $0x460] sm:$0xff]
        %v4415 = vld [vmem:[#allocation10 + $0x468] sm:$0xff]
        %v4416 = vld [vmem:[#allocation10 + $0x470] sm:$0xff]
        %v4417 = vld [vmem:[#allocation10 + $0x478] sm:$0xff]
        %v4418 = vld [vmem:[#allocation10 + $0x480] sm:$0xff]
        %v4419 = vld [vmem:[#allocation10 + $0x488] sm:$0xff]
        %v4420 = vld [vmem:[#allocation10 + $0x490] sm:$0xff]
        %v4421 = vld [vmem:[#allocation10 + $0x498] sm:$0xff]
        %v4422 = vld [vmem:[#allocation10 + $0x4a0] sm:$0xff]
        %v4423 = vld [vmem:[#allocation10 + $0x4a8] sm:$0xff]
        %v4424 = vld [vmem:[#allocation10 + $0x4b0] sm:$0xff]
        %v4425 = vld [vmem:[#allocation10 + $0x4b8] sm:$0xff]
        %v4426 = vld [vmem:[#allocation10 + $0x4c0] sm:$0xff]
        %v4427 = vld [vmem:[#allocation10 + $0x4c8] sm:$0xff]
        %v4428 = vld [vmem:[#allocation10 + $0x4d0] sm:$0xff]
        %v4429 = vld [vmem:[#allocation10 + $0x4d8] sm:$0xff]
        %v4430 = vld [vmem:[#allocation10 + $0x4e0] sm:$0xff]
        %v4431 = vld [vmem:[#allocation10 + $0x4e8] sm:$0xff]
        %v4432 = vld [vmem:[#allocation10 + $0x4f0] sm:$0xff]
        %v4433 = vld [vmem:[#allocation10 + $0x4f8] sm:$0xff]
        %v4434 = vld [vmem:[#allocation10 + $0x500] sm:$0xff]
        %v4435 = vld [vmem:[#allocation10 + $0x508] sm:$0xff]
        %v4436 = vld [vmem:[#allocation10 + $0x510] sm:$0xff]
        %v4437 = vld [vmem:[#allocation10 + $0x518] sm:$0xff]
        %v4438 = vld [vmem:[#allocation10 + $0x520] sm:$0xff]
        %v4439 = vld [vmem:[#allocation10 + $0x528] sm:$0xff]
        %v4440 = vld [vmem:[#allocation10 + $0x530] sm:$0xff]
        %v4441 = vld [vmem:[#allocation10 + $0x538] sm:$0xff]
        %v4442 = vld [vmem:[#allocation10 + $0x540] sm:$0xff]
        %v4443 = vld [vmem:[#allocation10 + $0x548] sm:$0xff]
        %v4444 = vld [vmem:[#allocation10 + $0x550] sm:$0xff]
        %v4445 = vld [vmem:[#allocation10 + $0x558] sm:$0xff]
        %v4446 = vld [vmem:[#allocation10 + $0x560] sm:$0xff]
        %v4447 = vld [vmem:[#allocation10 + $0x568] sm:$0xff]
        %v4448 = vld [vmem:[#allocation10 + $0x570] sm:$0xff]
        %v4449 = vld [vmem:[#allocation10 + $0x578] sm:$0xff]
        %v4450 = vld [vmem:[#allocation10 + $0x580] sm:$0xff]
        %v4451 = vld [vmem:[#allocation10 + $0x588] sm:$0xff]
        %v4452 = vld [vmem:[#allocation10 + $0x590] sm:$0xff]
        %v4453 = vld [vmem:[#allocation10 + $0x598] sm:$0xff]
        %v4454 = vld [vmem:[#allocation10 + $0x5a0] sm:$0xff]
        %v4455 = vld [vmem:[#allocation10 + $0x5a8] sm:$0xff]
        %v4456 = vld [vmem:[#allocation10 + $0x5b0] sm:$0xff]
        %v4457 = vld [vmem:[#allocation10 + $0x5b8] sm:$0xff]
        %v4458 = vld [vmem:[#allocation10 + $0x5c0] sm:$0xff]
        %v4459 = vld [vmem:[#allocation10 + $0x5c8] sm:$0xff]
        %v4460 = vld [vmem:[#allocation10 + $0x5d0] sm:$0xff]
        %v4461 = vld [vmem:[#allocation10 + $0x5d8] sm:$0xff]
        %v4462 = vld [vmem:[#allocation10 + $0x5e0] sm:$0xff]
        %v4463 = vld [vmem:[#allocation10 + $0x5e8] sm:$0xff]
        %v4464 = vld [vmem:[#allocation10 + $0x5f0] sm:$0xff]
        %v4465 = vld [vmem:[#allocation10 + $0x5f8] sm:$0xff]
        %v4466 = vld [vmem:[#allocation10 + $0x600] sm:$0xff]
        %v4467 = vld [vmem:[#allocation10 + $0x608] sm:$0xff]
        %v4468 = vld [vmem:[#allocation10 + $0x610] sm:$0xff]
        %v4469 = vld [vmem:[#allocation10 + $0x618] sm:$0xff]
        %v4470 = vld [vmem:[#allocation10 + $0x620] sm:$0xff]
        %v4471 = vld [vmem:[#allocation10 + $0x628] sm:$0xff]
        %v4472 = vld [vmem:[#allocation10 + $0x630] sm:$0xff]
        %v4473 = vld [vmem:[#allocation10 + $0x638] sm:$0xff]
        %v4474 = vld [vmem:[#allocation10 + $0x640] sm:$0xff]
        %v4475 = vld [vmem:[#allocation10 + $0x648] sm:$0xff]
        %v4476 = vld [vmem:[#allocation10 + $0x650] sm:$0xff]
        %v4477 = vld [vmem:[#allocation10 + $0x658] sm:$0xff]
        %v4478 = vld [vmem:[#allocation10 + $0x660] sm:$0xff]
        %v4479 = vld [vmem:[#allocation10 + $0x668] sm:$0xff]
        %v4480 = vld [vmem:[#allocation10 + $0x670] sm:$0xff]
        %v4481 = vld [vmem:[#allocation10 + $0x678] sm:$0xff]
        %v4482 = vld [vmem:[#allocation10 + $0x680] sm:$0xff]
        %v4483 = vld [vmem:[#allocation10 + $0x688] sm:$0xff]
        %v4484 = vld [vmem:[#allocation10 + $0x690] sm:$0xff]
        %v4485 = vld [vmem:[#allocation10 + $0x698] sm:$0xff]
        %v4486 = vld [vmem:[#allocation10 + $0x6a0] sm:$0xff]
        %v4487 = vld [vmem:[#allocation10 + $0x6a8] sm:$0xff]
        %v4488 = vld [vmem:[#allocation10 + $0x6b0] sm:$0xff]
        %v4489 = vld [vmem:[#allocation10 + $0x6b8] sm:$0xff]
        %v4490 = vld [vmem:[#allocation10 + $0x6c0] sm:$0xff]
        %v4491 = vld [vmem:[#allocation10 + $0x6c8] sm:$0xff]
        %v4492 = vld [vmem:[#allocation10 + $0x6d0] sm:$0xff]
        %v4493 = vld [vmem:[#allocation10 + $0x6d8] sm:$0xff]
        %v4494 = vld [vmem:[#allocation10 + $0x6e0] sm:$0xff]
        %v4495 = vld [vmem:[#allocation10 + $0x6e8] sm:$0xff]
        %v4496 = vld [vmem:[#allocation10 + $0x6f0] sm:$0xff]
        %v4497 = vld [vmem:[#allocation10 + $0x6f8] sm:$0xff]
        %v4498 = vld [vmem:[#allocation10 + $0x700] sm:$0xff]
        %v4499 = vld [vmem:[#allocation10 + $0x708] sm:$0xff]
        %v4500 = vld [vmem:[#allocation10 + $0x710] sm:$0xff]
        %v4501 = vld [vmem:[#allocation10 + $0x718] sm:$0xff]
        %v4502 = vld [vmem:[#allocation10 + $0x720] sm:$0xff]
        %v4503 = vld [vmem:[#allocation10 + $0x728] sm:$0xff]
        %v4504 = vld [vmem:[#allocation10 + $0x730] sm:$0xff]
        %v4505 = vld [vmem:[#allocation10 + $0x738] sm:$0xff]
        %v4506 = vld [vmem:[#allocation10 + $0x740] sm:$0xff]
        %v4507 = vld [vmem:[#allocation10 + $0x748] sm:$0xff]
        %v4508 = vld [vmem:[#allocation10 + $0x750] sm:$0xff]
        %v4509 = vld [vmem:[#allocation10 + $0x758] sm:$0xff]
        %v4510 = vld [vmem:[#allocation10 + $0x760] sm:$0xff]
        %v4511 = vld [vmem:[#allocation10 + $0x768] sm:$0xff]
        %v4512 = vld [vmem:[#allocation10 + $0x770] sm:$0xff]
        %v4513 = vld [vmem:[#allocation10 + $0x778] sm:$0xff]
        %v4514 = vld [vmem:[#allocation10 + $0x780] sm:$0xff]
        %v4515 = vld [vmem:[#allocation10 + $0x788] sm:$0xff]
        %v4516 = vld [vmem:[#allocation10 + $0x790] sm:$0xff]
        %v4517 = vld [vmem:[#allocation10 + $0x798] sm:$0xff]
        %v4518 = vld [vmem:[#allocation10 + $0x7a0] sm:$0xff]
        %v4519 = vld [vmem:[#allocation10 + $0x7a8] sm:$0xff]
        %v4520 = vld [vmem:[#allocation10 + $0x7b0] sm:$0xff]
        %v4521 = vld [vmem:[#allocation10 + $0x7b8] sm:$0xff]
        %v4522 = vld [vmem:[#allocation10 + $0x7c0] sm:$0xff]
        %v4523 = vld [vmem:[#allocation10 + $0x7c8] sm:$0xff]
        %v4524 = vld [vmem:[#allocation10 + $0x7d0] sm:$0xff]
        %v4525 = vld [vmem:[#allocation10 + $0x7d8] sm:$0xff]
        %v4526 = vld [vmem:[#allocation10 + $0x7e0] sm:$0xff]
        %v4527 = vld [vmem:[#allocation10 + $0x7e8] sm:$0xff]
        %v4528 = vld [vmem:[#allocation10 + $0x7f0] sm:$0xff]
        %v4529 = vld [vmem:[#allocation10 + $0x7f8] sm:$0xff]
        %v4530 = vld [vmem:[#allocation10 + $0x800] sm:$0xff]
        %v4531 = vld [vmem:[#allocation10 + $0x808] sm:$0xff]
        %v4532 = vld [vmem:[#allocation10 + $0x810] sm:$0xff]
        %v4533 = vld [vmem:[#allocation10 + $0x818] sm:$0xff]
        %v4534 = vld [vmem:[#allocation10 + $0x820] sm:$0xff]
        %v4535 = vld [vmem:[#allocation10 + $0x828] sm:$0xff]
        %v4536 = vld [vmem:[#allocation10 + $0x830] sm:$0xff]
        %v4537 = vld [vmem:[#allocation10 + $0x838] sm:$0xff]
        %v4538 = vld [vmem:[#allocation10 + $0x840] sm:$0xff]
        %v4539 = vld [vmem:[#allocation10 + $0x848] sm:$0xff]
        %v4540 = vld [vmem:[#allocation10 + $0x850] sm:$0xff]
        %v4541 = vld [vmem:[#allocation10 + $0x858] sm:$0xff]
        %v4542 = vld [vmem:[#allocation10 + $0x860] sm:$0xff]
        %v4543 = vld [vmem:[#allocation10 + $0x868] sm:$0xff]
        %v4544 = vld [vmem:[#allocation10 + $0x870] sm:$0xff]
        %v4545 = vld [vmem:[#allocation10 + $0x878] sm:$0xff]
        %v4546 = vld [vmem:[#allocation10 + $0x880] sm:$0xff]
        %v4547 = vld [vmem:[#allocation10 + $0x888] sm:$0xff]
        %v4548 = vld [vmem:[#allocation10 + $0x890] sm:$0xff]
        %v4549 = vld [vmem:[#allocation10 + $0x898] sm:$0xff]
        %v4550 = vld [vmem:[#allocation10 + $0x8a0] sm:$0xff]
        %v4551 = vld [vmem:[#allocation10 + $0x8a8] sm:$0xff]
        %v4552 = vld [vmem:[#allocation10 + $0x8b0] sm:$0xff]
        %v4553 = vld [vmem:[#allocation10 + $0x8b8] sm:$0xff]
        %v4554 = vld [vmem:[#allocation10 + $0x8c0] sm:$0xff]
        %v4555 = vld [vmem:[#allocation10 + $0x8c8] sm:$0xff]
        %v4556 = vld [vmem:[#allocation10 + $0x8d0] sm:$0xff]
        %v4557 = vld [vmem:[#allocation10 + $0x8d8] sm:$0xff]
        %v4558 = vld [vmem:[#allocation10 + $0x8e0] sm:$0xff]
        %v4559 = vld [vmem:[#allocation10 + $0x8e8] sm:$0xff]
        %v4560 = vld [vmem:[#allocation10 + $0x8f0] sm:$0xff]
        %v4561 = vld [vmem:[#allocation10 + $0x8f8] sm:$0xff]
        %v4562 = vld [vmem:[#allocation10 + $0x900] sm:$0xff]
        %v4563 = vld [vmem:[#allocation10 + $0x908] sm:$0xff]
        %v4564 = vld [vmem:[#allocation10 + $0x910] sm:$0xff]
        %v4565 = vld [vmem:[#allocation10 + $0x918] sm:$0xff]
        %v4566 = vld [vmem:[#allocation10 + $0x920] sm:$0xff]
        %v4567 = vld [vmem:[#allocation10 + $0x928] sm:$0xff]
        %v4568 = vld [vmem:[#allocation10 + $0x930] sm:$0xff]
        %v4569 = vld [vmem:[#allocation10 + $0x938] sm:$0xff]
        %v4570 = vld [vmem:[#allocation10 + $0x940] sm:$0xff]
        %v4571 = vld [vmem:[#allocation10 + $0x948] sm:$0xff]
        %v4572 = vld [vmem:[#allocation10 + $0x950] sm:$0xff]
        %v4573 = vld [vmem:[#allocation10 + $0x958] sm:$0xff]
        %v4574 = vld [vmem:[#allocation10 + $0x960] sm:$0xff]
        %v4575 = vld [vmem:[#allocation10 + $0x968] sm:$0xff]
        %v4576 = vld [vmem:[#allocation10 + $0x970] sm:$0xff]
        %v4577 = vld [vmem:[#allocation10 + $0x978] sm:$0xff]
        %v4578 = vld [vmem:[#allocation10 + $0x980] sm:$0xff]
        %v4579 = vld [vmem:[#allocation10 + $0x988] sm:$0xff]
        %v4580 = vld [vmem:[#allocation10 + $0x990] sm:$0xff]
        %v4581 = vld [vmem:[#allocation10 + $0x998] sm:$0xff]
        %v4582 = vld [vmem:[#allocation10 + $0x9a0] sm:$0xff]
        %v4583 = vld [vmem:[#allocation10 + $0x9a8] sm:$0xff]
        %v4584 = vld [vmem:[#allocation10 + $0x9b0] sm:$0xff]
        %v4585 = vld [vmem:[#allocation10 + $0x9b8] sm:$0xff]
        %v4586 = vld [vmem:[#allocation10 + $0x9c0] sm:$0xff]
        %v4587 = vld [vmem:[#allocation10 + $0x9c8] sm:$0xff]
        %v4588 = vld [vmem:[#allocation10 + $0x9d0] sm:$0xff]
        %v4589 = vld [vmem:[#allocation10 + $0x9d8] sm:$0xff]
        %v4590 = vld [vmem:[#allocation10 + $0x9e0] sm:$0xff]
        %v4591 = vld [vmem:[#allocation10 + $0x9e8] sm:$0xff]
        %v4592 = vld [vmem:[#allocation10 + $0x9f0] sm:$0xff]
        %v4593 = vld [vmem:[#allocation10 + $0x9f8] sm:$0xff]
        %v4594 = vld [vmem:[#allocation10 + $0xa00] sm:$0xff]
        %v4595 = vld [vmem:[#allocation10 + $0xa08] sm:$0xff]
        %v4596 = vld [vmem:[#allocation10 + $0xa10] sm:$0xff]
        %v4597 = vld [vmem:[#allocation10 + $0xa18] sm:$0xff]
        %v4598 = vld [vmem:[#allocation10 + $0xa20] sm:$0xff]
        %v4599 = vld [vmem:[#allocation10 + $0xa28] sm:$0xff]
        %v4600 = vld [vmem:[#allocation10 + $0xa30] sm:$0xff]
        %v4601 = vld [vmem:[#allocation10 + $0xa38] sm:$0xff]
        %v4602 = vld [vmem:[#allocation10 + $0xa40] sm:$0xff]
        %v4603 = vld [vmem:[#allocation10 + $0xa48] sm:$0xff]
        %v4604 = vld [vmem:[#allocation10 + $0xa50] sm:$0xff]
        %v4605 = vld [vmem:[#allocation10 + $0xa58] sm:$0xff]
        %v4606 = vld [vmem:[#allocation10 + $0xa60] sm:$0xff]
        %v4607 = vld [vmem:[#allocation10 + $0xa68] sm:$0xff]
        %v4608 = vld [vmem:[#allocation10 + $0xa70] sm:$0xff]
        %v4609 = vld [vmem:[#allocation10 + $0xa78] sm:$0xff]
        %v4610 = vld [vmem:[#allocation10 + $0xa80] sm:$0xff]
        %v4611 = vld [vmem:[#allocation10 + $0xa88] sm:$0xff]
        %v4612 = vld [vmem:[#allocation10 + $0xa90] sm:$0xff]
        %v4613 = vld [vmem:[#allocation10 + $0xa98] sm:$0xff]
        %v4614 = vld [vmem:[#allocation10 + $0xaa0] sm:$0xff]
        %v4615 = vld [vmem:[#allocation10 + $0xaa8] sm:$0xff]
        %v4616 = vld [vmem:[#allocation10 + $0xab0] sm:$0xff]
        %v4617 = vld [vmem:[#allocation10 + $0xab8] sm:$0xff]
        %v4618 = vld [vmem:[#allocation10 + $0xac0] sm:$0xff]
        %v4619 = vld [vmem:[#allocation10 + $0xac8] sm:$0xff]
        %v4620 = vld [vmem:[#allocation10 + $0xad0] sm:$0xff]
        %v4621 = vld [vmem:[#allocation10 + $0xad8] sm:$0xff]
        %v4622 = vld [vmem:[#allocation10 + $0xae0] sm:$0xff]
        %v4623 = vld [vmem:[#allocation10 + $0xae8] sm:$0xff]
        %v4624 = vld [vmem:[#allocation10 + $0xaf0] sm:$0xff]
        %v4625 = vld [vmem:[#allocation10 + $0xaf8] sm:$0xff]
        %v4626 = vld [vmem:[#allocation10 + $0xb00] sm:$0xff]
        %v4627 = vld [vmem:[#allocation10 + $0xb08] sm:$0xff]
        %v4628 = vld [vmem:[#allocation10 + $0xb10] sm:$0xff]
        %v4629 = vld [vmem:[#allocation10 + $0xb18] sm:$0xff]
        %v4630 = vld [vmem:[#allocation10 + $0xb20] sm:$0xff]
        %v4631 = vld [vmem:[#allocation10 + $0xb28] sm:$0xff]
        %v4632 = vld [vmem:[#allocation10 + $0xb30] sm:$0xff]
        %v4633 = vld [vmem:[#allocation10 + $0xb38] sm:$0xff]
        %v4634 = vld [vmem:[#allocation10 + $0xb40] sm:$0xff]
        %v4635 = vld [vmem:[#allocation10 + $0xb48] sm:$0xff]
        %v4636 = vld [vmem:[#allocation10 + $0xb50] sm:$0xff]
        %v4637 = vld [vmem:[#allocation10 + $0xb58] sm:$0xff]
        %v4638 = vld [vmem:[#allocation10 + $0xb60] sm:$0xff]
        %v4639 = vld [vmem:[#allocation10 + $0xb68] sm:$0xff]
        %v4640 = vld [vmem:[#allocation10 + $0xb70] sm:$0xff]
        %v4641 = vld [vmem:[#allocation10 + $0xb78] sm:$0xff]
        %v4642 = vld [vmem:[#allocation10 + $0xb80] sm:$0xff]
        %v4643 = vld [vmem:[#allocation10 + $0xb88] sm:$0xff]
        %v4644 = vld [vmem:[#allocation10 + $0xb90] sm:$0xff]
        %v4645 = vld [vmem:[#allocation10 + $0xb98] sm:$0xff]
        %v4646 = vld [vmem:[#allocation10 + $0xba0] sm:$0xff]
        %v4647 = vld [vmem:[#allocation10 + $0xba8] sm:$0xff]
        %v4648 = vld [vmem:[#allocation10 + $0xbb0] sm:$0xff]
        %v4649 = vld [vmem:[#allocation10 + $0xbb8] sm:$0xff]
        %v4650 = vld [vmem:[#allocation10 + $0xbc0] sm:$0xff]
        %v4651 = vld [vmem:[#allocation10 + $0xbc8] sm:$0xff]
        %v4652 = vld [vmem:[#allocation10 + $0xbd0] sm:$0xff]
        %v4653 = vld [vmem:[#allocation10 + $0xbd8] sm:$0xff]
        %v4654 = vld [vmem:[#allocation10 + $0xbe0] sm:$0xff]
        %v4655 = vld [vmem:[#allocation10 + $0xbe8] sm:$0xff]
        %v4656 = vld [vmem:[#allocation10 + $0xbf0] sm:$0xff]
        %v4657 = vld [vmem:[#allocation10 + $0xbf8] sm:$0xff]
        %v4658 = vld [vmem:[#allocation10 + $0xc00] sm:$0xff]
        %v4659 = vld [vmem:[#allocation10 + $0xc08] sm:$0xff]
        %v4660 = vld [vmem:[#allocation10 + $0xc10] sm:$0xff]
        %v4661 = vld [vmem:[#allocation10 + $0xc18] sm:$0xff]
        %v4662 = vld [vmem:[#allocation10 + $0xc20] sm:$0xff]
        %v4663 = vld [vmem:[#allocation10 + $0xc28] sm:$0xff]
        %v4664 = vld [vmem:[#allocation10 + $0xc30] sm:$0xff]
        %v4665 = vld [vmem:[#allocation10 + $0xc38] sm:$0xff]
        %v4666 = vld [vmem:[#allocation10 + $0xc40] sm:$0xff]
        %v4667 = vld [vmem:[#allocation10 + $0xc48] sm:$0xff]
        %v4668 = vld [vmem:[#allocation10 + $0xc50] sm:$0xff]
        %v4669 = vld [vmem:[#allocation10 + $0xc58] sm:$0xff]
        %v4670 = vld [vmem:[#allocation10 + $0xc60] sm:$0xff]
        %v4671 = vld [vmem:[#allocation10 + $0xc68] sm:$0xff]
        %v4672 = vld [vmem:[#allocation10 + $0xc70] sm:$0xff]
        %v4673 = vld [vmem:[#allocation10 + $0xc78] sm:$0xff]
        %s4674 = scalar_lea.vmem [#allocation18], 5
        %v4675 = vld [vmem:[%s4674] ss:$8 sm:$0xf]
        %v4676 = vld [vmem:[%s4674] ss:$8 sm:$0x10]
        %v4677 = vor.u32 %v4675, %v4676
        %v4679 = vperm.slane %v4677, 0
        %v4680 = vperm.slane %v4677, 1
        %v4681 = vperm.slane %v4677, 2
        %v4682 = vperm.slane %v4677, 3
        %v4683 = vperm.slane %v4677, 4
        %4689 = vmatpush.msra.mxu0 %v4349
        %4690 = vmatpush.msra.mxu0 %v4344
        %4691 = vmatpush.msra.mxu0 %v4339
        %4692 = vmatpush.msra.mxu0 %v4334
        %4693 = vmatpush.msra.mxu0 %v4329
        %4694 = vmatpush.msra.mxu0 %v4324
        %4695 = vmatpush.msra.mxu0 %v4319
        %4696 = vmatpush.msra.mxu0 %v4314
        %4697 = vmatpush.msra.mxu0 %v4309
        %4698 = vmatpush.msra.mxu0 %v4304
        %4699 = vmatpush.msra.mxu0 %v4299
        %4700 = vmatpush.msra.mxu0 %v4294
        %4701 = vmatpush.msra.mxu0 %v4289
        %4702 = vmatpush.msra.mxu0 %v4284
        %4703 = vmatpush.msra.mxu0 %v4279
        %4704 = vmatpush.msra.mxu0 %v4274
        %4705 = vmatmul.f32.gmra.mxu0 %v4194
        %v4706 = vpop.f32.mrf.mxu0
        %v4707 = vadd.f32 %v4679, %v4706
        %4708 = vmatmul.f32.gmra.mxu0 %v4199
        %v4709 = vpop.f32.mrf.mxu0
        %v4710 = vadd.f32 %v4679, %v4709
        %4711 = vmatmul.f32.gmra.mxu0 %v4204
        %v4712 = vpop.f32.mrf.mxu0
        %v4713 = vadd.f32 %v4679, %v4712
        %4714 = vmatmul.f32.gmra.mxu0 %v4209
        %v4715 = vpop.f32.mrf.mxu0
        %v4716 = vadd.f32 %v4679, %v4715
        %4717 = vmatmul.f32.gmra.mxu0 %v4214
        %v4718 = vpop.f32.mrf.mxu0
        %v4719 = vadd.f32 %v4679, %v4718
        %4720 = vmatmul.f32.gmra.mxu0 %v4219
        %v4721 = vpop.f32.mrf.mxu0
        %v4722 = vadd.f32 %v4679, %v4721
        %4723 = vmatmul.f32.gmra.mxu0 %v4224
        %v4724 = vpop.f32.mrf.mxu0
        %v4725 = vadd.f32 %v4679, %v4724
        %4726 = vmatmul.f32.gmra.mxu0 %v4229
        %v4727 = vpop.f32.mrf.mxu0
        %v4728 = vadd.f32 %v4679, %v4727
        %4729 = vmatmul.f32.gmra.mxu0 %v4234
        %v4730 = vpop.f32.mrf.mxu0
        %v4731 = vadd.f32 %v4679, %v4730
        %4732 = vmatmul.f32.gmra.mxu0 %v4239
        %v4733 = vpop.f32.mrf.mxu0
        %v4734 = vadd.f32 %v4679, %v4733
        %4735 = vmatmul.f32.gmra.mxu0 %v4244
        %v4736 = vpop.f32.mrf.mxu0
        %v4737 = vadd.f32 %v4679, %v4736
        %4738 = vmatmul.f32.gmra.mxu0 %v4249
        %v4739 = vpop.f32.mrf.mxu0
        %v4740 = vadd.f32 %v4679, %v4739
        %4741 = vmatmul.f32.gmra.mxu0 %v4254
        %v4742 = vpop.f32.mrf.mxu0
        %v4743 = vadd.f32 %v4679, %v4742
        %4744 = vmatmul.f32.gmra.mxu0 %v4259
        %v4745 = vpop.f32.mrf.mxu0
        %v4746 = vadd.f32 %v4679, %v4745
        %4747 = vmatmul.f32.gmra.mxu0 %v4264
        %v4748 = vpop.f32.mrf.mxu0
        %v4749 = vadd.f32 %v4679, %v4748
        %4750 = vmatmul.f32.gmra.mxu0 %v4269
        %v4751 = vpop.f32.mrf.mxu0
        %v4752 = vadd.f32 %v4679, %v4751
        %4753 = vdwg.mxu0
        %4754 = vmatpush.msra.mxu0 %v4429
        %4755 = vmatpush.msra.mxu0 %v4424
        %4756 = vmatpush.msra.mxu0 %v4419
        %4757 = vmatpush.msra.mxu0 %v4414
        %4758 = vmatpush.msra.mxu0 %v4409
        %4759 = vmatpush.msra.mxu0 %v4404
        %4760 = vmatpush.msra.mxu0 %v4399
        %4761 = vmatpush.msra.mxu0 %v4394
        %4762 = vmatpush.msra.mxu0 %v4389
        %4763 = vmatpush.msra.mxu0 %v4384
        %4764 = vmatpush.msra.mxu0 %v4379
        %4765 = vmatpush.msra.mxu0 %v4374
        %4766 = vmatpush.msra.mxu0 %v4369
        %4767 = vmatpush.msra.mxu0 %v4364
        %4768 = vmatpush.msra.mxu0 %v4359
        %4769 = vmatpush.msra.mxu0 %v4354
        %4770 = vmatmul.f32.gmra.mxu0 %v4195
        %v4771 = vpop.f32.mrf.mxu0
        %v4772 = vadd.f32 %v4707, %v4771
        %4773 = vmatmul.f32.gmra.mxu0 %v4200
        %v4774 = vpop.f32.mrf.mxu0
        %v4775 = vadd.f32 %v4710, %v4774
        %4776 = vmatmul.f32.gmra.mxu0 %v4205
        %v4777 = vpop.f32.mrf.mxu0
        %v4778 = vadd.f32 %v4713, %v4777
        %4779 = vmatmul.f32.gmra.mxu0 %v4210
        %v4780 = vpop.f32.mrf.mxu0
        %v4781 = vadd.f32 %v4716, %v4780
        %4782 = vmatmul.f32.gmra.mxu0 %v4215
        %v4783 = vpop.f32.mrf.mxu0
        %v4784 = vadd.f32 %v4719, %v4783
        %4785 = vmatmul.f32.gmra.mxu0 %v4220
        %v4786 = vpop.f32.mrf.mxu0
        %v4787 = vadd.f32 %v4722, %v4786
        %4788 = vmatmul.f32.gmra.mxu0 %v4225
        %v4789 = vpop.f32.mrf.mxu0
        %v4790 = vadd.f32 %v4725, %v4789
        %4791 = vmatmul.f32.gmra.mxu0 %v4230
        %v4792 = vpop.f32.mrf.mxu0
        %v4793 = vadd.f32 %v4728, %v4792
        %4794 = vmatmul.f32.gmra.mxu0 %v4235
        %v4795 = vpop.f32.mrf.mxu0
        %v4796 = vadd.f32 %v4731, %v4795
        %4797 = vmatmul.f32.gmra.mxu0 %v4240
        %v4798 = vpop.f32.mrf.mxu0
        %v4799 = vadd.f32 %v4734, %v4798
        %4800 = vmatmul.f32.gmra.mxu0 %v4245
        %v4801 = vpop.f32.mrf.mxu0
        %v4802 = vadd.f32 %v4737, %v4801
        %4803 = vmatmul.f32.gmra.mxu0 %v4250
        %v4804 = vpop.f32.mrf.mxu0
        %v4805 = vadd.f32 %v4740, %v4804
        %4806 = vmatmul.f32.gmra.mxu0 %v4255
        %v4807 = vpop.f32.mrf.mxu0
        %v4808 = vadd.f32 %v4743, %v4807
        %4809 = vmatmul.f32.gmra.mxu0 %v4260
        %v4810 = vpop.f32.mrf.mxu0
        %v4811 = vadd.f32 %v4746, %v4810
        %4812 = vmatmul.f32.gmra.mxu0 %v4265
        %v4813 = vpop.f32.mrf.mxu0
        %v4814 = vadd.f32 %v4749, %v4813
        %4815 = vmatmul.f32.gmra.mxu0 %v4270
        %v4816 = vpop.f32.mrf.mxu0
        %v4817 = vadd.f32 %v4752, %v4816
        %4818 = vdwg.mxu0
        %4819 = vmatpush.msra.mxu0 %v4509
        %4820 = vmatpush.msra.mxu0 %v4504
        %4821 = vmatpush.msra.mxu0 %v4499
        %4822 = vmatpush.msra.mxu0 %v4494
        %4823 = vmatpush.msra.mxu0 %v4489
        %4824 = vmatpush.msra.mxu0 %v4484
        %4825 = vmatpush.msra.mxu0 %v4479
        %4826 = vmatpush.msra.mxu0 %v4474
        %4827 = vmatpush.msra.mxu0 %v4469
        %4828 = vmatpush.msra.mxu0 %v4464
        %4829 = vmatpush.msra.mxu0 %v4459
        %4830 = vmatpush.msra.mxu0 %v4454
        %4831 = vmatpush.msra.mxu0 %v4449
        %4832 = vmatpush.msra.mxu0 %v4444
        %4833 = vmatpush.msra.mxu0 %v4439
        %4834 = vmatpush.msra.mxu0 %v4434
        %4835 = vmatmul.f32.gmra.mxu0 %v4196
        %v4836 = vpop.f32.mrf.mxu0
        %v4837 = vadd.f32 %v4772, %v4836
        %4838 = vmatmul.f32.gmra.mxu0 %v4201
        %v4839 = vpop.f32.mrf.mxu0
        %v4840 = vadd.f32 %v4775, %v4839
        %4841 = vmatmul.f32.gmra.mxu0 %v4206
        %v4842 = vpop.f32.mrf.mxu0
        %v4843 = vadd.f32 %v4778, %v4842
        %4844 = vmatmul.f32.gmra.mxu0 %v4211
        %v4845 = vpop.f32.mrf.mxu0
        %v4846 = vadd.f32 %v4781, %v4845
        %4847 = vmatmul.f32.gmra.mxu0 %v4216
        %v4848 = vpop.f32.mrf.mxu0
        %v4849 = vadd.f32 %v4784, %v4848
        %4850 = vmatmul.f32.gmra.mxu0 %v4221
        %v4851 = vpop.f32.mrf.mxu0
        %v4852 = vadd.f32 %v4787, %v4851
        %4853 = vmatmul.f32.gmra.mxu0 %v4226
        %v4854 = vpop.f32.mrf.mxu0
        %v4855 = vadd.f32 %v4790, %v4854
        %4856 = vmatmul.f32.gmra.mxu0 %v4231
        %v4857 = vpop.f32.mrf.mxu0
        %v4858 = vadd.f32 %v4793, %v4857
        %4859 = vmatmul.f32.gmra.mxu0 %v4236
        %v4860 = vpop.f32.mrf.mxu0
        %v4861 = vadd.f32 %v4796, %v4860
        %4862 = vmatmul.f32.gmra.mxu0 %v4241
        %v4863 = vpop.f32.mrf.mxu0
        %v4864 = vadd.f32 %v4799, %v4863
        %4865 = vmatmul.f32.gmra.mxu0 %v4246
        %v4866 = vpop.f32.mrf.mxu0
        %v4867 = vadd.f32 %v4802, %v4866
        %4868 = vmatmul.f32.gmra.mxu0 %v4251
        %v4869 = vpop.f32.mrf.mxu0
        %v4870 = vadd.f32 %v4805, %v4869
        %4871 = vmatmul.f32.gmra.mxu0 %v4256
        %v4872 = vpop.f32.mrf.mxu0
        %v4873 = vadd.f32 %v4808, %v4872
        %4874 = vmatmul.f32.gmra.mxu0 %v4261
        %v4875 = vpop.f32.mrf.mxu0
        %v4876 = vadd.f32 %v4811, %v4875
        %4877 = vmatmul.f32.gmra.mxu0 %v4266
        %v4878 = vpop.f32.mrf.mxu0
        %v4879 = vadd.f32 %v4814, %v4878
        %4880 = vmatmul.f32.gmra.mxu0 %v4271
        %v4881 = vpop.f32.mrf.mxu0
        %v4882 = vadd.f32 %v4817, %v4881
        %4883 = vdwg.mxu0
        %4884 = vmatpush.msra.mxu0 %v4589
        %4885 = vmatpush.msra.mxu0 %v4584
        %4886 = vmatpush.msra.mxu0 %v4579
        %4887 = vmatpush.msra.mxu0 %v4574
        %4888 = vmatpush.msra.mxu0 %v4569
        %4889 = vmatpush.msra.mxu0 %v4564
        %4890 = vmatpush.msra.mxu0 %v4559
        %4891 = vmatpush.msra.mxu0 %v4554
        %4892 = vmatpush.msra.mxu0 %v4549
        %4893 = vmatpush.msra.mxu0 %v4544
        %4894 = vmatpush.msra.mxu0 %v4539
        %4895 = vmatpush.msra.mxu0 %v4534
        %4896 = vmatpush.msra.mxu0 %v4529
        %4897 = vmatpush.msra.mxu0 %v4524
        %4898 = vmatpush.msra.mxu0 %v4519
        %4899 = vmatpush.msra.mxu0 %v4514
        %4900 = vmatmul.f32.gmra.mxu0 %v4197
        %v4901 = vpop.f32.mrf.mxu0
        %v4902 = vadd.f32 %v4837, %v4901
        %4903 = vmatmul.f32.gmra.mxu0 %v4202
        %v4904 = vpop.f32.mrf.mxu0
        %v4905 = vadd.f32 %v4840, %v4904
        %4906 = vmatmul.f32.gmra.mxu0 %v4207
        %v4907 = vpop.f32.mrf.mxu0
        %v4908 = vadd.f32 %v4843, %v4907
        %4909 = vmatmul.f32.gmra.mxu0 %v4212
        %v4910 = vpop.f32.mrf.mxu0
        %v4911 = vadd.f32 %v4846, %v4910
        %4912 = vmatmul.f32.gmra.mxu0 %v4217
        %v4913 = vpop.f32.mrf.mxu0
        %v4914 = vadd.f32 %v4849, %v4913
        %4915 = vmatmul.f32.gmra.mxu0 %v4222
        %v4916 = vpop.f32.mrf.mxu0
        %v4917 = vadd.f32 %v4852, %v4916
        %4918 = vmatmul.f32.gmra.mxu0 %v4227
        %v4919 = vpop.f32.mrf.mxu0
        %v4920 = vadd.f32 %v4855, %v4919
        %4921 = vmatmul.f32.gmra.mxu0 %v4232
        %v4922 = vpop.f32.mrf.mxu0
        %v4923 = vadd.f32 %v4858, %v4922
        %4924 = vmatmul.f32.gmra.mxu0 %v4237
        %v4925 = vpop.f32.mrf.mxu0
        %v4926 = vadd.f32 %v4861, %v4925
        %4927 = vmatmul.f32.gmra.mxu0 %v4242
        %v4928 = vpop.f32.mrf.mxu0
        %v4929 = vadd.f32 %v4864, %v4928
        %4930 = vmatmul.f32.gmra.mxu0 %v4247
        %v4931 = vpop.f32.mrf.mxu0
        %v4932 = vadd.f32 %v4867, %v4931
        %4933 = vmatmul.f32.gmra.mxu0 %v4252
        %v4934 = vpop.f32.mrf.mxu0
        %v4935 = vadd.f32 %v4870, %v4934
        %4936 = vmatmul.f32.gmra.mxu0 %v4257
        %v4937 = vpop.f32.mrf.mxu0
        %v4938 = vadd.f32 %v4873, %v4937
        %4939 = vmatmul.f32.gmra.mxu0 %v4262
        %v4940 = vpop.f32.mrf.mxu0
        %v4941 = vadd.f32 %v4876, %v4940
        %4942 = vmatmul.f32.gmra.mxu0 %v4267
        %v4943 = vpop.f32.mrf.mxu0
        %v4944 = vadd.f32 %v4879, %v4943
        %4945 = vmatmul.f32.gmra.mxu0 %v4272
        %v4946 = vpop.f32.mrf.mxu0
        %v4947 = vadd.f32 %v4882, %v4946
        %4948 = vdwg.mxu0
        %4949 = vmatpush.msra.mxu0 %v4669
        %4950 = vmatpush.msra.mxu0 %v4664
        %4951 = vmatpush.msra.mxu0 %v4659
        %4952 = vmatpush.msra.mxu0 %v4654
        %4953 = vmatpush.msra.mxu0 %v4649
        %4954 = vmatpush.msra.mxu0 %v4644
        %4955 = vmatpush.msra.mxu0 %v4639
        %4956 = vmatpush.msra.mxu0 %v4634
        %4957 = vmatpush.msra.mxu0 %v4629
        %4958 = vmatpush.msra.mxu0 %v4624
        %4959 = vmatpush.msra.mxu0 %v4619
        %4960 = vmatpush.msra.mxu0 %v4614
        %4961 = vmatpush.msra.mxu0 %v4609
        %4962 = vmatpush.msra.mxu0 %v4604
        %4963 = vmatpush.msra.mxu0 %v4599
        %4964 = vmatpush.msra.mxu0 %v4594
        %4965 = vmatmul.f32.gmra.mxu0 %v4198
        %v4966 = vpop.f32.mrf.mxu0
        %v4967 = vadd.f32 %v4902, %v4966
        %4968 = vmatmul.f32.gmra.mxu0 %v4203
        %v4969 = vpop.f32.mrf.mxu0
        %v4970 = vadd.f32 %v4905, %v4969
        %4971 = vmatmul.f32.gmra.mxu0 %v4208
        %v4972 = vpop.f32.mrf.mxu0
        %v4973 = vadd.f32 %v4908, %v4972
        %4974 = vmatmul.f32.gmra.mxu0 %v4213
        %v4975 = vpop.f32.mrf.mxu0
        %v4976 = vadd.f32 %v4911, %v4975
        %4977 = vmatmul.f32.gmra.mxu0 %v4218
        %v4978 = vpop.f32.mrf.mxu0
        %v4979 = vadd.f32 %v4914, %v4978
        %4980 = vmatmul.f32.gmra.mxu0 %v4223
        %v4981 = vpop.f32.mrf.mxu0
        %v4982 = vadd.f32 %v4917, %v4981
        %4983 = vmatmul.f32.gmra.mxu0 %v4228
        %v4984 = vpop.f32.mrf.mxu0
        %v4985 = vadd.f32 %v4920, %v4984
        %4986 = vmatmul.f32.gmra.mxu0 %v4233
        %v4987 = vpop.f32.mrf.mxu0
        %v4988 = vadd.f32 %v4923, %v4987
        %4989 = vmatmul.f32.gmra.mxu0 %v4238
        %v4990 = vpop.f32.mrf.mxu0
        %v4991 = vadd.f32 %v4926, %v4990
        %4992 = vmatmul.f32.gmra.mxu0 %v4243
        %v4993 = vpop.f32.mrf.mxu0
        %v4994 = vadd.f32 %v4929, %v4993
        %4995 = vmatmul.f32.gmra.mxu0 %v4248
        %v4996 = vpop.f32.mrf.mxu0
        %v4997 = vadd.f32 %v4932, %v4996
        %4998 = vmatmul.f32.gmra.mxu0 %v4253
        %v4999 = vpop.f32.mrf.mxu0
        %v5000 = vadd.f32 %v4935, %v4999
        %5001 = vmatmul.f32.gmra.mxu0 %v4258
        %v5002 = vpop.f32.mrf.mxu0
        %v5003 = vadd.f32 %v4938, %v5002
        %5004 = vmatmul.f32.gmra.mxu0 %v4263
        %v5005 = vpop.f32.mrf.mxu0
        %v5006 = vadd.f32 %v4941, %v5005
        %5007 = vmatmul.f32.gmra.mxu0 %v4268
        %v5008 = vpop.f32.mrf.mxu0
        %v5009 = vadd.f32 %v4944, %v5008
        %5010 = vmatmul.f32.gmra.mxu0 %v4273
        %v5011 = vpop.f32.mrf.mxu0
        %v5012 = vadd.f32 %v4947, %v5011
        %5013 = vdwg.mxu0
        %5014 = vmatpush.msra.mxu0 %v4350
        %5015 = vmatpush.msra.mxu0 %v4345
        %5016 = vmatpush.msra.mxu0 %v4340
        %5017 = vmatpush.msra.mxu0 %v4335
        %5018 = vmatpush.msra.mxu0 %v4330
        %5019 = vmatpush.msra.mxu0 %v4325
        %5020 = vmatpush.msra.mxu0 %v4320
        %5021 = vmatpush.msra.mxu0 %v4315
        %5022 = vmatpush.msra.mxu0 %v4310
        %5023 = vmatpush.msra.mxu0 %v4305
        %5024 = vmatpush.msra.mxu0 %v4300
        %5025 = vmatpush.msra.mxu0 %v4295
        %5026 = vmatpush.msra.mxu0 %v4290
        %5027 = vmatpush.msra.mxu0 %v4285
        %5028 = vmatpush.msra.mxu0 %v4280
        %5029 = vmatpush.msra.mxu0 %v4275
        %5030 = vmatmul.f32.gmra.mxu0 %v4194
        %v5031 = vpop.f32.mrf.mxu0
        %v5032 = vadd.f32 %v4680, %v5031
        %5033 = vmatmul.f32.gmra.mxu0 %v4199
        %v5034 = vpop.f32.mrf.mxu0
        %v5035 = vadd.f32 %v4680, %v5034
        %5036 = vmatmul.f32.gmra.mxu0 %v4204
        %v5037 = vpop.f32.mrf.mxu0
        %v5038 = vadd.f32 %v4680, %v5037
        %5039 = vmatmul.f32.gmra.mxu0 %v4209
        %v5040 = vpop.f32.mrf.mxu0
        %v5041 = vadd.f32 %v4680, %v5040
        %5042 = vmatmul.f32.gmra.mxu0 %v4214
        %v5043 = vpop.f32.mrf.mxu0
        %v5044 = vadd.f32 %v4680, %v5043
        %5045 = vmatmul.f32.gmra.mxu0 %v4219
        %v5046 = vpop.f32.mrf.mxu0
        %v5047 = vadd.f32 %v4680, %v5046
        %5048 = vmatmul.f32.gmra.mxu0 %v4224
        %v5049 = vpop.f32.mrf.mxu0
        %v5050 = vadd.f32 %v4680, %v5049
        %5051 = vmatmul.f32.gmra.mxu0 %v4229
        %v5052 = vpop.f32.mrf.mxu0
        %v5053 = vadd.f32 %v4680, %v5052
        %5054 = vmatmul.f32.gmra.mxu0 %v4234
        %v5055 = vpop.f32.mrf.mxu0
        %v5056 = vadd.f32 %v4680, %v5055
        %5057 = vmatmul.f32.gmra.mxu0 %v4239
        %v5058 = vpop.f32.mrf.mxu0
        %v5059 = vadd.f32 %v4680, %v5058
        %5060 = vmatmul.f32.gmra.mxu0 %v4244
        %v5061 = vpop.f32.mrf.mxu0
        %v5062 = vadd.f32 %v4680, %v5061
        %5063 = vmatmul.f32.gmra.mxu0 %v4249
        %v5064 = vpop.f32.mrf.mxu0
        %v5065 = vadd.f32 %v4680, %v5064
        %5066 = vmatmul.f32.gmra.mxu0 %v4254
        %v5067 = vpop.f32.mrf.mxu0
        %v5068 = vadd.f32 %v4680, %v5067
        %5069 = vmatmul.f32.gmra.mxu0 %v4259
        %v5070 = vpop.f32.mrf.mxu0
        %v5071 = vadd.f32 %v4680, %v5070
        %5072 = vmatmul.f32.gmra.mxu0 %v4264
        %v5073 = vpop.f32.mrf.mxu0
        %v5074 = vadd.f32 %v4680, %v5073
        %5075 = vmatmul.f32.gmra.mxu0 %v4269
        %v5076 = vpop.f32.mrf.mxu0
        %v5077 = vadd.f32 %v4680, %v5076
        %5078 = vdwg.mxu0
        %5079 = vmatpush.msra.mxu0 %v4430
        %5080 = vmatpush.msra.mxu0 %v4425
        %5081 = vmatpush.msra.mxu0 %v4420
        %5082 = vmatpush.msra.mxu0 %v4415
        %5083 = vmatpush.msra.mxu0 %v4410
        %5084 = vmatpush.msra.mxu0 %v4405
        %5085 = vmatpush.msra.mxu0 %v4400
        %5086 = vmatpush.msra.mxu0 %v4395
        %5087 = vmatpush.msra.mxu0 %v4390
        %5088 = vmatpush.msra.mxu0 %v4385
        %5089 = vmatpush.msra.mxu0 %v4380
        %5090 = vmatpush.msra.mxu0 %v4375
        %5091 = vmatpush.msra.mxu0 %v4370
        %5092 = vmatpush.msra.mxu0 %v4365
        %5093 = vmatpush.msra.mxu0 %v4360
        %5094 = vmatpush.msra.mxu0 %v4355
        %5095 = vmatmul.f32.gmra.mxu0 %v4195
        %v5096 = vpop.f32.mrf.mxu0
        %v5097 = vadd.f32 %v5032, %v5096
        %5098 = vmatmul.f32.gmra.mxu0 %v4200
        %v5099 = vpop.f32.mrf.mxu0
        %v5100 = vadd.f32 %v5035, %v5099
        %5101 = vmatmul.f32.gmra.mxu0 %v4205
        %v5102 = vpop.f32.mrf.mxu0
        %v5103 = vadd.f32 %v5038, %v5102
        %5104 = vmatmul.f32.gmra.mxu0 %v4210
        %v5105 = vpop.f32.mrf.mxu0
        %v5106 = vadd.f32 %v5041, %v5105
        %5107 = vmatmul.f32.gmra.mxu0 %v4215
        %v5108 = vpop.f32.mrf.mxu0
        %v5109 = vadd.f32 %v5044, %v5108
        %5110 = vmatmul.f32.gmra.mxu0 %v4220
        %v5111 = vpop.f32.mrf.mxu0
        %v5112 = vadd.f32 %v5047, %v5111
        %5113 = vmatmul.f32.gmra.mxu0 %v4225
        %v5114 = vpop.f32.mrf.mxu0
        %v5115 = vadd.f32 %v5050, %v5114
        %5116 = vmatmul.f32.gmra.mxu0 %v4230
        %v5117 = vpop.f32.mrf.mxu0
        %v5118 = vadd.f32 %v5053, %v5117
        %5119 = vmatmul.f32.gmra.mxu0 %v4235
        %v5120 = vpop.f32.mrf.mxu0
        %v5121 = vadd.f32 %v5056, %v5120
        %5122 = vmatmul.f32.gmra.mxu0 %v4240
        %v5123 = vpop.f32.mrf.mxu0
        %v5124 = vadd.f32 %v5059, %v5123
        %5125 = vmatmul.f32.gmra.mxu0 %v4245
        %v5126 = vpop.f32.mrf.mxu0
        %v5127 = vadd.f32 %v5062, %v5126
        %5128 = vmatmul.f32.gmra.mxu0 %v4250
        %v5129 = vpop.f32.mrf.mxu0
        %v5130 = vadd.f32 %v5065, %v5129
        %5131 = vmatmul.f32.gmra.mxu0 %v4255
        %v5132 = vpop.f32.mrf.mxu0
        %v5133 = vadd.f32 %v5068, %v5132
        %5134 = vmatmul.f32.gmra.mxu0 %v4260
        %v5135 = vpop.f32.mrf.mxu0
        %v5136 = vadd.f32 %v5071, %v5135
        %5137 = vmatmul.f32.gmra.mxu0 %v4265
        %v5138 = vpop.f32.mrf.mxu0
        %v5139 = vadd.f32 %v5074, %v5138
        %5140 = vmatmul.f32.gmra.mxu0 %v4270
        %v5141 = vpop.f32.mrf.mxu0
        %v5142 = vadd.f32 %v5077, %v5141
        %5143 = vdwg.mxu0
        %5144 = vmatpush.msra.mxu0 %v4510
        %5145 = vmatpush.msra.mxu0 %v4505
        %5146 = vmatpush.msra.mxu0 %v4500
        %5147 = vmatpush.msra.mxu0 %v4495
        %5148 = vmatpush.msra.mxu0 %v4490
        %5149 = vmatpush.msra.mxu0 %v4485
        %5150 = vmatpush.msra.mxu0 %v4480
        %5151 = vmatpush.msra.mxu0 %v4475
        %5152 = vmatpush.msra.mxu0 %v4470
        %5153 = vmatpush.msra.mxu0 %v4465
        %5154 = vmatpush.msra.mxu0 %v4460
        %5155 = vmatpush.msra.mxu0 %v4455
        %5156 = vmatpush.msra.mxu0 %v4450
        %5157 = vmatpush.msra.mxu0 %v4445
        %5158 = vmatpush.msra.mxu0 %v4440
        %5159 = vmatpush.msra.mxu0 %v4435
        %5160 = vmatmul.f32.gmra.mxu0 %v4196
        %v5161 = vpop.f32.mrf.mxu0
        %v5162 = vadd.f32 %v5097, %v5161
        %5163 = vmatmul.f32.gmra.mxu0 %v4201
        %v5164 = vpop.f32.mrf.mxu0
        %v5165 = vadd.f32 %v5100, %v5164
        %5166 = vmatmul.f32.gmra.mxu0 %v4206
        %v5167 = vpop.f32.mrf.mxu0
        %v5168 = vadd.f32 %v5103, %v5167
        %5169 = vmatmul.f32.gmra.mxu0 %v4211
        %v5170 = vpop.f32.mrf.mxu0
        %v5171 = vadd.f32 %v5106, %v5170
        %5172 = vmatmul.f32.gmra.mxu0 %v4216
        %v5173 = vpop.f32.mrf.mxu0
        %v5174 = vadd.f32 %v5109, %v5173
        %5175 = vmatmul.f32.gmra.mxu0 %v4221
        %v5176 = vpop.f32.mrf.mxu0
        %v5177 = vadd.f32 %v5112, %v5176
        %5178 = vmatmul.f32.gmra.mxu0 %v4226
        %v5179 = vpop.f32.mrf.mxu0
        %v5180 = vadd.f32 %v5115, %v5179
        %5181 = vmatmul.f32.gmra.mxu0 %v4231
        %v5182 = vpop.f32.mrf.mxu0
        %v5183 = vadd.f32 %v5118, %v5182
        %5184 = vmatmul.f32.gmra.mxu0 %v4236
        %v5185 = vpop.f32.mrf.mxu0
        %v5186 = vadd.f32 %v5121, %v5185
        %5187 = vmatmul.f32.gmra.mxu0 %v4241
        %v5188 = vpop.f32.mrf.mxu0
        %v5189 = vadd.f32 %v5124, %v5188
        %5190 = vmatmul.f32.gmra.mxu0 %v4246
        %v5191 = vpop.f32.mrf.mxu0
        %v5192 = vadd.f32 %v5127, %v5191
        %5193 = vmatmul.f32.gmra.mxu0 %v4251
        %v5194 = vpop.f32.mrf.mxu0
        %v5195 = vadd.f32 %v5130, %v5194
        %5196 = vmatmul.f32.gmra.mxu0 %v4256
        %v5197 = vpop.f32.mrf.mxu0
        %v5198 = vadd.f32 %v5133, %v5197
        %5199 = vmatmul.f32.gmra.mxu0 %v4261
        %v5200 = vpop.f32.mrf.mxu0
        %v5201 = vadd.f32 %v5136, %v5200
        %5202 = vmatmul.f32.gmra.mxu0 %v4266
        %v5203 = vpop.f32.mrf.mxu0
        %v5204 = vadd.f32 %v5139, %v5203
        %5205 = vmatmul.f32.gmra.mxu0 %v4271
        %v5206 = vpop.f32.mrf.mxu0
        %v5207 = vadd.f32 %v5142, %v5206
        %5208 = vdwg.mxu0
        %5209 = vmatpush.msra.mxu0 %v4590
        %5210 = vmatpush.msra.mxu0 %v4585
        %5211 = vmatpush.msra.mxu0 %v4580
        %5212 = vmatpush.msra.mxu0 %v4575
        %5213 = vmatpush.msra.mxu0 %v4570
        %5214 = vmatpush.msra.mxu0 %v4565
        %5215 = vmatpush.msra.mxu0 %v4560
        %5216 = vmatpush.msra.mxu0 %v4555
        %5217 = vmatpush.msra.mxu0 %v4550
        %5218 = vmatpush.msra.mxu0 %v4545
        %5219 = vmatpush.msra.mxu0 %v4540
        %5220 = vmatpush.msra.mxu0 %v4535
        %5221 = vmatpush.msra.mxu0 %v4530
        %5222 = vmatpush.msra.mxu0 %v4525
        %5223 = vmatpush.msra.mxu0 %v4520
        %5224 = vmatpush.msra.mxu0 %v4515
        %5225 = vmatmul.f32.gmra.mxu0 %v4197
        %v5226 = vpop.f32.mrf.mxu0
        %v5227 = vadd.f32 %v5162, %v5226
        %5228 = vmatmul.f32.gmra.mxu0 %v4202
        %v5229 = vpop.f32.mrf.mxu0
        %v5230 = vadd.f32 %v5165, %v5229
        %5231 = vmatmul.f32.gmra.mxu0 %v4207
        %v5232 = vpop.f32.mrf.mxu0
        %v5233 = vadd.f32 %v5168, %v5232
        %5234 = vmatmul.f32.gmra.mxu0 %v4212
        %v5235 = vpop.f32.mrf.mxu0
        %v5236 = vadd.f32 %v5171, %v5235
        %5237 = vmatmul.f32.gmra.mxu0 %v4217
        %v5238 = vpop.f32.mrf.mxu0
        %v5239 = vadd.f32 %v5174, %v5238
        %5240 = vmatmul.f32.gmra.mxu0 %v4222
        %v5241 = vpop.f32.mrf.mxu0
        %v5242 = vadd.f32 %v5177, %v5241
        %5243 = vmatmul.f32.gmra.mxu0 %v4227
        %v5244 = vpop.f32.mrf.mxu0
        %v5245 = vadd.f32 %v5180, %v5244
        %5246 = vmatmul.f32.gmra.mxu0 %v4232
        %v5247 = vpop.f32.mrf.mxu0
        %v5248 = vadd.f32 %v5183, %v5247
        %5249 = vmatmul.f32.gmra.mxu0 %v4237
        %v5250 = vpop.f32.mrf.mxu0
        %v5251 = vadd.f32 %v5186, %v5250
        %5252 = vmatmul.f32.gmra.mxu0 %v4242
        %v5253 = vpop.f32.mrf.mxu0
        %v5254 = vadd.f32 %v5189, %v5253
        %5255 = vmatmul.f32.gmra.mxu0 %v4247
        %v5256 = vpop.f32.mrf.mxu0
        %v5257 = vadd.f32 %v5192, %v5256
        %5258 = vmatmul.f32.gmra.mxu0 %v4252
        %v5259 = vpop.f32.mrf.mxu0
        %v5260 = vadd.f32 %v5195, %v5259
        %5261 = vmatmul.f32.gmra.mxu0 %v4257
        %v5262 = vpop.f32.mrf.mxu0
        %v5263 = vadd.f32 %v5198, %v5262
        %5264 = vmatmul.f32.gmra.mxu0 %v4262
        %v5265 = vpop.f32.mrf.mxu0
        %v5266 = vadd.f32 %v5201, %v5265
        %5267 = vmatmul.f32.gmra.mxu0 %v4267
        %v5268 = vpop.f32.mrf.mxu0
        %v5269 = vadd.f32 %v5204, %v5268
        %5270 = vmatmul.f32.gmra.mxu0 %v4272
        %v5271 = vpop.f32.mrf.mxu0
        %v5272 = vadd.f32 %v5207, %v5271
        %5273 = vdwg.mxu0
        %5274 = vmatpush.msra.mxu0 %v4670
        %5275 = vmatpush.msra.mxu0 %v4665
        %5276 = vmatpush.msra.mxu0 %v4660
        %5277 = vmatpush.msra.mxu0 %v4655
        %5278 = vmatpush.msra.mxu0 %v4650
        %5279 = vmatpush.msra.mxu0 %v4645
        %5280 = vmatpush.msra.mxu0 %v4640
        %5281 = vmatpush.msra.mxu0 %v4635
        %5282 = vmatpush.msra.mxu0 %v4630
        %5283 = vmatpush.msra.mxu0 %v4625
        %5284 = vmatpush.msra.mxu0 %v4620
        %5285 = vmatpush.msra.mxu0 %v4615
        %5286 = vmatpush.msra.mxu0 %v4610
        %5287 = vmatpush.msra.mxu0 %v4605
        %5288 = vmatpush.msra.mxu0 %v4600
        %5289 = vmatpush.msra.mxu0 %v4595
        %5290 = vmatmul.f32.gmra.mxu0 %v4198
        %v5291 = vpop.f32.mrf.mxu0
        %v5292 = vadd.f32 %v5227, %v5291
        %5293 = vmatmul.f32.gmra.mxu0 %v4203
        %v5294 = vpop.f32.mrf.mxu0
        %v5295 = vadd.f32 %v5230, %v5294
        %5296 = vmatmul.f32.gmra.mxu0 %v4208
        %v5297 = vpop.f32.mrf.mxu0
        %v5298 = vadd.f32 %v5233, %v5297
        %5299 = vmatmul.f32.gmra.mxu0 %v4213
        %v5300 = vpop.f32.mrf.mxu0
        %v5301 = vadd.f32 %v5236, %v5300
        %5302 = vmatmul.f32.gmra.mxu0 %v4218
        %v5303 = vpop.f32.mrf.mxu0
        %v5304 = vadd.f32 %v5239, %v5303
        %5305 = vmatmul.f32.gmra.mxu0 %v4223
        %v5306 = vpop.f32.mrf.mxu0
        %v5307 = vadd.f32 %v5242, %v5306
        %5308 = vmatmul.f32.gmra.mxu0 %v4228
        %v5309 = vpop.f32.mrf.mxu0
        %v5310 = vadd.f32 %v5245, %v5309
        %5311 = vmatmul.f32.gmra.mxu0 %v4233
        %v5312 = vpop.f32.mrf.mxu0
        %v5313 = vadd.f32 %v5248, %v5312
        %5314 = vmatmul.f32.gmra.mxu0 %v4238
        %v5315 = vpop.f32.mrf.mxu0
        %v5316 = vadd.f32 %v5251, %v5315
        %5317 = vmatmul.f32.gmra.mxu0 %v4243
        %v5318 = vpop.f32.mrf.mxu0
        %v5319 = vadd.f32 %v5254, %v5318
        %5320 = vmatmul.f32.gmra.mxu0 %v4248
        %v5321 = vpop.f32.mrf.mxu0
        %v5322 = vadd.f32 %v5257, %v5321
        %5323 = vmatmul.f32.gmra.mxu0 %v4253
        %v5324 = vpop.f32.mrf.mxu0
        %v5325 = vadd.f32 %v5260, %v5324
        %5326 = vmatmul.f32.gmra.mxu0 %v4258
        %v5327 = vpop.f32.mrf.mxu0
        %v5328 = vadd.f32 %v5263, %v5327
        %5329 = vmatmul.f32.gmra.mxu0 %v4263
        %v5330 = vpop.f32.mrf.mxu0
        %v5331 = vadd.f32 %v5266, %v5330
        %5332 = vmatmul.f32.gmra.mxu0 %v4268
        %v5333 = vpop.f32.mrf.mxu0
        %v5334 = vadd.f32 %v5269, %v5333
        %5335 = vmatmul.f32.gmra.mxu0 %v4273
        %v5336 = vpop.f32.mrf.mxu0
        %v5337 = vadd.f32 %v5272, %v5336
        %5338 = vdwg.mxu0
        %5339 = vmatpush.msra.mxu0 %v4351
        %5340 = vmatpush.msra.mxu0 %v4346
        %5341 = vmatpush.msra.mxu0 %v4341
        %5342 = vmatpush.msra.mxu0 %v4336
        %5343 = vmatpush.msra.mxu0 %v4331
        %5344 = vmatpush.msra.mxu0 %v4326
        %5345 = vmatpush.msra.mxu0 %v4321
        %5346 = vmatpush.msra.mxu0 %v4316
        %5347 = vmatpush.msra.mxu0 %v4311
        %5348 = vmatpush.msra.mxu0 %v4306
        %5349 = vmatpush.msra.mxu0 %v4301
        %5350 = vmatpush.msra.mxu0 %v4296
        %5351 = vmatpush.msra.mxu0 %v4291
        %5352 = vmatpush.msra.mxu0 %v4286
        %5353 = vmatpush.msra.mxu0 %v4281
        %5354 = vmatpush.msra.mxu0 %v4276
        %5355 = vmatmul.f32.gmra.mxu0 %v4194
        %v5356 = vpop.f32.mrf.mxu0
        %v5357 = vadd.f32 %v4681, %v5356
        %5358 = vmatmul.f32.gmra.mxu0 %v4199
        %v5359 = vpop.f32.mrf.mxu0
        %v5360 = vadd.f32 %v4681, %v5359
        %5361 = vmatmul.f32.gmra.mxu0 %v4204
        %v5362 = vpop.f32.mrf.mxu0
        %v5363 = vadd.f32 %v4681, %v5362
        %5364 = vmatmul.f32.gmra.mxu0 %v4209
        %v5365 = vpop.f32.mrf.mxu0
        %v5366 = vadd.f32 %v4681, %v5365
        %5367 = vmatmul.f32.gmra.mxu0 %v4214
        %v5368 = vpop.f32.mrf.mxu0
        %v5369 = vadd.f32 %v4681, %v5368
        %5370 = vmatmul.f32.gmra.mxu0 %v4219
        %v5371 = vpop.f32.mrf.mxu0
        %v5372 = vadd.f32 %v4681, %v5371
        %5373 = vmatmul.f32.gmra.mxu0 %v4224
        %v5374 = vpop.f32.mrf.mxu0
        %v5375 = vadd.f32 %v4681, %v5374
        %5376 = vmatmul.f32.gmra.mxu0 %v4229
        %v5377 = vpop.f32.mrf.mxu0
        %v5378 = vadd.f32 %v4681, %v5377
        %5379 = vmatmul.f32.gmra.mxu0 %v4234
        %v5380 = vpop.f32.mrf.mxu0
        %v5381 = vadd.f32 %v4681, %v5380
        %5382 = vmatmul.f32.gmra.mxu0 %v4239
        %v5383 = vpop.f32.mrf.mxu0
        %v5384 = vadd.f32 %v4681, %v5383
        %5385 = vmatmul.f32.gmra.mxu0 %v4244
        %v5386 = vpop.f32.mrf.mxu0
        %v5387 = vadd.f32 %v4681, %v5386
        %5388 = vmatmul.f32.gmra.mxu0 %v4249
        %v5389 = vpop.f32.mrf.mxu0
        %v5390 = vadd.f32 %v4681, %v5389
        %5391 = vmatmul.f32.gmra.mxu0 %v4254
        %v5392 = vpop.f32.mrf.mxu0
        %v5393 = vadd.f32 %v4681, %v5392
        %5394 = vmatmul.f32.gmra.mxu0 %v4259
        %v5395 = vpop.f32.mrf.mxu0
        %v5396 = vadd.f32 %v4681, %v5395
        %5397 = vmatmul.f32.gmra.mxu0 %v4264
        %v5398 = vpop.f32.mrf.mxu0
        %v5399 = vadd.f32 %v4681, %v5398
        %5400 = vmatmul.f32.gmra.mxu0 %v4269
        %v5401 = vpop.f32.mrf.mxu0
        %v5402 = vadd.f32 %v4681, %v5401
        %5403 = vdwg.mxu0
        %5404 = vmatpush.msra.mxu0 %v4431
        %5405 = vmatpush.msra.mxu0 %v4426
        %5406 = vmatpush.msra.mxu0 %v4421
        %5407 = vmatpush.msra.mxu0 %v4416
        %5408 = vmatpush.msra.mxu0 %v4411
        %5409 = vmatpush.msra.mxu0 %v4406
        %5410 = vmatpush.msra.mxu0 %v4401
        %5411 = vmatpush.msra.mxu0 %v4396
        %5412 = vmatpush.msra.mxu0 %v4391
        %5413 = vmatpush.msra.mxu0 %v4386
        %5414 = vmatpush.msra.mxu0 %v4381
        %5415 = vmatpush.msra.mxu0 %v4376
        %5416 = vmatpush.msra.mxu0 %v4371
        %5417 = vmatpush.msra.mxu0 %v4366
        %5418 = vmatpush.msra.mxu0 %v4361
        %5419 = vmatpush.msra.mxu0 %v4356
        %5420 = vmatmul.f32.gmra.mxu0 %v4195
        %v5421 = vpop.f32.mrf.mxu0
        %v5422 = vadd.f32 %v5357, %v5421
        %5423 = vmatmul.f32.gmra.mxu0 %v4200
        %v5424 = vpop.f32.mrf.mxu0
        %v5425 = vadd.f32 %v5360, %v5424
        %5426 = vmatmul.f32.gmra.mxu0 %v4205
        %v5427 = vpop.f32.mrf.mxu0
        %v5428 = vadd.f32 %v5363, %v5427
        %5429 = vmatmul.f32.gmra.mxu0 %v4210
        %v5430 = vpop.f32.mrf.mxu0
        %v5431 = vadd.f32 %v5366, %v5430
        %5432 = vmatmul.f32.gmra.mxu0 %v4215
        %v5433 = vpop.f32.mrf.mxu0
        %v5434 = vadd.f32 %v5369, %v5433
        %5435 = vmatmul.f32.gmra.mxu0 %v4220
        %v5436 = vpop.f32.mrf.mxu0
        %v5437 = vadd.f32 %v5372, %v5436
        %5438 = vmatmul.f32.gmra.mxu0 %v4225
        %v5439 = vpop.f32.mrf.mxu0
        %v5440 = vadd.f32 %v5375, %v5439
        %5441 = vmatmul.f32.gmra.mxu0 %v4230
        %v5442 = vpop.f32.mrf.mxu0
        %v5443 = vadd.f32 %v5378, %v5442
        %5444 = vmatmul.f32.gmra.mxu0 %v4235
        %v5445 = vpop.f32.mrf.mxu0
        %v5446 = vadd.f32 %v5381, %v5445
        %5447 = vmatmul.f32.gmra.mxu0 %v4240
        %v5448 = vpop.f32.mrf.mxu0
        %v5449 = vadd.f32 %v5384, %v5448
        %5450 = vmatmul.f32.gmra.mxu0 %v4245
        %v5451 = vpop.f32.mrf.mxu0
        %v5452 = vadd.f32 %v5387, %v5451
        %5453 = vmatmul.f32.gmra.mxu0 %v4250
        %v5454 = vpop.f32.mrf.mxu0
        %v5455 = vadd.f32 %v5390, %v5454
        %5456 = vmatmul.f32.gmra.mxu0 %v4255
        %v5457 = vpop.f32.mrf.mxu0
        %v5458 = vadd.f32 %v5393, %v5457
        %5459 = vmatmul.f32.gmra.mxu0 %v4260
        %v5460 = vpop.f32.mrf.mxu0
        %v5461 = vadd.f32 %v5396, %v5460
        %5462 = vmatmul.f32.gmra.mxu0 %v4265
        %v5463 = vpop.f32.mrf.mxu0
        %v5464 = vadd.f32 %v5399, %v5463
        %5465 = vmatmul.f32.gmra.mxu0 %v4270
        %v5466 = vpop.f32.mrf.mxu0
        %v5467 = vadd.f32 %v5402, %v5466
        %5468 = vdwg.mxu0
        %5469 = vmatpush.msra.mxu0 %v4511
        %5470 = vmatpush.msra.mxu0 %v4506
        %5471 = vmatpush.msra.mxu0 %v4501
        %5472 = vmatpush.msra.mxu0 %v4496
        %5473 = vmatpush.msra.mxu0 %v4491
        %5474 = vmatpush.msra.mxu0 %v4486
        %5475 = vmatpush.msra.mxu0 %v4481
        %5476 = vmatpush.msra.mxu0 %v4476
        %5477 = vmatpush.msra.mxu0 %v4471
        %5478 = vmatpush.msra.mxu0 %v4466
        %5479 = vmatpush.msra.mxu0 %v4461
        %5480 = vmatpush.msra.mxu0 %v4456
        %5481 = vmatpush.msra.mxu0 %v4451
        %5482 = vmatpush.msra.mxu0 %v4446
        %5483 = vmatpush.msra.mxu0 %v4441
        %5484 = vmatpush.msra.mxu0 %v4436
        %5485 = vmatmul.f32.gmra.mxu0 %v4196
        %v5486 = vpop.f32.mrf.mxu0
        %v5487 = vadd.f32 %v5422, %v5486
        %5488 = vmatmul.f32.gmra.mxu0 %v4201
        %v5489 = vpop.f32.mrf.mxu0
        %v5490 = vadd.f32 %v5425, %v5489
        %5491 = vmatmul.f32.gmra.mxu0 %v4206
        %v5492 = vpop.f32.mrf.mxu0
        %v5493 = vadd.f32 %v5428, %v5492
        %5494 = vmatmul.f32.gmra.mxu0 %v4211
        %v5495 = vpop.f32.mrf.mxu0
        %v5496 = vadd.f32 %v5431, %v5495
        %5497 = vmatmul.f32.gmra.mxu0 %v4216
        %v5498 = vpop.f32.mrf.mxu0
        %v5499 = vadd.f32 %v5434, %v5498
        %5500 = vmatmul.f32.gmra.mxu0 %v4221
        %v5501 = vpop.f32.mrf.mxu0
        %v5502 = vadd.f32 %v5437, %v5501
        %5503 = vmatmul.f32.gmra.mxu0 %v4226
        %v5504 = vpop.f32.mrf.mxu0
        %v5505 = vadd.f32 %v5440, %v5504
        %5506 = vmatmul.f32.gmra.mxu0 %v4231
        %v5507 = vpop.f32.mrf.mxu0
        %v5508 = vadd.f32 %v5443, %v5507
        %5509 = vmatmul.f32.gmra.mxu0 %v4236
        %v5510 = vpop.f32.mrf.mxu0
        %v5511 = vadd.f32 %v5446, %v5510
        %5512 = vmatmul.f32.gmra.mxu0 %v4241
        %v5513 = vpop.f32.mrf.mxu0
        %v5514 = vadd.f32 %v5449, %v5513
        %5515 = vmatmul.f32.gmra.mxu0 %v4246
        %v5516 = vpop.f32.mrf.mxu0
        %v5517 = vadd.f32 %v5452, %v5516
        %5518 = vmatmul.f32.gmra.mxu0 %v4251
        %v5519 = vpop.f32.mrf.mxu0
        %v5520 = vadd.f32 %v5455, %v5519
        %5521 = vmatmul.f32.gmra.mxu0 %v4256
        %v5522 = vpop.f32.mrf.mxu0
        %v5523 = vadd.f32 %v5458, %v5522
        %5524 = vmatmul.f32.gmra.mxu0 %v4261
        %v5525 = vpop.f32.mrf.mxu0
        %v5526 = vadd.f32 %v5461, %v5525
        %5527 = vmatmul.f32.gmra.mxu0 %v4266
        %v5528 = vpop.f32.mrf.mxu0
        %v5529 = vadd.f32 %v5464, %v5528
        %5530 = vmatmul.f32.gmra.mxu0 %v4271
        %v5531 = vpop.f32.mrf.mxu0
        %v5532 = vadd.f32 %v5467, %v5531
        %5533 = vdwg.mxu0
        %5534 = vmatpush.msra.mxu0 %v4591
        %5535 = vmatpush.msra.mxu0 %v4586
        %5536 = vmatpush.msra.mxu0 %v4581
        %5537 = vmatpush.msra.mxu0 %v4576
        %5538 = vmatpush.msra.mxu0 %v4571
        %5539 = vmatpush.msra.mxu0 %v4566
        %5540 = vmatpush.msra.mxu0 %v4561
        %5541 = vmatpush.msra.mxu0 %v4556
        %5542 = vmatpush.msra.mxu0 %v4551
        %5543 = vmatpush.msra.mxu0 %v4546
        %5544 = vmatpush.msra.mxu0 %v4541
        %5545 = vmatpush.msra.mxu0 %v4536
        %5546 = vmatpush.msra.mxu0 %v4531
        %5547 = vmatpush.msra.mxu0 %v4526
        %5548 = vmatpush.msra.mxu0 %v4521
        %5549 = vmatpush.msra.mxu0 %v4516
        %5550 = vmatmul.f32.gmra.mxu0 %v4197
        %v5551 = vpop.f32.mrf.mxu0
        %v5552 = vadd.f32 %v5487, %v5551
        %5553 = vmatmul.f32.gmra.mxu0 %v4202
        %v5554 = vpop.f32.mrf.mxu0
        %v5555 = vadd.f32 %v5490, %v5554
        %5556 = vmatmul.f32.gmra.mxu0 %v4207
        %v5557 = vpop.f32.mrf.mxu0
        %v5558 = vadd.f32 %v5493, %v5557
        %5559 = vmatmul.f32.gmra.mxu0 %v4212
        %v5560 = vpop.f32.mrf.mxu0
        %v5561 = vadd.f32 %v5496, %v5560
        %5562 = vmatmul.f32.gmra.mxu0 %v4217
        %v5563 = vpop.f32.mrf.mxu0
        %v5564 = vadd.f32 %v5499, %v5563
        %5565 = vmatmul.f32.gmra.mxu0 %v4222
        %v5566 = vpop.f32.mrf.mxu0
        %v5567 = vadd.f32 %v5502, %v5566
        %5568 = vmatmul.f32.gmra.mxu0 %v4227
        %v5569 = vpop.f32.mrf.mxu0
        %v5570 = vadd.f32 %v5505, %v5569
        %5571 = vmatmul.f32.gmra.mxu0 %v4232
        %v5572 = vpop.f32.mrf.mxu0
        %v5573 = vadd.f32 %v5508, %v5572
        %5574 = vmatmul.f32.gmra.mxu0 %v4237
        %v5575 = vpop.f32.mrf.mxu0
        %v5576 = vadd.f32 %v5511, %v5575
        %5577 = vmatmul.f32.gmra.mxu0 %v4242
        %v5578 = vpop.f32.mrf.mxu0
        %v5579 = vadd.f32 %v5514, %v5578
        %5580 = vmatmul.f32.gmra.mxu0 %v4247
        %v5581 = vpop.f32.mrf.mxu0
        %v5582 = vadd.f32 %v5517, %v5581
        %5583 = vmatmul.f32.gmra.mxu0 %v4252
        %v5584 = vpop.f32.mrf.mxu0
        %v5585 = vadd.f32 %v5520, %v5584
        %5586 = vmatmul.f32.gmra.mxu0 %v4257
        %v5587 = vpop.f32.mrf.mxu0
        %v5588 = vadd.f32 %v5523, %v5587
        %5589 = vmatmul.f32.gmra.mxu0 %v4262
        %v5590 = vpop.f32.mrf.mxu0
        %v5591 = vadd.f32 %v5526, %v5590
        %5592 = vmatmul.f32.gmra.mxu0 %v4267
        %v5593 = vpop.f32.mrf.mxu0
        %v5594 = vadd.f32 %v5529, %v5593
        %5595 = vmatmul.f32.gmra.mxu0 %v4272
        %v5596 = vpop.f32.mrf.mxu0
        %v5597 = vadd.f32 %v5532, %v5596
        %5598 = vdwg.mxu0
        %5599 = vmatpush.msra.mxu0 %v4671
        %5600 = vmatpush.msra.mxu0 %v4666
        %5601 = vmatpush.msra.mxu0 %v4661
        %5602 = vmatpush.msra.mxu0 %v4656
        %5603 = vmatpush.msra.mxu0 %v4651
        %5604 = vmatpush.msra.mxu0 %v4646
        %5605 = vmatpush.msra.mxu0 %v4641
        %5606 = vmatpush.msra.mxu0 %v4636
        %5607 = vmatpush.msra.mxu0 %v4631
        %5608 = vmatpush.msra.mxu0 %v4626
        %5609 = vmatpush.msra.mxu0 %v4621
        %5610 = vmatpush.msra.mxu0 %v4616
        %5611 = vmatpush.msra.mxu0 %v4611
        %5612 = vmatpush.msra.mxu0 %v4606
        %5613 = vmatpush.msra.mxu0 %v4601
        %5614 = vmatpush.msra.mxu0 %v4596
        %5615 = vmatmul.f32.gmra.mxu0 %v4198
        %v5616 = vpop.f32.mrf.mxu0
        %v5617 = vadd.f32 %v5552, %v5616
        %5618 = vmatmul.f32.gmra.mxu0 %v4203
        %v5619 = vpop.f32.mrf.mxu0
        %v5620 = vadd.f32 %v5555, %v5619
        %5621 = vmatmul.f32.gmra.mxu0 %v4208
        %v5622 = vpop.f32.mrf.mxu0
        %v5623 = vadd.f32 %v5558, %v5622
        %5624 = vmatmul.f32.gmra.mxu0 %v4213
        %v5625 = vpop.f32.mrf.mxu0
        %v5626 = vadd.f32 %v5561, %v5625
        %5627 = vmatmul.f32.gmra.mxu0 %v4218
        %v5628 = vpop.f32.mrf.mxu0
        %v5629 = vadd.f32 %v5564, %v5628
        %5630 = vmatmul.f32.gmra.mxu0 %v4223
        %v5631 = vpop.f32.mrf.mxu0
        %v5632 = vadd.f32 %v5567, %v5631
        %5633 = vmatmul.f32.gmra.mxu0 %v4228
        %v5634 = vpop.f32.mrf.mxu0
        %v5635 = vadd.f32 %v5570, %v5634
        %5636 = vmatmul.f32.gmra.mxu0 %v4233
        %v5637 = vpop.f32.mrf.mxu0
        %v5638 = vadd.f32 %v5573, %v5637
        %5639 = vmatmul.f32.gmra.mxu0 %v4238
        %v5640 = vpop.f32.mrf.mxu0
        %v5641 = vadd.f32 %v5576, %v5640
        %5642 = vmatmul.f32.gmra.mxu0 %v4243
        %v5643 = vpop.f32.mrf.mxu0
        %v5644 = vadd.f32 %v5579, %v5643
        %5645 = vmatmul.f32.gmra.mxu0 %v4248
        %v5646 = vpop.f32.mrf.mxu0
        %v5647 = vadd.f32 %v5582, %v5646
        %5648 = vmatmul.f32.gmra.mxu0 %v4253
        %v5649 = vpop.f32.mrf.mxu0
        %v5650 = vadd.f32 %v5585, %v5649
        %5651 = vmatmul.f32.gmra.mxu0 %v4258
        %v5652 = vpop.f32.mrf.mxu0
        %v5653 = vadd.f32 %v5588, %v5652
        %5654 = vmatmul.f32.gmra.mxu0 %v4263
        %v5655 = vpop.f32.mrf.mxu0
        %v5656 = vadd.f32 %v5591, %v5655
        %5657 = vmatmul.f32.gmra.mxu0 %v4268
        %v5658 = vpop.f32.mrf.mxu0
        %v5659 = vadd.f32 %v5594, %v5658
        %5660 = vmatmul.f32.gmra.mxu0 %v4273
        %v5661 = vpop.f32.mrf.mxu0
        %v5662 = vadd.f32 %v5597, %v5661
        %5663 = vdwg.mxu0
        %5664 = vmatpush.msra.mxu0 %v4352
        %5665 = vmatpush.msra.mxu0 %v4347
        %5666 = vmatpush.msra.mxu0 %v4342
        %5667 = vmatpush.msra.mxu0 %v4337
        %5668 = vmatpush.msra.mxu0 %v4332
        %5669 = vmatpush.msra.mxu0 %v4327
        %5670 = vmatpush.msra.mxu0 %v4322
        %5671 = vmatpush.msra.mxu0 %v4317
        %5672 = vmatpush.msra.mxu0 %v4312
        %5673 = vmatpush.msra.mxu0 %v4307
        %5674 = vmatpush.msra.mxu0 %v4302
        %5675 = vmatpush.msra.mxu0 %v4297
        %5676 = vmatpush.msra.mxu0 %v4292
        %5677 = vmatpush.msra.mxu0 %v4287
        %5678 = vmatpush.msra.mxu0 %v4282
        %5679 = vmatpush.msra.mxu0 %v4277
        %5680 = vmatmul.f32.gmra.mxu0 %v4194
        %v5681 = vpop.f32.mrf.mxu0
        %v5682 = vadd.f32 %v4682, %v5681
        %5683 = vmatmul.f32.gmra.mxu0 %v4199
        %v5684 = vpop.f32.mrf.mxu0
        %v5685 = vadd.f32 %v4682, %v5684
        %5686 = vmatmul.f32.gmra.mxu0 %v4204
        %v5687 = vpop.f32.mrf.mxu0
        %v5688 = vadd.f32 %v4682, %v5687
        %5689 = vmatmul.f32.gmra.mxu0 %v4209
        %v5690 = vpop.f32.mrf.mxu0
        %v5691 = vadd.f32 %v4682, %v5690
        %5692 = vmatmul.f32.gmra.mxu0 %v4214
        %v5693 = vpop.f32.mrf.mxu0
        %v5694 = vadd.f32 %v4682, %v5693
        %5695 = vmatmul.f32.gmra.mxu0 %v4219
        %v5696 = vpop.f32.mrf.mxu0
        %v5697 = vadd.f32 %v4682, %v5696
        %5698 = vmatmul.f32.gmra.mxu0 %v4224
        %v5699 = vpop.f32.mrf.mxu0
        %v5700 = vadd.f32 %v4682, %v5699
        %5701 = vmatmul.f32.gmra.mxu0 %v4229
        %v5702 = vpop.f32.mrf.mxu0
        %v5703 = vadd.f32 %v4682, %v5702
        %5704 = vmatmul.f32.gmra.mxu0 %v4234
        %v5705 = vpop.f32.mrf.mxu0
        %v5706 = vadd.f32 %v4682, %v5705
        %5707 = vmatmul.f32.gmra.mxu0 %v4239
        %v5708 = vpop.f32.mrf.mxu0
        %v5709 = vadd.f32 %v4682, %v5708
        %5710 = vmatmul.f32.gmra.mxu0 %v4244
        %v5711 = vpop.f32.mrf.mxu0
        %v5712 = vadd.f32 %v4682, %v5711
        %5713 = vmatmul.f32.gmra.mxu0 %v4249
        %v5714 = vpop.f32.mrf.mxu0
        %v5715 = vadd.f32 %v4682, %v5714
        %5716 = vmatmul.f32.gmra.mxu0 %v4254
        %v5717 = vpop.f32.mrf.mxu0
        %v5718 = vadd.f32 %v4682, %v5717
        %5719 = vmatmul.f32.gmra.mxu0 %v4259
        %v5720 = vpop.f32.mrf.mxu0
        %v5721 = vadd.f32 %v4682, %v5720
        %5722 = vmatmul.f32.gmra.mxu0 %v4264
        %v5723 = vpop.f32.mrf.mxu0
        %v5724 = vadd.f32 %v4682, %v5723
        %5725 = vmatmul.f32.gmra.mxu0 %v4269
        %v5726 = vpop.f32.mrf.mxu0
        %v5727 = vadd.f32 %v4682, %v5726
        %5728 = vdwg.mxu0
        %5729 = vmatpush.msra.mxu0 %v4432
        %5730 = vmatpush.msra.mxu0 %v4427
        %5731 = vmatpush.msra.mxu0 %v4422
        %5732 = vmatpush.msra.mxu0 %v4417
        %5733 = vmatpush.msra.mxu0 %v4412
        %5734 = vmatpush.msra.mxu0 %v4407
        %5735 = vmatpush.msra.mxu0 %v4402
        %5736 = vmatpush.msra.mxu0 %v4397
        %5737 = vmatpush.msra.mxu0 %v4392
        %5738 = vmatpush.msra.mxu0 %v4387
        %5739 = vmatpush.msra.mxu0 %v4382
        %5740 = vmatpush.msra.mxu0 %v4377
        %5741 = vmatpush.msra.mxu0 %v4372
        %5742 = vmatpush.msra.mxu0 %v4367
        %5743 = vmatpush.msra.mxu0 %v4362
        %5744 = vmatpush.msra.mxu0 %v4357
        %5745 = vmatmul.f32.gmra.mxu0 %v4195
        %v5746 = vpop.f32.mrf.mxu0
        %v5747 = vadd.f32 %v5682, %v5746
        %5748 = vmatmul.f32.gmra.mxu0 %v4200
        %v5749 = vpop.f32.mrf.mxu0
        %v5750 = vadd.f32 %v5685, %v5749
        %5751 = vmatmul.f32.gmra.mxu0 %v4205
        %v5752 = vpop.f32.mrf.mxu0
        %v5753 = vadd.f32 %v5688, %v5752
        %5754 = vmatmul.f32.gmra.mxu0 %v4210
        %v5755 = vpop.f32.mrf.mxu0
        %v5756 = vadd.f32 %v5691, %v5755
        %5757 = vmatmul.f32.gmra.mxu0 %v4215
        %v5758 = vpop.f32.mrf.mxu0
        %v5759 = vadd.f32 %v5694, %v5758
        %5760 = vmatmul.f32.gmra.mxu0 %v4220
        %v5761 = vpop.f32.mrf.mxu0
        %v5762 = vadd.f32 %v5697, %v5761
        %5763 = vmatmul.f32.gmra.mxu0 %v4225
        %v5764 = vpop.f32.mrf.mxu0
        %v5765 = vadd.f32 %v5700, %v5764
        %5766 = vmatmul.f32.gmra.mxu0 %v4230
        %v5767 = vpop.f32.mrf.mxu0
        %v5768 = vadd.f32 %v5703, %v5767
        %5769 = vmatmul.f32.gmra.mxu0 %v4235
        %v5770 = vpop.f32.mrf.mxu0
        %v5771 = vadd.f32 %v5706, %v5770
        %5772 = vmatmul.f32.gmra.mxu0 %v4240
        %v5773 = vpop.f32.mrf.mxu0
        %v5774 = vadd.f32 %v5709, %v5773
        %5775 = vmatmul.f32.gmra.mxu0 %v4245
        %v5776 = vpop.f32.mrf.mxu0
        %v5777 = vadd.f32 %v5712, %v5776
        %5778 = vmatmul.f32.gmra.mxu0 %v4250
        %v5779 = vpop.f32.mrf.mxu0
        %v5780 = vadd.f32 %v5715, %v5779
        %5781 = vmatmul.f32.gmra.mxu0 %v4255
        %v5782 = vpop.f32.mrf.mxu0
        %v5783 = vadd.f32 %v5718, %v5782
        %5784 = vmatmul.f32.gmra.mxu0 %v4260
        %v5785 = vpop.f32.mrf.mxu0
        %v5786 = vadd.f32 %v5721, %v5785
        %5787 = vmatmul.f32.gmra.mxu0 %v4265
        %v5788 = vpop.f32.mrf.mxu0
        %v5789 = vadd.f32 %v5724, %v5788
        %5790 = vmatmul.f32.gmra.mxu0 %v4270
        %v5791 = vpop.f32.mrf.mxu0
        %v5792 = vadd.f32 %v5727, %v5791
        %5793 = vdwg.mxu0
        %5794 = vmatpush.msra.mxu0 %v4512
        %5795 = vmatpush.msra.mxu0 %v4507
        %5796 = vmatpush.msra.mxu0 %v4502
        %5797 = vmatpush.msra.mxu0 %v4497
        %5798 = vmatpush.msra.mxu0 %v4492
        %5799 = vmatpush.msra.mxu0 %v4487
        %5800 = vmatpush.msra.mxu0 %v4482
        %5801 = vmatpush.msra.mxu0 %v4477
        %5802 = vmatpush.msra.mxu0 %v4472
        %5803 = vmatpush.msra.mxu0 %v4467
        %5804 = vmatpush.msra.mxu0 %v4462
        %5805 = vmatpush.msra.mxu0 %v4457
        %5806 = vmatpush.msra.mxu0 %v4452
        %5807 = vmatpush.msra.mxu0 %v4447
        %5808 = vmatpush.msra.mxu0 %v4442
        %5809 = vmatpush.msra.mxu0 %v4437
        %5810 = vmatmul.f32.gmra.mxu0 %v4196
        %v5811 = vpop.f32.mrf.mxu0
        %v5812 = vadd.f32 %v5747, %v5811
        %5813 = vmatmul.f32.gmra.mxu0 %v4201
        %v5814 = vpop.f32.mrf.mxu0
        %v5815 = vadd.f32 %v5750, %v5814
        %5816 = vmatmul.f32.gmra.mxu0 %v4206
        %v5817 = vpop.f32.mrf.mxu0
        %v5818 = vadd.f32 %v5753, %v5817
        %5819 = vmatmul.f32.gmra.mxu0 %v4211
        %v5820 = vpop.f32.mrf.mxu0
        %v5821 = vadd.f32 %v5756, %v5820
        %5822 = vmatmul.f32.gmra.mxu0 %v4216
        %v5823 = vpop.f32.mrf.mxu0
        %v5824 = vadd.f32 %v5759, %v5823
        %5825 = vmatmul.f32.gmra.mxu0 %v4221
        %v5826 = vpop.f32.mrf.mxu0
        %v5827 = vadd.f32 %v5762, %v5826
        %5828 = vmatmul.f32.gmra.mxu0 %v4226
        %v5829 = vpop.f32.mrf.mxu0
        %v5830 = vadd.f32 %v5765, %v5829
        %5831 = vmatmul.f32.gmra.mxu0 %v4231
        %v5832 = vpop.f32.mrf.mxu0
        %v5833 = vadd.f32 %v5768, %v5832
        %5834 = vmatmul.f32.gmra.mxu0 %v4236
        %v5835 = vpop.f32.mrf.mxu0
        %v5836 = vadd.f32 %v5771, %v5835
        %5837 = vmatmul.f32.gmra.mxu0 %v4241
        %v5838 = vpop.f32.mrf.mxu0
        %v5839 = vadd.f32 %v5774, %v5838
        %5840 = vmatmul.f32.gmra.mxu0 %v4246
        %v5841 = vpop.f32.mrf.mxu0
        %v5842 = vadd.f32 %v5777, %v5841
        %5843 = vmatmul.f32.gmra.mxu0 %v4251
        %v5844 = vpop.f32.mrf.mxu0
        %v5845 = vadd.f32 %v5780, %v5844
        %5846 = vmatmul.f32.gmra.mxu0 %v4256
        %v5847 = vpop.f32.mrf.mxu0
        %v5848 = vadd.f32 %v5783, %v5847
        %5849 = vmatmul.f32.gmra.mxu0 %v4261
        %v5850 = vpop.f32.mrf.mxu0
        %v5851 = vadd.f32 %v5786, %v5850
        %5852 = vmatmul.f32.gmra.mxu0 %v4266
        %v5853 = vpop.f32.mrf.mxu0
        %v5854 = vadd.f32 %v5789, %v5853
        %5855 = vmatmul.f32.gmra.mxu0 %v4271
        %v5856 = vpop.f32.mrf.mxu0
        %v5857 = vadd.f32 %v5792, %v5856
        %5858 = vdwg.mxu0
        %5859 = vmatpush.msra.mxu0 %v4592
        %5860 = vmatpush.msra.mxu0 %v4587
        %5861 = vmatpush.msra.mxu0 %v4582
        %5862 = vmatpush.msra.mxu0 %v4577
        %5863 = vmatpush.msra.mxu0 %v4572
        %5864 = vmatpush.msra.mxu0 %v4567
        %5865 = vmatpush.msra.mxu0 %v4562
        %5866 = vmatpush.msra.mxu0 %v4557
        %5867 = vmatpush.msra.mxu0 %v4552
        %5868 = vmatpush.msra.mxu0 %v4547
        %5869 = vmatpush.msra.mxu0 %v4542
        %5870 = vmatpush.msra.mxu0 %v4537
        %5871 = vmatpush.msra.mxu0 %v4532
        %5872 = vmatpush.msra.mxu0 %v4527
        %5873 = vmatpush.msra.mxu0 %v4522
        %5874 = vmatpush.msra.mxu0 %v4517
        %5875 = vmatmul.f32.gmra.mxu0 %v4197
        %v5876 = vpop.f32.mrf.mxu0
        %v5877 = vadd.f32 %v5812, %v5876
        %5878 = vmatmul.f32.gmra.mxu0 %v4202
        %v5879 = vpop.f32.mrf.mxu0
        %v5880 = vadd.f32 %v5815, %v5879
        %5881 = vmatmul.f32.gmra.mxu0 %v4207
        %v5882 = vpop.f32.mrf.mxu0
        %v5883 = vadd.f32 %v5818, %v5882
        %5884 = vmatmul.f32.gmra.mxu0 %v4212
        %v5885 = vpop.f32.mrf.mxu0
        %v5886 = vadd.f32 %v5821, %v5885
        %5887 = vmatmul.f32.gmra.mxu0 %v4217
        %v5888 = vpop.f32.mrf.mxu0
        %v5889 = vadd.f32 %v5824, %v5888
        %5890 = vmatmul.f32.gmra.mxu0 %v4222
        %v5891 = vpop.f32.mrf.mxu0
        %v5892 = vadd.f32 %v5827, %v5891
        %5893 = vmatmul.f32.gmra.mxu0 %v4227
        %v5894 = vpop.f32.mrf.mxu0
        %v5895 = vadd.f32 %v5830, %v5894
        %5896 = vmatmul.f32.gmra.mxu0 %v4232
        %v5897 = vpop.f32.mrf.mxu0
        %v5898 = vadd.f32 %v5833, %v5897
        %5899 = vmatmul.f32.gmra.mxu0 %v4237
        %v5900 = vpop.f32.mrf.mxu0
        %v5901 = vadd.f32 %v5836, %v5900
        %5902 = vmatmul.f32.gmra.mxu0 %v4242
        %v5903 = vpop.f32.mrf.mxu0
        %v5904 = vadd.f32 %v5839, %v5903
        %5905 = vmatmul.f32.gmra.mxu0 %v4247
        %v5906 = vpop.f32.mrf.mxu0
        %v5907 = vadd.f32 %v5842, %v5906
        %5908 = vmatmul.f32.gmra.mxu0 %v4252
        %v5909 = vpop.f32.mrf.mxu0
        %v5910 = vadd.f32 %v5845, %v5909
        %5911 = vmatmul.f32.gmra.mxu0 %v4257
        %v5912 = vpop.f32.mrf.mxu0
        %v5913 = vadd.f32 %v5848, %v5912
        %5914 = vmatmul.f32.gmra.mxu0 %v4262
        %v5915 = vpop.f32.mrf.mxu0
        %v5916 = vadd.f32 %v5851, %v5915
        %5917 = vmatmul.f32.gmra.mxu0 %v4267
        %v5918 = vpop.f32.mrf.mxu0
        %v5919 = vadd.f32 %v5854, %v5918
        %5920 = vmatmul.f32.gmra.mxu0 %v4272
        %v5921 = vpop.f32.mrf.mxu0
        %v5922 = vadd.f32 %v5857, %v5921
        %5923 = vdwg.mxu0
        %5924 = vmatpush.msra.mxu0 %v4672
        %5925 = vmatpush.msra.mxu0 %v4667
        %5926 = vmatpush.msra.mxu0 %v4662
        %5927 = vmatpush.msra.mxu0 %v4657
        %5928 = vmatpush.msra.mxu0 %v4652
        %5929 = vmatpush.msra.mxu0 %v4647
        %5930 = vmatpush.msra.mxu0 %v4642
        %5931 = vmatpush.msra.mxu0 %v4637
        %5932 = vmatpush.msra.mxu0 %v4632
        %5933 = vmatpush.msra.mxu0 %v4627
        %5934 = vmatpush.msra.mxu0 %v4622
        %5935 = vmatpush.msra.mxu0 %v4617
        %5936 = vmatpush.msra.mxu0 %v4612
        %5937 = vmatpush.msra.mxu0 %v4607
        %5938 = vmatpush.msra.mxu0 %v4602
        %5939 = vmatpush.msra.mxu0 %v4597
        %5940 = vmatmul.f32.gmra.mxu0 %v4198
        %v5941 = vpop.f32.mrf.mxu0
        %v5942 = vadd.f32 %v5877, %v5941
        %5943 = vmatmul.f32.gmra.mxu0 %v4203
        %v5944 = vpop.f32.mrf.mxu0
        %v5945 = vadd.f32 %v5880, %v5944
        %5946 = vmatmul.f32.gmra.mxu0 %v4208
        %v5947 = vpop.f32.mrf.mxu0
        %v5948 = vadd.f32 %v5883, %v5947
        %5949 = vmatmul.f32.gmra.mxu0 %v4213
        %v5950 = vpop.f32.mrf.mxu0
        %v5951 = vadd.f32 %v5886, %v5950
        %5952 = vmatmul.f32.gmra.mxu0 %v4218
        %v5953 = vpop.f32.mrf.mxu0
        %v5954 = vadd.f32 %v5889, %v5953
        %5955 = vmatmul.f32.gmra.mxu0 %v4223
        %v5956 = vpop.f32.mrf.mxu0
        %v5957 = vadd.f32 %v5892, %v5956
        %5958 = vmatmul.f32.gmra.mxu0 %v4228
        %v5959 = vpop.f32.mrf.mxu0
        %v5960 = vadd.f32 %v5895, %v5959
        %5961 = vmatmul.f32.gmra.mxu0 %v4233
        %v5962 = vpop.f32.mrf.mxu0
        %v5963 = vadd.f32 %v5898, %v5962
        %5964 = vmatmul.f32.gmra.mxu0 %v4238
        %v5965 = vpop.f32.mrf.mxu0
        %v5966 = vadd.f32 %v5901, %v5965
        %5967 = vmatmul.f32.gmra.mxu0 %v4243
        %v5968 = vpop.f32.mrf.mxu0
        %v5969 = vadd.f32 %v5904, %v5968
        %5970 = vmatmul.f32.gmra.mxu0 %v4248
        %v5971 = vpop.f32.mrf.mxu0
        %v5972 = vadd.f32 %v5907, %v5971
        %5973 = vmatmul.f32.gmra.mxu0 %v4253
        %v5974 = vpop.f32.mrf.mxu0
        %v5975 = vadd.f32 %v5910, %v5974
        %5976 = vmatmul.f32.gmra.mxu0 %v4258
        %v5977 = vpop.f32.mrf.mxu0
        %v5978 = vadd.f32 %v5913, %v5977
        %5979 = vmatmul.f32.gmra.mxu0 %v4263
        %v5980 = vpop.f32.mrf.mxu0
        %v5981 = vadd.f32 %v5916, %v5980
        %5982 = vmatmul.f32.gmra.mxu0 %v4268
        %v5983 = vpop.f32.mrf.mxu0
        %v5984 = vadd.f32 %v5919, %v5983
        %5985 = vmatmul.f32.gmra.mxu0 %v4273
        %v5986 = vpop.f32.mrf.mxu0
        %v5987 = vadd.f32 %v5922, %v5986
        %5988 = vdwg.mxu0
        %5989 = vmatpush.msra.mxu0 %v4353
        %5990 = vmatpush.msra.mxu0 %v4348
        %5991 = vmatpush.msra.mxu0 %v4343
        %5992 = vmatpush.msra.mxu0 %v4338
        %5993 = vmatpush.msra.mxu0 %v4333
        %5994 = vmatpush.msra.mxu0 %v4328
        %5995 = vmatpush.msra.mxu0 %v4323
        %5996 = vmatpush.msra.mxu0 %v4318
        %5997 = vmatpush.msra.mxu0 %v4313
        %5998 = vmatpush.msra.mxu0 %v4308
        %5999 = vmatpush.msra.mxu0 %v4303
        %6000 = vmatpush.msra.mxu0 %v4298
        %6001 = vmatpush.msra.mxu0 %v4293
        %6002 = vmatpush.msra.mxu0 %v4288
        %6003 = vmatpush.msra.mxu0 %v4283
        %6004 = vmatpush.msra.mxu0 %v4278
        %6005 = vmatmul.f32.gmra.mxu0 %v4194
        %v6006 = vpop.f32.mrf.mxu0
        %v6007 = vadd.f32 %v4683, %v6006
        %6008 = vmatmul.f32.gmra.mxu0 %v4199
        %v6009 = vpop.f32.mrf.mxu0
        %v6010 = vadd.f32 %v4683, %v6009
        %6011 = vmatmul.f32.gmra.mxu0 %v4204
        %v6012 = vpop.f32.mrf.mxu0
        %v6013 = vadd.f32 %v4683, %v6012
        %6014 = vmatmul.f32.gmra.mxu0 %v4209
        %v6015 = vpop.f32.mrf.mxu0
        %v6016 = vadd.f32 %v4683, %v6015
        %6017 = vmatmul.f32.gmra.mxu0 %v4214
        %v6018 = vpop.f32.mrf.mxu0
        %v6019 = vadd.f32 %v4683, %v6018
        %6020 = vmatmul.f32.gmra.mxu0 %v4219
        %v6021 = vpop.f32.mrf.mxu0
        %v6022 = vadd.f32 %v4683, %v6021
        %6023 = vmatmul.f32.gmra.mxu0 %v4224
        %v6024 = vpop.f32.mrf.mxu0
        %v6025 = vadd.f32 %v4683, %v6024
        %6026 = vmatmul.f32.gmra.mxu0 %v4229
        %v6027 = vpop.f32.mrf.mxu0
        %v6028 = vadd.f32 %v4683, %v6027
        %6029 = vmatmul.f32.gmra.mxu0 %v4234
        %v6030 = vpop.f32.mrf.mxu0
        %v6031 = vadd.f32 %v4683, %v6030
        %6032 = vmatmul.f32.gmra.mxu0 %v4239
        %v6033 = vpop.f32.mrf.mxu0
        %v6034 = vadd.f32 %v4683, %v6033
        %6035 = vmatmul.f32.gmra.mxu0 %v4244
        %v6036 = vpop.f32.mrf.mxu0
        %v6037 = vadd.f32 %v4683, %v6036
        %6038 = vmatmul.f32.gmra.mxu0 %v4249
        %v6039 = vpop.f32.mrf.mxu0
        %v6040 = vadd.f32 %v4683, %v6039
        %6041 = vmatmul.f32.gmra.mxu0 %v4254
        %v6042 = vpop.f32.mrf.mxu0
        %v6043 = vadd.f32 %v4683, %v6042
        %6044 = vmatmul.f32.gmra.mxu0 %v4259
        %v6045 = vpop.f32.mrf.mxu0
        %v6046 = vadd.f32 %v4683, %v6045
        %6047 = vmatmul.f32.gmra.mxu0 %v4264
        %v6048 = vpop.f32.mrf.mxu0
        %v6049 = vadd.f32 %v4683, %v6048
        %6050 = vmatmul.f32.gmra.mxu0 %v4269
        %v6051 = vpop.f32.mrf.mxu0
        %v6052 = vadd.f32 %v4683, %v6051
        %6053 = vdwg.mxu0
        %6054 = vmatpush.msra.mxu0 %v4433
        %6055 = vmatpush.msra.mxu0 %v4428
        %6056 = vmatpush.msra.mxu0 %v4423
        %6057 = vmatpush.msra.mxu0 %v4418
        %6058 = vmatpush.msra.mxu0 %v4413
        %6059 = vmatpush.msra.mxu0 %v4408
        %6060 = vmatpush.msra.mxu0 %v4403
        %6061 = vmatpush.msra.mxu0 %v4398
        %6062 = vmatpush.msra.mxu0 %v4393
        %6063 = vmatpush.msra.mxu0 %v4388
        %6064 = vmatpush.msra.mxu0 %v4383
        %6065 = vmatpush.msra.mxu0 %v4378
        %6066 = vmatpush.msra.mxu0 %v4373
        %6067 = vmatpush.msra.mxu0 %v4368
        %6068 = vmatpush.msra.mxu0 %v4363
        %6069 = vmatpush.msra.mxu0 %v4358
        %6070 = vmatmul.f32.gmra.mxu0 %v4195
        %v6071 = vpop.f32.mrf.mxu0
        %v6072 = vadd.f32 %v6007, %v6071
        %6073 = vmatmul.f32.gmra.mxu0 %v4200
        %v6074 = vpop.f32.mrf.mxu0
        %v6075 = vadd.f32 %v6010, %v6074
        %6076 = vmatmul.f32.gmra.mxu0 %v4205
        %v6077 = vpop.f32.mrf.mxu0
        %v6078 = vadd.f32 %v6013, %v6077
        %6079 = vmatmul.f32.gmra.mxu0 %v4210
        %v6080 = vpop.f32.mrf.mxu0
        %v6081 = vadd.f32 %v6016, %v6080
        %6082 = vmatmul.f32.gmra.mxu0 %v4215
        %v6083 = vpop.f32.mrf.mxu0
        %v6084 = vadd.f32 %v6019, %v6083
        %6085 = vmatmul.f32.gmra.mxu0 %v4220
        %v6086 = vpop.f32.mrf.mxu0
        %v6087 = vadd.f32 %v6022, %v6086
        %6088 = vmatmul.f32.gmra.mxu0 %v4225
        %v6089 = vpop.f32.mrf.mxu0
        %v6090 = vadd.f32 %v6025, %v6089
        %6091 = vmatmul.f32.gmra.mxu0 %v4230
        %v6092 = vpop.f32.mrf.mxu0
        %v6093 = vadd.f32 %v6028, %v6092
        %6094 = vmatmul.f32.gmra.mxu0 %v4235
        %v6095 = vpop.f32.mrf.mxu0
        %v6096 = vadd.f32 %v6031, %v6095
        %6097 = vmatmul.f32.gmra.mxu0 %v4240
        %v6098 = vpop.f32.mrf.mxu0
        %v6099 = vadd.f32 %v6034, %v6098
        %6100 = vmatmul.f32.gmra.mxu0 %v4245
        %v6101 = vpop.f32.mrf.mxu0
        %v6102 = vadd.f32 %v6037, %v6101
        %6103 = vmatmul.f32.gmra.mxu0 %v4250
        %v6104 = vpop.f32.mrf.mxu0
        %v6105 = vadd.f32 %v6040, %v6104
        %6106 = vmatmul.f32.gmra.mxu0 %v4255
        %v6107 = vpop.f32.mrf.mxu0
        %v6108 = vadd.f32 %v6043, %v6107
        %6109 = vmatmul.f32.gmra.mxu0 %v4260
        %v6110 = vpop.f32.mrf.mxu0
        %v6111 = vadd.f32 %v6046, %v6110
        %6112 = vmatmul.f32.gmra.mxu0 %v4265
        %v6113 = vpop.f32.mrf.mxu0
        %v6114 = vadd.f32 %v6049, %v6113
        %6115 = vmatmul.f32.gmra.mxu0 %v4270
        %v6116 = vpop.f32.mrf.mxu0
        %v6117 = vadd.f32 %v6052, %v6116
        %6118 = vdwg.mxu0
        %6119 = vmatpush.msra.mxu0 %v4513
        %6120 = vmatpush.msra.mxu0 %v4508
        %6121 = vmatpush.msra.mxu0 %v4503
        %6122 = vmatpush.msra.mxu0 %v4498
        %6123 = vmatpush.msra.mxu0 %v4493
        %6124 = vmatpush.msra.mxu0 %v4488
        %6125 = vmatpush.msra.mxu0 %v4483
        %6126 = vmatpush.msra.mxu0 %v4478
        %6127 = vmatpush.msra.mxu0 %v4473
        %6128 = vmatpush.msra.mxu0 %v4468
        %6129 = vmatpush.msra.mxu0 %v4463
        %6130 = vmatpush.msra.mxu0 %v4458
        %6131 = vmatpush.msra.mxu0 %v4453
        %6132 = vmatpush.msra.mxu0 %v4448
        %6133 = vmatpush.msra.mxu0 %v4443
        %6134 = vmatpush.msra.mxu0 %v4438
        %6135 = vmatmul.f32.gmra.mxu0 %v4196
        %v6136 = vpop.f32.mrf.mxu0
        %v6137 = vadd.f32 %v6072, %v6136
        %6138 = vmatmul.f32.gmra.mxu0 %v4201
        %v6139 = vpop.f32.mrf.mxu0
        %v6140 = vadd.f32 %v6075, %v6139
        %6141 = vmatmul.f32.gmra.mxu0 %v4206
        %v6142 = vpop.f32.mrf.mxu0
        %v6143 = vadd.f32 %v6078, %v6142
        %6144 = vmatmul.f32.gmra.mxu0 %v4211
        %v6145 = vpop.f32.mrf.mxu0
        %v6146 = vadd.f32 %v6081, %v6145
        %6147 = vmatmul.f32.gmra.mxu0 %v4216
        %v6148 = vpop.f32.mrf.mxu0
        %v6149 = vadd.f32 %v6084, %v6148
        %6150 = vmatmul.f32.gmra.mxu0 %v4221
        %v6151 = vpop.f32.mrf.mxu0
        %v6152 = vadd.f32 %v6087, %v6151
        %6153 = vmatmul.f32.gmra.mxu0 %v4226
        %v6154 = vpop.f32.mrf.mxu0
        %v6155 = vadd.f32 %v6090, %v6154
        %6156 = vmatmul.f32.gmra.mxu0 %v4231
        %v6157 = vpop.f32.mrf.mxu0
        %v6158 = vadd.f32 %v6093, %v6157
        %6159 = vmatmul.f32.gmra.mxu0 %v4236
        %v6160 = vpop.f32.mrf.mxu0
        %v6161 = vadd.f32 %v6096, %v6160
        %6162 = vmatmul.f32.gmra.mxu0 %v4241
        %v6163 = vpop.f32.mrf.mxu0
        %v6164 = vadd.f32 %v6099, %v6163
        %6165 = vmatmul.f32.gmra.mxu0 %v4246
        %v6166 = vpop.f32.mrf.mxu0
        %v6167 = vadd.f32 %v6102, %v6166
        %6168 = vmatmul.f32.gmra.mxu0 %v4251
        %v6169 = vpop.f32.mrf.mxu0
        %v6170 = vadd.f32 %v6105, %v6169
        %6171 = vmatmul.f32.gmra.mxu0 %v4256
        %v6172 = vpop.f32.mrf.mxu0
        %v6173 = vadd.f32 %v6108, %v6172
        %6174 = vmatmul.f32.gmra.mxu0 %v4261
        %v6175 = vpop.f32.mrf.mxu0
        %v6176 = vadd.f32 %v6111, %v6175
        %6177 = vmatmul.f32.gmra.mxu0 %v4266
        %v6178 = vpop.f32.mrf.mxu0
        %v6179 = vadd.f32 %v6114, %v6178
        %6180 = vmatmul.f32.gmra.mxu0 %v4271
        %v6181 = vpop.f32.mrf.mxu0
        %v6182 = vadd.f32 %v6117, %v6181
        %6183 = vdwg.mxu0
        %6184 = vmatpush.msra.mxu0 %v4593
        %6185 = vmatpush.msra.mxu0 %v4588
        %6186 = vmatpush.msra.mxu0 %v4583
        %6187 = vmatpush.msra.mxu0 %v4578
        %6188 = vmatpush.msra.mxu0 %v4573
        %6189 = vmatpush.msra.mxu0 %v4568
        %6190 = vmatpush.msra.mxu0 %v4563
        %6191 = vmatpush.msra.mxu0 %v4558
        %6192 = vmatpush.msra.mxu0 %v4553
        %6193 = vmatpush.msra.mxu0 %v4548
        %6194 = vmatpush.msra.mxu0 %v4543
        %6195 = vmatpush.msra.mxu0 %v4538
        %6196 = vmatpush.msra.mxu0 %v4533
        %6197 = vmatpush.msra.mxu0 %v4528
        %6198 = vmatpush.msra.mxu0 %v4523
        %6199 = vmatpush.msra.mxu0 %v4518
        %6200 = vmatmul.f32.gmra.mxu0 %v4197
        %v6201 = vpop.f32.mrf.mxu0
        %v6202 = vadd.f32 %v6137, %v6201
        %6203 = vmatmul.f32.gmra.mxu0 %v4202
        %v6204 = vpop.f32.mrf.mxu0
        %v6205 = vadd.f32 %v6140, %v6204
        %6206 = vmatmul.f32.gmra.mxu0 %v4207
        %v6207 = vpop.f32.mrf.mxu0
        %v6208 = vadd.f32 %v6143, %v6207
        %6209 = vmatmul.f32.gmra.mxu0 %v4212
        %v6210 = vpop.f32.mrf.mxu0
        %v6211 = vadd.f32 %v6146, %v6210
        %6212 = vmatmul.f32.gmra.mxu0 %v4217
        %v6213 = vpop.f32.mrf.mxu0
        %v6214 = vadd.f32 %v6149, %v6213
        %6215 = vmatmul.f32.gmra.mxu0 %v4222
        %v6216 = vpop.f32.mrf.mxu0
        %v6217 = vadd.f32 %v6152, %v6216
        %6218 = vmatmul.f32.gmra.mxu0 %v4227
        %v6219 = vpop.f32.mrf.mxu0
        %v6220 = vadd.f32 %v6155, %v6219
        %6221 = vmatmul.f32.gmra.mxu0 %v4232
        %v6222 = vpop.f32.mrf.mxu0
        %v6223 = vadd.f32 %v6158, %v6222
        %6224 = vmatmul.f32.gmra.mxu0 %v4237
        %v6225 = vpop.f32.mrf.mxu0
        %v6226 = vadd.f32 %v6161, %v6225
        %6227 = vmatmul.f32.gmra.mxu0 %v4242
        %v6228 = vpop.f32.mrf.mxu0
        %v6229 = vadd.f32 %v6164, %v6228
        %6230 = vmatmul.f32.gmra.mxu0 %v4247
        %v6231 = vpop.f32.mrf.mxu0
        %v6232 = vadd.f32 %v6167, %v6231
        %6233 = vmatmul.f32.gmra.mxu0 %v4252
        %v6234 = vpop.f32.mrf.mxu0
        %v6235 = vadd.f32 %v6170, %v6234
        %6236 = vmatmul.f32.gmra.mxu0 %v4257
        %v6237 = vpop.f32.mrf.mxu0
        %v6238 = vadd.f32 %v6173, %v6237
        %6239 = vmatmul.f32.gmra.mxu0 %v4262
        %v6240 = vpop.f32.mrf.mxu0
        %v6241 = vadd.f32 %v6176, %v6240
        %6242 = vmatmul.f32.gmra.mxu0 %v4267
        %v6243 = vpop.f32.mrf.mxu0
        %v6244 = vadd.f32 %v6179, %v6243
        %6245 = vmatmul.f32.gmra.mxu0 %v4272
        %v6246 = vpop.f32.mrf.mxu0
        %v6247 = vadd.f32 %v6182, %v6246
        %6248 = vdwg.mxu0
        %6249 = vmatpush.msra.mxu0 %v4673
        %6250 = vmatpush.msra.mxu0 %v4668
        %6251 = vmatpush.msra.mxu0 %v4663
        %6252 = vmatpush.msra.mxu0 %v4658
        %6253 = vmatpush.msra.mxu0 %v4653
        %6254 = vmatpush.msra.mxu0 %v4648
        %6255 = vmatpush.msra.mxu0 %v4643
        %6256 = vmatpush.msra.mxu0 %v4638
        %6257 = vmatpush.msra.mxu0 %v4633
        %6258 = vmatpush.msra.mxu0 %v4628
        %6259 = vmatpush.msra.mxu0 %v4623
        %6260 = vmatpush.msra.mxu0 %v4618
        %6261 = vmatpush.msra.mxu0 %v4613
        %6262 = vmatpush.msra.mxu0 %v4608
        %6263 = vmatpush.msra.mxu0 %v4603
        %6264 = vmatpush.msra.mxu0 %v4598
        %6265 = vmatmul.f32.gmra.mxu0 %v4198
        %v6266 = vpop.f32.mrf.mxu0
        %v6267 = vadd.f32 %v6202, %v6266
        %6268 = vmatmul.f32.gmra.mxu0 %v4203
        %v6269 = vpop.f32.mrf.mxu0
        %v6270 = vadd.f32 %v6205, %v6269
        %6271 = vmatmul.f32.gmra.mxu0 %v4208
        %v6272 = vpop.f32.mrf.mxu0
        %v6273 = vadd.f32 %v6208, %v6272
        %6274 = vmatmul.f32.gmra.mxu0 %v4213
        %v6275 = vpop.f32.mrf.mxu0
        %v6276 = vadd.f32 %v6211, %v6275
        %6277 = vmatmul.f32.gmra.mxu0 %v4218
        %v6278 = vpop.f32.mrf.mxu0
        %v6279 = vadd.f32 %v6214, %v6278
        %6280 = vmatmul.f32.gmra.mxu0 %v4223
        %v6281 = vpop.f32.mrf.mxu0
        %v6282 = vadd.f32 %v6217, %v6281
        %6283 = vmatmul.f32.gmra.mxu0 %v4228
        %v6284 = vpop.f32.mrf.mxu0
        %v6285 = vadd.f32 %v6220, %v6284
        %6286 = vmatmul.f32.gmra.mxu0 %v4233
        %v6287 = vpop.f32.mrf.mxu0
        %v6288 = vadd.f32 %v6223, %v6287
        %6289 = vmatmul.f32.gmra.mxu0 %v4238
        %v6290 = vpop.f32.mrf.mxu0
        %v6291 = vadd.f32 %v6226, %v6290
        %6292 = vmatmul.f32.gmra.mxu0 %v4243
        %v6293 = vpop.f32.mrf.mxu0
        %v6294 = vadd.f32 %v6229, %v6293
        %6295 = vmatmul.f32.gmra.mxu0 %v4248
        %v6296 = vpop.f32.mrf.mxu0
        %v6297 = vadd.f32 %v6232, %v6296
        %6298 = vmatmul.f32.gmra.mxu0 %v4253
        %v6299 = vpop.f32.mrf.mxu0
        %v6300 = vadd.f32 %v6235, %v6299
        %6301 = vmatmul.f32.gmra.mxu0 %v4258
        %v6302 = vpop.f32.mrf.mxu0
        %v6303 = vadd.f32 %v6238, %v6302
        %6304 = vmatmul.f32.gmra.mxu0 %v4263
        %v6305 = vpop.f32.mrf.mxu0
        %v6306 = vadd.f32 %v6241, %v6305
        %6307 = vmatmul.f32.gmra.mxu0 %v4268
        %v6308 = vpop.f32.mrf.mxu0
        %v6309 = vadd.f32 %v6244, %v6308
        %6310 = vmatmul.f32.gmra.mxu0 %v4273
        %v6311 = vpop.f32.mrf.mxu0
        %v6312 = vadd.f32 %v6247, %v6311
        %6313 = vdwg.mxu0
        %v6314 = vmax.f32 %v4967, 0.0
        %v6315 = vmax.f32 %v5292, 0.0
        %v6316 = vmax.f32 %v5617, 0.0
        %v6317 = vmax.f32 %v5942, 0.0
        %v6318 = vmax.f32 %v6267, 0.0
        %v6319 = vmax.f32 %v4970, 0.0
        %v6320 = vmax.f32 %v5295, 0.0
        %v6321 = vmax.f32 %v5620, 0.0
        %v6322 = vmax.f32 %v5945, 0.0
        %v6323 = vmax.f32 %v6270, 0.0
        %v6324 = vmax.f32 %v4973, 0.0
        %v6325 = vmax.f32 %v5298, 0.0
        %v6326 = vmax.f32 %v5623, 0.0
        %v6327 = vmax.f32 %v5948, 0.0
        %v6328 = vmax.f32 %v6273, 0.0
        %v6329 = vmax.f32 %v4976, 0.0
        %v6330 = vmax.f32 %v5301, 0.0
        %v6331 = vmax.f32 %v5626, 0.0
        %v6332 = vmax.f32 %v5951, 0.0
        %v6333 = vmax.f32 %v6276, 0.0
        %v6334 = vmax.f32 %v4979, 0.0
        %v6335 = vmax.f32 %v5304, 0.0
        %v6336 = vmax.f32 %v5629, 0.0
        %v6337 = vmax.f32 %v5954, 0.0
        %v6338 = vmax.f32 %v6279, 0.0
        %v6339 = vmax.f32 %v4982, 0.0
        %v6340 = vmax.f32 %v5307, 0.0
        %v6341 = vmax.f32 %v5632, 0.0
        %v6342 = vmax.f32 %v5957, 0.0
        %v6343 = vmax.f32 %v6282, 0.0
        %v6344 = vmax.f32 %v4985, 0.0
        %v6345 = vmax.f32 %v5310, 0.0
        %v6346 = vmax.f32 %v5635, 0.0
        %v6347 = vmax.f32 %v5960, 0.0
        %v6348 = vmax.f32 %v6285, 0.0
        %v6349 = vmax.f32 %v4988, 0.0
        %v6350 = vmax.f32 %v5313, 0.0
        %v6351 = vmax.f32 %v5638, 0.0
        %v6352 = vmax.f32 %v5963, 0.0
        %v6353 = vmax.f32 %v6288, 0.0
        %v6354 = vmax.f32 %v4991, 0.0
        %v6355 = vmax.f32 %v5316, 0.0
        %v6356 = vmax.f32 %v5641, 0.0
        %v6357 = vmax.f32 %v5966, 0.0
        %v6358 = vmax.f32 %v6291, 0.0
        %v6359 = vmax.f32 %v4994, 0.0
        %v6360 = vmax.f32 %v5319, 0.0
        %v6361 = vmax.f32 %v5644, 0.0
        %v6362 = vmax.f32 %v5969, 0.0
        %v6363 = vmax.f32 %v6294, 0.0
        %v6364 = vmax.f32 %v4997, 0.0
        %v6365 = vmax.f32 %v5322, 0.0
        %v6366 = vmax.f32 %v5647, 0.0
        %v6367 = vmax.f32 %v5972, 0.0
        %v6368 = vmax.f32 %v6297, 0.0
        %v6369 = vmax.f32 %v5000, 0.0
        %v6370 = vmax.f32 %v5325, 0.0
        %v6371 = vmax.f32 %v5650, 0.0
        %v6372 = vmax.f32 %v5975, 0.0
        %v6373 = vmax.f32 %v6300, 0.0
        %v6374 = vmax.f32 %v5003, 0.0
        %v6375 = vmax.f32 %v5328, 0.0
        %v6376 = vmax.f32 %v5653, 0.0
        %v6377 = vmax.f32 %v5978, 0.0
        %v6378 = vmax.f32 %v6303, 0.0
        %v6379 = vmax.f32 %v5006, 0.0
        %v6380 = vmax.f32 %v5331, 0.0
        %v6381 = vmax.f32 %v5656, 0.0
        %v6382 = vmax.f32 %v5981, 0.0
        %v6383 = vmax.f32 %v6306, 0.0
        %v6384 = vmax.f32 %v5009, 0.0
        %v6385 = vmax.f32 %v5334, 0.0
        %v6386 = vmax.f32 %v5659, 0.0
        %v6387 = vmax.f32 %v5984, 0.0
        %v6388 = vmax.f32 %v6309, 0.0
        %v6389 = vmax.f32 %v5012, 0.0
        %v6390 = vmax.f32 %v5337, 0.0
        %v6391 = vmax.f32 %v5662, 0.0
        %v6392 = vmax.f32 %v5987, 0.0
        %v6393 = vmax.f32 %v6312, 0.0
        %v6394 = vld [vmem:[#allocation12] sm:$0xff]
        %v6395 = vld [vmem:[#allocation12 + $0x8] sm:$0xff]
        %v6396 = vld [vmem:[#allocation12 + $0x10] sm:$0xff]
        %v6397 = vld [vmem:[#allocation12 + $0x18] sm:$0xff]
        %v6398 = vld [vmem:[#allocation12 + $0x20] sm:$0xff]
        %v6399 = vld [vmem:[#allocation12 + $0x28] sm:$0xff]
        %v6400 = vld [vmem:[#allocation12 + $0x30] sm:$0xff]
        %v6401 = vld [vmem:[#allocation12 + $0x38] sm:$0xff]
        %v6402 = vld [vmem:[#allocation12 + $0x40] sm:$0xff]
        %v6403 = vld [vmem:[#allocation12 + $0x48] sm:$0xff]
        %v6404 = vld [vmem:[#allocation12 + $0x50] sm:$0xff]
        %v6405 = vld [vmem:[#allocation12 + $0x58] sm:$0xff]
        %v6406 = vld [vmem:[#allocation12 + $0x60] sm:$0xff]
        %v6407 = vld [vmem:[#allocation12 + $0x68] sm:$0xff]
        %v6408 = vld [vmem:[#allocation12 + $0x70] sm:$0xff]
        %v6409 = vld [vmem:[#allocation12 + $0x78] sm:$0xff]
        %v6410 = vld [vmem:[#allocation12 + $0x80] sm:$0xff]
        %v6411 = vld [vmem:[#allocation12 + $0x88] sm:$0xff]
        %v6412 = vld [vmem:[#allocation12 + $0x90] sm:$0xff]
        %v6413 = vld [vmem:[#allocation12 + $0x98] sm:$0xff]
        %v6414 = vld [vmem:[#allocation12 + $0xa0] sm:$0xff]
        %v6415 = vld [vmem:[#allocation12 + $0xa8] sm:$0xff]
        %v6416 = vld [vmem:[#allocation12 + $0xb0] sm:$0xff]
        %v6417 = vld [vmem:[#allocation12 + $0xb8] sm:$0xff]
        %v6418 = vld [vmem:[#allocation12 + $0xc0] sm:$0xff]
        %v6419 = vld [vmem:[#allocation12 + $0xc8] sm:$0xff]
        %v6420 = vld [vmem:[#allocation12 + $0xd0] sm:$0xff]
        %v6421 = vld [vmem:[#allocation12 + $0xd8] sm:$0xff]
        %v6422 = vld [vmem:[#allocation12 + $0xe0] sm:$0xff]
        %v6423 = vld [vmem:[#allocation12 + $0xe8] sm:$0xff]
        %v6424 = vld [vmem:[#allocation12 + $0xf0] sm:$0xff]
        %v6425 = vld [vmem:[#allocation12 + $0xf8] sm:$0xff]
        %v6426 = vld [vmem:[#allocation12 + $0x100] sm:$0xff]
        %v6427 = vld [vmem:[#allocation12 + $0x108] sm:$0xff]
        %v6428 = vld [vmem:[#allocation12 + $0x110] sm:$0xff]
        %v6429 = vld [vmem:[#allocation12 + $0x118] sm:$0xff]
        %v6430 = vld [vmem:[#allocation12 + $0x120] sm:$0xff]
        %v6431 = vld [vmem:[#allocation12 + $0x128] sm:$0xff]
        %v6432 = vld [vmem:[#allocation12 + $0x130] sm:$0xff]
        %v6433 = vld [vmem:[#allocation12 + $0x138] sm:$0xff]
        %v6434 = vld [vmem:[#allocation12 + $0x140] sm:$0xff]
        %v6435 = vld [vmem:[#allocation12 + $0x148] sm:$0xff]
        %v6436 = vld [vmem:[#allocation12 + $0x150] sm:$0xff]
        %v6437 = vld [vmem:[#allocation12 + $0x158] sm:$0xff]
        %v6438 = vld [vmem:[#allocation12 + $0x160] sm:$0xff]
        %v6439 = vld [vmem:[#allocation12 + $0x168] sm:$0xff]
        %v6440 = vld [vmem:[#allocation12 + $0x170] sm:$0xff]
        %v6441 = vld [vmem:[#allocation12 + $0x178] sm:$0xff]
        %v6442 = vld [vmem:[#allocation12 + $0x180] sm:$0xff]
        %v6443 = vld [vmem:[#allocation12 + $0x188] sm:$0xff]
        %v6444 = vld [vmem:[#allocation12 + $0x190] sm:$0xff]
        %v6445 = vld [vmem:[#allocation12 + $0x198] sm:$0xff]
        %v6446 = vld [vmem:[#allocation12 + $0x1a0] sm:$0xff]
        %v6447 = vld [vmem:[#allocation12 + $0x1a8] sm:$0xff]
        %v6448 = vld [vmem:[#allocation12 + $0x1b0] sm:$0xff]
        %v6449 = vld [vmem:[#allocation12 + $0x1b8] sm:$0xff]
        %v6450 = vld [vmem:[#allocation12 + $0x1c0] sm:$0xff]
        %v6451 = vld [vmem:[#allocation12 + $0x1c8] sm:$0xff]
        %v6452 = vld [vmem:[#allocation12 + $0x1d0] sm:$0xff]
        %v6453 = vld [vmem:[#allocation12 + $0x1d8] sm:$0xff]
        %v6454 = vld [vmem:[#allocation12 + $0x1e0] sm:$0xff]
        %v6455 = vld [vmem:[#allocation12 + $0x1e8] sm:$0xff]
        %v6456 = vld [vmem:[#allocation12 + $0x1f0] sm:$0xff]
        %v6457 = vld [vmem:[#allocation12 + $0x1f8] sm:$0xff]
        %v6458 = vld [vmem:[#allocation12 + $0x200] sm:$0xff]
        %v6459 = vld [vmem:[#allocation12 + $0x208] sm:$0xff]
        %v6460 = vld [vmem:[#allocation12 + $0x210] sm:$0xff]
        %v6461 = vld [vmem:[#allocation12 + $0x218] sm:$0xff]
        %v6462 = vld [vmem:[#allocation12 + $0x220] sm:$0xff]
        %v6463 = vld [vmem:[#allocation12 + $0x228] sm:$0xff]
        %v6464 = vld [vmem:[#allocation12 + $0x230] sm:$0xff]
        %v6465 = vld [vmem:[#allocation12 + $0x238] sm:$0xff]
        %v6466 = vld [vmem:[#allocation12 + $0x240] sm:$0xff]
        %v6467 = vld [vmem:[#allocation12 + $0x248] sm:$0xff]
        %v6468 = vld [vmem:[#allocation12 + $0x250] sm:$0xff]
        %v6469 = vld [vmem:[#allocation12 + $0x258] sm:$0xff]
        %v6470 = vld [vmem:[#allocation12 + $0x260] sm:$0xff]
        %v6471 = vld [vmem:[#allocation12 + $0x268] sm:$0xff]
        %v6472 = vld [vmem:[#allocation12 + $0x270] sm:$0xff]
        %v6473 = vld [vmem:[#allocation12 + $0x278] sm:$0xff]
        %v6474 = vld [vmem:[#allocation12 + $0x280] sm:$0xff]
        %v6475 = vld [vmem:[#allocation12 + $0x288] sm:$0xff]
        %v6476 = vld [vmem:[#allocation12 + $0x290] sm:$0xff]
        %v6477 = vld [vmem:[#allocation12 + $0x298] sm:$0xff]
        %v6478 = vld [vmem:[#allocation12 + $0x2a0] sm:$0xff]
        %v6479 = vld [vmem:[#allocation12 + $0x2a8] sm:$0xff]
        %v6480 = vld [vmem:[#allocation12 + $0x2b0] sm:$0xff]
        %v6481 = vld [vmem:[#allocation12 + $0x2b8] sm:$0xff]
        %v6482 = vld [vmem:[#allocation12 + $0x2c0] sm:$0xff]
        %v6483 = vld [vmem:[#allocation12 + $0x2c8] sm:$0xff]
        %v6484 = vld [vmem:[#allocation12 + $0x2d0] sm:$0xff]
        %v6485 = vld [vmem:[#allocation12 + $0x2d8] sm:$0xff]
        %v6486 = vld [vmem:[#allocation12 + $0x2e0] sm:$0xff]
        %v6487 = vld [vmem:[#allocation12 + $0x2e8] sm:$0xff]
        %v6488 = vld [vmem:[#allocation12 + $0x2f0] sm:$0xff]
        %v6489 = vld [vmem:[#allocation12 + $0x2f8] sm:$0xff]
        %v6490 = vld [vmem:[#allocation12 + $0x300] sm:$0xff]
        %v6491 = vld [vmem:[#allocation12 + $0x308] sm:$0xff]
        %v6492 = vld [vmem:[#allocation12 + $0x310] sm:$0xff]
        %v6493 = vld [vmem:[#allocation12 + $0x318] sm:$0xff]
        %v6494 = vld [vmem:[#allocation12 + $0x320] sm:$0xff]
        %v6495 = vld [vmem:[#allocation12 + $0x328] sm:$0xff]
        %v6496 = vld [vmem:[#allocation12 + $0x330] sm:$0xff]
        %v6497 = vld [vmem:[#allocation12 + $0x338] sm:$0xff]
        %v6498 = vld [vmem:[#allocation12 + $0x340] sm:$0xff]
        %v6499 = vld [vmem:[#allocation12 + $0x348] sm:$0xff]
        %v6500 = vld [vmem:[#allocation12 + $0x350] sm:$0xff]
        %v6501 = vld [vmem:[#allocation12 + $0x358] sm:$0xff]
        %v6502 = vld [vmem:[#allocation12 + $0x360] sm:$0xff]
        %v6503 = vld [vmem:[#allocation12 + $0x368] sm:$0xff]
        %v6504 = vld [vmem:[#allocation12 + $0x370] sm:$0xff]
        %v6505 = vld [vmem:[#allocation12 + $0x378] sm:$0xff]
        %v6506 = vld [vmem:[#allocation12 + $0x380] sm:$0xff]
        %v6507 = vld [vmem:[#allocation12 + $0x388] sm:$0xff]
        %v6508 = vld [vmem:[#allocation12 + $0x390] sm:$0xff]
        %v6509 = vld [vmem:[#allocation12 + $0x398] sm:$0xff]
        %v6510 = vld [vmem:[#allocation12 + $0x3a0] sm:$0xff]
        %v6511 = vld [vmem:[#allocation12 + $0x3a8] sm:$0xff]
        %v6512 = vld [vmem:[#allocation12 + $0x3b0] sm:$0xff]
        %v6513 = vld [vmem:[#allocation12 + $0x3b8] sm:$0xff]
        %v6514 = vld [vmem:[#allocation12 + $0x3c0] sm:$0xff]
        %v6515 = vld [vmem:[#allocation12 + $0x3c8] sm:$0xff]
        %v6516 = vld [vmem:[#allocation12 + $0x3d0] sm:$0xff]
        %v6517 = vld [vmem:[#allocation12 + $0x3d8] sm:$0xff]
        %v6518 = vld [vmem:[#allocation12 + $0x3e0] sm:$0xff]
        %v6519 = vld [vmem:[#allocation12 + $0x3e8] sm:$0xff]
        %v6520 = vld [vmem:[#allocation12 + $0x3f0] sm:$0xff]
        %v6521 = vld [vmem:[#allocation12 + $0x3f8] sm:$0xff]
        %v6522 = vld [vmem:[#allocation12 + $0x400] sm:$0xff]
        %v6523 = vld [vmem:[#allocation12 + $0x408] sm:$0xff]
        %v6524 = vld [vmem:[#allocation12 + $0x410] sm:$0xff]
        %v6525 = vld [vmem:[#allocation12 + $0x418] sm:$0xff]
        %v6526 = vld [vmem:[#allocation12 + $0x420] sm:$0xff]
        %v6527 = vld [vmem:[#allocation12 + $0x428] sm:$0xff]
        %v6528 = vld [vmem:[#allocation12 + $0x430] sm:$0xff]
        %v6529 = vld [vmem:[#allocation12 + $0x438] sm:$0xff]
        %v6530 = vld [vmem:[#allocation12 + $0x440] sm:$0xff]
        %v6531 = vld [vmem:[#allocation12 + $0x448] sm:$0xff]
        %v6532 = vld [vmem:[#allocation12 + $0x450] sm:$0xff]
        %v6533 = vld [vmem:[#allocation12 + $0x458] sm:$0xff]
        %v6534 = vld [vmem:[#allocation12 + $0x460] sm:$0xff]
        %v6535 = vld [vmem:[#allocation12 + $0x468] sm:$0xff]
        %v6536 = vld [vmem:[#allocation12 + $0x470] sm:$0xff]
        %v6537 = vld [vmem:[#allocation12 + $0x478] sm:$0xff]
        %v6538 = vld [vmem:[#allocation12 + $0x480] sm:$0xff]
        %v6539 = vld [vmem:[#allocation12 + $0x488] sm:$0xff]
        %v6540 = vld [vmem:[#allocation12 + $0x490] sm:$0xff]
        %v6541 = vld [vmem:[#allocation12 + $0x498] sm:$0xff]
        %v6542 = vld [vmem:[#allocation12 + $0x4a0] sm:$0xff]
        %v6543 = vld [vmem:[#allocation12 + $0x4a8] sm:$0xff]
        %v6544 = vld [vmem:[#allocation12 + $0x4b0] sm:$0xff]
        %v6545 = vld [vmem:[#allocation12 + $0x4b8] sm:$0xff]
        %v6546 = vld [vmem:[#allocation12 + $0x4c0] sm:$0xff]
        %v6547 = vld [vmem:[#allocation12 + $0x4c8] sm:$0xff]
        %v6548 = vld [vmem:[#allocation12 + $0x4d0] sm:$0xff]
        %v6549 = vld [vmem:[#allocation12 + $0x4d8] sm:$0xff]
        %v6550 = vld [vmem:[#allocation12 + $0x4e0] sm:$0xff]
        %v6551 = vld [vmem:[#allocation12 + $0x4e8] sm:$0xff]
        %v6552 = vld [vmem:[#allocation12 + $0x4f0] sm:$0xff]
        %v6553 = vld [vmem:[#allocation12 + $0x4f8] sm:$0xff]
        %v6554 = vld [vmem:[#allocation12 + $0x500] sm:$0xff]
        %v6555 = vld [vmem:[#allocation12 + $0x508] sm:$0xff]
        %v6556 = vld [vmem:[#allocation12 + $0x510] sm:$0xff]
        %v6557 = vld [vmem:[#allocation12 + $0x518] sm:$0xff]
        %v6558 = vld [vmem:[#allocation12 + $0x520] sm:$0xff]
        %v6559 = vld [vmem:[#allocation12 + $0x528] sm:$0xff]
        %v6560 = vld [vmem:[#allocation12 + $0x530] sm:$0xff]
        %v6561 = vld [vmem:[#allocation12 + $0x538] sm:$0xff]
        %v6562 = vld [vmem:[#allocation12 + $0x540] sm:$0xff]
        %v6563 = vld [vmem:[#allocation12 + $0x548] sm:$0xff]
        %v6564 = vld [vmem:[#allocation12 + $0x550] sm:$0xff]
        %v6565 = vld [vmem:[#allocation12 + $0x558] sm:$0xff]
        %v6566 = vld [vmem:[#allocation12 + $0x560] sm:$0xff]
        %v6567 = vld [vmem:[#allocation12 + $0x568] sm:$0xff]
        %v6568 = vld [vmem:[#allocation12 + $0x570] sm:$0xff]
        %v6569 = vld [vmem:[#allocation12 + $0x578] sm:$0xff]
        %v6570 = vld [vmem:[#allocation12 + $0x580] sm:$0xff]
        %v6571 = vld [vmem:[#allocation12 + $0x588] sm:$0xff]
        %v6572 = vld [vmem:[#allocation12 + $0x590] sm:$0xff]
        %v6573 = vld [vmem:[#allocation12 + $0x598] sm:$0xff]
        %v6574 = vld [vmem:[#allocation12 + $0x5a0] sm:$0xff]
        %v6575 = vld [vmem:[#allocation12 + $0x5a8] sm:$0xff]
        %v6576 = vld [vmem:[#allocation12 + $0x5b0] sm:$0xff]
        %v6577 = vld [vmem:[#allocation12 + $0x5b8] sm:$0xff]
        %v6578 = vld [vmem:[#allocation12 + $0x5c0] sm:$0xff]
        %v6579 = vld [vmem:[#allocation12 + $0x5c8] sm:$0xff]
        %v6580 = vld [vmem:[#allocation12 + $0x5d0] sm:$0xff]
        %v6581 = vld [vmem:[#allocation12 + $0x5d8] sm:$0xff]
        %v6582 = vld [vmem:[#allocation12 + $0x5e0] sm:$0xff]
        %v6583 = vld [vmem:[#allocation12 + $0x5e8] sm:$0xff]
        %v6584 = vld [vmem:[#allocation12 + $0x5f0] sm:$0xff]
        %v6585 = vld [vmem:[#allocation12 + $0x5f8] sm:$0xff]
        %v6586 = vld [vmem:[#allocation12 + $0x600] sm:$0xff]
        %v6587 = vld [vmem:[#allocation12 + $0x608] sm:$0xff]
        %v6588 = vld [vmem:[#allocation12 + $0x610] sm:$0xff]
        %v6589 = vld [vmem:[#allocation12 + $0x618] sm:$0xff]
        %v6590 = vld [vmem:[#allocation12 + $0x620] sm:$0xff]
        %v6591 = vld [vmem:[#allocation12 + $0x628] sm:$0xff]
        %v6592 = vld [vmem:[#allocation12 + $0x630] sm:$0xff]
        %v6593 = vld [vmem:[#allocation12 + $0x638] sm:$0xff]
        %v6594 = vld [vmem:[#allocation12 + $0x640] sm:$0xff]
        %v6595 = vld [vmem:[#allocation12 + $0x648] sm:$0xff]
        %v6596 = vld [vmem:[#allocation12 + $0x650] sm:$0xff]
        %v6597 = vld [vmem:[#allocation12 + $0x658] sm:$0xff]
        %v6598 = vld [vmem:[#allocation12 + $0x660] sm:$0xff]
        %v6599 = vld [vmem:[#allocation12 + $0x668] sm:$0xff]
        %v6600 = vld [vmem:[#allocation12 + $0x670] sm:$0xff]
        %v6601 = vld [vmem:[#allocation12 + $0x678] sm:$0xff]
        %v6602 = vld [vmem:[#allocation12 + $0x680] sm:$0xff]
        %v6603 = vld [vmem:[#allocation12 + $0x688] sm:$0xff]
        %v6604 = vld [vmem:[#allocation12 + $0x690] sm:$0xff]
        %v6605 = vld [vmem:[#allocation12 + $0x698] sm:$0xff]
        %v6606 = vld [vmem:[#allocation12 + $0x6a0] sm:$0xff]
        %v6607 = vld [vmem:[#allocation12 + $0x6a8] sm:$0xff]
        %v6608 = vld [vmem:[#allocation12 + $0x6b0] sm:$0xff]
        %v6609 = vld [vmem:[#allocation12 + $0x6b8] sm:$0xff]
        %v6610 = vld [vmem:[#allocation12 + $0x6c0] sm:$0xff]
        %v6611 = vld [vmem:[#allocation12 + $0x6c8] sm:$0xff]
        %v6612 = vld [vmem:[#allocation12 + $0x6d0] sm:$0xff]
        %v6613 = vld [vmem:[#allocation12 + $0x6d8] sm:$0xff]
        %v6614 = vld [vmem:[#allocation12 + $0x6e0] sm:$0xff]
        %v6615 = vld [vmem:[#allocation12 + $0x6e8] sm:$0xff]
        %v6616 = vld [vmem:[#allocation12 + $0x6f0] sm:$0xff]
        %v6617 = vld [vmem:[#allocation12 + $0x6f8] sm:$0xff]
        %v6618 = vld [vmem:[#allocation12 + $0x700] sm:$0xff]
        %v6619 = vld [vmem:[#allocation12 + $0x708] sm:$0xff]
        %v6620 = vld [vmem:[#allocation12 + $0x710] sm:$0xff]
        %v6621 = vld [vmem:[#allocation12 + $0x718] sm:$0xff]
        %v6622 = vld [vmem:[#allocation12 + $0x720] sm:$0xff]
        %v6623 = vld [vmem:[#allocation12 + $0x728] sm:$0xff]
        %v6624 = vld [vmem:[#allocation12 + $0x730] sm:$0xff]
        %v6625 = vld [vmem:[#allocation12 + $0x738] sm:$0xff]
        %v6626 = vld [vmem:[#allocation12 + $0x740] sm:$0xff]
        %v6627 = vld [vmem:[#allocation12 + $0x748] sm:$0xff]
        %v6628 = vld [vmem:[#allocation12 + $0x750] sm:$0xff]
        %v6629 = vld [vmem:[#allocation12 + $0x758] sm:$0xff]
        %v6630 = vld [vmem:[#allocation12 + $0x760] sm:$0xff]
        %v6631 = vld [vmem:[#allocation12 + $0x768] sm:$0xff]
        %v6632 = vld [vmem:[#allocation12 + $0x770] sm:$0xff]
        %v6633 = vld [vmem:[#allocation12 + $0x778] sm:$0xff]
        %s6634 = scalar_lea.vmem [#allocation18], 6
        %v6635 = vld [vmem:[%s6634] ss:$8 sm:$0x7]
        %v6637 = vperm.slane %v6635, 0
        %v6638 = vperm.slane %v6635, 1
        %v6639 = vperm.slane %v6635, 2
        %6643 = vmatpush.msra.mxu0 %v6439
        %6644 = vmatpush.msra.mxu0 %v6436
        %6645 = vmatpush.msra.mxu0 %v6433
        %6646 = vmatpush.msra.mxu0 %v6430
        %6647 = vmatpush.msra.mxu0 %v6427
        %6648 = vmatpush.msra.mxu0 %v6424
        %6649 = vmatpush.msra.mxu0 %v6421
        %6650 = vmatpush.msra.mxu0 %v6418
        %6651 = vmatpush.msra.mxu0 %v6415
        %6652 = vmatpush.msra.mxu0 %v6412
        %6653 = vmatpush.msra.mxu0 %v6409
        %6654 = vmatpush.msra.mxu0 %v6406
        %6655 = vmatpush.msra.mxu0 %v6403
        %6656 = vmatpush.msra.mxu0 %v6400
        %6657 = vmatpush.msra.mxu0 %v6397
        %6658 = vmatpush.msra.mxu0 %v6394
        %6659 = vmatmul.f32.gmra.mxu0 %v6314
        %v6660 = vpop.f32.mrf.mxu0
        %v6661 = vadd.f32 %v6637, %v6660
        %6662 = vmatmul.f32.gmra.mxu0 %v6319
        %v6663 = vpop.f32.mrf.mxu0
        %v6664 = vadd.f32 %v6637, %v6663
        %6665 = vmatmul.f32.gmra.mxu0 %v6324
        %v6666 = vpop.f32.mrf.mxu0
        %v6667 = vadd.f32 %v6637, %v6666
        %6668 = vmatmul.f32.gmra.mxu0 %v6329
        %v6669 = vpop.f32.mrf.mxu0
        %v6670 = vadd.f32 %v6637, %v6669
        %6671 = vmatmul.f32.gmra.mxu0 %v6334
        %v6672 = vpop.f32.mrf.mxu0
        %v6673 = vadd.f32 %v6637, %v6672
        %6674 = vmatmul.f32.gmra.mxu0 %v6339
        %v6675 = vpop.f32.mrf.mxu0
        %v6676 = vadd.f32 %v6637, %v6675
        %6677 = vmatmul.f32.gmra.mxu0 %v6344
        %v6678 = vpop.f32.mrf.mxu0
        %v6679 = vadd.f32 %v6637, %v6678
        %6680 = vmatmul.f32.gmra.mxu0 %v6349
        %v6681 = vpop.f32.mrf.mxu0
        %v6682 = vadd.f32 %v6637, %v6681
        %6683 = vmatmul.f32.gmra.mxu0 %v6354
        %v6684 = vpop.f32.mrf.mxu0
        %v6685 = vadd.f32 %v6637, %v6684
        %6686 = vmatmul.f32.gmra.mxu0 %v6359
        %v6687 = vpop.f32.mrf.mxu0
        %v6688 = vadd.f32 %v6637, %v6687
        %6689 = vmatmul.f32.gmra.mxu0 %v6364
        %v6690 = vpop.f32.mrf.mxu0
        %v6691 = vadd.f32 %v6637, %v6690
        %6692 = vmatmul.f32.gmra.mxu0 %v6369
        %v6693 = vpop.f32.mrf.mxu0
        %v6694 = vadd.f32 %v6637, %v6693
        %6695 = vmatmul.f32.gmra.mxu0 %v6374
        %v6696 = vpop.f32.mrf.mxu0
        %v6697 = vadd.f32 %v6637, %v6696
        %6698 = vmatmul.f32.gmra.mxu0 %v6379
        %v6699 = vpop.f32.mrf.mxu0
        %v6700 = vadd.f32 %v6637, %v6699
        %6701 = vmatmul.f32.gmra.mxu0 %v6384
        %v6702 = vpop.f32.mrf.mxu0
        %v6703 = vadd.f32 %v6637, %v6702
        %6704 = vmatmul.f32.gmra.mxu0 %v6389
        %v6705 = vpop.f32.mrf.mxu0
        %v6706 = vadd.f32 %v6637, %v6705
        %6707 = vdwg.mxu0
        %6708 = vmatpush.msra.mxu0 %v6487
        %6709 = vmatpush.msra.mxu0 %v6484
        %6710 = vmatpush.msra.mxu0 %v6481
        %6711 = vmatpush.msra.mxu0 %v6478
        %6712 = vmatpush.msra.mxu0 %v6475
        %6713 = vmatpush.msra.mxu0 %v6472
        %6714 = vmatpush.msra.mxu0 %v6469
        %6715 = vmatpush.msra.mxu0 %v6466
        %6716 = vmatpush.msra.mxu0 %v6463
        %6717 = vmatpush.msra.mxu0 %v6460
        %6718 = vmatpush.msra.mxu0 %v6457
        %6719 = vmatpush.msra.mxu0 %v6454
        %6720 = vmatpush.msra.mxu0 %v6451
        %6721 = vmatpush.msra.mxu0 %v6448
        %6722 = vmatpush.msra.mxu0 %v6445
        %6723 = vmatpush.msra.mxu0 %v6442
        %6724 = vmatmul.f32.gmra.mxu0 %v6315
        %v6725 = vpop.f32.mrf.mxu0
        %v6726 = vadd.f32 %v6661, %v6725
        %6727 = vmatmul.f32.gmra.mxu0 %v6320
        %v6728 = vpop.f32.mrf.mxu0
        %v6729 = vadd.f32 %v6664, %v6728
        %6730 = vmatmul.f32.gmra.mxu0 %v6325
        %v6731 = vpop.f32.mrf.mxu0
        %v6732 = vadd.f32 %v6667, %v6731
        %6733 = vmatmul.f32.gmra.mxu0 %v6330
        %v6734 = vpop.f32.mrf.mxu0
        %v6735 = vadd.f32 %v6670, %v6734
        %6736 = vmatmul.f32.gmra.mxu0 %v6335
        %v6737 = vpop.f32.mrf.mxu0
        %v6738 = vadd.f32 %v6673, %v6737
        %6739 = vmatmul.f32.gmra.mxu0 %v6340
        %v6740 = vpop.f32.mrf.mxu0
        %v6741 = vadd.f32 %v6676, %v6740
        %6742 = vmatmul.f32.gmra.mxu0 %v6345
        %v6743 = vpop.f32.mrf.mxu0
        %v6744 = vadd.f32 %v6679, %v6743
        %6745 = vmatmul.f32.gmra.mxu0 %v6350
        %v6746 = vpop.f32.mrf.mxu0
        %v6747 = vadd.f32 %v6682, %v6746
        %6748 = vmatmul.f32.gmra.mxu0 %v6355
        %v6749 = vpop.f32.mrf.mxu0
        %v6750 = vadd.f32 %v6685, %v6749
        %6751 = vmatmul.f32.gmra.mxu0 %v6360
        %v6752 = vpop.f32.mrf.mxu0
        %v6753 = vadd.f32 %v6688, %v6752
        %6754 = vmatmul.f32.gmra.mxu0 %v6365
        %v6755 = vpop.f32.mrf.mxu0
        %v6756 = vadd.f32 %v6691, %v6755
        %6757 = vmatmul.f32.gmra.mxu0 %v6370
        %v6758 = vpop.f32.mrf.mxu0
        %v6759 = vadd.f32 %v6694, %v6758
        %6760 = vmatmul.f32.gmra.mxu0 %v6375
        %v6761 = vpop.f32.mrf.mxu0
        %v6762 = vadd.f32 %v6697, %v6761
        %6763 = vmatmul.f32.gmra.mxu0 %v6380
        %v6764 = vpop.f32.mrf.mxu0
        %v6765 = vadd.f32 %v6700, %v6764
        %6766 = vmatmul.f32.gmra.mxu0 %v6385
        %v6767 = vpop.f32.mrf.mxu0
        %v6768 = vadd.f32 %v6703, %v6767
        %6769 = vmatmul.f32.gmra.mxu0 %v6390
        %v6770 = vpop.f32.mrf.mxu0
        %v6771 = vadd.f32 %v6706, %v6770
        %6772 = vdwg.mxu0
        %6773 = vmatpush.msra.mxu0 %v6535
        %6774 = vmatpush.msra.mxu0 %v6532
        %6775 = vmatpush.msra.mxu0 %v6529
        %6776 = vmatpush.msra.mxu0 %v6526
        %6777 = vmatpush.msra.mxu0 %v6523
        %6778 = vmatpush.msra.mxu0 %v6520
        %6779 = vmatpush.msra.mxu0 %v6517
        %6780 = vmatpush.msra.mxu0 %v6514
        %6781 = vmatpush.msra.mxu0 %v6511
        %6782 = vmatpush.msra.mxu0 %v6508
        %6783 = vmatpush.msra.mxu0 %v6505
        %6784 = vmatpush.msra.mxu0 %v6502
        %6785 = vmatpush.msra.mxu0 %v6499
        %6786 = vmatpush.msra.mxu0 %v6496
        %6787 = vmatpush.msra.mxu0 %v6493
        %6788 = vmatpush.msra.mxu0 %v6490
        %6789 = vmatmul.f32.gmra.mxu0 %v6316
        %v6790 = vpop.f32.mrf.mxu0
        %v6791 = vadd.f32 %v6726, %v6790
        %6792 = vmatmul.f32.gmra.mxu0 %v6321
        %v6793 = vpop.f32.mrf.mxu0
        %v6794 = vadd.f32 %v6729, %v6793
        %6795 = vmatmul.f32.gmra.mxu0 %v6326
        %v6796 = vpop.f32.mrf.mxu0
        %v6797 = vadd.f32 %v6732, %v6796
        %6798 = vmatmul.f32.gmra.mxu0 %v6331
        %v6799 = vpop.f32.mrf.mxu0
        %v6800 = vadd.f32 %v6735, %v6799
        %6801 = vmatmul.f32.gmra.mxu0 %v6336
        %v6802 = vpop.f32.mrf.mxu0
        %v6803 = vadd.f32 %v6738, %v6802
        %6804 = vmatmul.f32.gmra.mxu0 %v6341
        %v6805 = vpop.f32.mrf.mxu0
        %v6806 = vadd.f32 %v6741, %v6805
        %6807 = vmatmul.f32.gmra.mxu0 %v6346
        %v6808 = vpop.f32.mrf.mxu0
        %v6809 = vadd.f32 %v6744, %v6808
        %6810 = vmatmul.f32.gmra.mxu0 %v6351
        %v6811 = vpop.f32.mrf.mxu0
        %v6812 = vadd.f32 %v6747, %v6811
        %6813 = vmatmul.f32.gmra.mxu0 %v6356
        %v6814 = vpop.f32.mrf.mxu0
        %v6815 = vadd.f32 %v6750, %v6814
        %6816 = vmatmul.f32.gmra.mxu0 %v6361
        %v6817 = vpop.f32.mrf.mxu0
        %v6818 = vadd.f32 %v6753, %v6817
        %6819 = vmatmul.f32.gmra.mxu0 %v6366
        %v6820 = vpop.f32.mrf.mxu0
        %v6821 = vadd.f32 %v6756, %v6820
        %6822 = vmatmul.f32.gmra.mxu0 %v6371
        %v6823 = vpop.f32.mrf.mxu0
        %v6824 = vadd.f32 %v6759, %v6823
        %6825 = vmatmul.f32.gmra.mxu0 %v6376
        %v6826 = vpop.f32.mrf.mxu0
        %v6827 = vadd.f32 %v6762, %v6826
        %6828 = vmatmul.f32.gmra.mxu0 %v6381
        %v6829 = vpop.f32.mrf.mxu0
        %v6830 = vadd.f32 %v6765, %v6829
        %6831 = vmatmul.f32.gmra.mxu0 %v6386
        %v6832 = vpop.f32.mrf.mxu0
        %v6833 = vadd.f32 %v6768, %v6832
        %6834 = vmatmul.f32.gmra.mxu0 %v6391
        %v6835 = vpop.f32.mrf.mxu0
        %v6836 = vadd.f32 %v6771, %v6835
        %6837 = vdwg.mxu0
        %6838 = vmatpush.msra.mxu0 %v6583
        %6839 = vmatpush.msra.mxu0 %v6580
        %6840 = vmatpush.msra.mxu0 %v6577
        %6841 = vmatpush.msra.mxu0 %v6574
        %6842 = vmatpush.msra.mxu0 %v6571
        %6843 = vmatpush.msra.mxu0 %v6568
        %6844 = vmatpush.msra.mxu0 %v6565
        %6845 = vmatpush.msra.mxu0 %v6562
        %6846 = vmatpush.msra.mxu0 %v6559
        %6847 = vmatpush.msra.mxu0 %v6556
        %6848 = vmatpush.msra.mxu0 %v6553
        %6849 = vmatpush.msra.mxu0 %v6550
        %6850 = vmatpush.msra.mxu0 %v6547
        %6851 = vmatpush.msra.mxu0 %v6544
        %6852 = vmatpush.msra.mxu0 %v6541
        %6853 = vmatpush.msra.mxu0 %v6538
        %6854 = vmatmul.f32.gmra.mxu0 %v6317
        %v6855 = vpop.f32.mrf.mxu0
        %v6856 = vadd.f32 %v6791, %v6855
        %6857 = vmatmul.f32.gmra.mxu0 %v6322
        %v6858 = vpop.f32.mrf.mxu0
        %v6859 = vadd.f32 %v6794, %v6858
        %6860 = vmatmul.f32.gmra.mxu0 %v6327
        %v6861 = vpop.f32.mrf.mxu0
        %v6862 = vadd.f32 %v6797, %v6861
        %6863 = vmatmul.f32.gmra.mxu0 %v6332
        %v6864 = vpop.f32.mrf.mxu0
        %v6865 = vadd.f32 %v6800, %v6864
        %6866 = vmatmul.f32.gmra.mxu0 %v6337
        %v6867 = vpop.f32.mrf.mxu0
        %v6868 = vadd.f32 %v6803, %v6867
        %6869 = vmatmul.f32.gmra.mxu0 %v6342
        %v6870 = vpop.f32.mrf.mxu0
        %v6871 = vadd.f32 %v6806, %v6870
        %6872 = vmatmul.f32.gmra.mxu0 %v6347
        %v6873 = vpop.f32.mrf.mxu0
        %v6874 = vadd.f32 %v6809, %v6873
        %6875 = vmatmul.f32.gmra.mxu0 %v6352
        %v6876 = vpop.f32.mrf.mxu0
        %v6877 = vadd.f32 %v6812, %v6876
        %6878 = vmatmul.f32.gmra.mxu0 %v6357
        %v6879 = vpop.f32.mrf.mxu0
        %v6880 = vadd.f32 %v6815, %v6879
        %6881 = vmatmul.f32.gmra.mxu0 %v6362
        %v6882 = vpop.f32.mrf.mxu0
        %v6883 = vadd.f32 %v6818, %v6882
        %6884 = vmatmul.f32.gmra.mxu0 %v6367
        %v6885 = vpop.f32.mrf.mxu0
        %v6886 = vadd.f32 %v6821, %v6885
        %6887 = vmatmul.f32.gmra.mxu0 %v6372
        %v6888 = vpop.f32.mrf.mxu0
        %v6889 = vadd.f32 %v6824, %v6888
        %6890 = vmatmul.f32.gmra.mxu0 %v6377
        %v6891 = vpop.f32.mrf.mxu0
        %v6892 = vadd.f32 %v6827, %v6891
        %6893 = vmatmul.f32.gmra.mxu0 %v6382
        %v6894 = vpop.f32.mrf.mxu0
        %v6895 = vadd.f32 %v6830, %v6894
        %6896 = vmatmul.f32.gmra.mxu0 %v6387
        %v6897 = vpop.f32.mrf.mxu0
        %v6898 = vadd.f32 %v6833, %v6897
        %6899 = vmatmul.f32.gmra.mxu0 %v6392
        %v6900 = vpop.f32.mrf.mxu0
        %v6901 = vadd.f32 %v6836, %v6900
        %6902 = vdwg.mxu0
        %6903 = vmatpush.msra.mxu0 %v6631
        %6904 = vmatpush.msra.mxu0 %v6628
        %6905 = vmatpush.msra.mxu0 %v6625
        %6906 = vmatpush.msra.mxu0 %v6622
        %6907 = vmatpush.msra.mxu0 %v6619
        %6908 = vmatpush.msra.mxu0 %v6616
        %6909 = vmatpush.msra.mxu0 %v6613
        %6910 = vmatpush.msra.mxu0 %v6610
        %6911 = vmatpush.msra.mxu0 %v6607
        %6912 = vmatpush.msra.mxu0 %v6604
        %6913 = vmatpush.msra.mxu0 %v6601
        %6914 = vmatpush.msra.mxu0 %v6598
        %6915 = vmatpush.msra.mxu0 %v6595
        %6916 = vmatpush.msra.mxu0 %v6592
        %6917 = vmatpush.msra.mxu0 %v6589
        %6918 = vmatpush.msra.mxu0 %v6586
        %6919 = vmatmul.f32.gmra.mxu0 %v6318
        %v6920 = vpop.f32.mrf.mxu0
        %v6921 = vadd.f32 %v6856, %v6920
        %6922 = vmatmul.f32.gmra.mxu0 %v6323
        %v6923 = vpop.f32.mrf.mxu0
        %v6924 = vadd.f32 %v6859, %v6923
        %6925 = vmatmul.f32.gmra.mxu0 %v6328
        %v6926 = vpop.f32.mrf.mxu0
        %v6927 = vadd.f32 %v6862, %v6926
        %6928 = vmatmul.f32.gmra.mxu0 %v6333
        %v6929 = vpop.f32.mrf.mxu0
        %v6930 = vadd.f32 %v6865, %v6929
        %6931 = vmatmul.f32.gmra.mxu0 %v6338
        %v6932 = vpop.f32.mrf.mxu0
        %v6933 = vadd.f32 %v6868, %v6932
        %6934 = vmatmul.f32.gmra.mxu0 %v6343
        %v6935 = vpop.f32.mrf.mxu0
        %v6936 = vadd.f32 %v6871, %v6935
        %6937 = vmatmul.f32.gmra.mxu0 %v6348
        %v6938 = vpop.f32.mrf.mxu0
        %v6939 = vadd.f32 %v6874, %v6938
        %6940 = vmatmul.f32.gmra.mxu0 %v6353
        %v6941 = vpop.f32.mrf.mxu0
        %v6942 = vadd.f32 %v6877, %v6941
        %6943 = vmatmul.f32.gmra.mxu0 %v6358
        %v6944 = vpop.f32.mrf.mxu0
        %v6945 = vadd.f32 %v6880, %v6944
        %6946 = vmatmul.f32.gmra.mxu0 %v6363
        %v6947 = vpop.f32.mrf.mxu0
        %v6948 = vadd.f32 %v6883, %v6947
        %6949 = vmatmul.f32.gmra.mxu0 %v6368
        %v6950 = vpop.f32.mrf.mxu0
        %v6951 = vadd.f32 %v6886, %v6950
        %6952 = vmatmul.f32.gmra.mxu0 %v6373
        %v6953 = vpop.f32.mrf.mxu0
        %v6954 = vadd.f32 %v6889, %v6953
        %6955 = vmatmul.f32.gmra.mxu0 %v6378
        %v6956 = vpop.f32.mrf.mxu0
        %v6957 = vadd.f32 %v6892, %v6956
        %6958 = vmatmul.f32.gmra.mxu0 %v6383
        %v6959 = vpop.f32.mrf.mxu0
        %v6960 = vadd.f32 %v6895, %v6959
        %6961 = vmatmul.f32.gmra.mxu0 %v6388
        %v6962 = vpop.f32.mrf.mxu0
        %v6963 = vadd.f32 %v6898, %v6962
        %6964 = vmatmul.f32.gmra.mxu0 %v6393
        %v6965 = vpop.f32.mrf.mxu0
        %v6966 = vadd.f32 %v6901, %v6965
        %6967 = vdwg.mxu0
        %6968 = vmatpush.msra.mxu0 %v6440
        %6969 = vmatpush.msra.mxu0 %v6437
        %6970 = vmatpush.msra.mxu0 %v6434
        %6971 = vmatpush.msra.mxu0 %v6431
        %6972 = vmatpush.msra.mxu0 %v6428
        %6973 = vmatpush.msra.mxu0 %v6425
        %6974 = vmatpush.msra.mxu0 %v6422
        %6975 = vmatpush.msra.mxu0 %v6419
        %6976 = vmatpush.msra.mxu0 %v6416
        %6977 = vmatpush.msra.mxu0 %v6413
        %6978 = vmatpush.msra.mxu0 %v6410
        %6979 = vmatpush.msra.mxu0 %v6407
        %6980 = vmatpush.msra.mxu0 %v6404
        %6981 = vmatpush.msra.mxu0 %v6401
        %6982 = vmatpush.msra.mxu0 %v6398
        %6983 = vmatpush.msra.mxu0 %v6395
        %6984 = vmatmul.f32.gmra.mxu0 %v6314
        %v6985 = vpop.f32.mrf.mxu0
        %v6986 = vadd.f32 %v6638, %v6985
        %6987 = vmatmul.f32.gmra.mxu0 %v6319
        %v6988 = vpop.f32.mrf.mxu0
        %v6989 = vadd.f32 %v6638, %v6988
        %6990 = vmatmul.f32.gmra.mxu0 %v6324
        %v6991 = vpop.f32.mrf.mxu0
        %v6992 = vadd.f32 %v6638, %v6991
        %6993 = vmatmul.f32.gmra.mxu0 %v6329
        %v6994 = vpop.f32.mrf.mxu0
        %v6995 = vadd.f32 %v6638, %v6994
        %6996 = vmatmul.f32.gmra.mxu0 %v6334
        %v6997 = vpop.f32.mrf.mxu0
        %v6998 = vadd.f32 %v6638, %v6997
        %6999 = vmatmul.f32.gmra.mxu0 %v6339
        %v7000 = vpop.f32.mrf.mxu0
        %v7001 = vadd.f32 %v6638, %v7000
        %7002 = vmatmul.f32.gmra.mxu0 %v6344
        %v7003 = vpop.f32.mrf.mxu0
        %v7004 = vadd.f32 %v6638, %v7003
        %7005 = vmatmul.f32.gmra.mxu0 %v6349
        %v7006 = vpop.f32.mrf.mxu0
        %v7007 = vadd.f32 %v6638, %v7006
        %7008 = vmatmul.f32.gmra.mxu0 %v6354
        %v7009 = vpop.f32.mrf.mxu0
        %v7010 = vadd.f32 %v6638, %v7009
        %7011 = vmatmul.f32.gmra.mxu0 %v6359
        %v7012 = vpop.f32.mrf.mxu0
        %v7013 = vadd.f32 %v6638, %v7012
        %7014 = vmatmul.f32.gmra.mxu0 %v6364
        %v7015 = vpop.f32.mrf.mxu0
        %v7016 = vadd.f32 %v6638, %v7015
        %7017 = vmatmul.f32.gmra.mxu0 %v6369
        %v7018 = vpop.f32.mrf.mxu0
        %v7019 = vadd.f32 %v6638, %v7018
        %7020 = vmatmul.f32.gmra.mxu0 %v6374
        %v7021 = vpop.f32.mrf.mxu0
        %v7022 = vadd.f32 %v6638, %v7021
        %7023 = vmatmul.f32.gmra.mxu0 %v6379
        %v7024 = vpop.f32.mrf.mxu0
        %v7025 = vadd.f32 %v6638, %v7024
        %7026 = vmatmul.f32.gmra.mxu0 %v6384
        %v7027 = vpop.f32.mrf.mxu0
        %v7028 = vadd.f32 %v6638, %v7027
        %7029 = vmatmul.f32.gmra.mxu0 %v6389
        %v7030 = vpop.f32.mrf.mxu0
        %v7031 = vadd.f32 %v6638, %v7030
        %7032 = vdwg.mxu0
        %7033 = vmatpush.msra.mxu0 %v6488
        %7034 = vmatpush.msra.mxu0 %v6485
        %7035 = vmatpush.msra.mxu0 %v6482
        %7036 = vmatpush.msra.mxu0 %v6479
        %7037 = vmatpush.msra.mxu0 %v6476
        %7038 = vmatpush.msra.mxu0 %v6473
        %7039 = vmatpush.msra.mxu0 %v6470
        %7040 = vmatpush.msra.mxu0 %v6467
        %7041 = vmatpush.msra.mxu0 %v6464
        %7042 = vmatpush.msra.mxu0 %v6461
        %7043 = vmatpush.msra.mxu0 %v6458
        %7044 = vmatpush.msra.mxu0 %v6455
        %7045 = vmatpush.msra.mxu0 %v6452
        %7046 = vmatpush.msra.mxu0 %v6449
        %7047 = vmatpush.msra.mxu0 %v6446
        %7048 = vmatpush.msra.mxu0 %v6443
        %7049 = vmatmul.f32.gmra.mxu0 %v6315
        %v7050 = vpop.f32.mrf.mxu0
        %v7051 = vadd.f32 %v6986, %v7050
        %7052 = vmatmul.f32.gmra.mxu0 %v6320
        %v7053 = vpop.f32.mrf.mxu0
        %v7054 = vadd.f32 %v6989, %v7053
        %7055 = vmatmul.f32.gmra.mxu0 %v6325
        %v7056 = vpop.f32.mrf.mxu0
        %v7057 = vadd.f32 %v6992, %v7056
        %7058 = vmatmul.f32.gmra.mxu0 %v6330
        %v7059 = vpop.f32.mrf.mxu0
        %v7060 = vadd.f32 %v6995, %v7059
        %7061 = vmatmul.f32.gmra.mxu0 %v6335
        %v7062 = vpop.f32.mrf.mxu0
        %v7063 = vadd.f32 %v6998, %v7062
        %7064 = vmatmul.f32.gmra.mxu0 %v6340
        %v7065 = vpop.f32.mrf.mxu0
        %v7066 = vadd.f32 %v7001, %v7065
        %7067 = vmatmul.f32.gmra.mxu0 %v6345
        %v7068 = vpop.f32.mrf.mxu0
        %v7069 = vadd.f32 %v7004, %v7068
        %7070 = vmatmul.f32.gmra.mxu0 %v6350
        %v7071 = vpop.f32.mrf.mxu0
        %v7072 = vadd.f32 %v7007, %v7071
        %7073 = vmatmul.f32.gmra.mxu0 %v6355
        %v7074 = vpop.f32.mrf.mxu0
        %v7075 = vadd.f32 %v7010, %v7074
        %7076 = vmatmul.f32.gmra.mxu0 %v6360
        %v7077 = vpop.f32.mrf.mxu0
        %v7078 = vadd.f32 %v7013, %v7077
        %7079 = vmatmul.f32.gmra.mxu0 %v6365
        %v7080 = vpop.f32.mrf.mxu0
        %v7081 = vadd.f32 %v7016, %v7080
        %7082 = vmatmul.f32.gmra.mxu0 %v6370
        %v7083 = vpop.f32.mrf.mxu0
        %v7084 = vadd.f32 %v7019, %v7083
        %7085 = vmatmul.f32.gmra.mxu0 %v6375
        %v7086 = vpop.f32.mrf.mxu0
        %v7087 = vadd.f32 %v7022, %v7086
        %7088 = vmatmul.f32.gmra.mxu0 %v6380
        %v7089 = vpop.f32.mrf.mxu0
        %v7090 = vadd.f32 %v7025, %v7089
        %7091 = vmatmul.f32.gmra.mxu0 %v6385
        %v7092 = vpop.f32.mrf.mxu0
        %v7093 = vadd.f32 %v7028, %v7092
        %7094 = vmatmul.f32.gmra.mxu0 %v6390
        %v7095 = vpop.f32.mrf.mxu0
        %v7096 = vadd.f32 %v7031, %v7095
        %7097 = vdwg.mxu0
        %7098 = vmatpush.msra.mxu0 %v6536
        %7099 = vmatpush.msra.mxu0 %v6533
        %7100 = vmatpush.msra.mxu0 %v6530
        %7101 = vmatpush.msra.mxu0 %v6527
        %7102 = vmatpush.msra.mxu0 %v6524
        %7103 = vmatpush.msra.mxu0 %v6521
        %7104 = vmatpush.msra.mxu0 %v6518
        %7105 = vmatpush.msra.mxu0 %v6515
        %7106 = vmatpush.msra.mxu0 %v6512
        %7107 = vmatpush.msra.mxu0 %v6509
        %7108 = vmatpush.msra.mxu0 %v6506
        %7109 = vmatpush.msra.mxu0 %v6503
        %7110 = vmatpush.msra.mxu0 %v6500
        %7111 = vmatpush.msra.mxu0 %v6497
        %7112 = vmatpush.msra.mxu0 %v6494
        %7113 = vmatpush.msra.mxu0 %v6491
        %7114 = vmatmul.f32.gmra.mxu0 %v6316
        %v7115 = vpop.f32.mrf.mxu0
        %v7116 = vadd.f32 %v7051, %v7115
        %7117 = vmatmul.f32.gmra.mxu0 %v6321
        %v7118 = vpop.f32.mrf.mxu0
        %v7119 = vadd.f32 %v7054, %v7118
        %7120 = vmatmul.f32.gmra.mxu0 %v6326
        %v7121 = vpop.f32.mrf.mxu0
        %v7122 = vadd.f32 %v7057, %v7121
        %7123 = vmatmul.f32.gmra.mxu0 %v6331
        %v7124 = vpop.f32.mrf.mxu0
        %v7125 = vadd.f32 %v7060, %v7124
        %7126 = vmatmul.f32.gmra.mxu0 %v6336
        %v7127 = vpop.f32.mrf.mxu0
        %v7128 = vadd.f32 %v7063, %v7127
        %7129 = vmatmul.f32.gmra.mxu0 %v6341
        %v7130 = vpop.f32.mrf.mxu0
        %v7131 = vadd.f32 %v7066, %v7130
        %7132 = vmatmul.f32.gmra.mxu0 %v6346
        %v7133 = vpop.f32.mrf.mxu0
        %v7134 = vadd.f32 %v7069, %v7133
        %7135 = vmatmul.f32.gmra.mxu0 %v6351
        %v7136 = vpop.f32.mrf.mxu0
        %v7137 = vadd.f32 %v7072, %v7136
        %7138 = vmatmul.f32.gmra.mxu0 %v6356
        %v7139 = vpop.f32.mrf.mxu0
        %v7140 = vadd.f32 %v7075, %v7139
        %7141 = vmatmul.f32.gmra.mxu0 %v6361
        %v7142 = vpop.f32.mrf.mxu0
        %v7143 = vadd.f32 %v7078, %v7142
        %7144 = vmatmul.f32.gmra.mxu0 %v6366
        %v7145 = vpop.f32.mrf.mxu0
        %v7146 = vadd.f32 %v7081, %v7145
        %7147 = vmatmul.f32.gmra.mxu0 %v6371
        %v7148 = vpop.f32.mrf.mxu0
        %v7149 = vadd.f32 %v7084, %v7148
        %7150 = vmatmul.f32.gmra.mxu0 %v6376
        %v7151 = vpop.f32.mrf.mxu0
        %v7152 = vadd.f32 %v7087, %v7151
        %7153 = vmatmul.f32.gmra.mxu0 %v6381
        %v7154 = vpop.f32.mrf.mxu0
        %v7155 = vadd.f32 %v7090, %v7154
        %7156 = vmatmul.f32.gmra.mxu0 %v6386
        %v7157 = vpop.f32.mrf.mxu0
        %v7158 = vadd.f32 %v7093, %v7157
        %7159 = vmatmul.f32.gmra.mxu0 %v6391
        %v7160 = vpop.f32.mrf.mxu0
        %v7161 = vadd.f32 %v7096, %v7160
        %7162 = vdwg.mxu0
        %7163 = vmatpush.msra.mxu0 %v6584
        %7164 = vmatpush.msra.mxu0 %v6581
        %7165 = vmatpush.msra.mxu0 %v6578
        %7166 = vmatpush.msra.mxu0 %v6575
        %7167 = vmatpush.msra.mxu0 %v6572
        %7168 = vmatpush.msra.mxu0 %v6569
        %7169 = vmatpush.msra.mxu0 %v6566
        %7170 = vmatpush.msra.mxu0 %v6563
        %7171 = vmatpush.msra.mxu0 %v6560
        %7172 = vmatpush.msra.mxu0 %v6557
        %7173 = vmatpush.msra.mxu0 %v6554
        %7174 = vmatpush.msra.mxu0 %v6551
        %7175 = vmatpush.msra.mxu0 %v6548
        %7176 = vmatpush.msra.mxu0 %v6545
        %7177 = vmatpush.msra.mxu0 %v6542
        %7178 = vmatpush.msra.mxu0 %v6539
        %7179 = vmatmul.f32.gmra.mxu0 %v6317
        %v7180 = vpop.f32.mrf.mxu0
        %v7181 = vadd.f32 %v7116, %v7180
        %7182 = vmatmul.f32.gmra.mxu0 %v6322
        %v7183 = vpop.f32.mrf.mxu0
        %v7184 = vadd.f32 %v7119, %v7183
        %7185 = vmatmul.f32.gmra.mxu0 %v6327
        %v7186 = vpop.f32.mrf.mxu0
        %v7187 = vadd.f32 %v7122, %v7186
        %7188 = vmatmul.f32.gmra.mxu0 %v6332
        %v7189 = vpop.f32.mrf.mxu0
        %v7190 = vadd.f32 %v7125, %v7189
        %7191 = vmatmul.f32.gmra.mxu0 %v6337
        %v7192 = vpop.f32.mrf.mxu0
        %v7193 = vadd.f32 %v7128, %v7192
        %7194 = vmatmul.f32.gmra.mxu0 %v6342
        %v7195 = vpop.f32.mrf.mxu0
        %v7196 = vadd.f32 %v7131, %v7195
        %7197 = vmatmul.f32.gmra.mxu0 %v6347
        %v7198 = vpop.f32.mrf.mxu0
        %v7199 = vadd.f32 %v7134, %v7198
        %7200 = vmatmul.f32.gmra.mxu0 %v6352
        %v7201 = vpop.f32.mrf.mxu0
        %v7202 = vadd.f32 %v7137, %v7201
        %7203 = vmatmul.f32.gmra.mxu0 %v6357
        %v7204 = vpop.f32.mrf.mxu0
        %v7205 = vadd.f32 %v7140, %v7204
        %7206 = vmatmul.f32.gmra.mxu0 %v6362
        %v7207 = vpop.f32.mrf.mxu0
        %v7208 = vadd.f32 %v7143, %v7207
        %7209 = vmatmul.f32.gmra.mxu0 %v6367
        %v7210 = vpop.f32.mrf.mxu0
        %v7211 = vadd.f32 %v7146, %v7210
        %7212 = vmatmul.f32.gmra.mxu0 %v6372
        %v7213 = vpop.f32.mrf.mxu0
        %v7214 = vadd.f32 %v7149, %v7213
        %7215 = vmatmul.f32.gmra.mxu0 %v6377
        %v7216 = vpop.f32.mrf.mxu0
        %v7217 = vadd.f32 %v7152, %v7216
        %7218 = vmatmul.f32.gmra.mxu0 %v6382
        %v7219 = vpop.f32.mrf.mxu0
        %v7220 = vadd.f32 %v7155, %v7219
        %7221 = vmatmul.f32.gmra.mxu0 %v6387
        %v7222 = vpop.f32.mrf.mxu0
        %v7223 = vadd.f32 %v7158, %v7222
        %7224 = vmatmul.f32.gmra.mxu0 %v6392
        %v7225 = vpop.f32.mrf.mxu0
        %v7226 = vadd.f32 %v7161, %v7225
        %7227 = vdwg.mxu0
        %7228 = vmatpush.msra.mxu0 %v6632
        %7229 = vmatpush.msra.mxu0 %v6629
        %7230 = vmatpush.msra.mxu0 %v6626
        %7231 = vmatpush.msra.mxu0 %v6623
        %7232 = vmatpush.msra.mxu0 %v6620
        %7233 = vmatpush.msra.mxu0 %v6617
        %7234 = vmatpush.msra.mxu0 %v6614
        %7235 = vmatpush.msra.mxu0 %v6611
        %7236 = vmatpush.msra.mxu0 %v6608
        %7237 = vmatpush.msra.mxu0 %v6605
        %7238 = vmatpush.msra.mxu0 %v6602
        %7239 = vmatpush.msra.mxu0 %v6599
        %7240 = vmatpush.msra.mxu0 %v6596
        %7241 = vmatpush.msra.mxu0 %v6593
        %7242 = vmatpush.msra.mxu0 %v6590
        %7243 = vmatpush.msra.mxu0 %v6587
        %7244 = vmatmul.f32.gmra.mxu0 %v6318
        %v7245 = vpop.f32.mrf.mxu0
        %v7246 = vadd.f32 %v7181, %v7245
        %7247 = vmatmul.f32.gmra.mxu0 %v6323
        %v7248 = vpop.f32.mrf.mxu0
        %v7249 = vadd.f32 %v7184, %v7248
        %7250 = vmatmul.f32.gmra.mxu0 %v6328
        %v7251 = vpop.f32.mrf.mxu0
        %v7252 = vadd.f32 %v7187, %v7251
        %7253 = vmatmul.f32.gmra.mxu0 %v6333
        %v7254 = vpop.f32.mrf.mxu0
        %v7255 = vadd.f32 %v7190, %v7254
        %7256 = vmatmul.f32.gmra.mxu0 %v6338
        %v7257 = vpop.f32.mrf.mxu0
        %v7258 = vadd.f32 %v7193, %v7257
        %7259 = vmatmul.f32.gmra.mxu0 %v6343
        %v7260 = vpop.f32.mrf.mxu0
        %v7261 = vadd.f32 %v7196, %v7260
        %7262 = vmatmul.f32.gmra.mxu0 %v6348
        %v7263 = vpop.f32.mrf.mxu0
        %v7264 = vadd.f32 %v7199, %v7263
        %7265 = vmatmul.f32.gmra.mxu0 %v6353
        %v7266 = vpop.f32.mrf.mxu0
        %v7267 = vadd.f32 %v7202, %v7266
        %7268 = vmatmul.f32.gmra.mxu0 %v6358
        %v7269 = vpop.f32.mrf.mxu0
        %v7270 = vadd.f32 %v7205, %v7269
        %7271 = vmatmul.f32.gmra.mxu0 %v6363
        %v7272 = vpop.f32.mrf.mxu0
        %v7273 = vadd.f32 %v7208, %v7272
        %7274 = vmatmul.f32.gmra.mxu0 %v6368
        %v7275 = vpop.f32.mrf.mxu0
        %v7276 = vadd.f32 %v7211, %v7275
        %7277 = vmatmul.f32.gmra.mxu0 %v6373
        %v7278 = vpop.f32.mrf.mxu0
        %v7279 = vadd.f32 %v7214, %v7278
        %7280 = vmatmul.f32.gmra.mxu0 %v6378
        %v7281 = vpop.f32.mrf.mxu0
        %v7282 = vadd.f32 %v7217, %v7281
        %7283 = vmatmul.f32.gmra.mxu0 %v6383
        %v7284 = vpop.f32.mrf.mxu0
        %v7285 = vadd.f32 %v7220, %v7284
        %7286 = vmatmul.f32.gmra.mxu0 %v6388
        %v7287 = vpop.f32.mrf.mxu0
        %v7288 = vadd.f32 %v7223, %v7287
        %7289 = vmatmul.f32.gmra.mxu0 %v6393
        %v7290 = vpop.f32.mrf.mxu0
        %v7291 = vadd.f32 %v7226, %v7290
        %7292 = vdwg.mxu0
        %7293 = vmatpush.msra.mxu0 %v6441
        %7294 = vmatpush.msra.mxu0 %v6438
        %7295 = vmatpush.msra.mxu0 %v6435
        %7296 = vmatpush.msra.mxu0 %v6432
        %7297 = vmatpush.msra.mxu0 %v6429
        %7298 = vmatpush.msra.mxu0 %v6426
        %7299 = vmatpush.msra.mxu0 %v6423
        %7300 = vmatpush.msra.mxu0 %v6420
        %7301 = vmatpush.msra.mxu0 %v6417
        %7302 = vmatpush.msra.mxu0 %v6414
        %7303 = vmatpush.msra.mxu0 %v6411
        %7304 = vmatpush.msra.mxu0 %v6408
        %7305 = vmatpush.msra.mxu0 %v6405
        %7306 = vmatpush.msra.mxu0 %v6402
        %7307 = vmatpush.msra.mxu0 %v6399
        %7308 = vmatpush.msra.mxu0 %v6396
        %7309 = vmatmul.f32.gmra.mxu0 %v6314
        %v7310 = vpop.f32.mrf.mxu0
        %v7311 = vadd.f32 %v6639, %v7310
        %7312 = vmatmul.f32.gmra.mxu0 %v6319
        %v7313 = vpop.f32.mrf.mxu0
        %v7314 = vadd.f32 %v6639, %v7313
        %7315 = vmatmul.f32.gmra.mxu0 %v6324
        %v7316 = vpop.f32.mrf.mxu0
        %v7317 = vadd.f32 %v6639, %v7316
        %7318 = vmatmul.f32.gmra.mxu0 %v6329
        %v7319 = vpop.f32.mrf.mxu0
        %v7320 = vadd.f32 %v6639, %v7319
        %7321 = vmatmul.f32.gmra.mxu0 %v6334
        %v7322 = vpop.f32.mrf.mxu0
        %v7323 = vadd.f32 %v6639, %v7322
        %7324 = vmatmul.f32.gmra.mxu0 %v6339
        %v7325 = vpop.f32.mrf.mxu0
        %v7326 = vadd.f32 %v6639, %v7325
        %7327 = vmatmul.f32.gmra.mxu0 %v6344
        %v7328 = vpop.f32.mrf.mxu0
        %v7329 = vadd.f32 %v6639, %v7328
        %7330 = vmatmul.f32.gmra.mxu0 %v6349
        %v7331 = vpop.f32.mrf.mxu0
        %v7332 = vadd.f32 %v6639, %v7331
        %7333 = vmatmul.f32.gmra.mxu0 %v6354
        %v7334 = vpop.f32.mrf.mxu0
        %v7335 = vadd.f32 %v6639, %v7334
        %7336 = vmatmul.f32.gmra.mxu0 %v6359
        %v7337 = vpop.f32.mrf.mxu0
        %v7338 = vadd.f32 %v6639, %v7337
        %7339 = vmatmul.f32.gmra.mxu0 %v6364
        %v7340 = vpop.f32.mrf.mxu0
        %v7341 = vadd.f32 %v6639, %v7340
        %7342 = vmatmul.f32.gmra.mxu0 %v6369
        %v7343 = vpop.f32.mrf.mxu0
        %v7344 = vadd.f32 %v6639, %v7343
        %7345 = vmatmul.f32.gmra.mxu0 %v6374
        %v7346 = vpop.f32.mrf.mxu0
        %v7347 = vadd.f32 %v6639, %v7346
        %7348 = vmatmul.f32.gmra.mxu0 %v6379
        %v7349 = vpop.f32.mrf.mxu0
        %v7350 = vadd.f32 %v6639, %v7349
        %7351 = vmatmul.f32.gmra.mxu0 %v6384
        %v7352 = vpop.f32.mrf.mxu0
        %v7353 = vadd.f32 %v6639, %v7352
        %7354 = vmatmul.f32.gmra.mxu0 %v6389
        %v7355 = vpop.f32.mrf.mxu0
        %v7356 = vadd.f32 %v6639, %v7355
        %7357 = vdwg.mxu0
        %7358 = vmatpush.msra.mxu0 %v6489
        %7359 = vmatpush.msra.mxu0 %v6486
        %7360 = vmatpush.msra.mxu0 %v6483
        %7361 = vmatpush.msra.mxu0 %v6480
        %7362 = vmatpush.msra.mxu0 %v6477
        %7363 = vmatpush.msra.mxu0 %v6474
        %7364 = vmatpush.msra.mxu0 %v6471
        %7365 = vmatpush.msra.mxu0 %v6468
        %7366 = vmatpush.msra.mxu0 %v6465
        %7367 = vmatpush.msra.mxu0 %v6462
        %7368 = vmatpush.msra.mxu0 %v6459
        %7369 = vmatpush.msra.mxu0 %v6456
        %7370 = vmatpush.msra.mxu0 %v6453
        %7371 = vmatpush.msra.mxu0 %v6450
        %7372 = vmatpush.msra.mxu0 %v6447
        %7373 = vmatpush.msra.mxu0 %v6444
        %7374 = vmatmul.f32.gmra.mxu0 %v6315
        %v7375 = vpop.f32.mrf.mxu0
        %v7376 = vadd.f32 %v7311, %v7375
        %7377 = vmatmul.f32.gmra.mxu0 %v6320
        %v7378 = vpop.f32.mrf.mxu0
        %v7379 = vadd.f32 %v7314, %v7378
        %7380 = vmatmul.f32.gmra.mxu0 %v6325
        %v7381 = vpop.f32.mrf.mxu0
        %v7382 = vadd.f32 %v7317, %v7381
        %7383 = vmatmul.f32.gmra.mxu0 %v6330
        %v7384 = vpop.f32.mrf.mxu0
        %v7385 = vadd.f32 %v7320, %v7384
        %7386 = vmatmul.f32.gmra.mxu0 %v6335
        %v7387 = vpop.f32.mrf.mxu0
        %v7388 = vadd.f32 %v7323, %v7387
        %7389 = vmatmul.f32.gmra.mxu0 %v6340
        %v7390 = vpop.f32.mrf.mxu0
        %v7391 = vadd.f32 %v7326, %v7390
        %7392 = vmatmul.f32.gmra.mxu0 %v6345
        %v7393 = vpop.f32.mrf.mxu0
        %v7394 = vadd.f32 %v7329, %v7393
        %7395 = vmatmul.f32.gmra.mxu0 %v6350
        %v7396 = vpop.f32.mrf.mxu0
        %v7397 = vadd.f32 %v7332, %v7396
        %7398 = vmatmul.f32.gmra.mxu0 %v6355
        %v7399 = vpop.f32.mrf.mxu0
        %v7400 = vadd.f32 %v7335, %v7399
        %7401 = vmatmul.f32.gmra.mxu0 %v6360
        %v7402 = vpop.f32.mrf.mxu0
        %v7403 = vadd.f32 %v7338, %v7402
        %7404 = vmatmul.f32.gmra.mxu0 %v6365
        %v7405 = vpop.f32.mrf.mxu0
        %v7406 = vadd.f32 %v7341, %v7405
        %7407 = vmatmul.f32.gmra.mxu0 %v6370
        %v7408 = vpop.f32.mrf.mxu0
        %v7409 = vadd.f32 %v7344, %v7408
        %7410 = vmatmul.f32.gmra.mxu0 %v6375
        %v7411 = vpop.f32.mrf.mxu0
        %v7412 = vadd.f32 %v7347, %v7411
        %7413 = vmatmul.f32.gmra.mxu0 %v6380
        %v7414 = vpop.f32.mrf.mxu0
        %v7415 = vadd.f32 %v7350, %v7414
        %7416 = vmatmul.f32.gmra.mxu0 %v6385
        %v7417 = vpop.f32.mrf.mxu0
        %v7418 = vadd.f32 %v7353, %v7417
        %7419 = vmatmul.f32.gmra.mxu0 %v6390
        %v7420 = vpop.f32.mrf.mxu0
        %v7421 = vadd.f32 %v7356, %v7420
        %7422 = vdwg.mxu0
        %7423 = vmatpush.msra.mxu0 %v6537
        %7424 = vmatpush.msra.mxu0 %v6534
        %7425 = vmatpush.msra.mxu0 %v6531
        %7426 = vmatpush.msra.mxu0 %v6528
        %7427 = vmatpush.msra.mxu0 %v6525
        %7428 = vmatpush.msra.mxu0 %v6522
        %7429 = vmatpush.msra.mxu0 %v6519
        %7430 = vmatpush.msra.mxu0 %v6516
        %7431 = vmatpush.msra.mxu0 %v6513
        %7432 = vmatpush.msra.mxu0 %v6510
        %7433 = vmatpush.msra.mxu0 %v6507
        %7434 = vmatpush.msra.mxu0 %v6504
        %7435 = vmatpush.msra.mxu0 %v6501
        %7436 = vmatpush.msra.mxu0 %v6498
        %7437 = vmatpush.msra.mxu0 %v6495
        %7438 = vmatpush.msra.mxu0 %v6492
        %7439 = vmatmul.f32.gmra.mxu0 %v6316
        %v7440 = vpop.f32.mrf.mxu0
        %v7441 = vadd.f32 %v7376, %v7440
        %7442 = vmatmul.f32.gmra.mxu0 %v6321
        %v7443 = vpop.f32.mrf.mxu0
        %v7444 = vadd.f32 %v7379, %v7443
        %7445 = vmatmul.f32.gmra.mxu0 %v6326
        %v7446 = vpop.f32.mrf.mxu0
        %v7447 = vadd.f32 %v7382, %v7446
        %7448 = vmatmul.f32.gmra.mxu0 %v6331
        %v7449 = vpop.f32.mrf.mxu0
        %v7450 = vadd.f32 %v7385, %v7449
        %7451 = vmatmul.f32.gmra.mxu0 %v6336
        %v7452 = vpop.f32.mrf.mxu0
        %v7453 = vadd.f32 %v7388, %v7452
        %7454 = vmatmul.f32.gmra.mxu0 %v6341
        %v7455 = vpop.f32.mrf.mxu0
        %v7456 = vadd.f32 %v7391, %v7455
        %7457 = vmatmul.f32.gmra.mxu0 %v6346
        %v7458 = vpop.f32.mrf.mxu0
        %v7459 = vadd.f32 %v7394, %v7458
        %7460 = vmatmul.f32.gmra.mxu0 %v6351
        %v7461 = vpop.f32.mrf.mxu0
        %v7462 = vadd.f32 %v7397, %v7461
        %7463 = vmatmul.f32.gmra.mxu0 %v6356
        %v7464 = vpop.f32.mrf.mxu0
        %v7465 = vadd.f32 %v7400, %v7464
        %7466 = vmatmul.f32.gmra.mxu0 %v6361
        %v7467 = vpop.f32.mrf.mxu0
        %v7468 = vadd.f32 %v7403, %v7467
        %7469 = vmatmul.f32.gmra.mxu0 %v6366
        %v7470 = vpop.f32.mrf.mxu0
        %v7471 = vadd.f32 %v7406, %v7470
        %7472 = vmatmul.f32.gmra.mxu0 %v6371
        %v7473 = vpop.f32.mrf.mxu0
        %v7474 = vadd.f32 %v7409, %v7473
        %7475 = vmatmul.f32.gmra.mxu0 %v6376
        %v7476 = vpop.f32.mrf.mxu0
        %v7477 = vadd.f32 %v7412, %v7476
        %7478 = vmatmul.f32.gmra.mxu0 %v6381
        %v7479 = vpop.f32.mrf.mxu0
        %v7480 = vadd.f32 %v7415, %v7479
        %7481 = vmatmul.f32.gmra.mxu0 %v6386
        %v7482 = vpop.f32.mrf.mxu0
        %v7483 = vadd.f32 %v7418, %v7482
        %7484 = vmatmul.f32.gmra.mxu0 %v6391
        %v7485 = vpop.f32.mrf.mxu0
        %v7486 = vadd.f32 %v7421, %v7485
        %7487 = vdwg.mxu0
        %7488 = vmatpush.msra.mxu0 %v6585
        %7489 = vmatpush.msra.mxu0 %v6582
        %7490 = vmatpush.msra.mxu0 %v6579
        %7491 = vmatpush.msra.mxu0 %v6576
        %7492 = vmatpush.msra.mxu0 %v6573
        %7493 = vmatpush.msra.mxu0 %v6570
        %7494 = vmatpush.msra.mxu0 %v6567
        %7495 = vmatpush.msra.mxu0 %v6564
        %7496 = vmatpush.msra.mxu0 %v6561
        %7497 = vmatpush.msra.mxu0 %v6558
        %7498 = vmatpush.msra.mxu0 %v6555
        %7499 = vmatpush.msra.mxu0 %v6552
        %7500 = vmatpush.msra.mxu0 %v6549
        %7501 = vmatpush.msra.mxu0 %v6546
        %7502 = vmatpush.msra.mxu0 %v6543
        %7503 = vmatpush.msra.mxu0 %v6540
        %7504 = vmatmul.f32.gmra.mxu0 %v6317
        %v7505 = vpop.f32.mrf.mxu0
        %v7506 = vadd.f32 %v7441, %v7505
        %7507 = vmatmul.f32.gmra.mxu0 %v6322
        %v7508 = vpop.f32.mrf.mxu0
        %v7509 = vadd.f32 %v7444, %v7508
        %7510 = vmatmul.f32.gmra.mxu0 %v6327
        %v7511 = vpop.f32.mrf.mxu0
        %v7512 = vadd.f32 %v7447, %v7511
        %7513 = vmatmul.f32.gmra.mxu0 %v6332
        %v7514 = vpop.f32.mrf.mxu0
        %v7515 = vadd.f32 %v7450, %v7514
        %7516 = vmatmul.f32.gmra.mxu0 %v6337
        %v7517 = vpop.f32.mrf.mxu0
        %v7518 = vadd.f32 %v7453, %v7517
        %7519 = vmatmul.f32.gmra.mxu0 %v6342
        %v7520 = vpop.f32.mrf.mxu0
        %v7521 = vadd.f32 %v7456, %v7520
        %7522 = vmatmul.f32.gmra.mxu0 %v6347
        %v7523 = vpop.f32.mrf.mxu0
        %v7524 = vadd.f32 %v7459, %v7523
        %7525 = vmatmul.f32.gmra.mxu0 %v6352
        %v7526 = vpop.f32.mrf.mxu0
        %v7527 = vadd.f32 %v7462, %v7526
        %7528 = vmatmul.f32.gmra.mxu0 %v6357
        %v7529 = vpop.f32.mrf.mxu0
        %v7530 = vadd.f32 %v7465, %v7529
        %7531 = vmatmul.f32.gmra.mxu0 %v6362
        %v7532 = vpop.f32.mrf.mxu0
        %v7533 = vadd.f32 %v7468, %v7532
        %7534 = vmatmul.f32.gmra.mxu0 %v6367
        %v7535 = vpop.f32.mrf.mxu0
        %v7536 = vadd.f32 %v7471, %v7535
        %7537 = vmatmul.f32.gmra.mxu0 %v6372
        %v7538 = vpop.f32.mrf.mxu0
        %v7539 = vadd.f32 %v7474, %v7538
        %7540 = vmatmul.f32.gmra.mxu0 %v6377
        %v7541 = vpop.f32.mrf.mxu0
        %v7542 = vadd.f32 %v7477, %v7541
        %7543 = vmatmul.f32.gmra.mxu0 %v6382
        %v7544 = vpop.f32.mrf.mxu0
        %v7545 = vadd.f32 %v7480, %v7544
        %7546 = vmatmul.f32.gmra.mxu0 %v6387
        %v7547 = vpop.f32.mrf.mxu0
        %v7548 = vadd.f32 %v7483, %v7547
        %7549 = vmatmul.f32.gmra.mxu0 %v6392
        %v7550 = vpop.f32.mrf.mxu0
        %v7551 = vadd.f32 %v7486, %v7550
        %7552 = vdwg.mxu0
        %7553 = vmatpush.msra.mxu0 %v6633
        %7554 = vmatpush.msra.mxu0 %v6630
        %7555 = vmatpush.msra.mxu0 %v6627
        %7556 = vmatpush.msra.mxu0 %v6624
        %7557 = vmatpush.msra.mxu0 %v6621
        %7558 = vmatpush.msra.mxu0 %v6618
        %7559 = vmatpush.msra.mxu0 %v6615
        %7560 = vmatpush.msra.mxu0 %v6612
        %7561 = vmatpush.msra.mxu0 %v6609
        %7562 = vmatpush.msra.mxu0 %v6606
        %7563 = vmatpush.msra.mxu0 %v6603
        %7564 = vmatpush.msra.mxu0 %v6600
        %7565 = vmatpush.msra.mxu0 %v6597
        %7566 = vmatpush.msra.mxu0 %v6594
        %7567 = vmatpush.msra.mxu0 %v6591
        %7568 = vmatpush.msra.mxu0 %v6588
        %7569 = vmatmul.f32.gmra.mxu0 %v6318
        %v7570 = vpop.f32.mrf.mxu0
        %v7571 = vadd.f32 %v7506, %v7570
        %7572 = vmatmul.f32.gmra.mxu0 %v6323
        %v7573 = vpop.f32.mrf.mxu0
        %v7574 = vadd.f32 %v7509, %v7573
        %7575 = vmatmul.f32.gmra.mxu0 %v6328
        %v7576 = vpop.f32.mrf.mxu0
        %v7577 = vadd.f32 %v7512, %v7576
        %7578 = vmatmul.f32.gmra.mxu0 %v6333
        %v7579 = vpop.f32.mrf.mxu0
        %v7580 = vadd.f32 %v7515, %v7579
        %7581 = vmatmul.f32.gmra.mxu0 %v6338
        %v7582 = vpop.f32.mrf.mxu0
        %v7583 = vadd.f32 %v7518, %v7582
        %7584 = vmatmul.f32.gmra.mxu0 %v6343
        %v7585 = vpop.f32.mrf.mxu0
        %v7586 = vadd.f32 %v7521, %v7585
        %7587 = vmatmul.f32.gmra.mxu0 %v6348
        %v7588 = vpop.f32.mrf.mxu0
        %v7589 = vadd.f32 %v7524, %v7588
        %7590 = vmatmul.f32.gmra.mxu0 %v6353
        %v7591 = vpop.f32.mrf.mxu0
        %v7592 = vadd.f32 %v7527, %v7591
        %7593 = vmatmul.f32.gmra.mxu0 %v6358
        %v7594 = vpop.f32.mrf.mxu0
        %v7595 = vadd.f32 %v7530, %v7594
        %7596 = vmatmul.f32.gmra.mxu0 %v6363
        %v7597 = vpop.f32.mrf.mxu0
        %v7598 = vadd.f32 %v7533, %v7597
        %7599 = vmatmul.f32.gmra.mxu0 %v6368
        %v7600 = vpop.f32.mrf.mxu0
        %v7601 = vadd.f32 %v7536, %v7600
        %7602 = vmatmul.f32.gmra.mxu0 %v6373
        %v7603 = vpop.f32.mrf.mxu0
        %v7604 = vadd.f32 %v7539, %v7603
        %7605 = vmatmul.f32.gmra.mxu0 %v6378
        %v7606 = vpop.f32.mrf.mxu0
        %v7607 = vadd.f32 %v7542, %v7606
        %7608 = vmatmul.f32.gmra.mxu0 %v6383
        %v7609 = vpop.f32.mrf.mxu0
        %v7610 = vadd.f32 %v7545, %v7609
        %7611 = vmatmul.f32.gmra.mxu0 %v6388
        %v7612 = vpop.f32.mrf.mxu0
        %v7613 = vadd.f32 %v7548, %v7612
        %7614 = vmatmul.f32.gmra.mxu0 %v6393
        %v7615 = vpop.f32.mrf.mxu0
        %v7616 = vadd.f32 %v7551, %v7615
        %7617 = vdwg.mxu0
        %v7618 = vmax.f32 %v6921, 0.0
        %v7619 = vmax.f32 %v7246, 0.0
        %v7620 = vmax.f32 %v7571, 0.0
        %v7621 = vmax.f32 %v6924, 0.0
        %v7622 = vmax.f32 %v7249, 0.0
        %v7623 = vmax.f32 %v7574, 0.0
        %v7624 = vmax.f32 %v6927, 0.0
        %v7625 = vmax.f32 %v7252, 0.0
        %v7626 = vmax.f32 %v7577, 0.0
        %v7627 = vmax.f32 %v6930, 0.0
        %v7628 = vmax.f32 %v7255, 0.0
        %v7629 = vmax.f32 %v7580, 0.0
        %v7630 = vmax.f32 %v6933, 0.0
        %v7631 = vmax.f32 %v7258, 0.0
        %v7632 = vmax.f32 %v7583, 0.0
        %v7633 = vmax.f32 %v6936, 0.0
        %v7634 = vmax.f32 %v7261, 0.0
        %v7635 = vmax.f32 %v7586, 0.0
        %v7636 = vmax.f32 %v6939, 0.0
        %v7637 = vmax.f32 %v7264, 0.0
        %v7638 = vmax.f32 %v7589, 0.0
        %v7639 = vmax.f32 %v6942, 0.0
        %v7640 = vmax.f32 %v7267, 0.0
        %v7641 = vmax.f32 %v7592, 0.0
        %v7642 = vmax.f32 %v6945, 0.0
        %v7643 = vmax.f32 %v7270, 0.0
        %v7644 = vmax.f32 %v7595, 0.0
        %v7645 = vmax.f32 %v6948, 0.0
        %v7646 = vmax.f32 %v7273, 0.0
        %v7647 = vmax.f32 %v7598, 0.0
        %v7648 = vmax.f32 %v6951, 0.0
        %v7649 = vmax.f32 %v7276, 0.0
        %v7650 = vmax.f32 %v7601, 0.0
        %v7651 = vmax.f32 %v6954, 0.0
        %v7652 = vmax.f32 %v7279, 0.0
        %v7653 = vmax.f32 %v7604, 0.0
        %v7654 = vmax.f32 %v6957, 0.0
        %v7655 = vmax.f32 %v7282, 0.0
        %v7656 = vmax.f32 %v7607, 0.0
        %v7657 = vmax.f32 %v6960, 0.0
        %v7658 = vmax.f32 %v7285, 0.0
        %v7659 = vmax.f32 %v7610, 0.0
        %v7660 = vmax.f32 %v6963, 0.0
        %v7661 = vmax.f32 %v7288, 0.0
        %v7662 = vmax.f32 %v7613, 0.0
        %v7663 = vmax.f32 %v6966, 0.0
        %v7664 = vmax.f32 %v7291, 0.0
        %v7665 = vmax.f32 %v7616, 0.0
        %v7666 = vld [vmem:[#allocation13] sm:$0xff]
        %v7667 = vld [vmem:[#allocation13 + $0x8] sm:$0xff]
        %v7668 = vld [vmem:[#allocation13 + $0x10] sm:$0xff]
        %v7669 = vld [vmem:[#allocation13 + $0x18] sm:$0xff]
        %v7670 = vld [vmem:[#allocation13 + $0x20] sm:$0xff]
        %v7671 = vld [vmem:[#allocation13 + $0x28] sm:$0xff]
        %v7672 = vld [vmem:[#allocation13 + $0x30] sm:$0xff]
        %v7673 = vld [vmem:[#allocation13 + $0x38] sm:$0xff]
        %v7674 = vld [vmem:[#allocation13 + $0x40] sm:$0xff]
        %v7675 = vld [vmem:[#allocation13 + $0x48] sm:$0xff]
        %v7676 = vld [vmem:[#allocation13 + $0x50] sm:$0xff]
        %v7677 = vld [vmem:[#allocation13 + $0x58] sm:$0xff]
        %v7678 = vld [vmem:[#allocation13 + $0x60] sm:$0xff]
        %v7679 = vld [vmem:[#allocation13 + $0x68] sm:$0xff]
        %v7680 = vld [vmem:[#allocation13 + $0x70] sm:$0xff]
        %v7681 = vld [vmem:[#allocation13 + $0x78] sm:$0xff]
        %v7682 = vld [vmem:[#allocation13 + $0x80] sm:$0xff]
        %v7683 = vld [vmem:[#allocation13 + $0x88] sm:$0xff]
        %v7684 = vld [vmem:[#allocation13 + $0x90] sm:$0xff]
        %v7685 = vld [vmem:[#allocation13 + $0x98] sm:$0xff]
        %v7686 = vld [vmem:[#allocation13 + $0xa0] sm:$0xff]
        %v7687 = vld [vmem:[#allocation13 + $0xa8] sm:$0xff]
        %v7688 = vld [vmem:[#allocation13 + $0xb0] sm:$0xff]
        %v7689 = vld [vmem:[#allocation13 + $0xb8] sm:$0xff]
        %v7690 = vld [vmem:[#allocation13 + $0xc0] sm:$0xff]
        %v7691 = vld [vmem:[#allocation13 + $0xc8] sm:$0xff]
        %v7692 = vld [vmem:[#allocation13 + $0xd0] sm:$0xff]
        %v7693 = vld [vmem:[#allocation13 + $0xd8] sm:$0xff]
        %v7694 = vld [vmem:[#allocation13 + $0xe0] sm:$0xff]
        %v7695 = vld [vmem:[#allocation13 + $0xe8] sm:$0xff]
        %v7696 = vld [vmem:[#allocation13 + $0xf0] sm:$0xff]
        %v7697 = vld [vmem:[#allocation13 + $0xf8] sm:$0xff]
        %v7698 = vld [vmem:[#allocation13 + $0x100] sm:$0xff]
        %v7699 = vld [vmem:[#allocation13 + $0x108] sm:$0xff]
        %v7700 = vld [vmem:[#allocation13 + $0x110] sm:$0xff]
        %v7701 = vld [vmem:[#allocation13 + $0x118] sm:$0xff]
        %v7702 = vld [vmem:[#allocation13 + $0x120] sm:$0xff]
        %v7703 = vld [vmem:[#allocation13 + $0x128] sm:$0xff]
        %v7704 = vld [vmem:[#allocation13 + $0x130] sm:$0xff]
        %v7705 = vld [vmem:[#allocation13 + $0x138] sm:$0xff]
        %v7706 = vld [vmem:[#allocation13 + $0x140] sm:$0xff]
        %v7707 = vld [vmem:[#allocation13 + $0x148] sm:$0xff]
        %v7708 = vld [vmem:[#allocation13 + $0x150] sm:$0xff]
        %v7709 = vld [vmem:[#allocation13 + $0x158] sm:$0xff]
        %v7710 = vld [vmem:[#allocation13 + $0x160] sm:$0xff]
        %v7711 = vld [vmem:[#allocation13 + $0x168] sm:$0xff]
        %v7712 = vld [vmem:[#allocation13 + $0x170] sm:$0xff]
        %v7713 = vld [vmem:[#allocation13 + $0x178] sm:$0xff]
        %v7714 = vld [vmem:[#allocation13 + $0x180] sm:$0xff]
        %v7715 = vld [vmem:[#allocation13 + $0x188] sm:$0xff]
        %v7716 = vld [vmem:[#allocation13 + $0x190] sm:$0xff]
        %v7717 = vld [vmem:[#allocation13 + $0x198] sm:$0xff]
        %v7718 = vld [vmem:[#allocation13 + $0x1a0] sm:$0xff]
        %v7719 = vld [vmem:[#allocation13 + $0x1a8] sm:$0xff]
        %v7720 = vld [vmem:[#allocation13 + $0x1b0] sm:$0xff]
        %v7721 = vld [vmem:[#allocation13 + $0x1b8] sm:$0xff]
        %v7722 = vld [vmem:[#allocation13 + $0x1c0] sm:$0xff]
        %v7723 = vld [vmem:[#allocation13 + $0x1c8] sm:$0xff]
        %v7724 = vld [vmem:[#allocation13 + $0x1d0] sm:$0xff]
        %v7725 = vld [vmem:[#allocation13 + $0x1d8] sm:$0xff]
        %v7726 = vld [vmem:[#allocation13 + $0x1e0] sm:$0xff]
        %v7727 = vld [vmem:[#allocation13 + $0x1e8] sm:$0xff]
        %v7728 = vld [vmem:[#allocation13 + $0x1f0] sm:$0xff]
        %v7729 = vld [vmem:[#allocation13 + $0x1f8] sm:$0xff]
        %v7730 = vld [vmem:[#allocation13 + $0x200] sm:$0xff]
        %v7731 = vld [vmem:[#allocation13 + $0x208] sm:$0xff]
        %v7732 = vld [vmem:[#allocation13 + $0x210] sm:$0xff]
        %v7733 = vld [vmem:[#allocation13 + $0x218] sm:$0xff]
        %v7734 = vld [vmem:[#allocation13 + $0x220] sm:$0xff]
        %v7735 = vld [vmem:[#allocation13 + $0x228] sm:$0xff]
        %v7736 = vld [vmem:[#allocation13 + $0x230] sm:$0xff]
        %v7737 = vld [vmem:[#allocation13 + $0x238] sm:$0xff]
        %v7738 = vld [vmem:[#allocation13 + $0x240] sm:$0xff]
        %v7739 = vld [vmem:[#allocation13 + $0x248] sm:$0xff]
        %v7740 = vld [vmem:[#allocation13 + $0x250] sm:$0xff]
        %v7741 = vld [vmem:[#allocation13 + $0x258] sm:$0xff]
        %v7742 = vld [vmem:[#allocation13 + $0x260] sm:$0xff]
        %v7743 = vld [vmem:[#allocation13 + $0x268] sm:$0xff]
        %v7744 = vld [vmem:[#allocation13 + $0x270] sm:$0xff]
        %v7745 = vld [vmem:[#allocation13 + $0x278] sm:$0xff]
        %v7746 = vld [vmem:[#allocation13 + $0x280] sm:$0xff]
        %v7747 = vld [vmem:[#allocation13 + $0x288] sm:$0xff]
        %v7748 = vld [vmem:[#allocation13 + $0x290] sm:$0xff]
        %v7749 = vld [vmem:[#allocation13 + $0x298] sm:$0xff]
        %v7750 = vld [vmem:[#allocation13 + $0x2a0] sm:$0xff]
        %v7751 = vld [vmem:[#allocation13 + $0x2a8] sm:$0xff]
        %v7752 = vld [vmem:[#allocation13 + $0x2b0] sm:$0xff]
        %v7753 = vld [vmem:[#allocation13 + $0x2b8] sm:$0xff]
        %v7754 = vld [vmem:[#allocation13 + $0x2c0] sm:$0xff]
        %v7755 = vld [vmem:[#allocation13 + $0x2c8] sm:$0xff]
        %v7756 = vld [vmem:[#allocation13 + $0x2d0] sm:$0xff]
        %v7757 = vld [vmem:[#allocation13 + $0x2d8] sm:$0xff]
        %v7758 = vld [vmem:[#allocation13 + $0x2e0] sm:$0xff]
        %v7759 = vld [vmem:[#allocation13 + $0x2e8] sm:$0xff]
        %v7760 = vld [vmem:[#allocation13 + $0x2f0] sm:$0xff]
        %v7761 = vld [vmem:[#allocation13 + $0x2f8] sm:$0xff]
        %v7762 = vld [vmem:[#allocation13 + $0x300] sm:$0xff]
        %v7763 = vld [vmem:[#allocation13 + $0x308] sm:$0xff]
        %v7764 = vld [vmem:[#allocation13 + $0x310] sm:$0xff]
        %v7765 = vld [vmem:[#allocation13 + $0x318] sm:$0xff]
        %v7766 = vld [vmem:[#allocation13 + $0x320] sm:$0xff]
        %v7767 = vld [vmem:[#allocation13 + $0x328] sm:$0xff]
        %v7768 = vld [vmem:[#allocation13 + $0x330] sm:$0xff]
        %v7769 = vld [vmem:[#allocation13 + $0x338] sm:$0xff]
        %v7770 = vld [vmem:[#allocation13 + $0x340] sm:$0xff]
        %v7771 = vld [vmem:[#allocation13 + $0x348] sm:$0xff]
        %v7772 = vld [vmem:[#allocation13 + $0x350] sm:$0xff]
        %v7773 = vld [vmem:[#allocation13 + $0x358] sm:$0xff]
        %v7774 = vld [vmem:[#allocation13 + $0x360] sm:$0xff]
        %v7775 = vld [vmem:[#allocation13 + $0x368] sm:$0xff]
        %v7776 = vld [vmem:[#allocation13 + $0x370] sm:$0xff]
        %v7777 = vld [vmem:[#allocation13 + $0x378] sm:$0xff]
        %v7778 = vld [vmem:[#allocation13 + $0x380] sm:$0xff]
        %v7779 = vld [vmem:[#allocation13 + $0x388] sm:$0xff]
        %v7780 = vld [vmem:[#allocation13 + $0x390] sm:$0xff]
        %v7781 = vld [vmem:[#allocation13 + $0x398] sm:$0xff]
        %v7782 = vld [vmem:[#allocation13 + $0x3a0] sm:$0xff]
        %v7783 = vld [vmem:[#allocation13 + $0x3a8] sm:$0xff]
        %v7784 = vld [vmem:[#allocation13 + $0x3b0] sm:$0xff]
        %v7785 = vld [vmem:[#allocation13 + $0x3b8] sm:$0xff]
        %v7786 = vld [vmem:[#allocation13 + $0x3c0] sm:$0xff]
        %v7787 = vld [vmem:[#allocation13 + $0x3c8] sm:$0xff]
        %v7788 = vld [vmem:[#allocation13 + $0x3d0] sm:$0xff]
        %v7789 = vld [vmem:[#allocation13 + $0x3d8] sm:$0xff]
        %v7790 = vld [vmem:[#allocation13 + $0x3e0] sm:$0xff]
        %v7791 = vld [vmem:[#allocation13 + $0x3e8] sm:$0xff]
        %v7792 = vld [vmem:[#allocation13 + $0x3f0] sm:$0xff]
        %v7793 = vld [vmem:[#allocation13 + $0x3f8] sm:$0xff]
        %v7794 = vld [vmem:[#allocation13 + $0x400] sm:$0xff]
        %v7795 = vld [vmem:[#allocation13 + $0x408] sm:$0xff]
        %v7796 = vld [vmem:[#allocation13 + $0x410] sm:$0xff]
        %v7797 = vld [vmem:[#allocation13 + $0x418] sm:$0xff]
        %v7798 = vld [vmem:[#allocation13 + $0x420] sm:$0xff]
        %v7799 = vld [vmem:[#allocation13 + $0x428] sm:$0xff]
        %v7800 = vld [vmem:[#allocation13 + $0x430] sm:$0xff]
        %v7801 = vld [vmem:[#allocation13 + $0x438] sm:$0xff]
        %v7802 = vld [vmem:[#allocation13 + $0x440] sm:$0xff]
        %v7803 = vld [vmem:[#allocation13 + $0x448] sm:$0xff]
        %v7804 = vld [vmem:[#allocation13 + $0x450] sm:$0xff]
        %v7805 = vld [vmem:[#allocation13 + $0x458] sm:$0xff]
        %v7806 = vld [vmem:[#allocation13 + $0x460] sm:$0xff]
        %v7807 = vld [vmem:[#allocation13 + $0x468] sm:$0xff]
        %v7808 = vld [vmem:[#allocation13 + $0x470] sm:$0xff]
        %v7809 = vld [vmem:[#allocation13 + $0x478] sm:$0xff]
        %s7810 = scalar_lea.vmem [#allocation18], 7
        %v7811 = vld [vmem:[%s7810] ss:$8 sm:$0x7]
        %v7813 = vperm.slane %v7811, 0
        %v7814 = vperm.slane %v7811, 1
        %v7815 = vperm.slane %v7811, 2
        %7819 = vmatpush.msra.mxu0 %v7711
        %7820 = vmatpush.msra.mxu0 %v7708
        %7821 = vmatpush.msra.mxu0 %v7705
        %7822 = vmatpush.msra.mxu0 %v7702
        %7823 = vmatpush.msra.mxu0 %v7699
        %7824 = vmatpush.msra.mxu0 %v7696
        %7825 = vmatpush.msra.mxu0 %v7693
        %7826 = vmatpush.msra.mxu0 %v7690
        %7827 = vmatpush.msra.mxu0 %v7687
        %7828 = vmatpush.msra.mxu0 %v7684
        %7829 = vmatpush.msra.mxu0 %v7681
        %7830 = vmatpush.msra.mxu0 %v7678
        %7831 = vmatpush.msra.mxu0 %v7675
        %7832 = vmatpush.msra.mxu0 %v7672
        %7833 = vmatpush.msra.mxu0 %v7669
        %7834 = vmatpush.msra.mxu0 %v7666
        %7835 = vmatmul.f32.gmra.mxu0 %v7618
        %v7836 = vpop.f32.mrf.mxu0
        %v7837 = vadd.f32 %v7813, %v7836
        %7838 = vmatmul.f32.gmra.mxu0 %v7621
        %v7839 = vpop.f32.mrf.mxu0
        %v7840 = vadd.f32 %v7813, %v7839
        %7841 = vmatmul.f32.gmra.mxu0 %v7624
        %v7842 = vpop.f32.mrf.mxu0
        %v7843 = vadd.f32 %v7813, %v7842
        %7844 = vmatmul.f32.gmra.mxu0 %v7627
        %v7845 = vpop.f32.mrf.mxu0
        %v7846 = vadd.f32 %v7813, %v7845
        %7847 = vmatmul.f32.gmra.mxu0 %v7630
        %v7848 = vpop.f32.mrf.mxu0
        %v7849 = vadd.f32 %v7813, %v7848
        %7850 = vmatmul.f32.gmra.mxu0 %v7633
        %v7851 = vpop.f32.mrf.mxu0
        %v7852 = vadd.f32 %v7813, %v7851
        %7853 = vmatmul.f32.gmra.mxu0 %v7636
        %v7854 = vpop.f32.mrf.mxu0
        %v7855 = vadd.f32 %v7813, %v7854
        %7856 = vmatmul.f32.gmra.mxu0 %v7639
        %v7857 = vpop.f32.mrf.mxu0
        %v7858 = vadd.f32 %v7813, %v7857
        %7859 = vmatmul.f32.gmra.mxu0 %v7642
        %v7860 = vpop.f32.mrf.mxu0
        %v7861 = vadd.f32 %v7813, %v7860
        %7862 = vmatmul.f32.gmra.mxu0 %v7645
        %v7863 = vpop.f32.mrf.mxu0
        %v7864 = vadd.f32 %v7813, %v7863
        %7865 = vmatmul.f32.gmra.mxu0 %v7648
        %v7866 = vpop.f32.mrf.mxu0
        %v7867 = vadd.f32 %v7813, %v7866
        %7868 = vmatmul.f32.gmra.mxu0 %v7651
        %v7869 = vpop.f32.mrf.mxu0
        %v7870 = vadd.f32 %v7813, %v7869
        %7871 = vmatmul.f32.gmra.mxu0 %v7654
        %v7872 = vpop.f32.mrf.mxu0
        %v7873 = vadd.f32 %v7813, %v7872
        %7874 = vmatmul.f32.gmra.mxu0 %v7657
        %v7875 = vpop.f32.mrf.mxu0
        %v7876 = vadd.f32 %v7813, %v7875
        %7877 = vmatmul.f32.gmra.mxu0 %v7660
        %v7878 = vpop.f32.mrf.mxu0
        %v7879 = vadd.f32 %v7813, %v7878
        %7880 = vmatmul.f32.gmra.mxu0 %v7663
        %v7881 = vpop.f32.mrf.mxu0
        %v7882 = vadd.f32 %v7813, %v7881
        %7883 = vdwg.mxu0
        %7884 = vmatpush.msra.mxu0 %v7759
        %7885 = vmatpush.msra.mxu0 %v7756
        %7886 = vmatpush.msra.mxu0 %v7753
        %7887 = vmatpush.msra.mxu0 %v7750
        %7888 = vmatpush.msra.mxu0 %v7747
        %7889 = vmatpush.msra.mxu0 %v7744
        %7890 = vmatpush.msra.mxu0 %v7741
        %7891 = vmatpush.msra.mxu0 %v7738
        %7892 = vmatpush.msra.mxu0 %v7735
        %7893 = vmatpush.msra.mxu0 %v7732
        %7894 = vmatpush.msra.mxu0 %v7729
        %7895 = vmatpush.msra.mxu0 %v7726
        %7896 = vmatpush.msra.mxu0 %v7723
        %7897 = vmatpush.msra.mxu0 %v7720
        %7898 = vmatpush.msra.mxu0 %v7717
        %7899 = vmatpush.msra.mxu0 %v7714
        %7900 = vmatmul.f32.gmra.mxu0 %v7619
        %v7901 = vpop.f32.mrf.mxu0
        %v7902 = vadd.f32 %v7837, %v7901
        %7903 = vmatmul.f32.gmra.mxu0 %v7622
        %v7904 = vpop.f32.mrf.mxu0
        %v7905 = vadd.f32 %v7840, %v7904
        %7906 = vmatmul.f32.gmra.mxu0 %v7625
        %v7907 = vpop.f32.mrf.mxu0
        %v7908 = vadd.f32 %v7843, %v7907
        %7909 = vmatmul.f32.gmra.mxu0 %v7628
        %v7910 = vpop.f32.mrf.mxu0
        %v7911 = vadd.f32 %v7846, %v7910
        %7912 = vmatmul.f32.gmra.mxu0 %v7631
        %v7913 = vpop.f32.mrf.mxu0
        %v7914 = vadd.f32 %v7849, %v7913
        %7915 = vmatmul.f32.gmra.mxu0 %v7634
        %v7916 = vpop.f32.mrf.mxu0
        %v7917 = vadd.f32 %v7852, %v7916
        %7918 = vmatmul.f32.gmra.mxu0 %v7637
        %v7919 = vpop.f32.mrf.mxu0
        %v7920 = vadd.f32 %v7855, %v7919
        %7921 = vmatmul.f32.gmra.mxu0 %v7640
        %v7922 = vpop.f32.mrf.mxu0
        %v7923 = vadd.f32 %v7858, %v7922
        %7924 = vmatmul.f32.gmra.mxu0 %v7643
        %v7925 = vpop.f32.mrf.mxu0
        %v7926 = vadd.f32 %v7861, %v7925
        %7927 = vmatmul.f32.gmra.mxu0 %v7646
        %v7928 = vpop.f32.mrf.mxu0
        %v7929 = vadd.f32 %v7864, %v7928
        %7930 = vmatmul.f32.gmra.mxu0 %v7649
        %v7931 = vpop.f32.mrf.mxu0
        %v7932 = vadd.f32 %v7867, %v7931
        %7933 = vmatmul.f32.gmra.mxu0 %v7652
        %v7934 = vpop.f32.mrf.mxu0
        %v7935 = vadd.f32 %v7870, %v7934
        %7936 = vmatmul.f32.gmra.mxu0 %v7655
        %v7937 = vpop.f32.mrf.mxu0
        %v7938 = vadd.f32 %v7873, %v7937
        %7939 = vmatmul.f32.gmra.mxu0 %v7658
        %v7940 = vpop.f32.mrf.mxu0
        %v7941 = vadd.f32 %v7876, %v7940
        %7942 = vmatmul.f32.gmra.mxu0 %v7661
        %v7943 = vpop.f32.mrf.mxu0
        %v7944 = vadd.f32 %v7879, %v7943
        %7945 = vmatmul.f32.gmra.mxu0 %v7664
        %v7946 = vpop.f32.mrf.mxu0
        %v7947 = vadd.f32 %v7882, %v7946
        %7948 = vdwg.mxu0
        %7949 = vmatpush.msra.mxu0 %v7807
        %7950 = vmatpush.msra.mxu0 %v7804
        %7951 = vmatpush.msra.mxu0 %v7801
        %7952 = vmatpush.msra.mxu0 %v7798
        %7953 = vmatpush.msra.mxu0 %v7795
        %7954 = vmatpush.msra.mxu0 %v7792
        %7955 = vmatpush.msra.mxu0 %v7789
        %7956 = vmatpush.msra.mxu0 %v7786
        %7957 = vmatpush.msra.mxu0 %v7783
        %7958 = vmatpush.msra.mxu0 %v7780
        %7959 = vmatpush.msra.mxu0 %v7777
        %7960 = vmatpush.msra.mxu0 %v7774
        %7961 = vmatpush.msra.mxu0 %v7771
        %7962 = vmatpush.msra.mxu0 %v7768
        %7963 = vmatpush.msra.mxu0 %v7765
        %7964 = vmatpush.msra.mxu0 %v7762
        %7965 = vmatmul.f32.gmra.mxu0 %v7620
        %v7966 = vpop.f32.mrf.mxu0
        %v7967 = vadd.f32 %v7902, %v7966
        %7968 = vmatmul.f32.gmra.mxu0 %v7623
        %v7969 = vpop.f32.mrf.mxu0
        %v7970 = vadd.f32 %v7905, %v7969
        %7971 = vmatmul.f32.gmra.mxu0 %v7626
        %v7972 = vpop.f32.mrf.mxu0
        %v7973 = vadd.f32 %v7908, %v7972
        %7974 = vmatmul.f32.gmra.mxu0 %v7629
        %v7975 = vpop.f32.mrf.mxu0
        %v7976 = vadd.f32 %v7911, %v7975
        %7977 = vmatmul.f32.gmra.mxu0 %v7632
        %v7978 = vpop.f32.mrf.mxu0
        %v7979 = vadd.f32 %v7914, %v7978
        %7980 = vmatmul.f32.gmra.mxu0 %v7635
        %v7981 = vpop.f32.mrf.mxu0
        %v7982 = vadd.f32 %v7917, %v7981
        %7983 = vmatmul.f32.gmra.mxu0 %v7638
        %v7984 = vpop.f32.mrf.mxu0
        %v7985 = vadd.f32 %v7920, %v7984
        %7986 = vmatmul.f32.gmra.mxu0 %v7641
        %v7987 = vpop.f32.mrf.mxu0
        %v7988 = vadd.f32 %v7923, %v7987
        %7989 = vmatmul.f32.gmra.mxu0 %v7644
        %v7990 = vpop.f32.mrf.mxu0
        %v7991 = vadd.f32 %v7926, %v7990
        %7992 = vmatmul.f32.gmra.mxu0 %v7647
        %v7993 = vpop.f32.mrf.mxu0
        %v7994 = vadd.f32 %v7929, %v7993
        %7995 = vmatmul.f32.gmra.mxu0 %v7650
        %v7996 = vpop.f32.mrf.mxu0
        %v7997 = vadd.f32 %v7932, %v7996
        %7998 = vmatmul.f32.gmra.mxu0 %v7653
        %v7999 = vpop.f32.mrf.mxu0
        %v8000 = vadd.f32 %v7935, %v7999
        %8001 = vmatmul.f32.gmra.mxu0 %v7656
        %v8002 = vpop.f32.mrf.mxu0
        %v8003 = vadd.f32 %v7938, %v8002
        %8004 = vmatmul.f32.gmra.mxu0 %v7659
        %v8005 = vpop.f32.mrf.mxu0
        %v8006 = vadd.f32 %v7941, %v8005
        %8007 = vmatmul.f32.gmra.mxu0 %v7662
        %v8008 = vpop.f32.mrf.mxu0
        %v8009 = vadd.f32 %v7944, %v8008
        %8010 = vmatmul.f32.gmra.mxu0 %v7665
        %v8011 = vpop.f32.mrf.mxu0
        %v8012 = vadd.f32 %v7947, %v8011
        %8013 = vdwg.mxu0
        %8014 = vmatpush.msra.mxu0 %v7712
        %8015 = vmatpush.msra.mxu0 %v7709
        %8016 = vmatpush.msra.mxu0 %v7706
        %8017 = vmatpush.msra.mxu0 %v7703
        %8018 = vmatpush.msra.mxu0 %v7700
        %8019 = vmatpush.msra.mxu0 %v7697
        %8020 = vmatpush.msra.mxu0 %v7694
        %8021 = vmatpush.msra.mxu0 %v7691
        %8022 = vmatpush.msra.mxu0 %v7688
        %8023 = vmatpush.msra.mxu0 %v7685
        %8024 = vmatpush.msra.mxu0 %v7682
        %8025 = vmatpush.msra.mxu0 %v7679
        %8026 = vmatpush.msra.mxu0 %v7676
        %8027 = vmatpush.msra.mxu0 %v7673
        %8028 = vmatpush.msra.mxu0 %v7670
        %8029 = vmatpush.msra.mxu0 %v7667
        %8030 = vmatmul.f32.gmra.mxu0 %v7618
        %v8031 = vpop.f32.mrf.mxu0
        %v8032 = vadd.f32 %v7814, %v8031
        %8033 = vmatmul.f32.gmra.mxu0 %v7621
        %v8034 = vpop.f32.mrf.mxu0
        %v8035 = vadd.f32 %v7814, %v8034
        %8036 = vmatmul.f32.gmra.mxu0 %v7624
        %v8037 = vpop.f32.mrf.mxu0
        %v8038 = vadd.f32 %v7814, %v8037
        %8039 = vmatmul.f32.gmra.mxu0 %v7627
        %v8040 = vpop.f32.mrf.mxu0
        %v8041 = vadd.f32 %v7814, %v8040
        %8042 = vmatmul.f32.gmra.mxu0 %v7630
        %v8043 = vpop.f32.mrf.mxu0
        %v8044 = vadd.f32 %v7814, %v8043
        %8045 = vmatmul.f32.gmra.mxu0 %v7633
        %v8046 = vpop.f32.mrf.mxu0
        %v8047 = vadd.f32 %v7814, %v8046
        %8048 = vmatmul.f32.gmra.mxu0 %v7636
        %v8049 = vpop.f32.mrf.mxu0
        %v8050 = vadd.f32 %v7814, %v8049
        %8051 = vmatmul.f32.gmra.mxu0 %v7639
        %v8052 = vpop.f32.mrf.mxu0
        %v8053 = vadd.f32 %v7814, %v8052
        %8054 = vmatmul.f32.gmra.mxu0 %v7642
        %v8055 = vpop.f32.mrf.mxu0
        %v8056 = vadd.f32 %v7814, %v8055
        %8057 = vmatmul.f32.gmra.mxu0 %v7645
        %v8058 = vpop.f32.mrf.mxu0
        %v8059 = vadd.f32 %v7814, %v8058
        %8060 = vmatmul.f32.gmra.mxu0 %v7648
        %v8061 = vpop.f32.mrf.mxu0
        %v8062 = vadd.f32 %v7814, %v8061
        %8063 = vmatmul.f32.gmra.mxu0 %v7651
        %v8064 = vpop.f32.mrf.mxu0
        %v8065 = vadd.f32 %v7814, %v8064
        %8066 = vmatmul.f32.gmra.mxu0 %v7654
        %v8067 = vpop.f32.mrf.mxu0
        %v8068 = vadd.f32 %v7814, %v8067
        %8069 = vmatmul.f32.gmra.mxu0 %v7657
        %v8070 = vpop.f32.mrf.mxu0
        %v8071 = vadd.f32 %v7814, %v8070
        %8072 = vmatmul.f32.gmra.mxu0 %v7660
        %v8073 = vpop.f32.mrf.mxu0
        %v8074 = vadd.f32 %v7814, %v8073
        %8075 = vmatmul.f32.gmra.mxu0 %v7663
        %v8076 = vpop.f32.mrf.mxu0
        %v8077 = vadd.f32 %v7814, %v8076
        %8078 = vdwg.mxu0
        %8079 = vmatpush.msra.mxu0 %v7760
        %8080 = vmatpush.msra.mxu0 %v7757
        %8081 = vmatpush.msra.mxu0 %v7754
        %8082 = vmatpush.msra.mxu0 %v7751
        %8083 = vmatpush.msra.mxu0 %v7748
        %8084 = vmatpush.msra.mxu0 %v7745
        %8085 = vmatpush.msra.mxu0 %v7742
        %8086 = vmatpush.msra.mxu0 %v7739
        %8087 = vmatpush.msra.mxu0 %v7736
        %8088 = vmatpush.msra.mxu0 %v7733
        %8089 = vmatpush.msra.mxu0 %v7730
        %8090 = vmatpush.msra.mxu0 %v7727
        %8091 = vmatpush.msra.mxu0 %v7724
        %8092 = vmatpush.msra.mxu0 %v7721
        %8093 = vmatpush.msra.mxu0 %v7718
        %8094 = vmatpush.msra.mxu0 %v7715
        %8095 = vmatmul.f32.gmra.mxu0 %v7619
        %v8096 = vpop.f32.mrf.mxu0
        %v8097 = vadd.f32 %v8032, %v8096
        %8098 = vmatmul.f32.gmra.mxu0 %v7622
        %v8099 = vpop.f32.mrf.mxu0
        %v8100 = vadd.f32 %v8035, %v8099
        %8101 = vmatmul.f32.gmra.mxu0 %v7625
        %v8102 = vpop.f32.mrf.mxu0
        %v8103 = vadd.f32 %v8038, %v8102
        %8104 = vmatmul.f32.gmra.mxu0 %v7628
        %v8105 = vpop.f32.mrf.mxu0
        %v8106 = vadd.f32 %v8041, %v8105
        %8107 = vmatmul.f32.gmra.mxu0 %v7631
        %v8108 = vpop.f32.mrf.mxu0
        %v8109 = vadd.f32 %v8044, %v8108
        %8110 = vmatmul.f32.gmra.mxu0 %v7634
        %v8111 = vpop.f32.mrf.mxu0
        %v8112 = vadd.f32 %v8047, %v8111
        %8113 = vmatmul.f32.gmra.mxu0 %v7637
        %v8114 = vpop.f32.mrf.mxu0
        %v8115 = vadd.f32 %v8050, %v8114
        %8116 = vmatmul.f32.gmra.mxu0 %v7640
        %v8117 = vpop.f32.mrf.mxu0
        %v8118 = vadd.f32 %v8053, %v8117
        %8119 = vmatmul.f32.gmra.mxu0 %v7643
        %v8120 = vpop.f32.mrf.mxu0
        %v8121 = vadd.f32 %v8056, %v8120
        %8122 = vmatmul.f32.gmra.mxu0 %v7646
        %v8123 = vpop.f32.mrf.mxu0
        %v8124 = vadd.f32 %v8059, %v8123
        %8125 = vmatmul.f32.gmra.mxu0 %v7649
        %v8126 = vpop.f32.mrf.mxu0
        %v8127 = vadd.f32 %v8062, %v8126
        %8128 = vmatmul.f32.gmra.mxu0 %v7652
        %v8129 = vpop.f32.mrf.mxu0
        %v8130 = vadd.f32 %v8065, %v8129
        %8131 = vmatmul.f32.gmra.mxu0 %v7655
        %v8132 = vpop.f32.mrf.mxu0
        %v8133 = vadd.f32 %v8068, %v8132
        %8134 = vmatmul.f32.gmra.mxu0 %v7658
        %v8135 = vpop.f32.mrf.mxu0
        %v8136 = vadd.f32 %v8071, %v8135
        %8137 = vmatmul.f32.gmra.mxu0 %v7661
        %v8138 = vpop.f32.mrf.mxu0
        %v8139 = vadd.f32 %v8074, %v8138
        %8140 = vmatmul.f32.gmra.mxu0 %v7664
        %v8141 = vpop.f32.mrf.mxu0
        %v8142 = vadd.f32 %v8077, %v8141
        %8143 = vdwg.mxu0
        %8144 = vmatpush.msra.mxu0 %v7808
        %8145 = vmatpush.msra.mxu0 %v7805
        %8146 = vmatpush.msra.mxu0 %v7802
        %8147 = vmatpush.msra.mxu0 %v7799
        %8148 = vmatpush.msra.mxu0 %v7796
        %8149 = vmatpush.msra.mxu0 %v7793
        %8150 = vmatpush.msra.mxu0 %v7790
        %8151 = vmatpush.msra.mxu0 %v7787
        %8152 = vmatpush.msra.mxu0 %v7784
        %8153 = vmatpush.msra.mxu0 %v7781
        %8154 = vmatpush.msra.mxu0 %v7778
        %8155 = vmatpush.msra.mxu0 %v7775
        %8156 = vmatpush.msra.mxu0 %v7772
        %8157 = vmatpush.msra.mxu0 %v7769
        %8158 = vmatpush.msra.mxu0 %v7766
        %8159 = vmatpush.msra.mxu0 %v7763
        %8160 = vmatmul.f32.gmra.mxu0 %v7620
        %v8161 = vpop.f32.mrf.mxu0
        %v8162 = vadd.f32 %v8097, %v8161
        %8163 = vmatmul.f32.gmra.mxu0 %v7623
        %v8164 = vpop.f32.mrf.mxu0
        %v8165 = vadd.f32 %v8100, %v8164
        %8166 = vmatmul.f32.gmra.mxu0 %v7626
        %v8167 = vpop.f32.mrf.mxu0
        %v8168 = vadd.f32 %v8103, %v8167
        %8169 = vmatmul.f32.gmra.mxu0 %v7629
        %v8170 = vpop.f32.mrf.mxu0
        %v8171 = vadd.f32 %v8106, %v8170
        %8172 = vmatmul.f32.gmra.mxu0 %v7632
        %v8173 = vpop.f32.mrf.mxu0
        %v8174 = vadd.f32 %v8109, %v8173
        %8175 = vmatmul.f32.gmra.mxu0 %v7635
        %v8176 = vpop.f32.mrf.mxu0
        %v8177 = vadd.f32 %v8112, %v8176
        %8178 = vmatmul.f32.gmra.mxu0 %v7638
        %v8179 = vpop.f32.mrf.mxu0
        %v8180 = vadd.f32 %v8115, %v8179
        %8181 = vmatmul.f32.gmra.mxu0 %v7641
        %v8182 = vpop.f32.mrf.mxu0
        %v8183 = vadd.f32 %v8118, %v8182
        %8184 = vmatmul.f32.gmra.mxu0 %v7644
        %v8185 = vpop.f32.mrf.mxu0
        %v8186 = vadd.f32 %v8121, %v8185
        %8187 = vmatmul.f32.gmra.mxu0 %v7647
        %v8188 = vpop.f32.mrf.mxu0
        %v8189 = vadd.f32 %v8124, %v8188
        %8190 = vmatmul.f32.gmra.mxu0 %v7650
        %v8191 = vpop.f32.mrf.mxu0
        %v8192 = vadd.f32 %v8127, %v8191
        %8193 = vmatmul.f32.gmra.mxu0 %v7653
        %v8194 = vpop.f32.mrf.mxu0
        %v8195 = vadd.f32 %v8130, %v8194
        %8196 = vmatmul.f32.gmra.mxu0 %v7656
        %v8197 = vpop.f32.mrf.mxu0
        %v8198 = vadd.f32 %v8133, %v8197
        %8199 = vmatmul.f32.gmra.mxu0 %v7659
        %v8200 = vpop.f32.mrf.mxu0
        %v8201 = vadd.f32 %v8136, %v8200
        %8202 = vmatmul.f32.gmra.mxu0 %v7662
        %v8203 = vpop.f32.mrf.mxu0
        %v8204 = vadd.f32 %v8139, %v8203
        %8205 = vmatmul.f32.gmra.mxu0 %v7665
        %v8206 = vpop.f32.mrf.mxu0
        %v8207 = vadd.f32 %v8142, %v8206
        %8208 = vdwg.mxu0
        %8209 = vmatpush.msra.mxu0 %v7713
        %8210 = vmatpush.msra.mxu0 %v7710
        %8211 = vmatpush.msra.mxu0 %v7707
        %8212 = vmatpush.msra.mxu0 %v7704
        %8213 = vmatpush.msra.mxu0 %v7701
        %8214 = vmatpush.msra.mxu0 %v7698
        %8215 = vmatpush.msra.mxu0 %v7695
        %8216 = vmatpush.msra.mxu0 %v7692
        %8217 = vmatpush.msra.mxu0 %v7689
        %8218 = vmatpush.msra.mxu0 %v7686
        %8219 = vmatpush.msra.mxu0 %v7683
        %8220 = vmatpush.msra.mxu0 %v7680
        %8221 = vmatpush.msra.mxu0 %v7677
        %8222 = vmatpush.msra.mxu0 %v7674
        %8223 = vmatpush.msra.mxu0 %v7671
        %8224 = vmatpush.msra.mxu0 %v7668
        %8225 = vmatmul.f32.gmra.mxu0 %v7618
        %v8226 = vpop.f32.mrf.mxu0
        %v8227 = vadd.f32 %v7815, %v8226
        %8228 = vmatmul.f32.gmra.mxu0 %v7621
        %v8229 = vpop.f32.mrf.mxu0
        %v8230 = vadd.f32 %v7815, %v8229
        %8231 = vmatmul.f32.gmra.mxu0 %v7624
        %v8232 = vpop.f32.mrf.mxu0
        %v8233 = vadd.f32 %v7815, %v8232
        %8234 = vmatmul.f32.gmra.mxu0 %v7627
        %v8235 = vpop.f32.mrf.mxu0
        %v8236 = vadd.f32 %v7815, %v8235
        %8237 = vmatmul.f32.gmra.mxu0 %v7630
        %v8238 = vpop.f32.mrf.mxu0
        %v8239 = vadd.f32 %v7815, %v8238
        %8240 = vmatmul.f32.gmra.mxu0 %v7633
        %v8241 = vpop.f32.mrf.mxu0
        %v8242 = vadd.f32 %v7815, %v8241
        %8243 = vmatmul.f32.gmra.mxu0 %v7636
        %v8244 = vpop.f32.mrf.mxu0
        %v8245 = vadd.f32 %v7815, %v8244
        %8246 = vmatmul.f32.gmra.mxu0 %v7639
        %v8247 = vpop.f32.mrf.mxu0
        %v8248 = vadd.f32 %v7815, %v8247
        %8249 = vmatmul.f32.gmra.mxu0 %v7642
        %v8250 = vpop.f32.mrf.mxu0
        %v8251 = vadd.f32 %v7815, %v8250
        %8252 = vmatmul.f32.gmra.mxu0 %v7645
        %v8253 = vpop.f32.mrf.mxu0
        %v8254 = vadd.f32 %v7815, %v8253
        %8255 = vmatmul.f32.gmra.mxu0 %v7648
        %v8256 = vpop.f32.mrf.mxu0
        %v8257 = vadd.f32 %v7815, %v8256
        %8258 = vmatmul.f32.gmra.mxu0 %v7651
        %v8259 = vpop.f32.mrf.mxu0
        %v8260 = vadd.f32 %v7815, %v8259
        %8261 = vmatmul.f32.gmra.mxu0 %v7654
        %v8262 = vpop.f32.mrf.mxu0
        %v8263 = vadd.f32 %v7815, %v8262
        %8264 = vmatmul.f32.gmra.mxu0 %v7657
        %v8265 = vpop.f32.mrf.mxu0
        %v8266 = vadd.f32 %v7815, %v8265
        %8267 = vmatmul.f32.gmra.mxu0 %v7660
        %v8268 = vpop.f32.mrf.mxu0
        %v8269 = vadd.f32 %v7815, %v8268
        %8270 = vmatmul.f32.gmra.mxu0 %v7663
        %v8271 = vpop.f32.mrf.mxu0
        %v8272 = vadd.f32 %v7815, %v8271
        %8273 = vdwg.mxu0
        %8274 = vmatpush.msra.mxu0 %v7761
        %8275 = vmatpush.msra.mxu0 %v7758
        %8276 = vmatpush.msra.mxu0 %v7755
        %8277 = vmatpush.msra.mxu0 %v7752
        %8278 = vmatpush.msra.mxu0 %v7749
        %8279 = vmatpush.msra.mxu0 %v7746
        %8280 = vmatpush.msra.mxu0 %v7743
        %8281 = vmatpush.msra.mxu0 %v7740
        %8282 = vmatpush.msra.mxu0 %v7737
        %8283 = vmatpush.msra.mxu0 %v7734
        %8284 = vmatpush.msra.mxu0 %v7731
        %8285 = vmatpush.msra.mxu0 %v7728
        %8286 = vmatpush.msra.mxu0 %v7725
        %8287 = vmatpush.msra.mxu0 %v7722
        %8288 = vmatpush.msra.mxu0 %v7719
        %8289 = vmatpush.msra.mxu0 %v7716
        %8290 = vmatmul.f32.gmra.mxu0 %v7619
        %v8291 = vpop.f32.mrf.mxu0
        %v8292 = vadd.f32 %v8227, %v8291
        %8293 = vmatmul.f32.gmra.mxu0 %v7622
        %v8294 = vpop.f32.mrf.mxu0
        %v8295 = vadd.f32 %v8230, %v8294
        %8296 = vmatmul.f32.gmra.mxu0 %v7625
        %v8297 = vpop.f32.mrf.mxu0
        %v8298 = vadd.f32 %v8233, %v8297
        %8299 = vmatmul.f32.gmra.mxu0 %v7628
        %v8300 = vpop.f32.mrf.mxu0
        %v8301 = vadd.f32 %v8236, %v8300
        %8302 = vmatmul.f32.gmra.mxu0 %v7631
        %v8303 = vpop.f32.mrf.mxu0
        %v8304 = vadd.f32 %v8239, %v8303
        %8305 = vmatmul.f32.gmra.mxu0 %v7634
        %v8306 = vpop.f32.mrf.mxu0
        %v8307 = vadd.f32 %v8242, %v8306
        %8308 = vmatmul.f32.gmra.mxu0 %v7637
        %v8309 = vpop.f32.mrf.mxu0
        %v8310 = vadd.f32 %v8245, %v8309
        %8311 = vmatmul.f32.gmra.mxu0 %v7640
        %v8312 = vpop.f32.mrf.mxu0
        %v8313 = vadd.f32 %v8248, %v8312
        %8314 = vmatmul.f32.gmra.mxu0 %v7643
        %v8315 = vpop.f32.mrf.mxu0
        %v8316 = vadd.f32 %v8251, %v8315
        %8317 = vmatmul.f32.gmra.mxu0 %v7646
        %v8318 = vpop.f32.mrf.mxu0
        %v8319 = vadd.f32 %v8254, %v8318
        %8320 = vmatmul.f32.gmra.mxu0 %v7649
        %v8321 = vpop.f32.mrf.mxu0
        %v8322 = vadd.f32 %v8257, %v8321
        %8323 = vmatmul.f32.gmra.mxu0 %v7652
        %v8324 = vpop.f32.mrf.mxu0
        %v8325 = vadd.f32 %v8260, %v8324
        %8326 = vmatmul.f32.gmra.mxu0 %v7655
        %v8327 = vpop.f32.mrf.mxu0
        %v8328 = vadd.f32 %v8263, %v8327
        %8329 = vmatmul.f32.gmra.mxu0 %v7658
        %v8330 = vpop.f32.mrf.mxu0
        %v8331 = vadd.f32 %v8266, %v8330
        %8332 = vmatmul.f32.gmra.mxu0 %v7661
        %v8333 = vpop.f32.mrf.mxu0
        %v8334 = vadd.f32 %v8269, %v8333
        %8335 = vmatmul.f32.gmra.mxu0 %v7664
        %v8336 = vpop.f32.mrf.mxu0
        %v8337 = vadd.f32 %v8272, %v8336
        %8338 = vdwg.mxu0
        %8339 = vmatpush.msra.mxu0 %v7809
        %8340 = vmatpush.msra.mxu0 %v7806
        %8341 = vmatpush.msra.mxu0 %v7803
        %8342 = vmatpush.msra.mxu0 %v7800
        %8343 = vmatpush.msra.mxu0 %v7797
        %8344 = vmatpush.msra.mxu0 %v7794
        %8345 = vmatpush.msra.mxu0 %v7791
        %8346 = vmatpush.msra.mxu0 %v7788
        %8347 = vmatpush.msra.mxu0 %v7785
        %8348 = vmatpush.msra.mxu0 %v7782
        %8349 = vmatpush.msra.mxu0 %v7779
        %8350 = vmatpush.msra.mxu0 %v7776
        %8351 = vmatpush.msra.mxu0 %v7773
        %8352 = vmatpush.msra.mxu0 %v7770
        %8353 = vmatpush.msra.mxu0 %v7767
        %8354 = vmatpush.msra.mxu0 %v7764
        %8355 = vmatmul.f32.gmra.mxu0 %v7620
        %v8356 = vpop.f32.mrf.mxu0
        %v8357 = vadd.f32 %v8292, %v8356
        %8358 = vmatmul.f32.gmra.mxu0 %v7623
        %v8359 = vpop.f32.mrf.mxu0
        %v8360 = vadd.f32 %v8295, %v8359
        %8361 = vmatmul.f32.gmra.mxu0 %v7626
        %v8362 = vpop.f32.mrf.mxu0
        %v8363 = vadd.f32 %v8298, %v8362
        %8364 = vmatmul.f32.gmra.mxu0 %v7629
        %v8365 = vpop.f32.mrf.mxu0
        %v8366 = vadd.f32 %v8301, %v8365
        %8367 = vmatmul.f32.gmra.mxu0 %v7632
        %v8368 = vpop.f32.mrf.mxu0
        %v8369 = vadd.f32 %v8304, %v8368
        %8370 = vmatmul.f32.gmra.mxu0 %v7635
        %v8371 = vpop.f32.mrf.mxu0
        %v8372 = vadd.f32 %v8307, %v8371
        %8373 = vmatmul.f32.gmra.mxu0 %v7638
        %v8374 = vpop.f32.mrf.mxu0
        %v8375 = vadd.f32 %v8310, %v8374
        %8376 = vmatmul.f32.gmra.mxu0 %v7641
        %v8377 = vpop.f32.mrf.mxu0
        %v8378 = vadd.f32 %v8313, %v8377
        %8379 = vmatmul.f32.gmra.mxu0 %v7644
        %v8380 = vpop.f32.mrf.mxu0
        %v8381 = vadd.f32 %v8316, %v8380
        %8382 = vmatmul.f32.gmra.mxu0 %v7647
        %v8383 = vpop.f32.mrf.mxu0
        %v8384 = vadd.f32 %v8319, %v8383
        %8385 = vmatmul.f32.gmra.mxu0 %v7650
        %v8386 = vpop.f32.mrf.mxu0
        %v8387 = vadd.f32 %v8322, %v8386
        %8388 = vmatmul.f32.gmra.mxu0 %v7653
        %v8389 = vpop.f32.mrf.mxu0
        %v8390 = vadd.f32 %v8325, %v8389
        %8391 = vmatmul.f32.gmra.mxu0 %v7656
        %v8392 = vpop.f32.mrf.mxu0
        %v8393 = vadd.f32 %v8328, %v8392
        %8394 = vmatmul.f32.gmra.mxu0 %v7659
        %v8395 = vpop.f32.mrf.mxu0
        %v8396 = vadd.f32 %v8331, %v8395
        %8397 = vmatmul.f32.gmra.mxu0 %v7662
        %v8398 = vpop.f32.mrf.mxu0
        %v8399 = vadd.f32 %v8334, %v8398
        %8400 = vmatmul.f32.gmra.mxu0 %v7665
        %v8401 = vpop.f32.mrf.mxu0
        %v8402 = vadd.f32 %v8337, %v8401
        %8403 = vdwg.mxu0
        %v8404 = vmax.f32 %v7967, 0.0
        %v8405 = vmax.f32 %v8162, 0.0
        %v8406 = vmax.f32 %v8357, 0.0
        %v8407 = vmax.f32 %v7970, 0.0
        %v8408 = vmax.f32 %v8165, 0.0
        %v8409 = vmax.f32 %v8360, 0.0
        %v8410 = vmax.f32 %v7973, 0.0
        %v8411 = vmax.f32 %v8168, 0.0
        %v8412 = vmax.f32 %v8363, 0.0
        %v8413 = vmax.f32 %v7976, 0.0
        %v8414 = vmax.f32 %v8171, 0.0
        %v8415 = vmax.f32 %v8366, 0.0
        %v8416 = vmax.f32 %v7979, 0.0
        %v8417 = vmax.f32 %v8174, 0.0
        %v8418 = vmax.f32 %v8369, 0.0
        %v8419 = vmax.f32 %v7982, 0.0
        %v8420 = vmax.f32 %v8177, 0.0
        %v8421 = vmax.f32 %v8372, 0.0
        %v8422 = vmax.f32 %v7985, 0.0
        %v8423 = vmax.f32 %v8180, 0.0
        %v8424 = vmax.f32 %v8375, 0.0
        %v8425 = vmax.f32 %v7988, 0.0
        %v8426 = vmax.f32 %v8183, 0.0
        %v8427 = vmax.f32 %v8378, 0.0
        %v8428 = vmax.f32 %v7991, 0.0
        %v8429 = vmax.f32 %v8186, 0.0
        %v8430 = vmax.f32 %v8381, 0.0
        %v8431 = vmax.f32 %v7994, 0.0
        %v8432 = vmax.f32 %v8189, 0.0
        %v8433 = vmax.f32 %v8384, 0.0
        %v8434 = vmax.f32 %v7997, 0.0
        %v8435 = vmax.f32 %v8192, 0.0
        %v8436 = vmax.f32 %v8387, 0.0
        %v8437 = vmax.f32 %v8000, 0.0
        %v8438 = vmax.f32 %v8195, 0.0
        %v8439 = vmax.f32 %v8390, 0.0
        %v8440 = vmax.f32 %v8003, 0.0
        %v8441 = vmax.f32 %v8198, 0.0
        %v8442 = vmax.f32 %v8393, 0.0
        %v8443 = vmax.f32 %v8006, 0.0
        %v8444 = vmax.f32 %v8201, 0.0
        %v8445 = vmax.f32 %v8396, 0.0
        %v8446 = vmax.f32 %v8009, 0.0
        %v8447 = vmax.f32 %v8204, 0.0
        %v8448 = vmax.f32 %v8399, 0.0
        %v8449 = vmax.f32 %v8012, 0.0
        %v8450 = vmax.f32 %v8207, 0.0
        %v8451 = vmax.f32 %v8402, 0.0
        %v8452 = vld [vmem:[#allocation15] sm:$0xff]
        %v8453 = vld [vmem:[#allocation15 + $0x8] sm:$0xff]
        %v8454 = vld [vmem:[#allocation15 + $0x10] sm:$0xff]
        %v8455 = vld [vmem:[#allocation15 + $0x18] sm:$0xff]
        %v8456 = vld [vmem:[#allocation15 + $0x20] sm:$0xff]
        %v8457 = vld [vmem:[#allocation15 + $0x28] sm:$0xff]
        %v8458 = vld [vmem:[#allocation15 + $0x30] sm:$0xff]
        %v8459 = vld [vmem:[#allocation15 + $0x38] sm:$0xff]
        %v8460 = vld [vmem:[#allocation15 + $0x40] sm:$0xff]
        %v8461 = vld [vmem:[#allocation15 + $0x48] sm:$0xff]
        %v8462 = vld [vmem:[#allocation15 + $0x50] sm:$0xff]
        %v8463 = vld [vmem:[#allocation15 + $0x58] sm:$0xff]
        %v8464 = vld [vmem:[#allocation15 + $0x60] sm:$0xff]
        %v8465 = vld [vmem:[#allocation15 + $0x68] sm:$0xff]
        %v8466 = vld [vmem:[#allocation15 + $0x70] sm:$0xff]
        %v8467 = vld [vmem:[#allocation15 + $0x78] sm:$0xff]
        %v8468 = vld [vmem:[#allocation15 + $0x80] sm:$0xff]
        %v8469 = vld [vmem:[#allocation15 + $0x88] sm:$0xff]
        %v8470 = vld [vmem:[#allocation15 + $0x90] sm:$0xff]
        %v8471 = vld [vmem:[#allocation15 + $0x98] sm:$0xff]
        %v8472 = vld [vmem:[#allocation15 + $0xa0] sm:$0xff]
        %v8473 = vld [vmem:[#allocation15 + $0xa8] sm:$0xff]
        %v8474 = vld [vmem:[#allocation15 + $0xb0] sm:$0xff]
        %v8475 = vld [vmem:[#allocation15 + $0xb8] sm:$0xff]
        %v8476 = vld [vmem:[#allocation15 + $0xc0] sm:$0xff]
        %v8477 = vld [vmem:[#allocation15 + $0xc8] sm:$0xff]
        %v8478 = vld [vmem:[#allocation15 + $0xd0] sm:$0xff]
        %v8479 = vld [vmem:[#allocation15 + $0xd8] sm:$0xff]
        %v8480 = vld [vmem:[#allocation15 + $0xe0] sm:$0xff]
        %v8481 = vld [vmem:[#allocation15 + $0xe8] sm:$0xff]
        %v8482 = vld [vmem:[#allocation15 + $0xf0] sm:$0xff]
        %v8483 = vld [vmem:[#allocation15 + $0xf8] sm:$0xff]
        %v8484 = vld [vmem:[#allocation15 + $0x100] sm:$0xff]
        %v8485 = vld [vmem:[#allocation15 + $0x108] sm:$0xff]
        %v8486 = vld [vmem:[#allocation15 + $0x110] sm:$0xff]
        %v8487 = vld [vmem:[#allocation15 + $0x118] sm:$0xff]
        %v8488 = vld [vmem:[#allocation15 + $0x120] sm:$0xff]
        %v8489 = vld [vmem:[#allocation15 + $0x128] sm:$0xff]
        %v8490 = vld [vmem:[#allocation15 + $0x130] sm:$0xff]
        %v8491 = vld [vmem:[#allocation15 + $0x138] sm:$0xff]
        %v8492 = vld [vmem:[#allocation15 + $0x140] sm:$0xff]
        %v8493 = vld [vmem:[#allocation15 + $0x148] sm:$0xff]
        %v8494 = vld [vmem:[#allocation15 + $0x150] sm:$0xff]
        %v8495 = vld [vmem:[#allocation15 + $0x158] sm:$0xff]
        %v8496 = vld [vmem:[#allocation15 + $0x160] sm:$0xff]
        %v8497 = vld [vmem:[#allocation15 + $0x168] sm:$0xff]
        %v8498 = vld [vmem:[#allocation15 + $0x170] sm:$0xff]
        %v8499 = vld [vmem:[#allocation15 + $0x178] sm:$0xff]
        %v8500 = vld [vmem:[#allocation15 + $0x180] sm:$0xff]
        %v8501 = vld [vmem:[#allocation15 + $0x188] sm:$0xff]
        %v8502 = vld [vmem:[#allocation15 + $0x190] sm:$0xff]
        %v8503 = vld [vmem:[#allocation15 + $0x198] sm:$0xff]
        %v8504 = vld [vmem:[#allocation15 + $0x1a0] sm:$0xff]
        %v8505 = vld [vmem:[#allocation15 + $0x1a8] sm:$0xff]
        %v8506 = vld [vmem:[#allocation15 + $0x1b0] sm:$0xff]
        %v8507 = vld [vmem:[#allocation15 + $0x1b8] sm:$0xff]
        %v8508 = vld [vmem:[#allocation15 + $0x1c0] sm:$0xff]
        %v8509 = vld [vmem:[#allocation15 + $0x1c8] sm:$0xff]
        %v8510 = vld [vmem:[#allocation15 + $0x1d0] sm:$0xff]
        %v8511 = vld [vmem:[#allocation15 + $0x1d8] sm:$0xff]
        %v8512 = vld [vmem:[#allocation15 + $0x1e0] sm:$0xff]
        %v8513 = vld [vmem:[#allocation15 + $0x1e8] sm:$0xff]
        %v8514 = vld [vmem:[#allocation15 + $0x1f0] sm:$0xff]
        %v8515 = vld [vmem:[#allocation15 + $0x1f8] sm:$0xff]
        %v8516 = vld [vmem:[#allocation15 + $0x200] sm:$0xff]
        %v8517 = vld [vmem:[#allocation15 + $0x208] sm:$0xff]
        %v8518 = vld [vmem:[#allocation15 + $0x210] sm:$0xff]
        %v8519 = vld [vmem:[#allocation15 + $0x218] sm:$0xff]
        %v8520 = vld [vmem:[#allocation15 + $0x220] sm:$0xff]
        %v8521 = vld [vmem:[#allocation15 + $0x228] sm:$0xff]
        %v8522 = vld [vmem:[#allocation15 + $0x230] sm:$0xff]
        %v8523 = vld [vmem:[#allocation15 + $0x238] sm:$0xff]
        %v8524 = vld [vmem:[#allocation15 + $0x240] sm:$0xff]
        %v8525 = vld [vmem:[#allocation15 + $0x248] sm:$0xff]
        %v8526 = vld [vmem:[#allocation15 + $0x250] sm:$0xff]
        %v8527 = vld [vmem:[#allocation15 + $0x258] sm:$0xff]
        %v8528 = vld [vmem:[#allocation15 + $0x260] sm:$0xff]
        %v8529 = vld [vmem:[#allocation15 + $0x268] sm:$0xff]
        %v8530 = vld [vmem:[#allocation15 + $0x270] sm:$0xff]
        %v8531 = vld [vmem:[#allocation15 + $0x278] sm:$0xff]
        %v8532 = vld [vmem:[#allocation15 + $0x280] sm:$0xff]
        %v8533 = vld [vmem:[#allocation15 + $0x288] sm:$0xff]
        %v8534 = vld [vmem:[#allocation15 + $0x290] sm:$0xff]
        %v8535 = vld [vmem:[#allocation15 + $0x298] sm:$0xff]
        %v8536 = vld [vmem:[#allocation15 + $0x2a0] sm:$0xff]
        %v8537 = vld [vmem:[#allocation15 + $0x2a8] sm:$0xff]
        %v8538 = vld [vmem:[#allocation15 + $0x2b0] sm:$0xff]
        %v8539 = vld [vmem:[#allocation15 + $0x2b8] sm:$0xff]
        %v8540 = vld [vmem:[#allocation15 + $0x2c0] sm:$0xff]
        %v8541 = vld [vmem:[#allocation15 + $0x2c8] sm:$0xff]
        %v8542 = vld [vmem:[#allocation15 + $0x2d0] sm:$0xff]
        %v8543 = vld [vmem:[#allocation15 + $0x2d8] sm:$0xff]
        %v8544 = vld [vmem:[#allocation15 + $0x2e0] sm:$0xff]
        %v8545 = vld [vmem:[#allocation15 + $0x2e8] sm:$0xff]
        %v8546 = vld [vmem:[#allocation15 + $0x2f0] sm:$0xff]
        %v8547 = vld [vmem:[#allocation15 + $0x2f8] sm:$0xff]
        %s8548 = scalar_lea.vmem [#allocation18], 40
        %v8549 = vld [vmem:[%s8548] ss:$8 sm:$0x3]
        %v8551 = vperm.slane %v8549, 0
        %v8552 = vperm.slane %v8549, 1
        %8555 = vmatpush.msra.mxu0 %v8482
        %8556 = vmatpush.msra.mxu0 %v8480
        %8557 = vmatpush.msra.mxu0 %v8478
        %8558 = vmatpush.msra.mxu0 %v8476
        %8559 = vmatpush.msra.mxu0 %v8474
        %8560 = vmatpush.msra.mxu0 %v8472
        %8561 = vmatpush.msra.mxu0 %v8470
        %8562 = vmatpush.msra.mxu0 %v8468
        %8563 = vmatpush.msra.mxu0 %v8466
        %8564 = vmatpush.msra.mxu0 %v8464
        %8565 = vmatpush.msra.mxu0 %v8462
        %8566 = vmatpush.msra.mxu0 %v8460
        %8567 = vmatpush.msra.mxu0 %v8458
        %8568 = vmatpush.msra.mxu0 %v8456
        %8569 = vmatpush.msra.mxu0 %v8454
        %8570 = vmatpush.msra.mxu0 %v8452
        %8571 = vmatmul.f32.gmra.mxu0 %v8404
        %v8572 = vpop.f32.mrf.mxu0
        %v8573 = vadd.f32 %v8551, %v8572
        %8574 = vmatmul.f32.gmra.mxu0 %v8407
        %v8575 = vpop.f32.mrf.mxu0
        %v8576 = vadd.f32 %v8551, %v8575
        %8577 = vmatmul.f32.gmra.mxu0 %v8410
        %v8578 = vpop.f32.mrf.mxu0
        %v8579 = vadd.f32 %v8551, %v8578
        %8580 = vmatmul.f32.gmra.mxu0 %v8413
        %v8581 = vpop.f32.mrf.mxu0
        %v8582 = vadd.f32 %v8551, %v8581
        %8583 = vmatmul.f32.gmra.mxu0 %v8416
        %v8584 = vpop.f32.mrf.mxu0
        %v8585 = vadd.f32 %v8551, %v8584
        %8586 = vmatmul.f32.gmra.mxu0 %v8419
        %v8587 = vpop.f32.mrf.mxu0
        %v8588 = vadd.f32 %v8551, %v8587
        %8589 = vmatmul.f32.gmra.mxu0 %v8422
        %v8590 = vpop.f32.mrf.mxu0
        %v8591 = vadd.f32 %v8551, %v8590
        %8592 = vmatmul.f32.gmra.mxu0 %v8425
        %v8593 = vpop.f32.mrf.mxu0
        %v8594 = vadd.f32 %v8551, %v8593
        %8595 = vmatmul.f32.gmra.mxu0 %v8428
        %v8596 = vpop.f32.mrf.mxu0
        %v8597 = vadd.f32 %v8551, %v8596
        %8598 = vmatmul.f32.gmra.mxu0 %v8431
        %v8599 = vpop.f32.mrf.mxu0
        %v8600 = vadd.f32 %v8551, %v8599
        %8601 = vmatmul.f32.gmra.mxu0 %v8434
        %v8602 = vpop.f32.mrf.mxu0
        %v8603 = vadd.f32 %v8551, %v8602
        %8604 = vmatmul.f32.gmra.mxu0 %v8437
        %v8605 = vpop.f32.mrf.mxu0
        %v8606 = vadd.f32 %v8551, %v8605
        %8607 = vmatmul.f32.gmra.mxu0 %v8440
        %v8608 = vpop.f32.mrf.mxu0
        %v8609 = vadd.f32 %v8551, %v8608
        %8610 = vmatmul.f32.gmra.mxu0 %v8443
        %v8611 = vpop.f32.mrf.mxu0
        %v8612 = vadd.f32 %v8551, %v8611
        %8613 = vmatmul.f32.gmra.mxu0 %v8446
        %v8614 = vpop.f32.mrf.mxu0
        %v8615 = vadd.f32 %v8551, %v8614
        %8616 = vmatmul.f32.gmra.mxu0 %v8449
        %v8617 = vpop.f32.mrf.mxu0
        %v8618 = vadd.f32 %v8551, %v8617
        %8619 = vdwg.mxu0
        %8620 = vmatpush.msra.mxu0 %v8514
        %8621 = vmatpush.msra.mxu0 %v8512
        %8622 = vmatpush.msra.mxu0 %v8510
        %8623 = vmatpush.msra.mxu0 %v8508
        %8624 = vmatpush.msra.mxu0 %v8506
        %8625 = vmatpush.msra.mxu0 %v8504
        %8626 = vmatpush.msra.mxu0 %v8502
        %8627 = vmatpush.msra.mxu0 %v8500
        %8628 = vmatpush.msra.mxu0 %v8498
        %8629 = vmatpush.msra.mxu0 %v8496
        %8630 = vmatpush.msra.mxu0 %v8494
        %8631 = vmatpush.msra.mxu0 %v8492
        %8632 = vmatpush.msra.mxu0 %v8490
        %8633 = vmatpush.msra.mxu0 %v8488
        %8634 = vmatpush.msra.mxu0 %v8486
        %8635 = vmatpush.msra.mxu0 %v8484
        %8636 = vmatmul.f32.gmra.mxu0 %v8405
        %v8637 = vpop.f32.mrf.mxu0
        %v8638 = vadd.f32 %v8573, %v8637
        %8639 = vmatmul.f32.gmra.mxu0 %v8408
        %v8640 = vpop.f32.mrf.mxu0
        %v8641 = vadd.f32 %v8576, %v8640
        %8642 = vmatmul.f32.gmra.mxu0 %v8411
        %v8643 = vpop.f32.mrf.mxu0
        %v8644 = vadd.f32 %v8579, %v8643
        %8645 = vmatmul.f32.gmra.mxu0 %v8414
        %v8646 = vpop.f32.mrf.mxu0
        %v8647 = vadd.f32 %v8582, %v8646
        %8648 = vmatmul.f32.gmra.mxu0 %v8417
        %v8649 = vpop.f32.mrf.mxu0
        %v8650 = vadd.f32 %v8585, %v8649
        %8651 = vmatmul.f32.gmra.mxu0 %v8420
        %v8652 = vpop.f32.mrf.mxu0
        %v8653 = vadd.f32 %v8588, %v8652
        %8654 = vmatmul.f32.gmra.mxu0 %v8423
        %v8655 = vpop.f32.mrf.mxu0
        %v8656 = vadd.f32 %v8591, %v8655
        %8657 = vmatmul.f32.gmra.mxu0 %v8426
        %v8658 = vpop.f32.mrf.mxu0
        %v8659 = vadd.f32 %v8594, %v8658
        %8660 = vmatmul.f32.gmra.mxu0 %v8429
        %v8661 = vpop.f32.mrf.mxu0
        %v8662 = vadd.f32 %v8597, %v8661
        %8663 = vmatmul.f32.gmra.mxu0 %v8432
        %v8664 = vpop.f32.mrf.mxu0
        %v8665 = vadd.f32 %v8600, %v8664
        %8666 = vmatmul.f32.gmra.mxu0 %v8435
        %v8667 = vpop.f32.mrf.mxu0
        %v8668 = vadd.f32 %v8603, %v8667
        %8669 = vmatmul.f32.gmra.mxu0 %v8438
        %v8670 = vpop.f32.mrf.mxu0
        %v8671 = vadd.f32 %v8606, %v8670
        %8672 = vmatmul.f32.gmra.mxu0 %v8441
        %v8673 = vpop.f32.mrf.mxu0
        %v8674 = vadd.f32 %v8609, %v8673
        %8675 = vmatmul.f32.gmra.mxu0 %v8444
        %v8676 = vpop.f32.mrf.mxu0
        %v8677 = vadd.f32 %v8612, %v8676
        %8678 = vmatmul.f32.gmra.mxu0 %v8447
        %v8679 = vpop.f32.mrf.mxu0
        %v8680 = vadd.f32 %v8615, %v8679
        %8681 = vmatmul.f32.gmra.mxu0 %v8450
        %v8682 = vpop.f32.mrf.mxu0
        %v8683 = vadd.f32 %v8618, %v8682
        %8684 = vdwg.mxu0
        %8685 = vmatpush.msra.mxu0 %v8546
        %8686 = vmatpush.msra.mxu0 %v8544
        %8687 = vmatpush.msra.mxu0 %v8542
        %8688 = vmatpush.msra.mxu0 %v8540
        %8689 = vmatpush.msra.mxu0 %v8538
        %8690 = vmatpush.msra.mxu0 %v8536
        %8691 = vmatpush.msra.mxu0 %v8534
        %8692 = vmatpush.msra.mxu0 %v8532
        %8693 = vmatpush.msra.mxu0 %v8530
        %8694 = vmatpush.msra.mxu0 %v8528
        %8695 = vmatpush.msra.mxu0 %v8526
        %8696 = vmatpush.msra.mxu0 %v8524
        %8697 = vmatpush.msra.mxu0 %v8522
        %8698 = vmatpush.msra.mxu0 %v8520
        %8699 = vmatpush.msra.mxu0 %v8518
        %8700 = vmatpush.msra.mxu0 %v8516
        %8701 = vmatmul.f32.gmra.mxu0 %v8406
        %v8702 = vpop.f32.mrf.mxu0
        %v8703 = vadd.f32 %v8638, %v8702
        %8704 = vmatmul.f32.gmra.mxu0 %v8409
        %v8705 = vpop.f32.mrf.mxu0
        %v8706 = vadd.f32 %v8641, %v8705
        %8707 = vmatmul.f32.gmra.mxu0 %v8412
        %v8708 = vpop.f32.mrf.mxu0
        %v8709 = vadd.f32 %v8644, %v8708
        %8710 = vmatmul.f32.gmra.mxu0 %v8415
        %v8711 = vpop.f32.mrf.mxu0
        %v8712 = vadd.f32 %v8647, %v8711
        %8713 = vmatmul.f32.gmra.mxu0 %v8418
        %v8714 = vpop.f32.mrf.mxu0
        %v8715 = vadd.f32 %v8650, %v8714
        %8716 = vmatmul.f32.gmra.mxu0 %v8421
        %v8717 = vpop.f32.mrf.mxu0
        %v8718 = vadd.f32 %v8653, %v8717
        %8719 = vmatmul.f32.gmra.mxu0 %v8424
        %v8720 = vpop.f32.mrf.mxu0
        %v8721 = vadd.f32 %v8656, %v8720
        %8722 = vmatmul.f32.gmra.mxu0 %v8427
        %v8723 = vpop.f32.mrf.mxu0
        %v8724 = vadd.f32 %v8659, %v8723
        %8725 = vmatmul.f32.gmra.mxu0 %v8430
        %v8726 = vpop.f32.mrf.mxu0
        %v8727 = vadd.f32 %v8662, %v8726
        %8728 = vmatmul.f32.gmra.mxu0 %v8433
        %v8729 = vpop.f32.mrf.mxu0
        %v8730 = vadd.f32 %v8665, %v8729
        %8731 = vmatmul.f32.gmra.mxu0 %v8436
        %v8732 = vpop.f32.mrf.mxu0
        %v8733 = vadd.f32 %v8668, %v8732
        %8734 = vmatmul.f32.gmra.mxu0 %v8439
        %v8735 = vpop.f32.mrf.mxu0
        %v8736 = vadd.f32 %v8671, %v8735
        %8737 = vmatmul.f32.gmra.mxu0 %v8442
        %v8738 = vpop.f32.mrf.mxu0
        %v8739 = vadd.f32 %v8674, %v8738
        %8740 = vmatmul.f32.gmra.mxu0 %v8445
        %v8741 = vpop.f32.mrf.mxu0
        %v8742 = vadd.f32 %v8677, %v8741
        %8743 = vmatmul.f32.gmra.mxu0 %v8448
        %v8744 = vpop.f32.mrf.mxu0
        %v8745 = vadd.f32 %v8680, %v8744
        %8746 = vmatmul.f32.gmra.mxu0 %v8451
        %v8747 = vpop.f32.mrf.mxu0
        %v8748 = vadd.f32 %v8683, %v8747
        %8749 = vdwg.mxu0
        %8750 = vmatpush.msra.mxu0 %v8483
        %8751 = vmatpush.msra.mxu0 %v8481
        %8752 = vmatpush.msra.mxu0 %v8479
        %8753 = vmatpush.msra.mxu0 %v8477
        %8754 = vmatpush.msra.mxu0 %v8475
        %8755 = vmatpush.msra.mxu0 %v8473
        %8756 = vmatpush.msra.mxu0 %v8471
        %8757 = vmatpush.msra.mxu0 %v8469
        %8758 = vmatpush.msra.mxu0 %v8467
        %8759 = vmatpush.msra.mxu0 %v8465
        %8760 = vmatpush.msra.mxu0 %v8463
        %8761 = vmatpush.msra.mxu0 %v8461
        %8762 = vmatpush.msra.mxu0 %v8459
        %8763 = vmatpush.msra.mxu0 %v8457
        %8764 = vmatpush.msra.mxu0 %v8455
        %8765 = vmatpush.msra.mxu0 %v8453
        %8766 = vmatmul.f32.gmra.mxu0 %v8404
        %v8767 = vpop.f32.mrf.mxu0
        %v8768 = vadd.f32 %v8552, %v8767
        %8769 = vmatmul.f32.gmra.mxu0 %v8407
        %v8770 = vpop.f32.mrf.mxu0
        %v8771 = vadd.f32 %v8552, %v8770
        %8772 = vmatmul.f32.gmra.mxu0 %v8410
        %v8773 = vpop.f32.mrf.mxu0
        %v8774 = vadd.f32 %v8552, %v8773
        %8775 = vmatmul.f32.gmra.mxu0 %v8413
        %v8776 = vpop.f32.mrf.mxu0
        %v8777 = vadd.f32 %v8552, %v8776
        %8778 = vmatmul.f32.gmra.mxu0 %v8416
        %v8779 = vpop.f32.mrf.mxu0
        %v8780 = vadd.f32 %v8552, %v8779
        %8781 = vmatmul.f32.gmra.mxu0 %v8419
        %v8782 = vpop.f32.mrf.mxu0
        %v8783 = vadd.f32 %v8552, %v8782
        %8784 = vmatmul.f32.gmra.mxu0 %v8422
        %v8785 = vpop.f32.mrf.mxu0
        %v8786 = vadd.f32 %v8552, %v8785
        %8787 = vmatmul.f32.gmra.mxu0 %v8425
        %v8788 = vpop.f32.mrf.mxu0
        %v8789 = vadd.f32 %v8552, %v8788
        %8790 = vmatmul.f32.gmra.mxu0 %v8428
        %v8791 = vpop.f32.mrf.mxu0
        %v8792 = vadd.f32 %v8552, %v8791
        %8793 = vmatmul.f32.gmra.mxu0 %v8431
        %v8794 = vpop.f32.mrf.mxu0
        %v8795 = vadd.f32 %v8552, %v8794
        %8796 = vmatmul.f32.gmra.mxu0 %v8434
        %v8797 = vpop.f32.mrf.mxu0
        %v8798 = vadd.f32 %v8552, %v8797
        %8799 = vmatmul.f32.gmra.mxu0 %v8437
        %v8800 = vpop.f32.mrf.mxu0
        %v8801 = vadd.f32 %v8552, %v8800
        %8802 = vmatmul.f32.gmra.mxu0 %v8440
        %v8803 = vpop.f32.mrf.mxu0
        %v8804 = vadd.f32 %v8552, %v8803
        %8805 = vmatmul.f32.gmra.mxu0 %v8443
        %v8806 = vpop.f32.mrf.mxu0
        %v8807 = vadd.f32 %v8552, %v8806
        %8808 = vmatmul.f32.gmra.mxu0 %v8446
        %v8809 = vpop.f32.mrf.mxu0
        %v8810 = vadd.f32 %v8552, %v8809
        %8811 = vmatmul.f32.gmra.mxu0 %v8449
        %v8812 = vpop.f32.mrf.mxu0
        %v8813 = vadd.f32 %v8552, %v8812
        %8814 = vdwg.mxu0
        %8815 = vmatpush.msra.mxu0 %v8515
        %8816 = vmatpush.msra.mxu0 %v8513
        %8817 = vmatpush.msra.mxu0 %v8511
        %8818 = vmatpush.msra.mxu0 %v8509
        %8819 = vmatpush.msra.mxu0 %v8507
        %8820 = vmatpush.msra.mxu0 %v8505
        %8821 = vmatpush.msra.mxu0 %v8503
        %8822 = vmatpush.msra.mxu0 %v8501
        %8823 = vmatpush.msra.mxu0 %v8499
        %8824 = vmatpush.msra.mxu0 %v8497
        %8825 = vmatpush.msra.mxu0 %v8495
        %8826 = vmatpush.msra.mxu0 %v8493
        %8827 = vmatpush.msra.mxu0 %v8491
        %8828 = vmatpush.msra.mxu0 %v8489
        %8829 = vmatpush.msra.mxu0 %v8487
        %8830 = vmatpush.msra.mxu0 %v8485
        %8831 = vmatmul.f32.gmra.mxu0 %v8405
        %v8832 = vpop.f32.mrf.mxu0
        %v8833 = vadd.f32 %v8768, %v8832
        %8834 = vmatmul.f32.gmra.mxu0 %v8408
        %v8835 = vpop.f32.mrf.mxu0
        %v8836 = vadd.f32 %v8771, %v8835
        %8837 = vmatmul.f32.gmra.mxu0 %v8411
        %v8838 = vpop.f32.mrf.mxu0
        %v8839 = vadd.f32 %v8774, %v8838
        %8840 = vmatmul.f32.gmra.mxu0 %v8414
        %v8841 = vpop.f32.mrf.mxu0
        %v8842 = vadd.f32 %v8777, %v8841
        %8843 = vmatmul.f32.gmra.mxu0 %v8417
        %v8844 = vpop.f32.mrf.mxu0
        %v8845 = vadd.f32 %v8780, %v8844
        %8846 = vmatmul.f32.gmra.mxu0 %v8420
        %v8847 = vpop.f32.mrf.mxu0
        %v8848 = vadd.f32 %v8783, %v8847
        %8849 = vmatmul.f32.gmra.mxu0 %v8423
        %v8850 = vpop.f32.mrf.mxu0
        %v8851 = vadd.f32 %v8786, %v8850
        %8852 = vmatmul.f32.gmra.mxu0 %v8426
        %v8853 = vpop.f32.mrf.mxu0
        %v8854 = vadd.f32 %v8789, %v8853
        %8855 = vmatmul.f32.gmra.mxu0 %v8429
        %v8856 = vpop.f32.mrf.mxu0
        %v8857 = vadd.f32 %v8792, %v8856
        %8858 = vmatmul.f32.gmra.mxu0 %v8432
        %v8859 = vpop.f32.mrf.mxu0
        %v8860 = vadd.f32 %v8795, %v8859
        %8861 = vmatmul.f32.gmra.mxu0 %v8435
        %v8862 = vpop.f32.mrf.mxu0
        %v8863 = vadd.f32 %v8798, %v8862
        %8864 = vmatmul.f32.gmra.mxu0 %v8438
        %v8865 = vpop.f32.mrf.mxu0
        %v8866 = vadd.f32 %v8801, %v8865
        %8867 = vmatmul.f32.gmra.mxu0 %v8441
        %v8868 = vpop.f32.mrf.mxu0
        %v8869 = vadd.f32 %v8804, %v8868
        %8870 = vmatmul.f32.gmra.mxu0 %v8444
        %v8871 = vpop.f32.mrf.mxu0
        %v8872 = vadd.f32 %v8807, %v8871
        %8873 = vmatmul.f32.gmra.mxu0 %v8447
        %v8874 = vpop.f32.mrf.mxu0
        %v8875 = vadd.f32 %v8810, %v8874
        %8876 = vmatmul.f32.gmra.mxu0 %v8450
        %v8877 = vpop.f32.mrf.mxu0
        %v8878 = vadd.f32 %v8813, %v8877
        %8879 = vdwg.mxu0
        %8880 = vmatpush.msra.mxu0 %v8547
        %8881 = vmatpush.msra.mxu0 %v8545
        %8882 = vmatpush.msra.mxu0 %v8543
        %8883 = vmatpush.msra.mxu0 %v8541
        %8884 = vmatpush.msra.mxu0 %v8539
        %8885 = vmatpush.msra.mxu0 %v8537
        %8886 = vmatpush.msra.mxu0 %v8535
        %8887 = vmatpush.msra.mxu0 %v8533
        %8888 = vmatpush.msra.mxu0 %v8531
        %8889 = vmatpush.msra.mxu0 %v8529
        %8890 = vmatpush.msra.mxu0 %v8527
        %8891 = vmatpush.msra.mxu0 %v8525
        %8892 = vmatpush.msra.mxu0 %v8523
        %8893 = vmatpush.msra.mxu0 %v8521
        %8894 = vmatpush.msra.mxu0 %v8519
        %8895 = vmatpush.msra.mxu0 %v8517
        %8896 = vmatmul.f32.gmra.mxu0 %v8406
        %v8897 = vpop.f32.mrf.mxu0
        %v8898 = vadd.f32 %v8833, %v8897
        %8899 = vmatmul.f32.gmra.mxu0 %v8409
        %v8900 = vpop.f32.mrf.mxu0
        %v8901 = vadd.f32 %v8836, %v8900
        %8902 = vmatmul.f32.gmra.mxu0 %v8412
        %v8903 = vpop.f32.mrf.mxu0
        %v8904 = vadd.f32 %v8839, %v8903
        %8905 = vmatmul.f32.gmra.mxu0 %v8415
        %v8906 = vpop.f32.mrf.mxu0
        %v8907 = vadd.f32 %v8842, %v8906
        %8908 = vmatmul.f32.gmra.mxu0 %v8418
        %v8909 = vpop.f32.mrf.mxu0
        %v8910 = vadd.f32 %v8845, %v8909
        %8911 = vmatmul.f32.gmra.mxu0 %v8421
        %v8912 = vpop.f32.mrf.mxu0
        %v8913 = vadd.f32 %v8848, %v8912
        %8914 = vmatmul.f32.gmra.mxu0 %v8424
        %v8915 = vpop.f32.mrf.mxu0
        %v8916 = vadd.f32 %v8851, %v8915
        %8917 = vmatmul.f32.gmra.mxu0 %v8427
        %v8918 = vpop.f32.mrf.mxu0
        %v8919 = vadd.f32 %v8854, %v8918
        %8920 = vmatmul.f32.gmra.mxu0 %v8430
        %v8921 = vpop.f32.mrf.mxu0
        %v8922 = vadd.f32 %v8857, %v8921
        %8923 = vmatmul.f32.gmra.mxu0 %v8433
        %v8924 = vpop.f32.mrf.mxu0
        %v8925 = vadd.f32 %v8860, %v8924
        %8926 = vmatmul.f32.gmra.mxu0 %v8436
        %v8927 = vpop.f32.mrf.mxu0
        %v8928 = vadd.f32 %v8863, %v8927
        %8929 = vmatmul.f32.gmra.mxu0 %v8439
        %v8930 = vpop.f32.mrf.mxu0
        %v8931 = vadd.f32 %v8866, %v8930
        %8932 = vmatmul.f32.gmra.mxu0 %v8442
        %v8933 = vpop.f32.mrf.mxu0
        %v8934 = vadd.f32 %v8869, %v8933
        %8935 = vmatmul.f32.gmra.mxu0 %v8445
        %v8936 = vpop.f32.mrf.mxu0
        %v8937 = vadd.f32 %v8872, %v8936
        %8938 = vmatmul.f32.gmra.mxu0 %v8448
        %v8939 = vpop.f32.mrf.mxu0
        %v8940 = vadd.f32 %v8875, %v8939
        %8941 = vmatmul.f32.gmra.mxu0 %v8451
        %v8942 = vpop.f32.mrf.mxu0
        %v8943 = vadd.f32 %v8878, %v8942
        %8944 = vdwg.mxu0
        %v8945 = vmax.f32 %v8703, 0.0
        %v8946 = vmax.f32 %v8898, 0.0
        %v8947 = vmax.f32 %v8706, 0.0
        %v8948 = vmax.f32 %v8901, 0.0
        %v8949 = vmax.f32 %v8709, 0.0
        %v8950 = vmax.f32 %v8904, 0.0
        %v8951 = vmax.f32 %v8712, 0.0
        %v8952 = vmax.f32 %v8907, 0.0
        %v8953 = vmax.f32 %v8715, 0.0
        %v8954 = vmax.f32 %v8910, 0.0
        %v8955 = vmax.f32 %v8718, 0.0
        %v8956 = vmax.f32 %v8913, 0.0
        %v8957 = vmax.f32 %v8721, 0.0
        %v8958 = vmax.f32 %v8916, 0.0
        %v8959 = vmax.f32 %v8724, 0.0
        %v8960 = vmax.f32 %v8919, 0.0
        %v8961 = vmax.f32 %v8727, 0.0
        %v8962 = vmax.f32 %v8922, 0.0
        %v8963 = vmax.f32 %v8730, 0.0
        %v8964 = vmax.f32 %v8925, 0.0
        %v8965 = vmax.f32 %v8733, 0.0
        %v8966 = vmax.f32 %v8928, 0.0
        %v8967 = vmax.f32 %v8736, 0.0
        %v8968 = vmax.f32 %v8931, 0.0
        %v8969 = vmax.f32 %v8739, 0.0
        %v8970 = vmax.f32 %v8934, 0.0
        %v8971 = vmax.f32 %v8742, 0.0
        %v8972 = vmax.f32 %v8937, 0.0
        %v8973 = vmax.f32 %v8745, 0.0
        %v8974 = vmax.f32 %v8940, 0.0
        %v8975 = vmax.f32 %v8748, 0.0
        %v8976 = vmax.f32 %v8943, 0.0
        %v8977 = vld [vmem:[#allocation16] sm:$0xff]
        %v8978 = vld [vmem:[#allocation16 + $0x8] sm:$0xff]
        %v8979 = vld [vmem:[#allocation16 + $0x10] sm:$0xff]
        %v8980 = vld [vmem:[#allocation16 + $0x18] sm:$0xff]
        %v8981 = vld [vmem:[#allocation16 + $0x20] sm:$0xff]
        %v8982 = vld [vmem:[#allocation16 + $0x28] sm:$0xff]
        %v8983 = vld [vmem:[#allocation16 + $0x30] sm:$0xff]
        %v8984 = vld [vmem:[#allocation16 + $0x38] sm:$0xff]
        %v8985 = vld [vmem:[#allocation16 + $0x40] sm:$0xff]
        %v8986 = vld [vmem:[#allocation16 + $0x48] sm:$0xff]
        %v8987 = vld [vmem:[#allocation16 + $0x50] sm:$0xff]
        %v8988 = vld [vmem:[#allocation16 + $0x58] sm:$0xff]
        %v8989 = vld [vmem:[#allocation16 + $0x60] sm:$0xff]
        %v8990 = vld [vmem:[#allocation16 + $0x68] sm:$0xff]
        %v8991 = vld [vmem:[#allocation16 + $0x70] sm:$0xff]
        %v8992 = vld [vmem:[#allocation16 + $0x78] sm:$0xff]
        %v8993 = vld [vmem:[#allocation16 + $0x80] sm:$0xff]
        %v8994 = vld [vmem:[#allocation16 + $0x88] sm:$0xff]
        %v8995 = vld [vmem:[#allocation16 + $0x90] sm:$0xff]
        %v8996 = vld [vmem:[#allocation16 + $0x98] sm:$0xff]
        %v8997 = vld [vmem:[#allocation16 + $0xa0] sm:$0xff]
        %v8998 = vld [vmem:[#allocation16 + $0xa8] sm:$0xff]
        %v8999 = vld [vmem:[#allocation16 + $0xb0] sm:$0xff]
        %v9000 = vld [vmem:[#allocation16 + $0xb8] sm:$0xff]
        %v9001 = vld [vmem:[#allocation16 + $0xc0] sm:$0xff]
        %v9002 = vld [vmem:[#allocation16 + $0xc8] sm:$0xff]
        %v9003 = vld [vmem:[#allocation16 + $0xd0] sm:$0xff]
        %v9004 = vld [vmem:[#allocation16 + $0xd8] sm:$0xff]
        %v9005 = vld [vmem:[#allocation16 + $0xe0] sm:$0xff]
        %v9006 = vld [vmem:[#allocation16 + $0xe8] sm:$0xff]
        %v9007 = vld [vmem:[#allocation16 + $0xf0] sm:$0xff]
        %v9008 = vld [vmem:[#allocation16 + $0xf8] sm:$0xff]
        %v9009 = vld [vmem:[#allocation18 + $0x29] ss:$0 sm:$0xff]
        %9010 = vmatpush.msra.mxu0 %v8992
        %9011 = vmatpush.msra.mxu0 %v8991
        %9012 = vmatpush.msra.mxu0 %v8990
        %9013 = vmatpush.msra.mxu0 %v8989
        %9014 = vmatpush.msra.mxu0 %v8988
        %9015 = vmatpush.msra.mxu0 %v8987
        %9016 = vmatpush.msra.mxu0 %v8986
        %9017 = vmatpush.msra.mxu0 %v8985
        %9018 = vmatpush.msra.mxu0 %v8984
        %9019 = vmatpush.msra.mxu0 %v8983
        %9020 = vmatpush.msra.mxu0 %v8982
        %9021 = vmatpush.msra.mxu0 %v8981
        %9022 = vmatpush.msra.mxu0 %v8980
        %9023 = vmatpush.msra.mxu0 %v8979
        %9024 = vmatpush.msra.mxu0 %v8978
        %9025 = vmatpush.msra.mxu0 %v8977
        %9026 = vmatmul.f32.gmra.mxu0 %v8945
        %v9027 = vpop.f32.mrf.mxu0
        %v9028 = vadd.f32 %v9009, %v9027
        %9029 = vmatmul.f32.gmra.mxu0 %v8947
        %v9030 = vpop.f32.mrf.mxu0
        %v9031 = vadd.f32 %v9009, %v9030
        %9032 = vmatmul.f32.gmra.mxu0 %v8949
        %v9033 = vpop.f32.mrf.mxu0
        %v9034 = vadd.f32 %v9009, %v9033
        %9035 = vmatmul.f32.gmra.mxu0 %v8951
        %v9036 = vpop.f32.mrf.mxu0
        %v9037 = vadd.f32 %v9009, %v9036
        %9038 = vmatmul.f32.gmra.mxu0 %v8953
        %v9039 = vpop.f32.mrf.mxu0
        %v9040 = vadd.f32 %v9009, %v9039
        %9041 = vmatmul.f32.gmra.mxu0 %v8955
        %v9042 = vpop.f32.mrf.mxu0
        %v9043 = vadd.f32 %v9009, %v9042
        %9044 = vmatmul.f32.gmra.mxu0 %v8957
        %v9045 = vpop.f32.mrf.mxu0
        %v9046 = vadd.f32 %v9009, %v9045
        %9047 = vmatmul.f32.gmra.mxu0 %v8959
        %v9048 = vpop.f32.mrf.mxu0
        %v9049 = vadd.f32 %v9009, %v9048
        %9050 = vmatmul.f32.gmra.mxu0 %v8961
        %v9051 = vpop.f32.mrf.mxu0
        %v9052 = vadd.f32 %v9009, %v9051
        %9053 = vmatmul.f32.gmra.mxu0 %v8963
        %v9054 = vpop.f32.mrf.mxu0
        %v9055 = vadd.f32 %v9009, %v9054
        %9056 = vmatmul.f32.gmra.mxu0 %v8965
        %v9057 = vpop.f32.mrf.mxu0
        %v9058 = vadd.f32 %v9009, %v9057
        %9059 = vmatmul.f32.gmra.mxu0 %v8967
        %v9060 = vpop.f32.mrf.mxu0
        %v9061 = vadd.f32 %v9009, %v9060
        %9062 = vmatmul.f32.gmra.mxu0 %v8969
        %v9063 = vpop.f32.mrf.mxu0
        %v9064 = vadd.f32 %v9009, %v9063
        %9065 = vmatmul.f32.gmra.mxu0 %v8971
        %v9066 = vpop.f32.mrf.mxu0
        %v9067 = vadd.f32 %v9009, %v9066
        %9068 = vmatmul.f32.gmra.mxu0 %v8973
        %v9069 = vpop.f32.mrf.mxu0
        %v9070 = vadd.f32 %v9009, %v9069
        %9071 = vmatmul.f32.gmra.mxu0 %v8975
        %v9072 = vpop.f32.mrf.mxu0
        %v9073 = vadd.f32 %v9009, %v9072
        %9074 = vdwg.mxu0
        %9075 = vmatpush.msra.mxu0 %v9008
        %9076 = vmatpush.msra.mxu0 %v9007
        %9077 = vmatpush.msra.mxu0 %v9006
        %9078 = vmatpush.msra.mxu0 %v9005
        %9079 = vmatpush.msra.mxu0 %v9004
        %9080 = vmatpush.msra.mxu0 %v9003
        %9081 = vmatpush.msra.mxu0 %v9002
        %9082 = vmatpush.msra.mxu0 %v9001
        %9083 = vmatpush.msra.mxu0 %v9000
        %9084 = vmatpush.msra.mxu0 %v8999
        %9085 = vmatpush.msra.mxu0 %v8998
        %9086 = vmatpush.msra.mxu0 %v8997
        %9087 = vmatpush.msra.mxu0 %v8996
        %9088 = vmatpush.msra.mxu0 %v8995
        %9089 = vmatpush.msra.mxu0 %v8994
        %9090 = vmatpush.msra.mxu0 %v8993
        %9091 = vmatmul.f32.gmra.mxu0 %v8946
        %v9092 = vpop.f32.mrf.mxu0
        %v9093 = vadd.f32 %v9028, %v9092
        %9094 = vmatmul.f32.gmra.mxu0 %v8948
        %v9095 = vpop.f32.mrf.mxu0
        %v9096 = vadd.f32 %v9031, %v9095
        %9097 = vmatmul.f32.gmra.mxu0 %v8950
        %v9098 = vpop.f32.mrf.mxu0
        %v9099 = vadd.f32 %v9034, %v9098
        %9100 = vmatmul.f32.gmra.mxu0 %v8952
        %v9101 = vpop.f32.mrf.mxu0
        %v9102 = vadd.f32 %v9037, %v9101
        %9103 = vmatmul.f32.gmra.mxu0 %v8954
        %v9104 = vpop.f32.mrf.mxu0
        %v9105 = vadd.f32 %v9040, %v9104
        %9106 = vmatmul.f32.gmra.mxu0 %v8956
        %v9107 = vpop.f32.mrf.mxu0
        %v9108 = vadd.f32 %v9043, %v9107
        %9109 = vmatmul.f32.gmra.mxu0 %v8958
        %v9110 = vpop.f32.mrf.mxu0
        %v9111 = vadd.f32 %v9046, %v9110
        %9112 = vmatmul.f32.gmra.mxu0 %v8960
        %v9113 = vpop.f32.mrf.mxu0
        %v9114 = vadd.f32 %v9049, %v9113
        %9115 = vmatmul.f32.gmra.mxu0 %v8962
        %v9116 = vpop.f32.mrf.mxu0
        %v9117 = vadd.f32 %v9052, %v9116
        %9118 = vmatmul.f32.gmra.mxu0 %v8964
        %v9119 = vpop.f32.mrf.mxu0
        %v9120 = vadd.f32 %v9055, %v9119
        %9121 = vmatmul.f32.gmra.mxu0 %v8966
        %v9122 = vpop.f32.mrf.mxu0
        %v9123 = vadd.f32 %v9058, %v9122
        %9124 = vmatmul.f32.gmra.mxu0 %v8968
        %v9125 = vpop.f32.mrf.mxu0
        %v9126 = vadd.f32 %v9061, %v9125
        %9127 = vmatmul.f32.gmra.mxu0 %v8970
        %v9128 = vpop.f32.mrf.mxu0
        %v9129 = vadd.f32 %v9064, %v9128
        %9130 = vmatmul.f32.gmra.mxu0 %v8972
        %v9131 = vpop.f32.mrf.mxu0
        %v9132 = vadd.f32 %v9067, %v9131
        %9133 = vmatmul.f32.gmra.mxu0 %v8974
        %v9134 = vpop.f32.mrf.mxu0
        %v9135 = vadd.f32 %v9070, %v9134
        %9136 = vmatmul.f32.gmra.mxu0 %v8976
        %v9137 = vpop.f32.mrf.mxu0
        %v9138 = vadd.f32 %v9073, %v9137
        %9139 = vdwg.mxu0
        %v9140 = vmax.f32 %v9093, 0.0
        %v9141 = vmax.f32 %v9096, 0.0
        %v9142 = vmax.f32 %v9099, 0.0
        %v9143 = vmax.f32 %v9102, 0.0
        %v9144 = vmax.f32 %v9105, 0.0
        %v9145 = vmax.f32 %v9108, 0.0
        %v9146 = vmax.f32 %v9111, 0.0
        %v9147 = vmax.f32 %v9114, 0.0
        %v9148 = vmax.f32 %v9117, 0.0
        %v9149 = vmax.f32 %v9120, 0.0
        %v9150 = vmax.f32 %v9123, 0.0
        %v9151 = vmax.f32 %v9126, 0.0
        %v9152 = vmax.f32 %v9129, 0.0
        %v9153 = vmax.f32 %v9132, 0.0
        %v9154 = vmax.f32 %v9135, 0.0
        %v9155 = vmax.f32 %v9138, 0.0
        %v9156 = vld [vmem:[#allocation18 + $0x2a] ss:$0 sm:$0xff]
        %v9157 = vld [vmem:[#allocation18 + $0x2b] ss:$0 sm:$0xff]
        %v9158 = vmul.f32 %v9140, %v9156
        %v9159 = vmul.f32 %v9141, %v9156
        %v9160 = vmul.f32 %v9142, %v9156
        %v9161 = vmul.f32 %v9143, %v9156
        %v9162 = vmul.f32 %v9144, %v9156
        %v9163 = vmul.f32 %v9145, %v9156
        %v9164 = vmul.f32 %v9146, %v9156
        %v9165 = vmul.f32 %v9147, %v9156
        %v9166 = vmul.f32 %v9148, %v9156
        %v9167 = vmul.f32 %v9149, %v9156
        %v9168 = vmul.f32 %v9150, %v9156
        %v9169 = vmul.f32 %v9151, %v9156
        %v9170 = vmul.f32 %v9152, %v9156
        %v9171 = vmul.f32 %v9153, %v9156
        %v9172 = vmul.f32 %v9154, %v9156
        %v9173 = vmul.f32 %v9155, %v9156
        %9174 = vadd.xlane.f32.xlu0 %v9158
        %v9175 = vpop.xlane.xlu0 %9174
        %9176 = vadd.xlane.f32.xlu0 %v9159
        %v9177 = vpop.xlane.xlu0 %9176
        %9178 = vadd.xlane.f32.xlu0 %v9160
        %v9179 = vpop.xlane.xlu0 %9178
        %9180 = vadd.xlane.f32.xlu0 %v9161
        %v9181 = vpop.xlane.xlu0 %9180
        %9182 = vadd.xlane.f32.xlu0 %v9162
        %v9183 = vpop.xlane.xlu0 %9182
        %9184 = vadd.xlane.f32.xlu0 %v9163
        %v9185 = vpop.xlane.xlu0 %9184
        %9186 = vadd.xlane.f32.xlu0 %v9164
        %v9187 = vpop.xlane.xlu0 %9186
        %9188 = vadd.xlane.f32.xlu0 %v9165
        %v9189 = vpop.xlane.xlu0 %9188
        %9190 = vadd.xlane.f32.xlu0 %v9166
        %v9191 = vpop.xlane.xlu0 %9190
        %9192 = vadd.xlane.f32.xlu0 %v9167
        %v9193 = vpop.xlane.xlu0 %9192
        %9194 = vadd.xlane.f32.xlu0 %v9168
        %v9195 = vpop.xlane.xlu0 %9194
        %9196 = vadd.xlane.f32.xlu0 %v9169
        %v9197 = vpop.xlane.xlu0 %9196
        %9198 = vadd.xlane.f32.xlu0 %v9170
        %v9199 = vpop.xlane.xlu0 %9198
        %9200 = vadd.xlane.f32.xlu0 %v9171
        %v9201 = vpop.xlane.xlu0 %9200
        %9202 = vadd.xlane.f32.xlu0 %v9172
        %v9203 = vpop.xlane.xlu0 %9202
        %9204 = vadd.xlane.f32.xlu0 %v9173
        %v9205 = vpop.xlane.xlu0 %9204
        %v9206 = vadd.f32 %v9175, %v9157
        %v9207 = vadd.f32 %v9177, %v9157
        %v9208 = vadd.f32 %v9179, %v9157
        %v9209 = vadd.f32 %v9181, %v9157
        %v9210 = vadd.f32 %v9183, %v9157
        %v9211 = vadd.f32 %v9185, %v9157
        %v9212 = vadd.f32 %v9187, %v9157
        %v9213 = vadd.f32 %v9189, %v9157
        %v9214 = vadd.f32 %v9191, %v9157
        %v9215 = vadd.f32 %v9193, %v9157
        %v9216 = vadd.f32 %v9195, %v9157
        %v9217 = vadd.f32 %v9197, %v9157
        %v9218 = vadd.f32 %v9199, %v9157
        %v9219 = vadd.f32 %v9201, %v9157
        %v9220 = vadd.f32 %v9203, %v9157
        %v9221 = vadd.f32 %v9205, %v9157
        %vm9222 = vcmask 7168
        %9223 = vst.msk [vmem:[%s597] sm:$0xff] %vm9222, %v9206
        %9224 = vst.msk [vmem:[%s597 + $0x8] sm:$0xff] %vm9222, %v9207
        %9225 = vst.msk [vmem:[%s597 + $0x10] sm:$0xff] %vm9222, %v9208
        %9226 = vst.msk [vmem:[%s597 + $0x18] sm:$0xff] %vm9222, %v9209
        %9227 = vst.msk [vmem:[%s597 + $0x20] sm:$0xff] %vm9222, %v9210
        %9228 = vst.msk [vmem:[%s597 + $0x28] sm:$0xff] %vm9222, %v9211
        %9229 = vst.msk [vmem:[%s597 + $0x30] sm:$0xff] %vm9222, %v9212
        %9230 = vst.msk [vmem:[%s597 + $0x38] sm:$0xff] %vm9222, %v9213
        %9231 = vst.msk [vmem:[%s597 + $0x40] sm:$0xff] %vm9222, %v9214
        %9232 = vst.msk [vmem:[%s597 + $0x48] sm:$0xff] %vm9222, %v9215
        %9233 = vst.msk [vmem:[%s597 + $0x50] sm:$0xff] %vm9222, %v9216
        %9234 = vst.msk [vmem:[%s597 + $0x58] sm:$0xff] %vm9222, %v9217
        %9235 = vst.msk [vmem:[%s597 + $0x60] sm:$0xff] %vm9222, %v9218
        %9236 = vst.msk [vmem:[%s597 + $0x68] sm:$0xff] %vm9222, %v9219
        %9237 = vst.msk [vmem:[%s597 + $0x70] sm:$0xff] %vm9222, %v9220
        %9238 = vst.msk [vmem:[%s597 + $0x78] sm:$0xff] %vm9222, %v9221
        %s9239 = smul.u32 16, %s29
        %p9240 = scmp.lt.s32.totalorder %s9239, 47
        %s9241 = scalar_select %p9240, %s9239, 47
        %s9242 = smul.addr %s9241, 8
        %s9243 = scalar_lea.vmem %s12, %s9242
        // Predicated region
        $region113: #{tpu_custom_call.1} parent=67 // pred_check
          %p9244 = pneg %p304
        $region114: #{tpu_custom_call.1} parent=67 // pred_check_branch
          %9246 = sbr.rel (%p9244) target = $region116
        $region115: #{tpu_custom_call.1} parent=67 // pred_region
          %s9247 = smul.u32 16, %s29
        $region116: #{tpu_custom_call.1} parent=67 // pred_fallthru
          _
      $region68: #{tpu_custom_call.1} parent=5 // pred_fallthru
        _
      %p9248 = scmp.le.s32.totalorder 2, %s24
      // Predicated region
      $region117: #{tpu_custom_call.1} parent=5 // pred_check
        %p9249 = pneg %p9248
      $region118: #{tpu_custom_call.1} parent=5 // pred_check_branch
        %9251 = sbr.rel (%p9249) target = $region120
      $region119: #{tpu_custom_call.1} parent=5 // pred_region
        %s9252 = ssub.s32 %s24, 2
        // Predicated region
        $region121: #{tpu_custom_call.1} parent=119 // pred_check
          %p9253 = pneg %p310
        $region122: #{tpu_custom_call.1} parent=119 // pred_check_branch
          %9255 = sbr.rel (%p9253) target = $region124
        $region123: #{tpu_custom_call.1} parent=119 // pred_region
          %s9256 = smul.u32 16, %s30
          %p9257 = scmp.lt.s32.totalorder %s9256, 47
          %s9258 = scalar_select %p9257, %s9256, 47
          %s9259 = smul.addr %s9258, 8
          %s9260 = scalar_lea.vmem %s12, %s9259
        $region124: #{tpu_custom_call.1} parent=119 // pred_fallthru
          _
      $region120: #{tpu_custom_call.1} parent=5 // pred_fallthru
        _
    $region6: #{tpu_custom_call.1} parent=1 // loop_footer
      %s28 = sadd.s32 1, %s24
    $region7: #{tpu_custom_call.1} parent=1 // loop_footer_branch
      %23 = sbr.rel target = $region3
    $region8: #{tpu_custom_call.1} parent=1 // loop_exit
      _
    %9261 = vsyncpa [#allocation3], 1
    %s9262 = scalar_lea.sflag [#allocation3], 1
    %9263 = vsyncpa %s9262, 1
    %9264 = vsyncpa [#allocation5], 1
    %9265 = vsyncpa [#allocation8], 1
    %9266 = vsyncpa [#allocation11], 1
    %9267 = vsyncpa [#allocation14], 1
    %9268 = vsyncpa [#allocation17], 1

</llo_original>
